<compile_context>
chip_gen: v7x
topology: tpu7x:2x2x1
jax: 0.10.0
libtpu: 0.0.40
codegen_flags: <defaults>
</compile_context>

<pallas_src>
import functools
import jax
import jax.numpy as jnp
from jax import lax
from jax.experimental import pallas as pl
from jax.experimental.pallas import tpu as pltpu

# ------------------------- configuration (small but structurally faithful) ---------------
INPUT_NC = 3
OUTPUT_NC = 3
NGF = 8                    # LocalEnhancer ngf
N_DOWNSAMPLE_GLOBAL = 2
N_BLOCKS_GLOBAL = 2
N_LOCAL_ENHANCERS = 1
N_BLOCKS_LOCAL = 1
BN_EPS = 1e-5

TM_MAX = 256               # GEMM row tile (fits v5e/v6e/v7x VMEM budgets with margin)
LANE_TARGET = 512          # fold elementwise slabs up to this many lanes (>=128 dense)
VMEM_LIMIT = 32 * 1024 * 1024


def _round_up(x, m):
    return (x + m - 1) // m * m


def _pad_rows(a, mp):
    m = a.shape[0]
    if mp == m:
        return a
    return jnp.pad(a, ((0, mp - m), (0, 0)))


# ------------------------------------ Pallas kernels ------------------------------------

def _gemm_bias_stats_kernel(a_ref, b_ref, bias_ref, o_ref, sum_ref, sq_ref,
                            *, tm, m_valid, tanh):
    # A-tile [tm, K] (bf16) @ B [K, N] (bf16) -> f32, + bias, optional tanh.
    # Also emits masked per-channel sum and sum-of-squares partials for BatchNorm.
    i = pl.program_id(0)
    acc = jnp.dot(a_ref[...], b_ref[...], preferred_element_type=jnp.float32)
    y = acc + bias_ref[...]
    if tanh:
        y = jnp.tanh(y)
    o_ref[...] = y

    row = i * tm + lax.broadcasted_iota(jnp.int32, (tm, 1), 0)
    mask = (row < m_valid).astype(jnp.float32)           # exclude zero-padded rows
    ym = y * mask
    sum_ref[...] = jnp.sum(ym, axis=0, keepdims=True)[None]
    sq_ref[...] = jnp.sum(ym * y, axis=0, keepdims=True)[None]


def _scale_act_kernel(x_ref, sc_ref, sh_ref, o_ref, *, relu):
    y = x_ref[...] * sc_ref[...] + sh_ref[...]
    if relu:
        y = jnp.maximum(y, 0.0)
    o_ref[...] = y


def _scale_act_res_kernel(x_ref, sc_ref, sh_ref, r_ref, o_ref, *, relu):
    y = x_ref[...] * sc_ref[...] + sh_ref[...]
    if relu:
        y = jnp.maximum(y, 0.0)
    o_ref[...] = y + r_ref[...]


def _avgpool_kernel(t_ref, r_ref, o_ref):
    # t: [9, M, C] window taps, r: [M, 1] precomputed 1/valid_count
    o_ref[...] = jnp.sum(t_ref[...], axis=0) * r_ref[...]


# ------------------------------------ kernel wrappers ------------------------------------

def _gemm_bias_stats(a, b, bias, *, tanh=False):
    """Fused GEMM: out = A @ B + bias (optional tanh); also returns per-channel
    sum and sum-of-squares of the (valid rows of the) output."""
    m, k = a.shape
    n = b.shape[1]
    if m <= TM_MAX:
        mp = _round_up(m, 8)
    else:
        mp = _round_up(m, TM_MAX)
    tm = mp if mp <= TM_MAX else TM_MAX
    nt = mp // tm

    a_p = _pad_rows(a, mp).astype(jnp.bfloat16)
    b_c = b.astype(jnp.bfloat16)
    bias2 = bias.reshape(1, n).astype(jnp.float32)

    out, sums, sqs = pl.pallas_call(
        functools.partial(_gemm_bias_stats_kernel, tm=tm, m_valid=m, tanh=tanh),
        grid=(nt,),
        in_specs=[
            pl.BlockSpec((tm, k), lambda i: (i, 0)),
            pl.BlockSpec((k, n), lambda i: (0, 0)),
            pl.BlockSpec((1, n), lambda i: (0, 0)),
        ],
        out_specs=(
            pl.BlockSpec((tm, n), lambda i: (i, 0)),
            pl.BlockSpec((1, 1, n), lambda i: (i, 0, 0)),
            pl.BlockSpec((1, 1, n), lambda i: (i, 0, 0)),
        ),
        out_shape=(
            jax.ShapeDtypeStruct((mp, n), jnp.float32),
            jax.ShapeDtypeStruct((nt, 1, n), jnp.float32),
            jax.ShapeDtypeStruct((nt, 1, n), jnp.float32),
        ),
        compiler_params=pltpu.CompilerParams(
            dimension_semantics=("parallel",), vmem_limit_bytes=VMEM_LIMIT),
    )(a_p, b_c, bias2)

    return out, sums.reshape(nt, n).sum(axis=0), sqs.reshape(nt, n).sum(axis=0), mp


def _fold_factor(mp, c):
    # fold k consecutive rows into the lane axis so stores are lane-dense
    k = 1
    while (k * 2 * c <= LANE_TARGET) and (mp % (k * 2) == 0):
        k *= 2
    return k


def _bn_act_slab(x_slab, scale, shift, *, relu, residual=None):
    """y = act(scale*x + shift) [+ residual]   on a [Mp, C] slab (lane-dense folded)."""
    mp, c = x_slab.shape
    k = _fold_factor(mp, c)
    rows, lanes = mp // k, k * c
    x2 = x_slab.reshape(rows, lanes)
    sc2 = jnp.tile(scale, k).reshape(1, lanes)
    sh2 = jnp.tile(shift, k).reshape(1, lanes)

    tr = rows
    for cand in (512, 256, 128, 64, 32, 16, 8):
        if rows % cand == 0:
            tr = cand
            break
    nt = rows // tr

    if residual is None:
        kernel = functools.partial(_scale_act_kernel, relu=relu)
        arrays = (x2, sc2, sh2)
        in_specs = [pl.BlockSpec((tr, lanes), lambda i: (i, 0)),
                    pl.BlockSpec((1, lanes), lambda i: (0, 0)),
                    pl.BlockSpec((1, lanes), lambda i: (0, 0))]
    else:
        r2 = residual.reshape(rows, lanes)
        kernel = functools.partial(_scale_act_res_kernel, relu=relu)
        arrays = (x2, sc2, sh2, r2)
        in_specs = [pl.BlockSpec((tr, lanes), lambda i: (i, 0)),
                    pl.BlockSpec((1, lanes), lambda i: (0, 0)),
                    pl.BlockSpec((1, lanes), lambda i: (0, 0)),
                    pl.BlockSpec((tr, lanes), lambda i: (i, 0))]

    y2 = pl.pallas_call(
        kernel,
        grid=(nt,),
        in_specs=in_specs,
        out_specs=pl.BlockSpec((tr, lanes), lambda i: (i, 0)),
        out_shape=jax.ShapeDtypeStruct((rows, lanes), jnp.float32),
        compiler_params=pltpu.CompilerParams(
            dimension_semantics=("parallel",), vmem_limit_bytes=VMEM_LIMIT),
    )(*arrays)
    return y2.reshape(mp, c)


def _bn_scale_shift(sums, sqs, count, gamma, beta):
    # tiny per-channel math (glue): training-mode batch statistics, biased variance
    mean = sums / count
    var = sqs / count - mean * mean
    inv = lax.rsqrt(var + BN_EPS)
    scale = gamma * inv
    shift = beta - mean * scale
    return scale, shift


# ------------------------------------ layers ------------------------------------

def _im2col(x, kh, kw, stride):
    # TODO(synk): tap gather still materializes kh*kw copies in HBM (JAX glue).
    n, hp, wp, c = x.shape
    ho = (hp - kh) // stride + 1
    wo = (wp - kw) // stride + 1
    cols = []
    for i in range(kh):
        for j in range(kw):
            patch = lax.slice(x,
                              (0, i, j, 0),
                              (n, i + (ho - 1) * stride + 1, j + (wo - 1) * stride + 1, c),
                              (1, stride, stride, 1))
            cols.append(patch)
    col = jnp.stack(cols, axis=3)
    return col.reshape(n * ho * wo, kh * kw * c), (n, ho, wo)


def conv_bn_act(x, w, b, gamma, beta, *, stride=1, pad=0, pad_mode="zero",
                relu=True, residual=None):
    """Conv2d + BatchNorm(training stats) [+ ReLU] [+ residual add after activation]."""
    if pad > 0:
        mode = "reflect" if pad_mode == "reflect" else "constant"
        x = jnp.pad(x, ((0, 0), (pad, pad), (pad, pad), (0, 0)), mode=mode)
    kh, kw, cin, cout = w.shape
    col, (n, ho, wo) = _im2col(x, kh, kw, stride)
    m = col.shape[0]
    out, sums, sqs, mp = _gemm_bias_stats(col, w.reshape(kh * kw * cin, cout), b)
    scale, shift = _bn_scale_shift(sums, sqs, float(m), gamma, beta)
    res_slab = None
    if residual is not None:
        res_slab = _pad_rows(residual.reshape(m, cout), mp)
    y = _bn_act_slab(out, scale, shift, relu=relu, residual=res_slab)
    return y[:m].reshape(n, ho, wo, cout)


def conv_tanh(x, w, b, *, pad=3):
    """Final ReflectionPad + Conv7 + Tanh (tanh fused into the GEMM epilogue)."""
    x = jnp.pad(x, ((0, 0), (pad, pad), (pad, pad), (0, 0)), mode="reflect")
    kh, kw, cin, cout = w.shape
    col, (n, ho, wo) = _im2col(x, kh, kw, 1)
    m = col.shape[0]
    out, _, _, _ = _gemm_bias_stats(col, w.reshape(kh * kw * cin, cout), b, tanh=True)
    return out[:m].reshape(n, ho, wo, cout)


def conv_transpose_bn_relu(x, w_t, b, gamma, beta):
    """ConvTranspose2d(k=3, s=2, p=1, output_padding=1) + BN + ReLU via the sub-pixel
    4-phase block GEMM (no zero-dilated tensor, no multiply-by-zero MACs)."""
    n, h, w, cin = x.shape
    cout = w_t.shape[1]
    xp = jnp.pad(x, ((0, 0), (0, 1), (0, 1), (0, 0)))
    taps = (xp[:, :h, :w, :], xp[:, :h, 1:w + 1, :],
            xp[:, 1:h + 1, :w, :], xp[:, 1:h + 1, 1:w + 1, :])
    a = jnp.concatenate([t.reshape(n * h * w, cin) for t in taps], axis=1)   # [M, 4*Cin]

    def wk(ky, kx):
        return w_t[:, :, ky, kx]                       # [Cin, Cout]

    z = jnp.zeros((cin, cout), jnp.float32)
    # columns = output phases (0,0),(0,1),(1,0),(1,1); rows = taps (0,0),(0,+1),(+1,0),(+1,+1)
    b_blk = jnp.concatenate([
        jnp.concatenate([wk(1, 1), wk(1, 2), wk(2, 1), wk(2, 2)], axis=1),
        jnp.concatenate([z,        wk(1, 0), z,        wk(2, 0)], axis=1),
        jnp.concatenate([z,        z,        wk(0, 1), wk(0, 2)], axis=1),
        jnp.concatenate([z,        z,        z,        wk(0, 0)], axis=1),
    ], axis=0)                                         # [4*Cin, 4*Cout]
    bias_blk = jnp.tile(b, 4)

    m = n * h * w
    out, sums, sqs, _ = _gemm_bias_stats(a, b_blk, bias_blk)     # out: [Mp, 4*Cout]
    ch_sums = sums.reshape(4, cout).sum(axis=0)
    ch_sqs = sqs.reshape(4, cout).sum(axis=0)
    scale, shift = _bn_scale_shift(ch_sums, ch_sqs, float(4 * m), gamma, beta)
    y = _bn_act_slab(out, jnp.tile(scale, 4), jnp.tile(shift, 4), relu=True)
    y = y[:m].reshape(n, h, w, 2, 2, cout)
    y = y.transpose(0, 1, 3, 2, 4, 5).reshape(n, 2 * h, 2 * w, cout)   # pixel shuffle (glue)
    return y


def avg_pool_3x3_s2_p1(x):
    # AvgPool2d(3, stride=2, padding=[1,1], count_include_pad=False)
    n, h, w, c = x.shape
    ho = (h + 2 - 3) // 2 + 1
    wo = (w + 2 - 3) // 2 + 1
    xp = jnp.pad(x, ((0, 0), (1, 1), (1, 1), (0, 0)))
    taps = []
    for i in range(3):
        for j in range(3):
            taps.append(lax.slice(xp, (0, i, j, 0),
                                  (n, i + (ho - 1) * 2 + 1, j + (wo - 1) * 2 + 1, c),
                                  (1, 2, 2, 1)).reshape(n * ho * wo, c))
    ts = jnp.stack(taps, axis=0)                       # [9, M, C]
    # divisor depends only on output position: precompute reciprocal counts
    idx_h = jnp.arange(ho) * 2 - 1
    idx_w = jnp.arange(wo) * 2 - 1
    cnt_h = jnp.clip(idx_h + 3, 0, h) - jnp.clip(idx_h, 0, h)
    cnt_w = jnp.clip(idx_w + 3, 0, w) - jnp.clip(idx_w, 0, w)
    recip = 1.0 / (cnt_h[:, None] * cnt_w[None, :]).astype(jnp.float32)
    recip = jnp.broadcast_to(recip[None, :, :, None], (n, ho, wo, 1)).reshape(n * ho * wo, 1)
    out = pl.pallas_call(
        _avgpool_kernel,
        out_shape=jax.ShapeDtypeStruct((n * ho * wo, c), jnp.float32),
        in_specs=[pl.BlockSpec(memory_space=pltpu.MemorySpace.VMEM),
                  pl.BlockSpec(memory_space=pltpu.MemorySpace.VMEM)],
        out_specs=pl.BlockSpec(memory_space=pltpu.MemorySpace.VMEM),
    )(ts, recip)
    return out.reshape(n, ho, wo, c)


def resnet_block(x, p):
    # ReflPad+Conv3+BN+ReLU, ReflPad+Conv3+BN, residual add fused into the 2nd BN kernel.
    y = conv_bn_act(x, p["w1"], p["b1"], p["g1"], p["be1"],
                    stride=1, pad=1, pad_mode="reflect", relu=True)
    y = conv_bn_act(y, p["w2"], p["b2"], p["g2"], p["be2"],
                    stride=1, pad=1, pad_mode="reflect", relu=False, residual=x)
    return y


# ------------------------------------ parameter init ------------------------------------

class _KeyGen:
    def __init__(self, seed):
        self.key = jax.random.PRNGKey(seed)

    def next(self):
        self.key, sub = jax.random.split(self.key)
        return sub


def _conv_p(kg, kh, kw, cin, cout):
    return {"w": jax.random.normal(kg.next(), (kh, kw, cin, cout), jnp.float32) * 0.1,
            "b": jnp.zeros((cout,), jnp.float32)}


def _convT_p(kg, cin, cout, k=3):
    return {"w": jax.random.normal(kg.next(), (cin, cout, k, k), jnp.float32) * 0.1,
            "b": jnp.zeros((cout,), jnp.float32)}


def _bn_p(c):
    return {"g": jnp.ones((c,), jnp.float32), "be": jnp.zeros((c,), jnp.float32)}


def _res_p(kg, dim):
    return {"w1": jax.random.normal(kg.next(), (3, 3, dim, dim), jnp.float32) * 0.1,
            "b1": jnp.zeros((dim,), jnp.float32),
            "g1": jnp.ones((dim,), jnp.float32), "be1": jnp.zeros((dim,), jnp.float32),
            "w2": jax.random.normal(kg.next(), (3, 3, dim, dim), jnp.float32) * 0.1,
            "b2": jnp.zeros((dim,), jnp.float32),
            "g2": jnp.ones((dim,), jnp.float32), "be2": jnp.zeros((dim,), jnp.float32)}


def init_params(seed=0):
    kg = _KeyGen(seed)
    params = {}

    # GlobalGenerator trunk (last ReflectionPad/Conv7/Tanh removed by LocalEnhancer)
    ngf_g = NGF * 2 ** N_LOCAL_ENHANCERS
    g = {"c7": _conv_p(kg, 7, 7, INPUT_NC, ngf_g), "c7_bn": _bn_p(ngf_g),
         "down": [], "res": [], "up": []}
    for i in range(N_DOWNSAMPLE_GLOBAL):
        mult = 2 ** i
        cin, cout = ngf_g * mult, ngf_g * mult * 2
        g["down"].append({**_conv_p(kg, 3, 3, cin, cout), **_bn_p(cout)})
    mult = 2 ** N_DOWNSAMPLE_GLOBAL
    for _ in range(N_BLOCKS_GLOBAL):
        g["res"].append(_res_p(kg, ngf_g * mult))
    for i in range(N_DOWNSAMPLE_GLOBAL):
        mult = 2 ** (N_DOWNSAMPLE_GLOBAL - i)
        cin, cout = ngf_g * mult, ngf_g * mult // 2
        g["up"].append({**_convT_p(kg, cin, cout), **_bn_p(cout)})
    params["global"] = g

    # Local enhancers
    params["local"] = []
    for n in range(1, N_LOCAL_ENHANCERS + 1):
        ngf_l = NGF * 2 ** (N_LOCAL_ENHANCERS - n)
        lp = {"d_c7": _conv_p(kg, 7, 7, INPUT_NC, ngf_l), "d_c7_bn": _bn_p(ngf_l),
              "d_c3": _conv_p(kg, 3, 3, ngf_l, ngf_l * 2), "d_c3_bn": _bn_p(ngf_l * 2),
              "res": [_res_p(kg, ngf_l * 2) for _ in range(N_BLOCKS_LOCAL)],
              "up": {**_convT_p(kg, ngf_l * 2, ngf_l), **_bn_p(ngf_l)}}
        if n == N_LOCAL_ENHANCERS:
            lp["final"] = _conv_p(kg, 7, 7, NGF, OUTPUT_NC)
        params["local"].append(lp)
    return params


# ------------------------------------ forward ------------------------------------

def local_enhancer_forward(params, x_nchw):
    x = jnp.transpose(x_nchw, (0, 2, 3, 1)).astype(jnp.float32)   # -> NHWC

    # downsample pyramid
    inputs = [x]
    for _ in range(N_LOCAL_ENHANCERS):
        inputs.append(avg_pool_3x3_s2_p1(inputs[-1]))

    # global trunk on coarsest input
    g = params["global"]
    y = conv_bn_act(inputs[-1], g["c7"]["w"], g["c7"]["b"],
                    g["c7_bn"]["g"], g["c7_bn"]["be"],
                    stride=1, pad=3, pad_mode="reflect", relu=True)
    for d in g["down"]:
        y = conv_bn_act(y, d["w"], d["b"], d["g"], d["be"],
                        stride=2, pad=1, pad_mode="zero", relu=True)
    for rb in g["res"]:
        y = resnet_block(y, rb)
    for u in g["up"]:
        y = conv_transpose_bn_relu(y, u["w"], u["b"], u["g"], u["be"])
    output_prev = y

    # local enhancer branches
    for n in range(1, N_LOCAL_ENHANCERS + 1):
        lp = params["local"][n - 1]
        inp = inputs[N_LOCAL_ENHANCERS - n]
        d = conv_bn_act(inp, lp["d_c7"]["w"], lp["d_c7"]["b"],
                        lp["d_c7_bn"]["g"], lp["d_c7_bn"]["be"],
                        stride=1, pad=3, pad_mode="reflect", relu=True)
        # branch add (model_downsample(input_i) + output_prev) fused into this BN/ReLU epilogue
        y = conv_bn_act(d, lp["d_c3"]["w"], lp["d_c3"]["b"],
                        lp["d_c3_bn"]["g"], lp["d_c3_bn"]["be"],
                        stride=2, pad=1, pad_mode="zero", relu=True, residual=output_prev)
        for rb in lp["res"]:
            y = resnet_block(y, rb)
        up = lp["up"]
        y = conv_transpose_bn_relu(y, up["w"], up["b"], up["g"], up["be"])
        if n == N_LOCAL_ENHANCERS:
            y = conv_tanh(y, lp["final"]["w"], lp["final"]["b"], pad=3)
        output_prev = y

    return jnp.transpose(output_prev, (0, 3, 1, 2))   # -> NCHW


if __name__ == "__main__":
    params = init_params(seed=0)
    x = jax.random.normal(jax.random.PRNGKey(0), (2, INPUT_NC, 16, 16), jnp.float32)

    fwd = jax.jit(local_enhancer_forward)
    out = jax.block_until_ready(fwd(params, x))

    assert out.shape == (2, OUTPUT_NC, 16, 16), out.shape
    assert bool(jnp.all(jnp.isfinite(out)))
    print("KERNEL_OK")
</pallas_src>

<mosaic_0001>
module attributes {stable_mosaic.version = 11 : i64} {
  func.func @_avgpool_kernel(%arg0: memref<9x128x3xf32, #tpu.memory_space<vmem>>, %arg1: memref<128x1xf32, #tpu.memory_space<vmem>>, %arg2: memref<128x3xf32, #tpu.memory_space<vmem>>) attributes {dimension_semantics = [], scalar_prefetch = 0 : i64, scratch_operands = 0 : i64, tpu.core_type = #tpu.core_type<tc>} {
    %c0 = arith.constant 0 : index
    %c0_0 = arith.constant 0 : index
    %c0_1 = arith.constant 0 : index
    %0 = vector.load %arg0[%c0, %c0_0, %c0_1] : memref<9x128x3xf32, #tpu.memory_space<vmem>>, vector<9x128x3xf32>
    %cst = arith.constant dense<0.000000e+00> : vector<128x3xf32>
    %1 = vector.multi_reduction <add>, %0, %cst [0] : vector<9x128x3xf32> to vector<128x3xf32>
    %c0_2 = arith.constant 0 : index
    %c0_3 = arith.constant 0 : index
    %2 = vector.load %arg1[%c0_2, %c0_3] : memref<128x1xf32, #tpu.memory_space<vmem>>, vector<128x1xf32>
    %3 = vector.broadcast %2 : vector<128x1xf32> to vector<128x3xf32>
    %4 = arith.mulf %1, %3 : vector<128x3xf32>
    %c0_4 = arith.constant 0 : index
    %c0_5 = arith.constant 0 : index
    %5 = vector.load %arg2[%c0_4, %c0_5] : memref<128x3xf32, #tpu.memory_space<vmem>>, vector<128x3xf32>
    tpu.vector_store %arg2[%c0_4, %c0_5], %4 {strides = array<i32>} : memref<128x3xf32, #tpu.memory_space<vmem>>, vector<128x3xf32>,
    return
  }
}

module attributes {stable_mosaic.version = 11 : i64} {
  func.func @_gemm_bias_stats_kernel(%arg0: i32, %arg1: memref<128x147xbf16, #tpu.memory_space<vmem>>, %arg2: memref<147x16xbf16, #tpu.memory_space<vmem>>, %arg3: memref<1x16xf32, #tpu.memory_space<vmem>>, %arg4: memref<128x16xf32, #tpu.memory_space<vmem>>, %arg5: memref<1x1x16xf32, #tpu.memory_space<vmem>>, %arg6: memref<1x1x16xf32, #tpu.memory_space<vmem>>) attributes {dimension_semantics = [#tpu.dimension_semantics<parallel>], iteration_bounds = array<i64: 1>, scalar_prefetch = 0 : i64, scratch_operands = 0 : i64, tpu.core_type = #tpu.core_type<tc>, window_params = [{transform_indices = @transform_0, window_bounds = array<i64: 128, 147>}, {pipeline_mode = #tpu.pipeline_mode<synchronous>, transform_indices = @transform_1, window_bounds = array<i64: 147, 16>}, {pipeline_mode = #tpu.pipeline_mode<synchronous>, transform_indices = @transform_2, window_bounds = array<i64: 1, 16>}, {transform_indices = @transform_3, window_bounds = array<i64: 128, 16>}, {transform_indices = @transform_4, window_bounds = array<i64: 1, 1, 16>}, {transform_indices = @transform_5, window_bounds = array<i64: 1, 1, 16>}]} {
    %c0 = arith.constant 0 : index
    %c0_0 = arith.constant 0 : index
    %0 = vector.load %arg1[%c0, %c0_0] : memref<128x147xbf16, #tpu.memory_space<vmem>>, vector<128x147xbf16>
    %c0_1 = arith.constant 0 : index
    %c0_2 = arith.constant 0 : index
    %1 = vector.load %arg2[%c0_1, %c0_2] : memref<147x16xbf16, #tpu.memory_space<vmem>>, vector<147x16xbf16>
    %cst = arith.constant dense<0.000000e+00> : vector<128x16xf32>
    %2 = tpu.matmul %0, %1, %cst {dimension_numbers = #tpu.dot_dimension_numbers<[1], [0], [0], [1], [0, 0, 1, 1], [], []>} : vector<128x147xbf16>, vector<147x16xbf16>, vector<128x16xf32> -> vector<128x16xf32>
    %c0_3 = arith.constant 0 : index
    %c0_4 = arith.constant 0 : index
    %3 = vector.load %arg3[%c0_3, %c0_4] : memref<1x16xf32, #tpu.memory_space<vmem>>, vector<1x16xf32>
    %4 = vector.broadcast %3 : vector<1x16xf32> to vector<128x16xf32>
    %5 = arith.addf %2, %4 : vector<128x16xf32>
    %c0_5 = arith.constant 0 : index
    %c0_6 = arith.constant 0 : index
    %6 = vector.load %arg4[%c0_5, %c0_6] : memref<128x16xf32, #tpu.memory_space<vmem>>, vector<128x16xf32>
    tpu.vector_store %arg4[%c0_5, %c0_6], %5 {strides = array<i32>} : memref<128x16xf32, #tpu.memory_space<vmem>>, vector<128x16xf32>,
    %c128_i32 = arith.constant 128 : i32
    %7 = arith.muli %arg0, %c128_i32 : i32
    %8 = tpu.iota {dimensions = array<i32: 0>} : vector<128x1xi32>
    %9 = vector.broadcast %7 : i32 to vector<128x1xi32>
    %10 = arith.addi %9, %8 : vector<128x1xi32>
    %c128_i32_7 = arith.constant 128 : i32
    %11 = vector.broadcast %c128_i32_7 : i32 to vector<128x1xi32>
    %12 = arith.cmpi slt, %10, %11 : vector<128x1xi32>
    %13 = arith.extui %12 : vector<128x1xi1> to vector<128x1xi32>
    %14 = arith.sitofp %13 : vector<128x1xi32> to vector<128x1xf32>
    %15 = vector.broadcast %14 : vector<128x1xf32> to vector<128x16xf32>
    %16 = arith.mulf %5, %15 : vector<128x16xf32>
    %cst_8 = arith.constant dense<0.000000e+00> : vector<16xf32>
    %17 = vector.multi_reduction <add>, %16, %cst_8 [0] : vector<128x16xf32> to vector<16xf32>
    %18 = vector.shape_cast %17 : vector<16xf32> to vector<1x16xf32>
    %19 = vector.shape_cast %18 : vector<1x16xf32> to vector<1x1x16xf32>
    %c0_9 = arith.constant 0 : index
    %c0_10 = arith.constant 0 : index
    %c0_11 = arith.constant 0 : index
    %20 = vector.load %arg5[%c0_9, %c0_10, %c0_11] : memref<1x1x16xf32, #tpu.memory_space<vmem>>, vector<1x1x16xf32>
    tpu.vector_store %arg5[%c0_9, %c0_10, %c0_11], %19 {strides = array<i32>} : memref<1x1x16xf32, #tpu.memory_space<vmem>>, vector<1x1x16xf32>,
    %21 = arith.mulf %16, %5 : vector<128x16xf32>
    %cst_12 = arith.constant dense<0.000000e+00> : vector<16xf32>
    %22 = vector.multi_reduction <add>, %21, %cst_12 [0] : vector<128x16xf32> to vector<16xf32>
    %23 = vector.shape_cast %22 : vector<16xf32> to vector<1x16xf32>
    %24 = vector.shape_cast %23 : vector<1x16xf32> to vector<1x1x16xf32>
    %c0_13 = arith.constant 0 : index
    %c0_14 = arith.constant 0 : index
    %c0_15 = arith.constant 0 : index
    %25 = vector.load %arg6[%c0_13, %c0_14, %c0_15] : memref<1x1x16xf32, #tpu.memory_space<vmem>>, vector<1x1x16xf32>
    tpu.vector_store %arg6[%c0_13, %c0_14, %c0_15], %24 {strides = array<i32>} : memref<1x1x16xf32, #tpu.memory_space<vmem>>, vector<1x1x16xf32>,
    return
  }
  func.func @transform_0(%arg0: i32) -> (i32, i32) {
    %c0_i32 = arith.constant 0 : i32
    %c0_i32_0 = arith.constant 0 : i32
    return %arg0, %c0_i32 : i32, i32
  }
  func.func @transform_1(%arg0: i32) -> (i32, i32) {
    %c0_i32 = arith.constant 0 : i32
    %c0_i32_0 = arith.constant 0 : i32
    %c0_i32_1 = arith.constant 0 : i32
    return %c0_i32, %c0_i32_0 : i32, i32
  }
  func.func @transform_2(%arg0: i32) -> (i32, i32) {
    %c0_i32 = arith.constant 0 : i32
    %c0_i32_0 = arith.constant 0 : i32
    %c0_i32_1 = arith.constant 0 : i32
    return %c0_i32, %c0_i32_0 : i32, i32
  }
  func.func @transform_3(%arg0: i32) -> (i32, i32) {
    %c0_i32 = arith.constant 0 : i32
    %c0_i32_0 = arith.constant 0 : i32
    return %arg0, %c0_i32 : i32, i32
  }
  func.func @transform_4(%arg0: i32) -> (i32, i32, i32) {
    %c0_i32 = arith.constant 0 : i32
    %c0_i32_0 = arith.constant 0 : i32
    %c0_i32_1 = arith.constant 0 : i32
    return %arg0, %c0_i32, %c0_i32_0 : i32, i32, i32
  }
  func.func @transform_5(%arg0: i32) -> (i32, i32, i32) {
    %c0_i32 = arith.constant 0 : i32
    %c0_i32_0 = arith.constant 0 : i32
    %c0_i32_1 = arith.constant 0 : i32
    return %arg0, %c0_i32, %c0_i32_0 : i32, i32, i32
  }
}

module attributes {stable_mosaic.version = 11 : i64} {
  func.func @_scale_act_kernel(%arg0: i32, %arg1: memref<4x512xf32, #tpu.memory_space<vmem>>, %arg2: memref<1x512xf32, #tpu.memory_space<vmem>>, %arg3: memref<1x512xf32, #tpu.memory_space<vmem>>, %arg4: memref<4x512xf32, #tpu.memory_space<vmem>>) attributes {dimension_semantics = [#tpu.dimension_semantics<parallel>], iteration_bounds = array<i64: 1>, scalar_prefetch = 0 : i64, scratch_operands = 0 : i64, tpu.core_type = #tpu.core_type<tc>, window_params = [{transform_indices = @transform_0, window_bounds = array<i64: 4, 512>}, {pipeline_mode = #tpu.pipeline_mode<synchronous>, transform_indices = @transform_1, window_bounds = array<i64: 1, 512>}, {pipeline_mode = #tpu.pipeline_mode<synchronous>, transform_indices = @transform_2, window_bounds = array<i64: 1, 512>}, {transform_indices = @transform_3, window_bounds = array<i64: 4, 512>}]} {
    %c0 = arith.constant 0 : index
    %c0_0 = arith.constant 0 : index
    %0 = vector.load %arg1[%c0, %c0_0] : memref<4x512xf32, #tpu.memory_space<vmem>>, vector<4x512xf32>
    %c0_1 = arith.constant 0 : index
    %c0_2 = arith.constant 0 : index
    %1 = vector.load %arg2[%c0_1, %c0_2] : memref<1x512xf32, #tpu.memory_space<vmem>>, vector<1x512xf32>
    %2 = vector.broadcast %1 : vector<1x512xf32> to vector<4x512xf32>
    %3 = arith.mulf %0, %2 : vector<4x512xf32>
    %c0_3 = arith.constant 0 : index
    %c0_4 = arith.constant 0 : index
    %4 = vector.load %arg3[%c0_3, %c0_4] : memref<1x512xf32, #tpu.memory_space<vmem>>, vector<1x512xf32>
    %5 = vector.broadcast %4 : vector<1x512xf32> to vector<4x512xf32>
    %6 = arith.addf %3, %5 : vector<4x512xf32>
    %cst = arith.constant 0.000000e+00 : f32
    %7 = vector.broadcast %cst : f32 to vector<4x512xf32>
    %8 = arith.maximumf %6, %7 : vector<4x512xf32>
    %c0_5 = arith.constant 0 : index
    %c0_6 = arith.constant 0 : index
    %9 = vector.load %arg4[%c0_5, %c0_6] : memref<4x512xf32, #tpu.memory_space<vmem>>, vector<4x512xf32>
    tpu.vector_store %arg4[%c0_5, %c0_6], %8 {strides = array<i32>} : memref<4x512xf32, #tpu.memory_space<vmem>>, vector<4x512xf32>,
    return
  }
  func.func @transform_0(%arg0: i32) -> (i32, i32) {
    %c0_i32 = arith.constant 0 : i32
    %c0_i32_0 = arith.constant 0 : i32
    return %arg0, %c0_i32 : i32, i32
  }
  func.func @transform_1(%arg0: i32) -> (i32, i32) {
    %c0_i32 = arith.constant 0 : i32
    %c0_i32_0 = arith.constant 0 : i32
    %c0_i32_1 = arith.constant 0 : i32
    return %c0_i32, %c0_i32_0 : i32, i32
  }
  func.func @transform_2(%arg0: i32) -> (i32, i32) {
    %c0_i32 = arith.constant 0 : i32
    %c0_i32_0 = arith.constant 0 : i32
    %c0_i32_1 = arith.constant 0 : i32
    return %c0_i32, %c0_i32_0 : i32, i32
  }
  func.func @transform_3(%arg0: i32) -> (i32, i32) {
    %c0_i32 = arith.constant 0 : i32
    %c0_i32_0 = arith.constant 0 : i32
    return %arg0, %c0_i32 : i32, i32
  }
}

module attributes {stable_mosaic.version = 11 : i64} {
  func.func @_gemm_bias_stats_kernel(%arg0: i32, %arg1: memref<32x144xbf16, #tpu.memory_space<vmem>>, %arg2: memref<144x32xbf16, #tpu.memory_space<vmem>>, %arg3: memref<1x32xf32, #tpu.memory_space<vmem>>, %arg4: memref<32x32xf32, #tpu.memory_space<vmem>>, %arg5: memref<1x1x32xf32, #tpu.memory_space<vmem>>, %arg6: memref<1x1x32xf32, #tpu.memory_space<vmem>>) attributes {dimension_semantics = [#tpu.dimension_semantics<parallel>], iteration_bounds = array<i64: 1>, scalar_prefetch = 0 : i64, scratch_operands = 0 : i64, tpu.core_type = #tpu.core_type<tc>, window_params = [{transform_indices = @transform_0, window_bounds = array<i64: 32, 144>}, {pipeline_mode = #tpu.pipeline_mode<synchronous>, transform_indices = @transform_1, window_bounds = array<i64: 144, 32>}, {pipeline_mode = #tpu.pipeline_mode<synchronous>, transform_indices = @transform_2, window_bounds = array<i64: 1, 32>}, {transform_indices = @transform_3, window_bounds = array<i64: 32, 32>}, {transform_indices = @transform_4, window_bounds = array<i64: 1, 1, 32>}, {transform_indices = @transform_5, window_bounds = array<i64: 1, 1, 32>}]} {
    %c0 = arith.constant 0 : index
    %c0_0 = arith.constant 0 : index
    %0 = vector.load %arg1[%c0, %c0_0] : memref<32x144xbf16, #tpu.memory_space<vmem>>, vector<32x144xbf16>
    %c0_1 = arith.constant 0 : index
    %c0_2 = arith.constant 0 : index
    %1 = vector.load %arg2[%c0_1, %c0_2] : memref<144x32xbf16, #tpu.memory_space<vmem>>, vector<144x32xbf16>
    %cst = arith.constant dense<0.000000e+00> : vector<32x32xf32>
    %2 = tpu.matmul %0, %1, %cst {dimension_numbers = #tpu.dot_dimension_numbers<[1], [0], [0], [1], [0, 0, 1, 1], [], []>} : vector<32x144xbf16>, vector<144x32xbf16>, vector<32x32xf32> -> vector<32x32xf32>
    %c0_3 = arith.constant 0 : index
    %c0_4 = arith.constant 0 : index
    %3 = vector.load %arg3[%c0_3, %c0_4] : memref<1x32xf32, #tpu.memory_space<vmem>>, vector<1x32xf32>
    %4 = vector.broadcast %3 : vector<1x32xf32> to vector<32x32xf32>
    %5 = arith.addf %2, %4 : vector<32x32xf32>
    %c0_5 = arith.constant 0 : index
    %c0_6 = arith.constant 0 : index
    %6 = vector.load %arg4[%c0_5, %c0_6] : memref<32x32xf32, #tpu.memory_space<vmem>>, vector<32x32xf32>
    tpu.vector_store %arg4[%c0_5, %c0_6], %5 {strides = array<i32>} : memref<32x32xf32, #tpu.memory_space<vmem>>, vector<32x32xf32>,
    %c32_i32 = arith.constant 32 : i32
    %7 = arith.muli %arg0, %c32_i32 : i32
    %8 = tpu.iota {dimensions = array<i32: 0>} : vector<32x1xi32>
    %9 = vector.broadcast %7 : i32 to vector<32x1xi32>
    %10 = arith.addi %9, %8 : vector<32x1xi32>
    %c32_i32_7 = arith.constant 32 : i32
    %11 = vector.broadcast %c32_i32_7 : i32 to vector<32x1xi32>
    %12 = arith.cmpi slt, %10, %11 : vector<32x1xi32>
    %13 = arith.extui %12 : vector<32x1xi1> to vector<32x1xi32>
    %14 = arith.sitofp %13 : vector<32x1xi32> to vector<32x1xf32>
    %15 = vector.broadcast %14 : vector<32x1xf32> to vector<32x32xf32>
    %16 = arith.mulf %5, %15 : vector<32x32xf32>
    %cst_8 = arith.constant dense<0.000000e+00> : vector<32xf32>
    %17 = vector.multi_reduction <add>, %16, %cst_8 [0] : vector<32x32xf32> to vector<32xf32>
    %18 = vector.shape_cast %17 : vector<32xf32> to vector<1x32xf32>
    %19 = vector.shape_cast %18 : vector<1x32xf32> to vector<1x1x32xf32>
    %c0_9 = arith.constant 0 : index
    %c0_10 = arith.constant 0 : index
    %c0_11 = arith.constant 0 : index
    %20 = vector.load %arg5[%c0_9, %c0_10, %c0_11] : memref<1x1x32xf32, #tpu.memory_space<vmem>>, vector<1x1x32xf32>
    tpu.vector_store %arg5[%c0_9, %c0_10, %c0_11], %19 {strides = array<i32>} : memref<1x1x32xf32, #tpu.memory_space<vmem>>, vector<1x1x32xf32>,
    %21 = arith.mulf %16, %5 : vector<32x32xf32>
    %cst_12 = arith.constant dense<0.000000e+00> : vector<32xf32>
    %22 = vector.multi_reduction <add>, %21, %cst_12 [0] : vector<32x32xf32> to vector<32xf32>
    %23 = vector.shape_cast %22 : vector<32xf32> to vector<1x32xf32>
    %24 = vector.shape_cast %23 : vector<1x32xf32> to vector<1x1x32xf32>
    %c0_13 = arith.constant 0 : index
    %c0_14 = arith.constant 0 : index
    %c0_15 = arith.constant 0 : index
    %25 = vector.load %arg6[%c0_13, %c0_14, %c0_15] : memref<1x1x32xf32, #tpu.memory_space<vmem>>, vector<1x1x32xf32>
    tpu.vector_store %arg6[%c0_13, %c0_14, %c0_15], %24 {strides = array<i32>} : memref<1x1x32xf32, #tpu.memory_space<vmem>>, vector<1x1x32xf32>,
    return
  }
  func.func @transform_0(%arg0: i32) -> (i32, i32) {
    %c0_i32 = arith.constant 0 : i32
    %c0_i32_0 = arith.constant 0 : i32
    return %arg0, %c0_i32 : i32, i32
  }
  func.func @transform_1(%arg0: i32) -> (i32, i32) {
    %c0_i32 = arith.constant 0 : i32
    %c0_i32_0 = arith.constant 0 : i32
    %c0_i32_1 = arith.constant 0 : i32
    return %c0_i32, %c0_i32_0 : i32, i32
  }
  func.func @transform_2(%arg0: i32) -> (i32, i32) {
    %c0_i32 = arith.constant 0 : i32
    %c0_i32_0 = arith.constant 0 : i32
    %c0_i32_1 = arith.constant 0 : i32
    return %c0_i32, %c0_i32_0 : i32, i32
  }
  func.func @transform_3(%arg0: i32) -> (i32, i32) {
    %c0_i32 = arith.constant 0 : i32
    %c0_i32_0 = arith.constant 0 : i32
    return %arg0, %c0_i32 : i32, i32
  }
  func.func @transform_4(%arg0: i32) -> (i32, i32, i32) {
    %c0_i32 = arith.constant 0 : i32
    %c0_i32_0 = arith.constant 0 : i32
    %c0_i32_1 = arith.constant 0 : i32
    return %arg0, %c0_i32, %c0_i32_0 : i32, i32, i32
  }
  func.func @transform_5(%arg0: i32) -> (i32, i32, i32) {
    %c0_i32 = arith.constant 0 : i32
    %c0_i32_0 = arith.constant 0 : i32
    %c0_i32_1 = arith.constant 0 : i32
    return %arg0, %c0_i32, %c0_i32_0 : i32, i32, i32
  }
}

module attributes {stable_mosaic.version = 11 : i64} {
  func.func @_scale_act_kernel(%arg0: i32, %arg1: memref<2x512xf32, #tpu.memory_space<vmem>>, %arg2: memref<1x512xf32, #tpu.memory_space<vmem>>, %arg3: memref<1x512xf32, #tpu.memory_space<vmem>>, %arg4: memref<2x512xf32, #tpu.memory_space<vmem>>) attributes {dimension_semantics = [#tpu.dimension_semantics<parallel>], iteration_bounds = array<i64: 1>, scalar_prefetch = 0 : i64, scratch_operands = 0 : i64, tpu.core_type = #tpu.core_type<tc>, window_params = [{transform_indices = @transform_0, window_bounds = array<i64: 2, 512>}, {pipeline_mode = #tpu.pipeline_mode<synchronous>, transform_indices = @transform_1, window_bounds = array<i64: 1, 512>}, {pipeline_mode = #tpu.pipeline_mode<synchronous>, transform_indices = @transform_2, window_bounds = array<i64: 1, 512>}, {transform_indices = @transform_3, window_bounds = array<i64: 2, 512>}]} {
    %c0 = arith.constant 0 : index
    %c0_0 = arith.constant 0 : index
    %0 = vector.load %arg1[%c0, %c0_0] : memref<2x512xf32, #tpu.memory_space<vmem>>, vector<2x512xf32>
    %c0_1 = arith.constant 0 : index
    %c0_2 = arith.constant 0 : index
    %1 = vector.load %arg2[%c0_1, %c0_2] : memref<1x512xf32, #tpu.memory_space<vmem>>, vector<1x512xf32>
    %2 = vector.broadcast %1 : vector<1x512xf32> to vector<2x512xf32>
    %3 = arith.mulf %0, %2 : vector<2x512xf32>
    %c0_3 = arith.constant 0 : index
    %c0_4 = arith.constant 0 : index
    %4 = vector.load %arg3[%c0_3, %c0_4] : memref<1x512xf32, #tpu.memory_space<vmem>>, vector<1x512xf32>
    %5 = vector.broadcast %4 : vector<1x512xf32> to vector<2x512xf32>
    %6 = arith.addf %3, %5 : vector<2x512xf32>
    %cst = arith.constant 0.000000e+00 : f32
    %7 = vector.broadcast %cst : f32 to vector<2x512xf32>
    %8 = arith.maximumf %6, %7 : vector<2x512xf32>
    %c0_5 = arith.constant 0 : index
    %c0_6 = arith.constant 0 : index
    %9 = vector.load %arg4[%c0_5, %c0_6] : memref<2x512xf32, #tpu.memory_space<vmem>>, vector<2x512xf32>
    tpu.vector_store %arg4[%c0_5, %c0_6], %8 {strides = array<i32>} : memref<2x512xf32, #tpu.memory_space<vmem>>, vector<2x512xf32>,
    return
  }
  func.func @transform_0(%arg0: i32) -> (i32, i32) {
    %c0_i32 = arith.constant 0 : i32
    %c0_i32_0 = arith.constant 0 : i32
    return %arg0, %c0_i32 : i32, i32
  }
  func.func @transform_1(%arg0: i32) -> (i32, i32) {
    %c0_i32 = arith.constant 0 : i32
    %c0_i32_0 = arith.constant 0 : i32
    %c0_i32_1 = arith.constant 0 : i32
    return %c0_i32, %c0_i32_0 : i32, i32
  }
  func.func @transform_2(%arg0: i32) -> (i32, i32) {
    %c0_i32 = arith.constant 0 : i32
    %c0_i32_0 = arith.constant 0 : i32
    %c0_i32_1 = arith.constant 0 : i32
    return %c0_i32, %c0_i32_0 : i32, i32
  }
  func.func @transform_3(%arg0: i32) -> (i32, i32) {
    %c0_i32 = arith.constant 0 : i32
    %c0_i32_0 = arith.constant 0 : i32
    return %arg0, %c0_i32 : i32, i32
  }
}

module attributes {stable_mosaic.version = 11 : i64} {
  func.func @_scale_act_kernel(%arg0: i32, %arg1: memref<1x512xf32, #tpu.memory_space<vmem>>, %arg2: memref<1x512xf32, #tpu.memory_space<vmem>>, %arg3: memref<1x512xf32, #tpu.memory_space<vmem>>, %arg4: memref<1x512xf32, #tpu.memory_space<vmem>>) attributes {dimension_semantics = [#tpu.dimension_semantics<parallel>], iteration_bounds = array<i64: 1>, scalar_prefetch = 0 : i64, scratch_operands = 0 : i64, tpu.core_type = #tpu.core_type<tc>, window_params = [{transform_indices = @transform_0, window_bounds = array<i64: 1, 512>}, {pipeline_mode = #tpu.pipeline_mode<synchronous>, transform_indices = @transform_1, window_bounds = array<i64: 1, 512>}, {pipeline_mode = #tpu.pipeline_mode<synchronous>, transform_indices = @transform_2, window_bounds = array<i64: 1, 512>}, {transform_indices = @transform_3, window_bounds = array<i64: 1, 512>}]} {
    %c0 = arith.constant 0 : index
    %c0_0 = arith.constant 0 : index
    %0 = vector.load %arg1[%c0, %c0_0] : memref<1x512xf32, #tpu.memory_space<vmem>>, vector<1x512xf32>
    %c0_1 = arith.constant 0 : index
    %c0_2 = arith.constant 0 : index
    %1 = vector.load %arg2[%c0_1, %c0_2] : memref<1x512xf32, #tpu.memory_space<vmem>>, vector<1x512xf32>
    %2 = arith.mulf %0, %1 : vector<1x512xf32>
    %c0_3 = arith.constant 0 : index
    %c0_4 = arith.constant 0 : index
    %3 = vector.load %arg3[%c0_3, %c0_4] : memref<1x512xf32, #tpu.memory_space<vmem>>, vector<1x512xf32>
    %4 = arith.addf %2, %3 : vector<1x512xf32>
    %cst = arith.constant 0.000000e+00 : f32
    %5 = vector.broadcast %cst : f32 to vector<1x512xf32>
    %6 = arith.maximumf %4, %5 : vector<1x512xf32>
    %c0_5 = arith.constant 0 : index
    %c0_6 = arith.constant 0 : index
    %7 = vector.load %arg4[%c0_5, %c0_6] : memref<1x512xf32, #tpu.memory_space<vmem>>, vector<1x512xf32>
    tpu.vector_store %arg4[%c0_5, %c0_6], %6 {strides = array<i32>} : memref<1x512xf32, #tpu.memory_space<vmem>>, vector<1x512xf32>,
    return
  }
  func.func @transform_0(%arg0: i32) -> (i32, i32) {
    %c0_i32 = arith.constant 0 : i32
    %c0_i32_0 = arith.constant 0 : i32
    return %arg0, %c0_i32 : i32, i32
  }
  func.func @transform_1(%arg0: i32) -> (i32, i32) {
    %c0_i32 = arith.constant 0 : i32
    %c0_i32_0 = arith.constant 0 : i32
    %c0_i32_1 = arith.constant 0 : i32
    return %c0_i32, %c0_i32_0 : i32, i32
  }
  func.func @transform_2(%arg0: i32) -> (i32, i32) {
    %c0_i32 = arith.constant 0 : i32
    %c0_i32_0 = arith.constant 0 : i32
    %c0_i32_1 = arith.constant 0 : i32
    return %c0_i32, %c0_i32_0 : i32, i32
  }
  func.func @transform_3(%arg0: i32) -> (i32, i32) {
    %c0_i32 = arith.constant 0 : i32
    %c0_i32_0 = arith.constant 0 : i32
    return %arg0, %c0_i32 : i32, i32
  }
}

module attributes {stable_mosaic.version = 11 : i64} {
  func.func @_gemm_bias_stats_kernel(%arg0: i32, %arg1: memref<8x288xbf16, #tpu.memory_space<vmem>>, %arg2: memref<288x64xbf16, #tpu.memory_space<vmem>>, %arg3: memref<1x64xf32, #tpu.memory_space<vmem>>, %arg4: memref<8x64xf32, #tpu.memory_space<vmem>>, %arg5: memref<1x1x64xf32, #tpu.memory_space<vmem>>, %arg6: memref<1x1x64xf32, #tpu.memory_space<vmem>>) attributes {dimension_semantics = [#tpu.dimension_semantics<parallel>], iteration_bounds = array<i64: 1>, scalar_prefetch = 0 : i64, scratch_operands = 0 : i64, tpu.core_type = #tpu.core_type<tc>, window_params = [{transform_indices = @transform_0, window_bounds = array<i64: 8, 288>}, {pipeline_mode = #tpu.pipeline_mode<synchronous>, transform_indices = @transform_1, window_bounds = array<i64: 288, 64>}, {pipeline_mode = #tpu.pipeline_mode<synchronous>, transform_indices = @transform_2, window_bounds = array<i64: 1, 64>}, {transform_indices = @transform_3, window_bounds = array<i64: 8, 64>}, {transform_indices = @transform_4, window_bounds = array<i64: 1, 1, 64>}, {transform_indices = @transform_5, window_bounds = array<i64: 1, 1, 64>}]} {
    %c0 = arith.constant 0 : index
    %c0_0 = arith.constant 0 : index
    %0 = vector.load %arg1[%c0, %c0_0] : memref<8x288xbf16, #tpu.memory_space<vmem>>, vector<8x288xbf16>
    %c0_1 = arith.constant 0 : index
    %c0_2 = arith.constant 0 : index
    %1 = vector.load %arg2[%c0_1, %c0_2] : memref<288x64xbf16, #tpu.memory_space<vmem>>, vector<288x64xbf16>
    %cst = arith.constant dense<0.000000e+00> : vector<8x64xf32>
    %2 = tpu.matmul %0, %1, %cst {dimension_numbers = #tpu.dot_dimension_numbers<[1], [0], [0], [1], [0, 0, 1, 1], [], []>} : vector<8x288xbf16>, vector<288x64xbf16>, vector<8x64xf32> -> vector<8x64xf32>
    %c0_3 = arith.constant 0 : index
    %c0_4 = arith.constant 0 : index
    %3 = vector.load %arg3[%c0_3, %c0_4] : memref<1x64xf32, #tpu.memory_space<vmem>>, vector<1x64xf32>
    %4 = vector.broadcast %3 : vector<1x64xf32> to vector<8x64xf32>
    %5 = arith.addf %2, %4 : vector<8x64xf32>
    %c0_5 = arith.constant 0 : index
    %c0_6 = arith.constant 0 : index
    %6 = vector.load %arg4[%c0_5, %c0_6] : memref<8x64xf32, #tpu.memory_space<vmem>>, vector<8x64xf32>
    tpu.vector_store %arg4[%c0_5, %c0_6], %5 {strides = array<i32>} : memref<8x64xf32, #tpu.memory_space<vmem>>, vector<8x64xf32>,
    %c8_i32 = arith.constant 8 : i32
    %7 = arith.muli %arg0, %c8_i32 : i32
    %8 = tpu.iota {dimensions = array<i32: 0>} : vector<8x1xi32>
    %9 = vector.broadcast %7 : i32 to vector<8x1xi32>
    %10 = arith.addi %9, %8 : vector<8x1xi32>
    %c8_i32_7 = arith.constant 8 : i32
    %11 = vector.broadcast %c8_i32_7 : i32 to vector<8x1xi32>
    %12 = arith.cmpi slt, %10, %11 : vector<8x1xi32>
    %13 = arith.extui %12 : vector<8x1xi1> to vector<8x1xi32>
    %14 = arith.sitofp %13 : vector<8x1xi32> to vector<8x1xf32>
    %15 = vector.broadcast %14 : vector<8x1xf32> to vector<8x64xf32>
    %16 = arith.mulf %5, %15 : vector<8x64xf32>
    %cst_8 = arith.constant dense<0.000000e+00> : vector<64xf32>
    %17 = vector.multi_reduction <add>, %16, %cst_8 [0] : vector<8x64xf32> to vector<64xf32>
    %18 = vector.shape_cast %17 : vector<64xf32> to vector<1x64xf32>
    %19 = vector.shape_cast %18 : vector<1x64xf32> to vector<1x1x64xf32>
    %c0_9 = arith.constant 0 : index
    %c0_10 = arith.constant 0 : index
    %c0_11 = arith.constant 0 : index
    %20 = vector.load %arg5[%c0_9, %c0_10, %c0_11] : memref<1x1x64xf32, #tpu.memory_space<vmem>>, vector<1x1x64xf32>
    tpu.vector_store %arg5[%c0_9, %c0_10, %c0_11], %19 {strides = array<i32>} : memref<1x1x64xf32, #tpu.memory_space<vmem>>, vector<1x1x64xf32>,
    %21 = arith.mulf %16, %5 : vector<8x64xf32>
    %cst_12 = arith.constant dense<0.000000e+00> : vector<64xf32>
    %22 = vector.multi_reduction <add>, %21, %cst_12 [0] : vector<8x64xf32> to vector<64xf32>
    %23 = vector.shape_cast %22 : vector<64xf32> to vector<1x64xf32>
    %24 = vector.shape_cast %23 : vector<1x64xf32> to vector<1x1x64xf32>
    %c0_13 = arith.constant 0 : index
    %c0_14 = arith.constant 0 : index
    %c0_15 = arith.constant 0 : index
    %25 = vector.load %arg6[%c0_13, %c0_14, %c0_15] : memref<1x1x64xf32, #tpu.memory_space<vmem>>, vector<1x1x64xf32>
    tpu.vector_store %arg6[%c0_13, %c0_14, %c0_15], %24 {strides = array<i32>} : memref<1x1x64xf32, #tpu.memory_space<vmem>>, vector<1x1x64xf32>,
    return
  }
  func.func @transform_0(%arg0: i32) -> (i32, i32) {
    %c0_i32 = arith.constant 0 : i32
    %c0_i32_0 = arith.constant 0 : i32
    return %arg0, %c0_i32 : i32, i32
  }
  func.func @transform_1(%arg0: i32) -> (i32, i32) {
    %c0_i32 = arith.constant 0 : i32
    %c0_i32_0 = arith.constant 0 : i32
    %c0_i32_1 = arith.constant 0 : i32
    return %c0_i32, %c0_i32_0 : i32, i32
  }
  func.func @transform_2(%arg0: i32) -> (i32, i32) {
    %c0_i32 = arith.constant 0 : i32
    %c0_i32_0 = arith.constant 0 : i32
    %c0_i32_1 = arith.constant 0 : i32
    return %c0_i32, %c0_i32_0 : i32, i32
  }
  func.func @transform_3(%arg0: i32) -> (i32, i32) {
    %c0_i32 = arith.constant 0 : i32
    %c0_i32_0 = arith.constant 0 : i32
    return %arg0, %c0_i32 : i32, i32
  }
  func.func @transform_4(%arg0: i32) -> (i32, i32, i32) {
    %c0_i32 = arith.constant 0 : i32
    %c0_i32_0 = arith.constant 0 : i32
    %c0_i32_1 = arith.constant 0 : i32
    return %arg0, %c0_i32, %c0_i32_0 : i32, i32, i32
  }
  func.func @transform_5(%arg0: i32) -> (i32, i32, i32) {
    %c0_i32 = arith.constant 0 : i32
    %c0_i32_0 = arith.constant 0 : i32
    %c0_i32_1 = arith.constant 0 : i32
    return %arg0, %c0_i32, %c0_i32_0 : i32, i32, i32
  }
}

module attributes {stable_mosaic.version = 11 : i64} {
  func.func @_gemm_bias_stats_kernel(%arg0: i32, %arg1: memref<8x576xbf16, #tpu.memory_space<vmem>>, %arg2: memref<576x64xbf16, #tpu.memory_space<vmem>>, %arg3: memref<1x64xf32, #tpu.memory_space<vmem>>, %arg4: memref<8x64xf32, #tpu.memory_space<vmem>>, %arg5: memref<1x1x64xf32, #tpu.memory_space<vmem>>, %arg6: memref<1x1x64xf32, #tpu.memory_space<vmem>>) attributes {dimension_semantics = [#tpu.dimension_semantics<parallel>], iteration_bounds = array<i64: 1>, scalar_prefetch = 0 : i64, scratch_operands = 0 : i64, tpu.core_type = #tpu.core_type<tc>, window_params = [{transform_indices = @transform_0, window_bounds = array<i64: 8, 576>}, {pipeline_mode = #tpu.pipeline_mode<synchronous>, transform_indices = @transform_1, window_bounds = array<i64: 576, 64>}, {pipeline_mode = #tpu.pipeline_mode<synchronous>, transform_indices = @transform_2, window_bounds = array<i64: 1, 64>}, {transform_indices = @transform_3, window_bounds = array<i64: 8, 64>}, {transform_indices = @transform_4, window_bounds = array<i64: 1, 1, 64>}, {transform_indices = @transform_5, window_bounds = array<i64: 1, 1, 64>}]} {
    %c0 = arith.constant 0 : index
    %c0_0 = arith.constant 0 : index
    %0 = vector.load %arg1[%c0, %c0_0] : memref<8x576xbf16, #tpu.memory_space<vmem>>, vector<8x576xbf16>
    %c0_1 = arith.constant 0 : index
    %c0_2 = arith.constant 0 : index
    %1 = vector.load %arg2[%c0_1, %c0_2] : memref<576x64xbf16, #tpu.memory_space<vmem>>, vector<576x64xbf16>
    %cst = arith.constant dense<0.000000e+00> : vector<8x64xf32>
    %2 = tpu.matmul %0, %1, %cst {dimension_numbers = #tpu.dot_dimension_numbers<[1], [0], [0], [1], [0, 0, 1, 1], [], []>} : vector<8x576xbf16>, vector<576x64xbf16>, vector<8x64xf32> -> vector<8x64xf32>
    %c0_3 = arith.constant 0 : index
    %c0_4 = arith.constant 0 : index
    %3 = vector.load %arg3[%c0_3, %c0_4] : memref<1x64xf32, #tpu.memory_space<vmem>>, vector<1x64xf32>
    %4 = vector.broadcast %3 : vector<1x64xf32> to vector<8x64xf32>
    %5 = arith.addf %2, %4 : vector<8x64xf32>
    %c0_5 = arith.constant 0 : index
    %c0_6 = arith.constant 0 : index
    %6 = vector.load %arg4[%c0_5, %c0_6] : memref<8x64xf32, #tpu.memory_space<vmem>>, vector<8x64xf32>
    tpu.vector_store %arg4[%c0_5, %c0_6], %5 {strides = array<i32>} : memref<8x64xf32, #tpu.memory_space<vmem>>, vector<8x64xf32>,
    %c8_i32 = arith.constant 8 : i32
    %7 = arith.muli %arg0, %c8_i32 : i32
    %8 = tpu.iota {dimensions = array<i32: 0>} : vector<8x1xi32>
    %9 = vector.broadcast %7 : i32 to vector<8x1xi32>
    %10 = arith.addi %9, %8 : vector<8x1xi32>
    %c8_i32_7 = arith.constant 8 : i32
    %11 = vector.broadcast %c8_i32_7 : i32 to vector<8x1xi32>
    %12 = arith.cmpi slt, %10, %11 : vector<8x1xi32>
    %13 = arith.extui %12 : vector<8x1xi1> to vector<8x1xi32>
    %14 = arith.sitofp %13 : vector<8x1xi32> to vector<8x1xf32>
    %15 = vector.broadcast %14 : vector<8x1xf32> to vector<8x64xf32>
    %16 = arith.mulf %5, %15 : vector<8x64xf32>
    %cst_8 = arith.constant dense<0.000000e+00> : vector<64xf32>
    %17 = vector.multi_reduction <add>, %16, %cst_8 [0] : vector<8x64xf32> to vector<64xf32>
    %18 = vector.shape_cast %17 : vector<64xf32> to vector<1x64xf32>
    %19 = vector.shape_cast %18 : vector<1x64xf32> to vector<1x1x64xf32>
    %c0_9 = arith.constant 0 : index
    %c0_10 = arith.constant 0 : index
    %c0_11 = arith.constant 0 : index
    %20 = vector.load %arg5[%c0_9, %c0_10, %c0_11] : memref<1x1x64xf32, #tpu.memory_space<vmem>>, vector<1x1x64xf32>
    tpu.vector_store %arg5[%c0_9, %c0_10, %c0_11], %19 {strides = array<i32>} : memref<1x1x64xf32, #tpu.memory_space<vmem>>, vector<1x1x64xf32>,
    %21 = arith.mulf %16, %5 : vector<8x64xf32>
    %cst_12 = arith.constant dense<0.000000e+00> : vector<64xf32>
    %22 = vector.multi_reduction <add>, %21, %cst_12 [0] : vector<8x64xf32> to vector<64xf32>
    %23 = vector.shape_cast %22 : vector<64xf32> to vector<1x64xf32>
    %24 = vector.shape_cast %23 : vector<1x64xf32> to vector<1x1x64xf32>
    %c0_13 = arith.constant 0 : index
    %c0_14 = arith.constant 0 : index
    %c0_15 = arith.constant 0 : index
    %25 = vector.load %arg6[%c0_13, %c0_14, %c0_15] : memref<1x1x64xf32, #tpu.memory_space<vmem>>, vector<1x1x64xf32>
    tpu.vector_store %arg6[%c0_13, %c0_14, %c0_15], %24 {strides = array<i32>} : memref<1x1x64xf32, #tpu.memory_space<vmem>>, vector<1x1x64xf32>,
    return
  }
  func.func @transform_0(%arg0: i32) -> (i32, i32) {
    %c0_i32 = arith.constant 0 : i32
    %c0_i32_0 = arith.constant 0 : i32
    return %arg0, %c0_i32 : i32, i32
  }
  func.func @transform_1(%arg0: i32) -> (i32, i32) {
    %c0_i32 = arith.constant 0 : i32
    %c0_i32_0 = arith.constant 0 : i32
    %c0_i32_1 = arith.constant 0 : i32
    return %c0_i32, %c0_i32_0 : i32, i32
  }
  func.func @transform_2(%arg0: i32) -> (i32, i32) {
    %c0_i32 = arith.constant 0 : i32
    %c0_i32_0 = arith.constant 0 : i32
    %c0_i32_1 = arith.constant 0 : i32
    return %c0_i32, %c0_i32_0 : i32, i32
  }
  func.func @transform_3(%arg0: i32) -> (i32, i32) {
    %c0_i32 = arith.constant 0 : i32
    %c0_i32_0 = arith.constant 0 : i32
    return %arg0, %c0_i32 : i32, i32
  }
  func.func @transform_4(%arg0: i32) -> (i32, i32, i32) {
    %c0_i32 = arith.constant 0 : i32
    %c0_i32_0 = arith.constant 0 : i32
    %c0_i32_1 = arith.constant 0 : i32
    return %arg0, %c0_i32, %c0_i32_0 : i32, i32, i32
  }
  func.func @transform_5(%arg0: i32) -> (i32, i32, i32) {
    %c0_i32 = arith.constant 0 : i32
    %c0_i32_0 = arith.constant 0 : i32
    %c0_i32_1 = arith.constant 0 : i32
    return %arg0, %c0_i32, %c0_i32_0 : i32, i32, i32
  }
}

module attributes {stable_mosaic.version = 11 : i64} {
  func.func @_scale_act_res_kernel(%arg0: i32, %arg1: memref<1x512xf32, #tpu.memory_space<vmem>>, %arg2: memref<1x512xf32, #tpu.memory_space<vmem>>, %arg3: memref<1x512xf32, #tpu.memory_space<vmem>>, %arg4: memref<1x512xf32, #tpu.memory_space<vmem>>, %arg5: memref<1x512xf32, #tpu.memory_space<vmem>>) attributes {dimension_semantics = [#tpu.dimension_semantics<parallel>], iteration_bounds = array<i64: 1>, scalar_prefetch = 0 : i64, scratch_operands = 0 : i64, tpu.core_type = #tpu.core_type<tc>, window_params = [{transform_indices = @transform_0, window_bounds = array<i64: 1, 512>}, {pipeline_mode = #tpu.pipeline_mode<synchronous>, transform_indices = @transform_1, window_bounds = array<i64: 1, 512>}, {pipeline_mode = #tpu.pipeline_mode<synchronous>, transform_indices = @transform_2, window_bounds = array<i64: 1, 512>}, {transform_indices = @transform_3, window_bounds = array<i64: 1, 512>}, {transform_indices = @transform_4, window_bounds = array<i64: 1, 512>}]} {
    %c0 = arith.constant 0 : index
    %c0_0 = arith.constant 0 : index
    %0 = vector.load %arg1[%c0, %c0_0] : memref<1x512xf32, #tpu.memory_space<vmem>>, vector<1x512xf32>
    %c0_1 = arith.constant 0 : index
    %c0_2 = arith.constant 0 : index
    %1 = vector.load %arg2[%c0_1, %c0_2] : memref<1x512xf32, #tpu.memory_space<vmem>>, vector<1x512xf32>
    %2 = arith.mulf %0, %1 : vector<1x512xf32>
    %c0_3 = arith.constant 0 : index
    %c0_4 = arith.constant 0 : index
    %3 = vector.load %arg3[%c0_3, %c0_4] : memref<1x512xf32, #tpu.memory_space<vmem>>, vector<1x512xf32>
    %4 = arith.addf %2, %3 : vector<1x512xf32>
    %c0_5 = arith.constant 0 : index
    %c0_6 = arith.constant 0 : index
    %5 = vector.load %arg4[%c0_5, %c0_6] : memref<1x512xf32, #tpu.memory_space<vmem>>, vector<1x512xf32>
    %6 = arith.addf %4, %5 : vector<1x512xf32>
    %c0_7 = arith.constant 0 : index
    %c0_8 = arith.constant 0 : index
    %7 = vector.load %arg5[%c0_7, %c0_8] : memref<1x512xf32, #tpu.memory_space<vmem>>, vector<1x512xf32>
    tpu.vector_store %arg5[%c0_7, %c0_8], %6 {strides = array<i32>} : memref<1x512xf32, #tpu.memory_space<vmem>>, vector<1x512xf32>,
    return
  }
  func.func @transform_0(%arg0: i32) -> (i32, i32) {
    %c0_i32 = arith.constant 0 : i32
    %c0_i32_0 = arith.constant 0 : i32
    return %arg0, %c0_i32 : i32, i32
  }
  func.func @transform_1(%arg0: i32) -> (i32, i32) {
    %c0_i32 = arith.constant 0 : i32
    %c0_i32_0 = arith.constant 0 : i32
    %c0_i32_1 = arith.constant 0 : i32
    return %c0_i32, %c0_i32_0 : i32, i32
  }
  func.func @transform_2(%arg0: i32) -> (i32, i32) {
    %c0_i32 = arith.constant 0 : i32
    %c0_i32_0 = arith.constant 0 : i32
    %c0_i32_1 = arith.constant 0 : i32
    return %c0_i32, %c0_i32_0 : i32, i32
  }
  func.func @transform_3(%arg0: i32) -> (i32, i32) {
    %c0_i32 = arith.constant 0 : i32
    %c0_i32_0 = arith.constant 0 : i32
    return %arg0, %c0_i32 : i32, i32
  }
  func.func @transform_4(%arg0: i32) -> (i32, i32) {
    %c0_i32 = arith.constant 0 : i32
    %c0_i32_0 = arith.constant 0 : i32
    return %arg0, %c0_i32 : i32, i32
  }
}

module attributes {stable_mosaic.version = 11 : i64} {
  func.func @_gemm_bias_stats_kernel(%arg0: i32, %arg1: memref<8x256xbf16, #tpu.memory_space<vmem>>, %arg2: memref<256x128xbf16, #tpu.memory_space<vmem>>, %arg3: memref<1x128xf32, #tpu.memory_space<vmem>>, %arg4: memref<8x128xf32, #tpu.memory_space<vmem>>, %arg5: memref<1x1x128xf32, #tpu.memory_space<vmem>>, %arg6: memref<1x1x128xf32, #tpu.memory_space<vmem>>) attributes {dimension_semantics = [#tpu.dimension_semantics<parallel>], iteration_bounds = array<i64: 1>, scalar_prefetch = 0 : i64, scratch_operands = 0 : i64, tpu.core_type = #tpu.core_type<tc>, window_params = [{transform_indices = @transform_0, window_bounds = array<i64: 8, 256>}, {pipeline_mode = #tpu.pipeline_mode<synchronous>, transform_indices = @transform_1, window_bounds = array<i64: 256, 128>}, {pipeline_mode = #tpu.pipeline_mode<synchronous>, transform_indices = @transform_2, window_bounds = array<i64: 1, 128>}, {transform_indices = @transform_3, window_bounds = array<i64: 8, 128>}, {transform_indices = @transform_4, window_bounds = array<i64: 1, 1, 128>}, {transform_indices = @transform_5, window_bounds = array<i64: 1, 1, 128>}]} {
    %c0 = arith.constant 0 : index
    %c0_0 = arith.constant 0 : index
    %0 = vector.load %arg1[%c0, %c0_0] : memref<8x256xbf16, #tpu.memory_space<vmem>>, vector<8x256xbf16>
    %c0_1 = arith.constant 0 : index
    %c0_2 = arith.constant 0 : index
    %1 = vector.load %arg2[%c0_1, %c0_2] : memref<256x128xbf16, #tpu.memory_space<vmem>>, vector<256x128xbf16>
    %cst = arith.constant dense<0.000000e+00> : vector<8x128xf32>
    %2 = tpu.matmul %0, %1, %cst {dimension_numbers = #tpu.dot_dimension_numbers<[1], [0], [0], [1], [0, 0, 1, 1], [], []>} : vector<8x256xbf16>, vector<256x128xbf16>, vector<8x128xf32> -> vector<8x128xf32>
    %c0_3 = arith.constant 0 : index
    %c0_4 = arith.constant 0 : index
    %3 = vector.load %arg3[%c0_3, %c0_4] : memref<1x128xf32, #tpu.memory_space<vmem>>, vector<1x128xf32>
    %4 = vector.broadcast %3 : vector<1x128xf32> to vector<8x128xf32>
    %5 = arith.addf %2, %4 : vector<8x128xf32>
    %c0_5 = arith.constant 0 : index
    %c0_6 = arith.constant 0 : index
    %6 = vector.load %arg4[%c0_5, %c0_6] : memref<8x128xf32, #tpu.memory_space<vmem>>, vector<8x128xf32>
    tpu.vector_store %arg4[%c0_5, %c0_6], %5 {strides = array<i32>} : memref<8x128xf32, #tpu.memory_space<vmem>>, vector<8x128xf32>,
    %c8_i32 = arith.constant 8 : i32
    %7 = arith.muli %arg0, %c8_i32 : i32
    %8 = tpu.iota {dimensions = array<i32: 0>} : vector<8x1xi32>
    %9 = vector.broadcast %7 : i32 to vector<8x1xi32>
    %10 = arith.addi %9, %8 : vector<8x1xi32>
    %c8_i32_7 = arith.constant 8 : i32
    %11 = vector.broadcast %c8_i32_7 : i32 to vector<8x1xi32>
    %12 = arith.cmpi slt, %10, %11 : vector<8x1xi32>
    %13 = arith.extui %12 : vector<8x1xi1> to vector<8x1xi32>
    %14 = arith.sitofp %13 : vector<8x1xi32> to vector<8x1xf32>
    %15 = vector.broadcast %14 : vector<8x1xf32> to vector<8x128xf32>
    %16 = arith.mulf %5, %15 : vector<8x128xf32>
    %cst_8 = arith.constant dense<0.000000e+00> : vector<128xf32>
    %17 = vector.multi_reduction <add>, %16, %cst_8 [0] : vector<8x128xf32> to vector<128xf32>
    %18 = vector.shape_cast %17 : vector<128xf32> to vector<1x128xf32>
    %19 = vector.shape_cast %18 : vector<1x128xf32> to vector<1x1x128xf32>
    %c0_9 = arith.constant 0 : index
    %c0_10 = arith.constant 0 : index
    %c0_11 = arith.constant 0 : index
    %20 = vector.load %arg5[%c0_9, %c0_10, %c0_11] : memref<1x1x128xf32, #tpu.memory_space<vmem>>, vector<1x1x128xf32>
    tpu.vector_store %arg5[%c0_9, %c0_10, %c0_11], %19 {strides = array<i32>} : memref<1x1x128xf32, #tpu.memory_space<vmem>>, vector<1x1x128xf32>,
    %21 = arith.mulf %16, %5 : vector<8x128xf32>
    %cst_12 = arith.constant dense<0.000000e+00> : vector<128xf32>
    %22 = vector.multi_reduction <add>, %21, %cst_12 [0] : vector<8x128xf32> to vector<128xf32>
    %23 = vector.shape_cast %22 : vector<128xf32> to vector<1x128xf32>
    %24 = vector.shape_cast %23 : vector<1x128xf32> to vector<1x1x128xf32>
    %c0_13 = arith.constant 0 : index
    %c0_14 = arith.constant 0 : index
    %c0_15 = arith.constant 0 : index
    %25 = vector.load %arg6[%c0_13, %c0_14, %c0_15] : memref<1x1x128xf32, #tpu.memory_space<vmem>>, vector<1x1x128xf32>
    tpu.vector_store %arg6[%c0_13, %c0_14, %c0_15], %24 {strides = array<i32>} : memref<1x1x128xf32, #tpu.memory_space<vmem>>, vector<1x1x128xf32>,
    return
  }
  func.func @transform_0(%arg0: i32) -> (i32, i32) {
    %c0_i32 = arith.constant 0 : i32
    %c0_i32_0 = arith.constant 0 : i32
    return %arg0, %c0_i32 : i32, i32
  }
  func.func @transform_1(%arg0: i32) -> (i32, i32) {
    %c0_i32 = arith.constant 0 : i32
    %c0_i32_0 = arith.constant 0 : i32
    %c0_i32_1 = arith.constant 0 : i32
    return %c0_i32, %c0_i32_0 : i32, i32
  }
  func.func @transform_2(%arg0: i32) -> (i32, i32) {
    %c0_i32 = arith.constant 0 : i32
    %c0_i32_0 = arith.constant 0 : i32
    %c0_i32_1 = arith.constant 0 : i32
    return %c0_i32, %c0_i32_0 : i32, i32
  }
  func.func @transform_3(%arg0: i32) -> (i32, i32) {
    %c0_i32 = arith.constant 0 : i32
    %c0_i32_0 = arith.constant 0 : i32
    return %arg0, %c0_i32 : i32, i32
  }
  func.func @transform_4(%arg0: i32) -> (i32, i32, i32) {
    %c0_i32 = arith.constant 0 : i32
    %c0_i32_0 = arith.constant 0 : i32
    %c0_i32_1 = arith.constant 0 : i32
    return %arg0, %c0_i32, %c0_i32_0 : i32, i32, i32
  }
  func.func @transform_5(%arg0: i32) -> (i32, i32, i32) {
    %c0_i32 = arith.constant 0 : i32
    %c0_i32_0 = arith.constant 0 : i32
    %c0_i32_1 = arith.constant 0 : i32
    return %arg0, %c0_i32, %c0_i32_0 : i32, i32, i32
  }
}

module attributes {stable_mosaic.version = 11 : i64} {
  func.func @_gemm_bias_stats_kernel(%arg0: i32, %arg1: memref<32x128xbf16, #tpu.memory_space<vmem>>, %arg2: memref<128x64xbf16, #tpu.memory_space<vmem>>, %arg3: memref<1x64xf32, #tpu.memory_space<vmem>>, %arg4: memref<32x64xf32, #tpu.memory_space<vmem>>, %arg5: memref<1x1x64xf32, #tpu.memory_space<vmem>>, %arg6: memref<1x1x64xf32, #tpu.memory_space<vmem>>) attributes {dimension_semantics = [#tpu.dimension_semantics<parallel>], iteration_bounds = array<i64: 1>, scalar_prefetch = 0 : i64, scratch_operands = 0 : i64, tpu.core_type = #tpu.core_type<tc>, window_params = [{transform_indices = @transform_0, window_bounds = array<i64: 32, 128>}, {pipeline_mode = #tpu.pipeline_mode<synchronous>, transform_indices = @transform_1, window_bounds = array<i64: 128, 64>}, {pipeline_mode = #tpu.pipeline_mode<synchronous>, transform_indices = @transform_2, window_bounds = array<i64: 1, 64>}, {transform_indices = @transform_3, window_bounds = array<i64: 32, 64>}, {transform_indices = @transform_4, window_bounds = array<i64: 1, 1, 64>}, {transform_indices = @transform_5, window_bounds = array<i64: 1, 1, 64>}]} {
    %c0 = arith.constant 0 : index
    %c0_0 = arith.constant 0 : index
    %0 = vector.load %arg1[%c0, %c0_0] : memref<32x128xbf16, #tpu.memory_space<vmem>>, vector<32x128xbf16>
    %c0_1 = arith.constant 0 : index
    %c0_2 = arith.constant 0 : index
    %1 = vector.load %arg2[%c0_1, %c0_2] : memref<128x64xbf16, #tpu.memory_space<vmem>>, vector<128x64xbf16>
    %cst = arith.constant dense<0.000000e+00> : vector<32x64xf32>
    %2 = tpu.matmul %0, %1, %cst {dimension_numbers = #tpu.dot_dimension_numbers<[1], [0], [0], [1], [0, 0, 1, 1], [], []>} : vector<32x128xbf16>, vector<128x64xbf16>, vector<32x64xf32> -> vector<32x64xf32>
    %c0_3 = arith.constant 0 : index
    %c0_4 = arith.constant 0 : index
    %3 = vector.load %arg3[%c0_3, %c0_4] : memref<1x64xf32, #tpu.memory_space<vmem>>, vector<1x64xf32>
    %4 = vector.broadcast %3 : vector<1x64xf32> to vector<32x64xf32>
    %5 = arith.addf %2, %4 : vector<32x64xf32>
    %c0_5 = arith.constant 0 : index
    %c0_6 = arith.constant 0 : index
    %6 = vector.load %arg4[%c0_5, %c0_6] : memref<32x64xf32, #tpu.memory_space<vmem>>, vector<32x64xf32>
    tpu.vector_store %arg4[%c0_5, %c0_6], %5 {strides = array<i32>} : memref<32x64xf32, #tpu.memory_space<vmem>>, vector<32x64xf32>,
    %c32_i32 = arith.constant 32 : i32
    %7 = arith.muli %arg0, %c32_i32 : i32
    %8 = tpu.iota {dimensions = array<i32: 0>} : vector<32x1xi32>
    %9 = vector.broadcast %7 : i32 to vector<32x1xi32>
    %10 = arith.addi %9, %8 : vector<32x1xi32>
    %c32_i32_7 = arith.constant 32 : i32
    %11 = vector.broadcast %c32_i32_7 : i32 to vector<32x1xi32>
    %12 = arith.cmpi slt, %10, %11 : vector<32x1xi32>
    %13 = arith.extui %12 : vector<32x1xi1> to vector<32x1xi32>
    %14 = arith.sitofp %13 : vector<32x1xi32> to vector<32x1xf32>
    %15 = vector.broadcast %14 : vector<32x1xf32> to vector<32x64xf32>
    %16 = arith.mulf %5, %15 : vector<32x64xf32>
    %cst_8 = arith.constant dense<0.000000e+00> : vector<64xf32>
    %17 = vector.multi_reduction <add>, %16, %cst_8 [0] : vector<32x64xf32> to vector<64xf32>
    %18 = vector.shape_cast %17 : vector<64xf32> to vector<1x64xf32>
    %19 = vector.shape_cast %18 : vector<1x64xf32> to vector<1x1x64xf32>
    %c0_9 = arith.constant 0 : index
    %c0_10 = arith.constant 0 : index
    %c0_11 = arith.constant 0 : index
    %20 = vector.load %arg5[%c0_9, %c0_10, %c0_11] : memref<1x1x64xf32, #tpu.memory_space<vmem>>, vector<1x1x64xf32>
    tpu.vector_store %arg5[%c0_9, %c0_10, %c0_11], %19 {strides = array<i32>} : memref<1x1x64xf32, #tpu.memory_space<vmem>>, vector<1x1x64xf32>,
    %21 = arith.mulf %16, %5 : vector<32x64xf32>
    %cst_12 = arith.constant dense<0.000000e+00> : vector<64xf32>
    %22 = vector.multi_reduction <add>, %21, %cst_12 [0] : vector<32x64xf32> to vector<64xf32>
    %23 = vector.shape_cast %22 : vector<64xf32> to vector<1x64xf32>
    %24 = vector.shape_cast %23 : vector<1x64xf32> to vector<1x1x64xf32>
    %c0_13 = arith.constant 0 : index
    %c0_14 = arith.constant 0 : index
    %c0_15 = arith.constant 0 : index
    %25 = vector.load %arg6[%c0_13, %c0_14, %c0_15] : memref<1x1x64xf32, #tpu.memory_space<vmem>>, vector<1x1x64xf32>
    tpu.vector_store %arg6[%c0_13, %c0_14, %c0_15], %24 {strides = array<i32>} : memref<1x1x64xf32, #tpu.memory_space<vmem>>, vector<1x1x64xf32>,
    return
  }
  func.func @transform_0(%arg0: i32) -> (i32, i32) {
    %c0_i32 = arith.constant 0 : i32
    %c0_i32_0 = arith.constant 0 : i32
    return %arg0, %c0_i32 : i32, i32
  }
  func.func @transform_1(%arg0: i32) -> (i32, i32) {
    %c0_i32 = arith.constant 0 : i32
    %c0_i32_0 = arith.constant 0 : i32
    %c0_i32_1 = arith.constant 0 : i32
    return %c0_i32, %c0_i32_0 : i32, i32
  }
  func.func @transform_2(%arg0: i32) -> (i32, i32) {
    %c0_i32 = arith.constant 0 : i32
    %c0_i32_0 = arith.constant 0 : i32
    %c0_i32_1 = arith.constant 0 : i32
    return %c0_i32, %c0_i32_0 : i32, i32
  }
  func.func @transform_3(%arg0: i32) -> (i32, i32) {
    %c0_i32 = arith.constant 0 : i32
    %c0_i32_0 = arith.constant 0 : i32
    return %arg0, %c0_i32 : i32, i32
  }
  func.func @transform_4(%arg0: i32) -> (i32, i32, i32) {
    %c0_i32 = arith.constant 0 : i32
    %c0_i32_0 = arith.constant 0 : i32
    %c0_i32_1 = arith.constant 0 : i32
    return %arg0, %c0_i32, %c0_i32_0 : i32, i32, i32
  }
  func.func @transform_5(%arg0: i32) -> (i32, i32, i32) {
    %c0_i32 = arith.constant 0 : i32
    %c0_i32_0 = arith.constant 0 : i32
    %c0_i32_1 = arith.constant 0 : i32
    return %arg0, %c0_i32, %c0_i32_0 : i32, i32, i32
  }
}

module attributes {stable_mosaic.version = 11 : i64} {
  func.func @_gemm_bias_stats_kernel(%arg0: i32, %arg1: memref<256x147xbf16, #tpu.memory_space<vmem>>, %arg2: memref<147x8xbf16, #tpu.memory_space<vmem>>, %arg3: memref<1x8xf32, #tpu.memory_space<vmem>>, %arg4: memref<256x8xf32, #tpu.memory_space<vmem>>, %arg5: memref<1x1x8xf32, #tpu.memory_space<vmem>>, %arg6: memref<1x1x8xf32, #tpu.memory_space<vmem>>) attributes {dimension_semantics = [#tpu.dimension_semantics<parallel>], iteration_bounds = array<i64: 2>, scalar_prefetch = 0 : i64, scratch_operands = 0 : i64, tpu.core_type = #tpu.core_type<tc>, window_params = [{transform_indices = @transform_0, window_bounds = array<i64: 256, 147>}, {pipeline_mode = #tpu.pipeline_mode<synchronous>, transform_indices = @transform_1, window_bounds = array<i64: 147, 8>}, {pipeline_mode = #tpu.pipeline_mode<synchronous>, transform_indices = @transform_2, window_bounds = array<i64: 1, 8>}, {transform_indices = @transform_3, window_bounds = array<i64: 256, 8>}, {transform_indices = @transform_4, window_bounds = array<i64: 1, 1, 8>}, {transform_indices = @transform_5, window_bounds = array<i64: 1, 1, 8>}]} {
    %c0 = arith.constant 0 : index
    %c0_0 = arith.constant 0 : index
    %0 = vector.load %arg1[%c0, %c0_0] : memref<256x147xbf16, #tpu.memory_space<vmem>>, vector<256x147xbf16>
    %c0_1 = arith.constant 0 : index
    %c0_2 = arith.constant 0 : index
    %1 = vector.load %arg2[%c0_1, %c0_2] : memref<147x8xbf16, #tpu.memory_space<vmem>>, vector<147x8xbf16>
    %cst = arith.constant dense<0.000000e+00> : vector<256x8xf32>
    %2 = tpu.matmul %0, %1, %cst {dimension_numbers = #tpu.dot_dimension_numbers<[1], [0], [0], [1], [0, 0, 1, 1], [], []>} : vector<256x147xbf16>, vector<147x8xbf16>, vector<256x8xf32> -> vector<256x8xf32>
    %c0_3 = arith.constant 0 : index
    %c0_4 = arith.constant 0 : index
    %3 = vector.load %arg3[%c0_3, %c0_4] : memref<1x8xf32, #tpu.memory_space<vmem>>, vector<1x8xf32>
    %4 = vector.broadcast %3 : vector<1x8xf32> to vector<256x8xf32>
    %5 = arith.addf %2, %4 : vector<256x8xf32>
    %c0_5 = arith.constant 0 : index
    %c0_6 = arith.constant 0 : index
    %6 = vector.load %arg4[%c0_5, %c0_6] : memref<256x8xf32, #tpu.memory_space<vmem>>, vector<256x8xf32>
    tpu.vector_store %arg4[%c0_5, %c0_6], %5 {strides = array<i32>} : memref<256x8xf32, #tpu.memory_space<vmem>>, vector<256x8xf32>,
    %c256_i32 = arith.constant 256 : i32
    %7 = arith.muli %arg0, %c256_i32 : i32
    %8 = tpu.iota {dimensions = array<i32: 0>} : vector<256x1xi32>
    %9 = vector.broadcast %7 : i32 to vector<256x1xi32>
    %10 = arith.addi %9, %8 : vector<256x1xi32>
    %c512_i32 = arith.constant 512 : i32
    %11 = vector.broadcast %c512_i32 : i32 to vector<256x1xi32>
    %12 = arith.cmpi slt, %10, %11 : vector<256x1xi32>
    %13 = arith.extui %12 : vector<256x1xi1> to vector<256x1xi32>
    %14 = arith.sitofp %13 : vector<256x1xi32> to vector<256x1xf32>
    %15 = vector.broadcast %14 : vector<256x1xf32> to vector<256x8xf32>
    %16 = arith.mulf %5, %15 : vector<256x8xf32>
    %cst_7 = arith.constant dense<0.000000e+00> : vector<8xf32>
    %17 = vector.multi_reduction <add>, %16, %cst_7 [0] : vector<256x8xf32> to vector<8xf32>
    %18 = vector.shape_cast %17 : vector<8xf32> to vector<1x8xf32>
    %19 = vector.shape_cast %18 : vector<1x8xf32> to vector<1x1x8xf32>
    %c0_8 = arith.constant 0 : index
    %c0_9 = arith.constant 0 : index
    %c0_10 = arith.constant 0 : index
    %20 = vector.load %arg5[%c0_8, %c0_9, %c0_10] : memref<1x1x8xf32, #tpu.memory_space<vmem>>, vector<1x1x8xf32>
    tpu.vector_store %arg5[%c0_8, %c0_9, %c0_10], %19 {strides = array<i32>} : memref<1x1x8xf32, #tpu.memory_space<vmem>>, vector<1x1x8xf32>,
    %21 = arith.mulf %16, %5 : vector<256x8xf32>
    %cst_11 = arith.constant dense<0.000000e+00> : vector<8xf32>
    %22 = vector.multi_reduction <add>, %21, %cst_11 [0] : vector<256x8xf32> to vector<8xf32>
    %23 = vector.shape_cast %22 : vector<8xf32> to vector<1x8xf32>
    %24 = vector.shape_cast %23 : vector<1x8xf32> to vector<1x1x8xf32>
    %c0_12 = arith.constant 0 : index
    %c0_13 = arith.constant 0 : index
    %c0_14 = arith.constant 0 : index
    %25 = vector.load %arg6[%c0_12, %c0_13, %c0_14] : memref<1x1x8xf32, #tpu.memory_space<vmem>>, vector<1x1x8xf32>
    tpu.vector_store %arg6[%c0_12, %c0_13, %c0_14], %24 {strides = array<i32>} : memref<1x1x8xf32, #tpu.memory_space<vmem>>, vector<1x1x8xf32>,
    return
  }
  func.func @transform_0(%arg0: i32) -> (i32, i32) {
    %c0_i32 = arith.constant 0 : i32
    %c0_i32_0 = arith.constant 0 : i32
    return %arg0, %c0_i32 : i32, i32
  }
  func.func @transform_1(%arg0: i32) -> (i32, i32) {
    %c0_i32 = arith.constant 0 : i32
    %c0_i32_0 = arith.constant 0 : i32
    %c0_i32_1 = arith.constant 0 : i32
    return %c0_i32, %c0_i32_0 : i32, i32
  }
  func.func @transform_2(%arg0: i32) -> (i32, i32) {
    %c0_i32 = arith.constant 0 : i32
    %c0_i32_0 = arith.constant 0 : i32
    %c0_i32_1 = arith.constant 0 : i32
    return %c0_i32, %c0_i32_0 : i32, i32
  }
  func.func @transform_3(%arg0: i32) -> (i32, i32) {
    %c0_i32 = arith.constant 0 : i32
    %c0_i32_0 = arith.constant 0 : i32
    return %arg0, %c0_i32 : i32, i32
  }
  func.func @transform_4(%arg0: i32) -> (i32, i32, i32) {
    %c0_i32 = arith.constant 0 : i32
    %c0_i32_0 = arith.constant 0 : i32
    %c0_i32_1 = arith.constant 0 : i32
    return %arg0, %c0_i32, %c0_i32_0 : i32, i32, i32
  }
  func.func @transform_5(%arg0: i32) -> (i32, i32, i32) {
    %c0_i32 = arith.constant 0 : i32
    %c0_i32_0 = arith.constant 0 : i32
    %c0_i32_1 = arith.constant 0 : i32
    return %arg0, %c0_i32, %c0_i32_0 : i32, i32, i32
  }
}

module attributes {stable_mosaic.version = 11 : i64} {
  func.func @_scale_act_kernel(%arg0: i32, %arg1: memref<8x512xf32, #tpu.memory_space<vmem>>, %arg2: memref<1x512xf32, #tpu.memory_space<vmem>>, %arg3: memref<1x512xf32, #tpu.memory_space<vmem>>, %arg4: memref<8x512xf32, #tpu.memory_space<vmem>>) attributes {dimension_semantics = [#tpu.dimension_semantics<parallel>], iteration_bounds = array<i64: 1>, scalar_prefetch = 0 : i64, scratch_operands = 0 : i64, tpu.core_type = #tpu.core_type<tc>, window_params = [{transform_indices = @transform_0, window_bounds = array<i64: 8, 512>}, {pipeline_mode = #tpu.pipeline_mode<synchronous>, transform_indices = @transform_1, window_bounds = array<i64: 1, 512>}, {pipeline_mode = #tpu.pipeline_mode<synchronous>, transform_indices = @transform_2, window_bounds = array<i64: 1, 512>}, {transform_indices = @transform_3, window_bounds = array<i64: 8, 512>}]} {
    %c0 = arith.constant 0 : index
    %c0_0 = arith.constant 0 : index
    %0 = vector.load %arg1[%c0, %c0_0] : memref<8x512xf32, #tpu.memory_space<vmem>>, vector<8x512xf32>
    %c0_1 = arith.constant 0 : index
    %c0_2 = arith.constant 0 : index
    %1 = vector.load %arg2[%c0_1, %c0_2] : memref<1x512xf32, #tpu.memory_space<vmem>>, vector<1x512xf32>
    %2 = vector.broadcast %1 : vector<1x512xf32> to vector<8x512xf32>
    %3 = arith.mulf %0, %2 : vector<8x512xf32>
    %c0_3 = arith.constant 0 : index
    %c0_4 = arith.constant 0 : index
    %4 = vector.load %arg3[%c0_3, %c0_4] : memref<1x512xf32, #tpu.memory_space<vmem>>, vector<1x512xf32>
    %5 = vector.broadcast %4 : vector<1x512xf32> to vector<8x512xf32>
    %6 = arith.addf %3, %5 : vector<8x512xf32>
    %cst = arith.constant 0.000000e+00 : f32
    %7 = vector.broadcast %cst : f32 to vector<8x512xf32>
    %8 = arith.maximumf %6, %7 : vector<8x512xf32>
    %c0_5 = arith.constant 0 : index
    %c0_6 = arith.constant 0 : index
    %9 = vector.load %arg4[%c0_5, %c0_6] : memref<8x512xf32, #tpu.memory_space<vmem>>, vector<8x512xf32>
    tpu.vector_store %arg4[%c0_5, %c0_6], %8 {strides = array<i32>} : memref<8x512xf32, #tpu.memory_space<vmem>>, vector<8x512xf32>,
    return
  }
  func.func @transform_0(%arg0: i32) -> (i32, i32) {
    %c0_i32 = arith.constant 0 : i32
    %c0_i32_0 = arith.constant 0 : i32
    return %arg0, %c0_i32 : i32, i32
  }
  func.func @transform_1(%arg0: i32) -> (i32, i32) {
    %c0_i32 = arith.constant 0 : i32
    %c0_i32_0 = arith.constant 0 : i32
    %c0_i32_1 = arith.constant 0 : i32
    return %c0_i32, %c0_i32_0 : i32, i32
  }
  func.func @transform_2(%arg0: i32) -> (i32, i32) {
    %c0_i32 = arith.constant 0 : i32
    %c0_i32_0 = arith.constant 0 : i32
    %c0_i32_1 = arith.constant 0 : i32
    return %c0_i32, %c0_i32_0 : i32, i32
  }
  func.func @transform_3(%arg0: i32) -> (i32, i32) {
    %c0_i32 = arith.constant 0 : i32
    %c0_i32_0 = arith.constant 0 : i32
    return %arg0, %c0_i32 : i32, i32
  }
}

module attributes {stable_mosaic.version = 11 : i64} {
  func.func @_gemm_bias_stats_kernel(%arg0: i32, %arg1: memref<128x72xbf16, #tpu.memory_space<vmem>>, %arg2: memref<72x16xbf16, #tpu.memory_space<vmem>>, %arg3: memref<1x16xf32, #tpu.memory_space<vmem>>, %arg4: memref<128x16xf32, #tpu.memory_space<vmem>>, %arg5: memref<1x1x16xf32, #tpu.memory_space<vmem>>, %arg6: memref<1x1x16xf32, #tpu.memory_space<vmem>>) attributes {dimension_semantics = [#tpu.dimension_semantics<parallel>], iteration_bounds = array<i64: 1>, scalar_prefetch = 0 : i64, scratch_operands = 0 : i64, tpu.core_type = #tpu.core_type<tc>, window_params = [{transform_indices = @transform_0, window_bounds = array<i64: 128, 72>}, {pipeline_mode = #tpu.pipeline_mode<synchronous>, transform_indices = @transform_1, window_bounds = array<i64: 72, 16>}, {pipeline_mode = #tpu.pipeline_mode<synchronous>, transform_indices = @transform_2, window_bounds = array<i64: 1, 16>}, {transform_indices = @transform_3, window_bounds = array<i64: 128, 16>}, {transform_indices = @transform_4, window_bounds = array<i64: 1, 1, 16>}, {transform_indices = @transform_5, window_bounds = array<i64: 1, 1, 16>}]} {
    %c0 = arith.constant 0 : index
    %c0_0 = arith.constant 0 : index
    %0 = vector.load %arg1[%c0, %c0_0] : memref<128x72xbf16, #tpu.memory_space<vmem>>, vector<128x72xbf16>
    %c0_1 = arith.constant 0 : index
    %c0_2 = arith.constant 0 : index
    %1 = vector.load %arg2[%c0_1, %c0_2] : memref<72x16xbf16, #tpu.memory_space<vmem>>, vector<72x16xbf16>
    %cst = arith.constant dense<0.000000e+00> : vector<128x16xf32>
    %2 = tpu.matmul %0, %1, %cst {dimension_numbers = #tpu.dot_dimension_numbers<[1], [0], [0], [1], [0, 0, 1, 1], [], []>} : vector<128x72xbf16>, vector<72x16xbf16>, vector<128x16xf32> -> vector<128x16xf32>
    %c0_3 = arith.constant 0 : index
    %c0_4 = arith.constant 0 : index
    %3 = vector.load %arg3[%c0_3, %c0_4] : memref<1x16xf32, #tpu.memory_space<vmem>>, vector<1x16xf32>
    %4 = vector.broadcast %3 : vector<1x16xf32> to vector<128x16xf32>
    %5 = arith.addf %2, %4 : vector<128x16xf32>
    %c0_5 = arith.constant 0 : index
    %c0_6 = arith.constant 0 : index
    %6 = vector.load %arg4[%c0_5, %c0_6] : memref<128x16xf32, #tpu.memory_space<vmem>>, vector<128x16xf32>
    tpu.vector_store %arg4[%c0_5, %c0_6], %5 {strides = array<i32>} : memref<128x16xf32, #tpu.memory_space<vmem>>, vector<128x16xf32>,
    %c128_i32 = arith.constant 128 : i32
    %7 = arith.muli %arg0, %c128_i32 : i32
    %8 = tpu.iota {dimensions = array<i32: 0>} : vector<128x1xi32>
    %9 = vector.broadcast %7 : i32 to vector<128x1xi32>
    %10 = arith.addi %9, %8 : vector<128x1xi32>
    %c128_i32_7 = arith.constant 128 : i32
    %11 = vector.broadcast %c128_i32_7 : i32 to vector<128x1xi32>
    %12 = arith.cmpi slt, %10, %11 : vector<128x1xi32>
    %13 = arith.extui %12 : vector<128x1xi1> to vector<128x1xi32>
    %14 = arith.sitofp %13 : vector<128x1xi32> to vector<128x1xf32>
    %15 = vector.broadcast %14 : vector<128x1xf32> to vector<128x16xf32>
    %16 = arith.mulf %5, %15 : vector<128x16xf32>
    %cst_8 = arith.constant dense<0.000000e+00> : vector<16xf32>
    %17 = vector.multi_reduction <add>, %16, %cst_8 [0] : vector<128x16xf32> to vector<16xf32>
    %18 = vector.shape_cast %17 : vector<16xf32> to vector<1x16xf32>
    %19 = vector.shape_cast %18 : vector<1x16xf32> to vector<1x1x16xf32>
    %c0_9 = arith.constant 0 : index
    %c0_10 = arith.constant 0 : index
    %c0_11 = arith.constant 0 : index
    %20 = vector.load %arg5[%c0_9, %c0_10, %c0_11] : memref<1x1x16xf32, #tpu.memory_space<vmem>>, vector<1x1x16xf32>
    tpu.vector_store %arg5[%c0_9, %c0_10, %c0_11], %19 {strides = array<i32>} : memref<1x1x16xf32, #tpu.memory_space<vmem>>, vector<1x1x16xf32>,
    %21 = arith.mulf %16, %5 : vector<128x16xf32>
    %cst_12 = arith.constant dense<0.000000e+00> : vector<16xf32>
    %22 = vector.multi_reduction <add>, %21, %cst_12 [0] : vector<128x16xf32> to vector<16xf32>
    %23 = vector.shape_cast %22 : vector<16xf32> to vector<1x16xf32>
    %24 = vector.shape_cast %23 : vector<1x16xf32> to vector<1x1x16xf32>
    %c0_13 = arith.constant 0 : index
    %c0_14 = arith.constant 0 : index
    %c0_15 = arith.constant 0 : index
    %25 = vector.load %arg6[%c0_13, %c0_14, %c0_15] : memref<1x1x16xf32, #tpu.memory_space<vmem>>, vector<1x1x16xf32>
    tpu.vector_store %arg6[%c0_13, %c0_14, %c0_15], %24 {strides = array<i32>} : memref<1x1x16xf32, #tpu.memory_space<vmem>>, vector<1x1x16xf32>,
    return
  }
  func.func @transform_0(%arg0: i32) -> (i32, i32) {
    %c0_i32 = arith.constant 0 : i32
    %c0_i32_0 = arith.constant 0 : i32
    return %arg0, %c0_i32 : i32, i32
  }
  func.func @transform_1(%arg0: i32) -> (i32, i32) {
    %c0_i32 = arith.constant 0 : i32
    %c0_i32_0 = arith.constant 0 : i32
    %c0_i32_1 = arith.constant 0 : i32
    return %c0_i32, %c0_i32_0 : i32, i32
  }
  func.func @transform_2(%arg0: i32) -> (i32, i32) {
    %c0_i32 = arith.constant 0 : i32
    %c0_i32_0 = arith.constant 0 : i32
    %c0_i32_1 = arith.constant 0 : i32
    return %c0_i32, %c0_i32_0 : i32, i32
  }
  func.func @transform_3(%arg0: i32) -> (i32, i32) {
    %c0_i32 = arith.constant 0 : i32
    %c0_i32_0 = arith.constant 0 : i32
    return %arg0, %c0_i32 : i32, i32
  }
  func.func @transform_4(%arg0: i32) -> (i32, i32, i32) {
    %c0_i32 = arith.constant 0 : i32
    %c0_i32_0 = arith.constant 0 : i32
    %c0_i32_1 = arith.constant 0 : i32
    return %arg0, %c0_i32, %c0_i32_0 : i32, i32, i32
  }
  func.func @transform_5(%arg0: i32) -> (i32, i32, i32) {
    %c0_i32 = arith.constant 0 : i32
    %c0_i32_0 = arith.constant 0 : i32
    %c0_i32_1 = arith.constant 0 : i32
    return %arg0, %c0_i32, %c0_i32_0 : i32, i32, i32
  }
}

module attributes {stable_mosaic.version = 11 : i64} {
  func.func @_scale_act_res_kernel(%arg0: i32, %arg1: memref<4x512xf32, #tpu.memory_space<vmem>>, %arg2: memref<1x512xf32, #tpu.memory_space<vmem>>, %arg3: memref<1x512xf32, #tpu.memory_space<vmem>>, %arg4: memref<4x512xf32, #tpu.memory_space<vmem>>, %arg5: memref<4x512xf32, #tpu.memory_space<vmem>>) attributes {dimension_semantics = [#tpu.dimension_semantics<parallel>], iteration_bounds = array<i64: 1>, scalar_prefetch = 0 : i64, scratch_operands = 0 : i64, tpu.core_type = #tpu.core_type<tc>, window_params = [{transform_indices = @transform_0, window_bounds = array<i64: 4, 512>}, {pipeline_mode = #tpu.pipeline_mode<synchronous>, transform_indices = @transform_1, window_bounds = array<i64: 1, 512>}, {pipeline_mode = #tpu.pipeline_mode<synchronous>, transform_indices = @transform_2, window_bounds = array<i64: 1, 512>}, {transform_indices = @transform_3, window_bounds = array<i64: 4, 512>}, {transform_indices = @transform_4, window_bounds = array<i64: 4, 512>}]} {
    %c0 = arith.constant 0 : index
    %c0_0 = arith.constant 0 : index
    %0 = vector.load %arg1[%c0, %c0_0] : memref<4x512xf32, #tpu.memory_space<vmem>>, vector<4x512xf32>
    %c0_1 = arith.constant 0 : index
    %c0_2 = arith.constant 0 : index
    %1 = vector.load %arg2[%c0_1, %c0_2] : memref<1x512xf32, #tpu.memory_space<vmem>>, vector<1x512xf32>
    %2 = vector.broadcast %1 : vector<1x512xf32> to vector<4x512xf32>
    %3 = arith.mulf %0, %2 : vector<4x512xf32>
    %c0_3 = arith.constant 0 : index
    %c0_4 = arith.constant 0 : index
    %4 = vector.load %arg3[%c0_3, %c0_4] : memref<1x512xf32, #tpu.memory_space<vmem>>, vector<1x512xf32>
    %5 = vector.broadcast %4 : vector<1x512xf32> to vector<4x512xf32>
    %6 = arith.addf %3, %5 : vector<4x512xf32>
    %cst = arith.constant 0.000000e+00 : f32
    %7 = vector.broadcast %cst : f32 to vector<4x512xf32>
    %8 = arith.maximumf %6, %7 : vector<4x512xf32>
    %c0_5 = arith.constant 0 : index
    %c0_6 = arith.constant 0 : index
    %9 = vector.load %arg4[%c0_5, %c0_6] : memref<4x512xf32, #tpu.memory_space<vmem>>, vector<4x512xf32>
    %10 = arith.addf %8, %9 : vector<4x512xf32>
    %c0_7 = arith.constant 0 : index
    %c0_8 = arith.constant 0 : index
    %11 = vector.load %arg5[%c0_7, %c0_8] : memref<4x512xf32, #tpu.memory_space<vmem>>, vector<4x512xf32>
    tpu.vector_store %arg5[%c0_7, %c0_8], %10 {strides = array<i32>} : memref<4x512xf32, #tpu.memory_space<vmem>>, vector<4x512xf32>,
    return
  }
  func.func @transform_0(%arg0: i32) -> (i32, i32) {
    %c0_i32 = arith.constant 0 : i32
    %c0_i32_0 = arith.constant 0 : i32
    return %arg0, %c0_i32 : i32, i32
  }
  func.func @transform_1(%arg0: i32) -> (i32, i32) {
    %c0_i32 = arith.constant 0 : i32
    %c0_i32_0 = arith.constant 0 : i32
    %c0_i32_1 = arith.constant 0 : i32
    return %c0_i32, %c0_i32_0 : i32, i32
  }
  func.func @transform_2(%arg0: i32) -> (i32, i32) {
    %c0_i32 = arith.constant 0 : i32
    %c0_i32_0 = arith.constant 0 : i32
    %c0_i32_1 = arith.constant 0 : i32
    return %c0_i32, %c0_i32_0 : i32, i32
  }
  func.func @transform_3(%arg0: i32) -> (i32, i32) {
    %c0_i32 = arith.constant 0 : i32
    %c0_i32_0 = arith.constant 0 : i32
    return %arg0, %c0_i32 : i32, i32
  }
  func.func @transform_4(%arg0: i32) -> (i32, i32) {
    %c0_i32 = arith.constant 0 : i32
    %c0_i32_0 = arith.constant 0 : i32
    return %arg0, %c0_i32 : i32, i32
  }
}

module attributes {stable_mosaic.version = 11 : i64} {
  func.func @_gemm_bias_stats_kernel(%arg0: i32, %arg1: memref<128x144xbf16, #tpu.memory_space<vmem>>, %arg2: memref<144x16xbf16, #tpu.memory_space<vmem>>, %arg3: memref<1x16xf32, #tpu.memory_space<vmem>>, %arg4: memref<128x16xf32, #tpu.memory_space<vmem>>, %arg5: memref<1x1x16xf32, #tpu.memory_space<vmem>>, %arg6: memref<1x1x16xf32, #tpu.memory_space<vmem>>) attributes {dimension_semantics = [#tpu.dimension_semantics<parallel>], iteration_bounds = array<i64: 1>, scalar_prefetch = 0 : i64, scratch_operands = 0 : i64, tpu.core_type = #tpu.core_type<tc>, window_params = [{transform_indices = @transform_0, window_bounds = array<i64: 128, 144>}, {pipeline_mode = #tpu.pipeline_mode<synchronous>, transform_indices = @transform_1, window_bounds = array<i64: 144, 16>}, {pipeline_mode = #tpu.pipeline_mode<synchronous>, transform_indices = @transform_2, window_bounds = array<i64: 1, 16>}, {transform_indices = @transform_3, window_bounds = array<i64: 128, 16>}, {transform_indices = @transform_4, window_bounds = array<i64: 1, 1, 16>}, {transform_indices = @transform_5, window_bounds = array<i64: 1, 1, 16>}]} {
    %c0 = arith.constant 0 : index
    %c0_0 = arith.constant 0 : index
    %0 = vector.load %arg1[%c0, %c0_0] : memref<128x144xbf16, #tpu.memory_space<vmem>>, vector<128x144xbf16>
    %c0_1 = arith.constant 0 : index
    %c0_2 = arith.constant 0 : index
    %1 = vector.load %arg2[%c0_1, %c0_2] : memref<144x16xbf16, #tpu.memory_space<vmem>>, vector<144x16xbf16>
    %cst = arith.constant dense<0.000000e+00> : vector<128x16xf32>
    %2 = tpu.matmul %0, %1, %cst {dimension_numbers = #tpu.dot_dimension_numbers<[1], [0], [0], [1], [0, 0, 1, 1], [], []>} : vector<128x144xbf16>, vector<144x16xbf16>, vector<128x16xf32> -> vector<128x16xf32>
    %c0_3 = arith.constant 0 : index
    %c0_4 = arith.constant 0 : index
    %3 = vector.load %arg3[%c0_3, %c0_4] : memref<1x16xf32, #tpu.memory_space<vmem>>, vector<1x16xf32>
    %4 = vector.broadcast %3 : vector<1x16xf32> to vector<128x16xf32>
    %5 = arith.addf %2, %4 : vector<128x16xf32>
    %c0_5 = arith.constant 0 : index
    %c0_6 = arith.constant 0 : index
    %6 = vector.load %arg4[%c0_5, %c0_6] : memref<128x16xf32, #tpu.memory_space<vmem>>, vector<128x16xf32>
    tpu.vector_store %arg4[%c0_5, %c0_6], %5 {strides = array<i32>} : memref<128x16xf32, #tpu.memory_space<vmem>>, vector<128x16xf32>,
    %c128_i32 = arith.constant 128 : i32
    %7 = arith.muli %arg0, %c128_i32 : i32
    %8 = tpu.iota {dimensions = array<i32: 0>} : vector<128x1xi32>
    %9 = vector.broadcast %7 : i32 to vector<128x1xi32>
    %10 = arith.addi %9, %8 : vector<128x1xi32>
    %c128_i32_7 = arith.constant 128 : i32
    %11 = vector.broadcast %c128_i32_7 : i32 to vector<128x1xi32>
    %12 = arith.cmpi slt, %10, %11 : vector<128x1xi32>
    %13 = arith.extui %12 : vector<128x1xi1> to vector<128x1xi32>
    %14 = arith.sitofp %13 : vector<128x1xi32> to vector<128x1xf32>
    %15 = vector.broadcast %14 : vector<128x1xf32> to vector<128x16xf32>
    %16 = arith.mulf %5, %15 : vector<128x16xf32>
    %cst_8 = arith.constant dense<0.000000e+00> : vector<16xf32>
    %17 = vector.multi_reduction <add>, %16, %cst_8 [0] : vector<128x16xf32> to vector<16xf32>
    %18 = vector.shape_cast %17 : vector<16xf32> to vector<1x16xf32>
    %19 = vector.shape_cast %18 : vector<1x16xf32> to vector<1x1x16xf32>
    %c0_9 = arith.constant 0 : index
    %c0_10 = arith.constant 0 : index
    %c0_11 = arith.constant 0 : index
    %20 = vector.load %arg5[%c0_9, %c0_10, %c0_11] : memref<1x1x16xf32, #tpu.memory_space<vmem>>, vector<1x1x16xf32>
    tpu.vector_store %arg5[%c0_9, %c0_10, %c0_11], %19 {strides = array<i32>} : memref<1x1x16xf32, #tpu.memory_space<vmem>>, vector<1x1x16xf32>,
    %21 = arith.mulf %16, %5 : vector<128x16xf32>
    %cst_12 = arith.constant dense<0.000000e+00> : vector<16xf32>
    %22 = vector.multi_reduction <add>, %21, %cst_12 [0] : vector<128x16xf32> to vector<16xf32>
    %23 = vector.shape_cast %22 : vector<16xf32> to vector<1x16xf32>
    %24 = vector.shape_cast %23 : vector<1x16xf32> to vector<1x1x16xf32>
    %c0_13 = arith.constant 0 : index
    %c0_14 = arith.constant 0 : index
    %c0_15 = arith.constant 0 : index
    %25 = vector.load %arg6[%c0_13, %c0_14, %c0_15] : memref<1x1x16xf32, #tpu.memory_space<vmem>>, vector<1x1x16xf32>
    tpu.vector_store %arg6[%c0_13, %c0_14, %c0_15], %24 {strides = array<i32>} : memref<1x1x16xf32, #tpu.memory_space<vmem>>, vector<1x1x16xf32>,
    return
  }
  func.func @transform_0(%arg0: i32) -> (i32, i32) {
    %c0_i32 = arith.constant 0 : i32
    %c0_i32_0 = arith.constant 0 : i32
    return %arg0, %c0_i32 : i32, i32
  }
  func.func @transform_1(%arg0: i32) -> (i32, i32) {
    %c0_i32 = arith.constant 0 : i32
    %c0_i32_0 = arith.constant 0 : i32
    %c0_i32_1 = arith.constant 0 : i32
    return %c0_i32, %c0_i32_0 : i32, i32
  }
  func.func @transform_2(%arg0: i32) -> (i32, i32) {
    %c0_i32 = arith.constant 0 : i32
    %c0_i32_0 = arith.constant 0 : i32
    %c0_i32_1 = arith.constant 0 : i32
    return %c0_i32, %c0_i32_0 : i32, i32
  }
  func.func @transform_3(%arg0: i32) -> (i32, i32) {
    %c0_i32 = arith.constant 0 : i32
    %c0_i32_0 = arith.constant 0 : i32
    return %arg0, %c0_i32 : i32, i32
  }
  func.func @transform_4(%arg0: i32) -> (i32, i32, i32) {
    %c0_i32 = arith.constant 0 : i32
    %c0_i32_0 = arith.constant 0 : i32
    %c0_i32_1 = arith.constant 0 : i32
    return %arg0, %c0_i32, %c0_i32_0 : i32, i32, i32
  }
  func.func @transform_5(%arg0: i32) -> (i32, i32, i32) {
    %c0_i32 = arith.constant 0 : i32
    %c0_i32_0 = arith.constant 0 : i32
    %c0_i32_1 = arith.constant 0 : i32
    return %arg0, %c0_i32, %c0_i32_0 : i32, i32, i32
  }
}

module attributes {stable_mosaic.version = 11 : i64} {
  func.func @_scale_act_res_kernel(%arg0: i32, %arg1: memref<4x512xf32, #tpu.memory_space<vmem>>, %arg2: memref<1x512xf32, #tpu.memory_space<vmem>>, %arg3: memref<1x512xf32, #tpu.memory_space<vmem>>, %arg4: memref<4x512xf32, #tpu.memory_space<vmem>>, %arg5: memref<4x512xf32, #tpu.memory_space<vmem>>) attributes {dimension_semantics = [#tpu.dimension_semantics<parallel>], iteration_bounds = array<i64: 1>, scalar_prefetch = 0 : i64, scratch_operands = 0 : i64, tpu.core_type = #tpu.core_type<tc>, window_params = [{transform_indices = @transform_0, window_bounds = array<i64: 4, 512>}, {pipeline_mode = #tpu.pipeline_mode<synchronous>, transform_indices = @transform_1, window_bounds = array<i64: 1, 512>}, {pipeline_mode = #tpu.pipeline_mode<synchronous>, transform_indices = @transform_2, window_bounds = array<i64: 1, 512>}, {transform_indices = @transform_3, window_bounds = array<i64: 4, 512>}, {transform_indices = @transform_4, window_bounds = array<i64: 4, 512>}]} {
    %c0 = arith.constant 0 : index
    %c0_0 = arith.constant 0 : index
    %0 = vector.load %arg1[%c0, %c0_0] : memref<4x512xf32, #tpu.memory_space<vmem>>, vector<4x512xf32>
    %c0_1 = arith.constant 0 : index
    %c0_2 = arith.constant 0 : index
    %1 = vector.load %arg2[%c0_1, %c0_2] : memref<1x512xf32, #tpu.memory_space<vmem>>, vector<1x512xf32>
    %2 = vector.broadcast %1 : vector<1x512xf32> to vector<4x512xf32>
    %3 = arith.mulf %0, %2 : vector<4x512xf32>
    %c0_3 = arith.constant 0 : index
    %c0_4 = arith.constant 0 : index
    %4 = vector.load %arg3[%c0_3, %c0_4] : memref<1x512xf32, #tpu.memory_space<vmem>>, vector<1x512xf32>
    %5 = vector.broadcast %4 : vector<1x512xf32> to vector<4x512xf32>
    %6 = arith.addf %3, %5 : vector<4x512xf32>
    %c0_5 = arith.constant 0 : index
    %c0_6 = arith.constant 0 : index
    %7 = vector.load %arg4[%c0_5, %c0_6] : memref<4x512xf32, #tpu.memory_space<vmem>>, vector<4x512xf32>
    %8 = arith.addf %6, %7 : vector<4x512xf32>
    %c0_7 = arith.constant 0 : index
    %c0_8 = arith.constant 0 : index
    %9 = vector.load %arg5[%c0_7, %c0_8] : memref<4x512xf32, #tpu.memory_space<vmem>>, vector<4x512xf32>
    tpu.vector_store %arg5[%c0_7, %c0_8], %8 {strides = array<i32>} : memref<4x512xf32, #tpu.memory_space<vmem>>, vector<4x512xf32>,
    return
  }
  func.func @transform_0(%arg0: i32) -> (i32, i32) {
    %c0_i32 = arith.constant 0 : i32
    %c0_i32_0 = arith.constant 0 : i32
    return %arg0, %c0_i32 : i32, i32
  }
  func.func @transform_1(%arg0: i32) -> (i32, i32) {
    %c0_i32 = arith.constant 0 : i32
    %c0_i32_0 = arith.constant 0 : i32
    %c0_i32_1 = arith.constant 0 : i32
    return %c0_i32, %c0_i32_0 : i32, i32
  }
  func.func @transform_2(%arg0: i32) -> (i32, i32) {
    %c0_i32 = arith.constant 0 : i32
    %c0_i32_0 = arith.constant 0 : i32
    %c0_i32_1 = arith.constant 0 : i32
    return %c0_i32, %c0_i32_0 : i32, i32
  }
  func.func @transform_3(%arg0: i32) -> (i32, i32) {
    %c0_i32 = arith.constant 0 : i32
    %c0_i32_0 = arith.constant 0 : i32
    return %arg0, %c0_i32 : i32, i32
  }
  func.func @transform_4(%arg0: i32) -> (i32, i32) {
    %c0_i32 = arith.constant 0 : i32
    %c0_i32_0 = arith.constant 0 : i32
    return %arg0, %c0_i32 : i32, i32
  }
}

module attributes {stable_mosaic.version = 11 : i64} {
  func.func @_gemm_bias_stats_kernel(%arg0: i32, %arg1: memref<128x64xbf16, #tpu.memory_space<vmem>>, %arg2: memref<64x32xbf16, #tpu.memory_space<vmem>>, %arg3: memref<1x32xf32, #tpu.memory_space<vmem>>, %arg4: memref<128x32xf32, #tpu.memory_space<vmem>>, %arg5: memref<1x1x32xf32, #tpu.memory_space<vmem>>, %arg6: memref<1x1x32xf32, #tpu.memory_space<vmem>>) attributes {dimension_semantics = [#tpu.dimension_semantics<parallel>], iteration_bounds = array<i64: 1>, scalar_prefetch = 0 : i64, scratch_operands = 0 : i64, tpu.core_type = #tpu.core_type<tc>, window_params = [{transform_indices = @transform_0, window_bounds = array<i64: 128, 64>}, {pipeline_mode = #tpu.pipeline_mode<synchronous>, transform_indices = @transform_1, window_bounds = array<i64: 64, 32>}, {pipeline_mode = #tpu.pipeline_mode<synchronous>, transform_indices = @transform_2, window_bounds = array<i64: 1, 32>}, {transform_indices = @transform_3, window_bounds = array<i64: 128, 32>}, {transform_indices = @transform_4, window_bounds = array<i64: 1, 1, 32>}, {transform_indices = @transform_5, window_bounds = array<i64: 1, 1, 32>}]} {
    %c0 = arith.constant 0 : index
    %c0_0 = arith.constant 0 : index
    %0 = vector.load %arg1[%c0, %c0_0] : memref<128x64xbf16, #tpu.memory_space<vmem>>, vector<128x64xbf16>
    %c0_1 = arith.constant 0 : index
    %c0_2 = arith.constant 0 : index
    %1 = vector.load %arg2[%c0_1, %c0_2] : memref<64x32xbf16, #tpu.memory_space<vmem>>, vector<64x32xbf16>
    %cst = arith.constant dense<0.000000e+00> : vector<128x32xf32>
    %2 = tpu.matmul %0, %1, %cst {dimension_numbers = #tpu.dot_dimension_numbers<[1], [0], [0], [1], [0, 0, 1, 1], [], []>} : vector<128x64xbf16>, vector<64x32xbf16>, vector<128x32xf32> -> vector<128x32xf32>
    %c0_3 = arith.constant 0 : index
    %c0_4 = arith.constant 0 : index
    %3 = vector.load %arg3[%c0_3, %c0_4] : memref<1x32xf32, #tpu.memory_space<vmem>>, vector<1x32xf32>
    %4 = vector.broadcast %3 : vector<1x32xf32> to vector<128x32xf32>
    %5 = arith.addf %2, %4 : vector<128x32xf32>
    %c0_5 = arith.constant 0 : index
    %c0_6 = arith.constant 0 : index
    %6 = vector.load %arg4[%c0_5, %c0_6] : memref<128x32xf32, #tpu.memory_space<vmem>>, vector<128x32xf32>
    tpu.vector_store %arg4[%c0_5, %c0_6], %5 {strides = array<i32>} : memref<128x32xf32, #tpu.memory_space<vmem>>, vector<128x32xf32>,
    %c128_i32 = arith.constant 128 : i32
    %7 = arith.muli %arg0, %c128_i32 : i32
    %8 = tpu.iota {dimensions = array<i32: 0>} : vector<128x1xi32>
    %9 = vector.broadcast %7 : i32 to vector<128x1xi32>
    %10 = arith.addi %9, %8 : vector<128x1xi32>
    %c128_i32_7 = arith.constant 128 : i32
    %11 = vector.broadcast %c128_i32_7 : i32 to vector<128x1xi32>
    %12 = arith.cmpi slt, %10, %11 : vector<128x1xi32>
    %13 = arith.extui %12 : vector<128x1xi1> to vector<128x1xi32>
    %14 = arith.sitofp %13 : vector<128x1xi32> to vector<128x1xf32>
    %15 = vector.broadcast %14 : vector<128x1xf32> to vector<128x32xf32>
    %16 = arith.mulf %5, %15 : vector<128x32xf32>
    %cst_8 = arith.constant dense<0.000000e+00> : vector<32xf32>
    %17 = vector.multi_reduction <add>, %16, %cst_8 [0] : vector<128x32xf32> to vector<32xf32>
    %18 = vector.shape_cast %17 : vector<32xf32> to vector<1x32xf32>
    %19 = vector.shape_cast %18 : vector<1x32xf32> to vector<1x1x32xf32>
    %c0_9 = arith.constant 0 : index
    %c0_10 = arith.constant 0 : index
    %c0_11 = arith.constant 0 : index
    %20 = vector.load %arg5[%c0_9, %c0_10, %c0_11] : memref<1x1x32xf32, #tpu.memory_space<vmem>>, vector<1x1x32xf32>
    tpu.vector_store %arg5[%c0_9, %c0_10, %c0_11], %19 {strides = array<i32>} : memref<1x1x32xf32, #tpu.memory_space<vmem>>, vector<1x1x32xf32>,
    %21 = arith.mulf %16, %5 : vector<128x32xf32>
    %cst_12 = arith.constant dense<0.000000e+00> : vector<32xf32>
    %22 = vector.multi_reduction <add>, %21, %cst_12 [0] : vector<128x32xf32> to vector<32xf32>
    %23 = vector.shape_cast %22 : vector<32xf32> to vector<1x32xf32>
    %24 = vector.shape_cast %23 : vector<1x32xf32> to vector<1x1x32xf32>
    %c0_13 = arith.constant 0 : index
    %c0_14 = arith.constant 0 : index
    %c0_15 = arith.constant 0 : index
    %25 = vector.load %arg6[%c0_13, %c0_14, %c0_15] : memref<1x1x32xf32, #tpu.memory_space<vmem>>, vector<1x1x32xf32>
    tpu.vector_store %arg6[%c0_13, %c0_14, %c0_15], %24 {strides = array<i32>} : memref<1x1x32xf32, #tpu.memory_space<vmem>>, vector<1x1x32xf32>,
    return
  }
  func.func @transform_0(%arg0: i32) -> (i32, i32) {
    %c0_i32 = arith.constant 0 : i32
    %c0_i32_0 = arith.constant 0 : i32
    return %arg0, %c0_i32 : i32, i32
  }
  func.func @transform_1(%arg0: i32) -> (i32, i32) {
    %c0_i32 = arith.constant 0 : i32
    %c0_i32_0 = arith.constant 0 : i32
    %c0_i32_1 = arith.constant 0 : i32
    return %c0_i32, %c0_i32_0 : i32, i32
  }
  func.func @transform_2(%arg0: i32) -> (i32, i32) {
    %c0_i32 = arith.constant 0 : i32
    %c0_i32_0 = arith.constant 0 : i32
    %c0_i32_1 = arith.constant 0 : i32
    return %c0_i32, %c0_i32_0 : i32, i32
  }
  func.func @transform_3(%arg0: i32) -> (i32, i32) {
    %c0_i32 = arith.constant 0 : i32
    %c0_i32_0 = arith.constant 0 : i32
    return %arg0, %c0_i32 : i32, i32
  }
  func.func @transform_4(%arg0: i32) -> (i32, i32, i32) {
    %c0_i32 = arith.constant 0 : i32
    %c0_i32_0 = arith.constant 0 : i32
    %c0_i32_1 = arith.constant 0 : i32
    return %arg0, %c0_i32, %c0_i32_0 : i32, i32, i32
  }
  func.func @transform_5(%arg0: i32) -> (i32, i32, i32) {
    %c0_i32 = arith.constant 0 : i32
    %c0_i32_0 = arith.constant 0 : i32
    %c0_i32_1 = arith.constant 0 : i32
    return %arg0, %c0_i32, %c0_i32_0 : i32, i32, i32
  }
}

module attributes {stable_mosaic.version = 11 : i64} {
  func.func @_gemm_bias_stats_kernel(%arg0: i32, %arg1: memref<256x392xbf16, #tpu.memory_space<vmem>>, %arg2: memref<392x3xbf16, #tpu.memory_space<vmem>>, %arg3: memref<1x3xf32, #tpu.memory_space<vmem>>, %arg4: memref<256x3xf32, #tpu.memory_space<vmem>>, %arg5: memref<1x1x3xf32, #tpu.memory_space<vmem>>, %arg6: memref<1x1x3xf32, #tpu.memory_space<vmem>>) attributes {dimension_semantics = [#tpu.dimension_semantics<parallel>], iteration_bounds = array<i64: 2>, scalar_prefetch = 0 : i64, scratch_operands = 0 : i64, tpu.core_type = #tpu.core_type<tc>, window_params = [{transform_indices = @transform_0, window_bounds = array<i64: 256, 392>}, {pipeline_mode = #tpu.pipeline_mode<synchronous>, transform_indices = @transform_1, window_bounds = array<i64: 392, 3>}, {pipeline_mode = #tpu.pipeline_mode<synchronous>, transform_indices = @transform_2, window_bounds = array<i64: 1, 3>}, {transform_indices = @transform_3, window_bounds = array<i64: 256, 3>}, {transform_indices = @transform_4, window_bounds = array<i64: 1, 1, 3>}, {transform_indices = @transform_5, window_bounds = array<i64: 1, 1, 3>}]} {
    %c0 = arith.constant 0 : index
    %c0_0 = arith.constant 0 : index
    %0 = vector.load %arg1[%c0, %c0_0] : memref<256x392xbf16, #tpu.memory_space<vmem>>, vector<256x392xbf16>
    %c0_1 = arith.constant 0 : index
    %c0_2 = arith.constant 0 : index
    %1 = vector.load %arg2[%c0_1, %c0_2] : memref<392x3xbf16, #tpu.memory_space<vmem>>, vector<392x3xbf16>
    %cst = arith.constant dense<0.000000e+00> : vector<256x3xf32>
    %2 = tpu.matmul %0, %1, %cst {dimension_numbers = #tpu.dot_dimension_numbers<[1], [0], [0], [1], [0, 0, 1, 1], [], []>} : vector<256x392xbf16>, vector<392x3xbf16>, vector<256x3xf32> -> vector<256x3xf32>
    %c0_3 = arith.constant 0 : index
    %c0_4 = arith.constant 0 : index
    %3 = vector.load %arg3[%c0_3, %c0_4] : memref<1x3xf32, #tpu.memory_space<vmem>>, vector<1x3xf32>
    %4 = vector.broadcast %3 : vector<1x3xf32> to vector<256x3xf32>
    %5 = arith.addf %2, %4 : vector<256x3xf32>
    %6 = math.tanh %5 : vector<256x3xf32>
    %c0_5 = arith.constant 0 : index
    %c0_6 = arith.constant 0 : index
    %7 = vector.load %arg4[%c0_5, %c0_6] : memref<256x3xf32, #tpu.memory_space<vmem>>, vector<256x3xf32>
    tpu.vector_store %arg4[%c0_5, %c0_6], %6 {strides = array<i32>} : memref<256x3xf32, #tpu.memory_space<vmem>>, vector<256x3xf32>,
    %c256_i32 = arith.constant 256 : i32
    %8 = arith.muli %arg0, %c256_i32 : i32
    %9 = tpu.iota {dimensions = array<i32: 0>} : vector<256x1xi32>
    %10 = vector.broadcast %8 : i32 to vector<256x1xi32>
    %11 = arith.addi %10, %9 : vector<256x1xi32>
    %c512_i32 = arith.constant 512 : i32
    %12 = vector.broadcast %c512_i32 : i32 to vector<256x1xi32>
    %13 = arith.cmpi slt, %11, %12 : vector<256x1xi32>
    %14 = arith.extui %13 : vector<256x1xi1> to vector<256x1xi32>
    %15 = arith.sitofp %14 : vector<256x1xi32> to vector<256x1xf32>
    %16 = vector.broadcast %15 : vector<256x1xf32> to vector<256x3xf32>
    %17 = arith.mulf %6, %16 : vector<256x3xf32>
    %cst_7 = arith.constant dense<0.000000e+00> : vector<3xf32>
    %18 = vector.multi_reduction <add>, %17, %cst_7 [0] : vector<256x3xf32> to vector<3xf32>
    %19 = vector.shape_cast %18 : vector<3xf32> to vector<1x3xf32>
    %20 = vector.shape_cast %19 : vector<1x3xf32> to vector<1x1x3xf32>
    %c0_8 = arith.constant 0 : index
    %c0_9 = arith.constant 0 : index
    %c0_10 = arith.constant 0 : index
    %21 = vector.load %arg5[%c0_8, %c0_9, %c0_10] : memref<1x1x3xf32, #tpu.memory_space<vmem>>, vector<1x1x3xf32>
    tpu.vector_store %arg5[%c0_8, %c0_9, %c0_10], %20 {strides = array<i32>} : memref<1x1x3xf32, #tpu.memory_space<vmem>>, vector<1x1x3xf32>,
    %22 = arith.mulf %17, %6 : vector<256x3xf32>
    %cst_11 = arith.constant dense<0.000000e+00> : vector<3xf32>
    %23 = vector.multi_reduction <add>, %22, %cst_11 [0] : vector<256x3xf32> to vector<3xf32>
    %24 = vector.shape_cast %23 : vector<3xf32> to vector<1x3xf32>
    %25 = vector.shape_cast %24 : vector<1x3xf32> to vector<1x1x3xf32>
    %c0_12 = arith.constant 0 : index
    %c0_13 = arith.constant 0 : index
    %c0_14 = arith.constant 0 : index
    %26 = vector.load %arg6[%c0_12, %c0_13, %c0_14] : memref<1x1x3xf32, #tpu.memory_space<vmem>>, vector<1x1x3xf32>
    tpu.vector_store %arg6[%c0_12, %c0_13, %c0_14], %25 {strides = array<i32>} : memref<1x1x3xf32, #tpu.memory_space<vmem>>, vector<1x1x3xf32>,
    return
  }
  func.func @transform_0(%arg0: i32) -> (i32, i32) {
    %c0_i32 = arith.constant 0 : i32
    %c0_i32_0 = arith.constant 0 : i32
    return %arg0, %c0_i32 : i32, i32
  }
  func.func @transform_1(%arg0: i32) -> (i32, i32) {
    %c0_i32 = arith.constant 0 : i32
    %c0_i32_0 = arith.constant 0 : i32
    %c0_i32_1 = arith.constant 0 : i32
    return %c0_i32, %c0_i32_0 : i32, i32
  }
  func.func @transform_2(%arg0: i32) -> (i32, i32) {
    %c0_i32 = arith.constant 0 : i32
    %c0_i32_0 = arith.constant 0 : i32
    %c0_i32_1 = arith.constant 0 : i32
    return %c0_i32, %c0_i32_0 : i32, i32
  }
  func.func @transform_3(%arg0: i32) -> (i32, i32) {
    %c0_i32 = arith.constant 0 : i32
    %c0_i32_0 = arith.constant 0 : i32
    return %arg0, %c0_i32 : i32, i32
  }
  func.func @transform_4(%arg0: i32) -> (i32, i32, i32) {
    %c0_i32 = arith.constant 0 : i32
    %c0_i32_0 = arith.constant 0 : i32
    %c0_i32_1 = arith.constant 0 : i32
    return %arg0, %c0_i32, %c0_i32_0 : i32, i32, i32
  }
  func.func @transform_5(%arg0: i32) -> (i32, i32, i32) {
    %c0_i32 = arith.constant 0 : i32
    %c0_i32_0 = arith.constant 0 : i32
    %c0_i32_1 = arith.constant 0 : i32
    return %arg0, %c0_i32, %c0_i32_0 : i32, i32, i32
  }
}

</mosaic_0001>

<llo_original>
// kernel: local_enhancer_forward.30
$region0: #{local_enhancer_forward.30}
  #allocation0 [shape = 'u32[]', space=smem, size = 0x4, offset = 0x4, fixed_abs, tag = 'smem constant byte address 0x4 - core index']
  #allocation1 [shape = 'u32[144,128]{1,0:T(1,128)}', space=vmem, size = 0x12000, scoped, tag = 'internal scratch']
  %s0 = inlined_call_operand.vmem [shape: f32[9,128,3], index: 0, kind: input, shape index: {}]
  %s1 = inlined_call_operand.vmem [shape: f32[128,1], index: 1, kind: input, shape index: {}]
  %s2 = inlined_call_operand.vmem [shape: f32[128,3], index: 2, kind: output, shape index: {}]
  %s3 = sld [smem:[#allocation0]]
  $region18: #{local_enhancer_forward.30} parent=0
    _
  %s5 = ssub.s32 1, %s3
  %s6 = scalar_select 0, %s5, %s3
  // Predicated region
  $region2: #{local_enhancer_forward.30} parent=0 // pred_check
    _
  $region3: #{local_enhancer_forward.30} parent=0 // pred_check_branch
    %8 = sbr.rel (0) target = $region5
  $region4: #{local_enhancer_forward.30} parent=0 // pred_region
    _
  $region5: #{local_enhancer_forward.30} parent=0 // pred_fallthru
    _
  // Predicated region
  $region6: #{local_enhancer_forward.30} parent=0 // pred_check
    _
  $region7: #{local_enhancer_forward.30} parent=0 // pred_check_branch
    %10 = sbr.rel (0) target = $region9
  $region8: #{local_enhancer_forward.30} parent=0 // pred_region
    _
  $region9: #{local_enhancer_forward.30} parent=0 // pred_fallthru
    _
  %v11 = vld [vmem:[%s0] sm:$0xff]
  %v12 = vld [vmem:[%s0 + $0x8] sm:$0xff]
  %v13 = vld [vmem:[%s0 + $0x10] sm:$0xff]
  %v14 = vld [vmem:[%s0 + $0x18] sm:$0xff]
  %v15 = vld [vmem:[%s0 + $0x20] sm:$0xff]
  %v16 = vld [vmem:[%s0 + $0x28] sm:$0xff]
  %v17 = vld [vmem:[%s0 + $0x30] sm:$0xff]
  %v18 = vld [vmem:[%s0 + $0x38] sm:$0xff]
  %v19 = vld [vmem:[%s0 + $0x40] sm:$0xff]
  %v20 = vld [vmem:[%s0 + $0x48] sm:$0xff]
  %v21 = vld [vmem:[%s0 + $0x50] sm:$0xff]
  %v22 = vld [vmem:[%s0 + $0x58] sm:$0xff]
  %v23 = vld [vmem:[%s0 + $0x60] sm:$0xff]
  %v24 = vld [vmem:[%s0 + $0x68] sm:$0xff]
  %v25 = vld [vmem:[%s0 + $0x70] sm:$0xff]
  %v26 = vld [vmem:[%s0 + $0x78] sm:$0xff]
  %v27 = vld [vmem:[%s0 + $0x80] sm:$0xff]
  %v28 = vld [vmem:[%s0 + $0x88] sm:$0xff]
  %v29 = vld [vmem:[%s0 + $0x90] sm:$0xff]
  %v30 = vld [vmem:[%s0 + $0x98] sm:$0xff]
  %v31 = vld [vmem:[%s0 + $0xa0] sm:$0xff]
  %v32 = vld [vmem:[%s0 + $0xa8] sm:$0xff]
  %v33 = vld [vmem:[%s0 + $0xb0] sm:$0xff]
  %v34 = vld [vmem:[%s0 + $0xb8] sm:$0xff]
  %v35 = vld [vmem:[%s0 + $0xc0] sm:$0xff]
  %v36 = vld [vmem:[%s0 + $0xc8] sm:$0xff]
  %v37 = vld [vmem:[%s0 + $0xd0] sm:$0xff]
  %v38 = vld [vmem:[%s0 + $0xd8] sm:$0xff]
  %v39 = vld [vmem:[%s0 + $0xe0] sm:$0xff]
  %v40 = vld [vmem:[%s0 + $0xe8] sm:$0xff]
  %v41 = vld [vmem:[%s0 + $0xf0] sm:$0xff]
  %v42 = vld [vmem:[%s0 + $0xf8] sm:$0xff]
  %v43 = vld [vmem:[%s0 + $0x100] sm:$0xff]
  %v44 = vld [vmem:[%s0 + $0x108] sm:$0xff]
  %v45 = vld [vmem:[%s0 + $0x110] sm:$0xff]
  %v46 = vld [vmem:[%s0 + $0x118] sm:$0xff]
  %v47 = vld [vmem:[%s0 + $0x120] sm:$0xff]
  %v48 = vld [vmem:[%s0 + $0x128] sm:$0xff]
  %v49 = vld [vmem:[%s0 + $0x130] sm:$0xff]
  %v50 = vld [vmem:[%s0 + $0x138] sm:$0xff]
  %v51 = vld [vmem:[%s0 + $0x140] sm:$0xff]
  %v52 = vld [vmem:[%s0 + $0x148] sm:$0xff]
  %v53 = vld [vmem:[%s0 + $0x150] sm:$0xff]
  %v54 = vld [vmem:[%s0 + $0x158] sm:$0xff]
  %v55 = vld [vmem:[%s0 + $0x160] sm:$0xff]
  %v56 = vld [vmem:[%s0 + $0x168] sm:$0xff]
  %v57 = vld [vmem:[%s0 + $0x170] sm:$0xff]
  %v58 = vld [vmem:[%s0 + $0x178] sm:$0xff]
  %v59 = vld [vmem:[%s0 + $0x180] sm:$0xff]
  %v60 = vld [vmem:[%s0 + $0x188] sm:$0xff]
  %v61 = vld [vmem:[%s0 + $0x190] sm:$0xff]
  %v62 = vld [vmem:[%s0 + $0x198] sm:$0xff]
  %v63 = vld [vmem:[%s0 + $0x1a0] sm:$0xff]
  %v64 = vld [vmem:[%s0 + $0x1a8] sm:$0xff]
  %v65 = vld [vmem:[%s0 + $0x1b0] sm:$0xff]
  %v66 = vld [vmem:[%s0 + $0x1b8] sm:$0xff]
  %v67 = vld [vmem:[%s0 + $0x1c0] sm:$0xff]
  %v68 = vld [vmem:[%s0 + $0x1c8] sm:$0xff]
  %v69 = vld [vmem:[%s0 + $0x1d0] sm:$0xff]
  %v70 = vld [vmem:[%s0 + $0x1d8] sm:$0xff]
  %v71 = vld [vmem:[%s0 + $0x1e0] sm:$0xff]
  %v72 = vld [vmem:[%s0 + $0x1e8] sm:$0xff]
  %v73 = vld [vmem:[%s0 + $0x1f0] sm:$0xff]
  %v74 = vld [vmem:[%s0 + $0x1f8] sm:$0xff]
  %v75 = vld [vmem:[%s0 + $0x200] sm:$0xff]
  %v76 = vld [vmem:[%s0 + $0x208] sm:$0xff]
  %v77 = vld [vmem:[%s0 + $0x210] sm:$0xff]
  %v78 = vld [vmem:[%s0 + $0x218] sm:$0xff]
  %v79 = vld [vmem:[%s0 + $0x220] sm:$0xff]
  %v80 = vld [vmem:[%s0 + $0x228] sm:$0xff]
  %v81 = vld [vmem:[%s0 + $0x230] sm:$0xff]
  %v82 = vld [vmem:[%s0 + $0x238] sm:$0xff]
  %v83 = vld [vmem:[%s0 + $0x240] sm:$0xff]
  %v84 = vld [vmem:[%s0 + $0x248] sm:$0xff]
  %v85 = vld [vmem:[%s0 + $0x250] sm:$0xff]
  %v86 = vld [vmem:[%s0 + $0x258] sm:$0xff]
  %v87 = vld [vmem:[%s0 + $0x260] sm:$0xff]
  %v88 = vld [vmem:[%s0 + $0x268] sm:$0xff]
  %v89 = vld [vmem:[%s0 + $0x270] sm:$0xff]
  %v90 = vld [vmem:[%s0 + $0x278] sm:$0xff]
  %v91 = vld [vmem:[%s0 + $0x280] sm:$0xff]
  %v92 = vld [vmem:[%s0 + $0x288] sm:$0xff]
  %v93 = vld [vmem:[%s0 + $0x290] sm:$0xff]
  %v94 = vld [vmem:[%s0 + $0x298] sm:$0xff]
  %v95 = vld [vmem:[%s0 + $0x2a0] sm:$0xff]
  %v96 = vld [vmem:[%s0 + $0x2a8] sm:$0xff]
  %v97 = vld [vmem:[%s0 + $0x2b0] sm:$0xff]
  %v98 = vld [vmem:[%s0 + $0x2b8] sm:$0xff]
  %v99 = vld [vmem:[%s0 + $0x2c0] sm:$0xff]
  %v100 = vld [vmem:[%s0 + $0x2c8] sm:$0xff]
  %v101 = vld [vmem:[%s0 + $0x2d0] sm:$0xff]
  %v102 = vld [vmem:[%s0 + $0x2d8] sm:$0xff]
  %v103 = vld [vmem:[%s0 + $0x2e0] sm:$0xff]
  %v104 = vld [vmem:[%s0 + $0x2e8] sm:$0xff]
  %v105 = vld [vmem:[%s0 + $0x2f0] sm:$0xff]
  %v106 = vld [vmem:[%s0 + $0x2f8] sm:$0xff]
  %v107 = vld [vmem:[%s0 + $0x300] sm:$0xff]
  %v108 = vld [vmem:[%s0 + $0x308] sm:$0xff]
  %v109 = vld [vmem:[%s0 + $0x310] sm:$0xff]
  %v110 = vld [vmem:[%s0 + $0x318] sm:$0xff]
  %v111 = vld [vmem:[%s0 + $0x320] sm:$0xff]
  %v112 = vld [vmem:[%s0 + $0x328] sm:$0xff]
  %v113 = vld [vmem:[%s0 + $0x330] sm:$0xff]
  %v114 = vld [vmem:[%s0 + $0x338] sm:$0xff]
  %v115 = vld [vmem:[%s0 + $0x340] sm:$0xff]
  %v116 = vld [vmem:[%s0 + $0x348] sm:$0xff]
  %v117 = vld [vmem:[%s0 + $0x350] sm:$0xff]
  %v118 = vld [vmem:[%s0 + $0x358] sm:$0xff]
  %v119 = vld [vmem:[%s0 + $0x360] sm:$0xff]
  %v120 = vld [vmem:[%s0 + $0x368] sm:$0xff]
  %v121 = vld [vmem:[%s0 + $0x370] sm:$0xff]
  %v122 = vld [vmem:[%s0 + $0x378] sm:$0xff]
  %v123 = vld [vmem:[%s0 + $0x380] sm:$0xff]
  %v124 = vld [vmem:[%s0 + $0x388] sm:$0xff]
  %v125 = vld [vmem:[%s0 + $0x390] sm:$0xff]
  %v126 = vld [vmem:[%s0 + $0x398] sm:$0xff]
  %v127 = vld [vmem:[%s0 + $0x3a0] sm:$0xff]
  %v128 = vld [vmem:[%s0 + $0x3a8] sm:$0xff]
  %v129 = vld [vmem:[%s0 + $0x3b0] sm:$0xff]
  %v130 = vld [vmem:[%s0 + $0x3b8] sm:$0xff]
  %v131 = vld [vmem:[%s0 + $0x3c0] sm:$0xff]
  %v132 = vld [vmem:[%s0 + $0x3c8] sm:$0xff]
  %v133 = vld [vmem:[%s0 + $0x3d0] sm:$0xff]
  %v134 = vld [vmem:[%s0 + $0x3d8] sm:$0xff]
  %v135 = vld [vmem:[%s0 + $0x3e0] sm:$0xff]
  %v136 = vld [vmem:[%s0 + $0x3e8] sm:$0xff]
  %v137 = vld [vmem:[%s0 + $0x3f0] sm:$0xff]
  %v138 = vld [vmem:[%s0 + $0x3f8] sm:$0xff]
  %v139 = vld [vmem:[%s0 + $0x400] sm:$0xff]
  %v140 = vld [vmem:[%s0 + $0x408] sm:$0xff]
  %v141 = vld [vmem:[%s0 + $0x410] sm:$0xff]
  %v142 = vld [vmem:[%s0 + $0x418] sm:$0xff]
  %v143 = vld [vmem:[%s0 + $0x420] sm:$0xff]
  %v144 = vld [vmem:[%s0 + $0x428] sm:$0xff]
  %v145 = vld [vmem:[%s0 + $0x430] sm:$0xff]
  %v146 = vld [vmem:[%s0 + $0x438] sm:$0xff]
  %v147 = vld [vmem:[%s0 + $0x440] sm:$0xff]
  %v148 = vld [vmem:[%s0 + $0x448] sm:$0xff]
  %v149 = vld [vmem:[%s0 + $0x450] sm:$0xff]
  %v150 = vld [vmem:[%s0 + $0x458] sm:$0xff]
  %v151 = vld [vmem:[%s0 + $0x460] sm:$0xff]
  %v152 = vld [vmem:[%s0 + $0x468] sm:$0xff]
  %v153 = vld [vmem:[%s0 + $0x470] sm:$0xff]
  %v154 = vld [vmem:[%s0 + $0x478] sm:$0xff]
  %vm155 = vcmask 23552
  %v156 = vsel %vm155, %v11, 0.0
  %v157 = vsel %vm155, %v27, 0.0
  %v158 = vadd.f32 %v156, %v157
  %v159 = vsel %vm155, %v43, 0.0
  %v160 = vadd.f32 %v158, %v159
  %v161 = vsel %vm155, %v59, 0.0
  %v162 = vadd.f32 %v160, %v161
  %v163 = vsel %vm155, %v75, 0.0
  %v164 = vadd.f32 %v162, %v163
  %v165 = vsel %vm155, %v91, 0.0
  %v166 = vadd.f32 %v164, %v165
  %v167 = vsel %vm155, %v107, 0.0
  %v168 = vadd.f32 %v166, %v167
  %v169 = vsel %vm155, %v123, 0.0
  %v170 = vadd.f32 %v168, %v169
  %v171 = vsel %vm155, %v139, 0.0
  %v172 = vadd.f32 %v170, %v171
  %v173 = vsel %vm155, %v12, 0.0
  %v174 = vsel %vm155, %v28, 0.0
  %v175 = vadd.f32 %v173, %v174
  %v176 = vsel %vm155, %v44, 0.0
  %v177 = vadd.f32 %v175, %v176
  %v178 = vsel %vm155, %v60, 0.0
  %v179 = vadd.f32 %v177, %v178
  %v180 = vsel %vm155, %v76, 0.0
  %v181 = vadd.f32 %v179, %v180
  %v182 = vsel %vm155, %v92, 0.0
  %v183 = vadd.f32 %v181, %v182
  %v184 = vsel %vm155, %v108, 0.0
  %v185 = vadd.f32 %v183, %v184
  %v186 = vsel %vm155, %v124, 0.0
  %v187 = vadd.f32 %v185, %v186
  %v188 = vsel %vm155, %v140, 0.0
  %v189 = vadd.f32 %v187, %v188
  %v190 = vsel %vm155, %v13, 0.0
  %v191 = vsel %vm155, %v29, 0.0
  %v192 = vadd.f32 %v190, %v191
  %v193 = vsel %vm155, %v45, 0.0
  %v194 = vadd.f32 %v192, %v193
  %v195 = vsel %vm155, %v61, 0.0
  %v196 = vadd.f32 %v194, %v195
  %v197 = vsel %vm155, %v77, 0.0
  %v198 = vadd.f32 %v196, %v197
  %v199 = vsel %vm155, %v93, 0.0
  %v200 = vadd.f32 %v198, %v199
  %v201 = vsel %vm155, %v109, 0.0
  %v202 = vadd.f32 %v200, %v201
  %v203 = vsel %vm155, %v125, 0.0
  %v204 = vadd.f32 %v202, %v203
  %v205 = vsel %vm155, %v141, 0.0
  %v206 = vadd.f32 %v204, %v205
  %v207 = vsel %vm155, %v14, 0.0
  %v208 = vsel %vm155, %v30, 0.0
  %v209 = vadd.f32 %v207, %v208
  %v210 = vsel %vm155, %v46, 0.0
  %v211 = vadd.f32 %v209, %v210
  %v212 = vsel %vm155, %v62, 0.0
  %v213 = vadd.f32 %v211, %v212
  %v214 = vsel %vm155, %v78, 0.0
  %v215 = vadd.f32 %v213, %v214
  %v216 = vsel %vm155, %v94, 0.0
  %v217 = vadd.f32 %v215, %v216
  %v218 = vsel %vm155, %v110, 0.0
  %v219 = vadd.f32 %v217, %v218
  %v220 = vsel %vm155, %v126, 0.0
  %v221 = vadd.f32 %v219, %v220
  %v222 = vsel %vm155, %v142, 0.0
  %v223 = vadd.f32 %v221, %v222
  %v224 = vsel %vm155, %v15, 0.0
  %v225 = vsel %vm155, %v31, 0.0
  %v226 = vadd.f32 %v224, %v225
  %v227 = vsel %vm155, %v47, 0.0
  %v228 = vadd.f32 %v226, %v227
  %v229 = vsel %vm155, %v63, 0.0
  %v230 = vadd.f32 %v228, %v229
  %v231 = vsel %vm155, %v79, 0.0
  %v232 = vadd.f32 %v230, %v231
  %v233 = vsel %vm155, %v95, 0.0
  %v234 = vadd.f32 %v232, %v233
  %v235 = vsel %vm155, %v111, 0.0
  %v236 = vadd.f32 %v234, %v235
  %v237 = vsel %vm155, %v127, 0.0
  %v238 = vadd.f32 %v236, %v237
  %v239 = vsel %vm155, %v143, 0.0
  %v240 = vadd.f32 %v238, %v239
  %v241 = vsel %vm155, %v16, 0.0
  %v242 = vsel %vm155, %v32, 0.0
  %v243 = vadd.f32 %v241, %v242
  %v244 = vsel %vm155, %v48, 0.0
  %v245 = vadd.f32 %v243, %v244
  %v246 = vsel %vm155, %v64, 0.0
  %v247 = vadd.f32 %v245, %v246
  %v248 = vsel %vm155, %v80, 0.0
  %v249 = vadd.f32 %v247, %v248
  %v250 = vsel %vm155, %v96, 0.0
  %v251 = vadd.f32 %v249, %v250
  %v252 = vsel %vm155, %v112, 0.0
  %v253 = vadd.f32 %v251, %v252
  %v254 = vsel %vm155, %v128, 0.0
  %v255 = vadd.f32 %v253, %v254
  %v256 = vsel %vm155, %v144, 0.0
  %v257 = vadd.f32 %v255, %v256
  %v258 = vsel %vm155, %v17, 0.0
  %v259 = vsel %vm155, %v33, 0.0
  %v260 = vadd.f32 %v258, %v259
  %v261 = vsel %vm155, %v49, 0.0
  %v262 = vadd.f32 %v260, %v261
  %v263 = vsel %vm155, %v65, 0.0
  %v264 = vadd.f32 %v262, %v263
  %v265 = vsel %vm155, %v81, 0.0
  %v266 = vadd.f32 %v264, %v265
  %v267 = vsel %vm155, %v97, 0.0
  %v268 = vadd.f32 %v266, %v267
  %v269 = vsel %vm155, %v113, 0.0
  %v270 = vadd.f32 %v268, %v269
  %v271 = vsel %vm155, %v129, 0.0
  %v272 = vadd.f32 %v270, %v271
  %v273 = vsel %vm155, %v145, 0.0
  %v274 = vadd.f32 %v272, %v273
  %v275 = vsel %vm155, %v18, 0.0
  %v276 = vsel %vm155, %v34, 0.0
  %v277 = vadd.f32 %v275, %v276
  %v278 = vsel %vm155, %v50, 0.0
  %v279 = vadd.f32 %v277, %v278
  %v280 = vsel %vm155, %v66, 0.0
  %v281 = vadd.f32 %v279, %v280
  %v282 = vsel %vm155, %v82, 0.0
  %v283 = vadd.f32 %v281, %v282
  %v284 = vsel %vm155, %v98, 0.0
  %v285 = vadd.f32 %v283, %v284
  %v286 = vsel %vm155, %v114, 0.0
  %v287 = vadd.f32 %v285, %v286
  %v288 = vsel %vm155, %v130, 0.0
  %v289 = vadd.f32 %v287, %v288
  %v290 = vsel %vm155, %v146, 0.0
  %v291 = vadd.f32 %v289, %v290
  %v292 = vsel %vm155, %v19, 0.0
  %v293 = vsel %vm155, %v35, 0.0
  %v294 = vadd.f32 %v292, %v293
  %v295 = vsel %vm155, %v51, 0.0
  %v296 = vadd.f32 %v294, %v295
  %v297 = vsel %vm155, %v67, 0.0
  %v298 = vadd.f32 %v296, %v297
  %v299 = vsel %vm155, %v83, 0.0
  %v300 = vadd.f32 %v298, %v299
  %v301 = vsel %vm155, %v99, 0.0
  %v302 = vadd.f32 %v300, %v301
  %v303 = vsel %vm155, %v115, 0.0
  %v304 = vadd.f32 %v302, %v303
  %v305 = vsel %vm155, %v131, 0.0
  %v306 = vadd.f32 %v304, %v305
  %v307 = vsel %vm155, %v147, 0.0
  %v308 = vadd.f32 %v306, %v307
  %v309 = vsel %vm155, %v20, 0.0
  %v310 = vsel %vm155, %v36, 0.0
  %v311 = vadd.f32 %v309, %v310
  %v312 = vsel %vm155, %v52, 0.0
  %v313 = vadd.f32 %v311, %v312
  %v314 = vsel %vm155, %v68, 0.0
  %v315 = vadd.f32 %v313, %v314
  %v316 = vsel %vm155, %v84, 0.0
  %v317 = vadd.f32 %v315, %v316
  %v318 = vsel %vm155, %v100, 0.0
  %v319 = vadd.f32 %v317, %v318
  %v320 = vsel %vm155, %v116, 0.0
  %v321 = vadd.f32 %v319, %v320
  %v322 = vsel %vm155, %v132, 0.0
  %v323 = vadd.f32 %v321, %v322
  %v324 = vsel %vm155, %v148, 0.0
  %v325 = vadd.f32 %v323, %v324
  %v326 = vsel %vm155, %v21, 0.0
  %v327 = vsel %vm155, %v37, 0.0
  %v328 = vadd.f32 %v326, %v327
  %v329 = vsel %vm155, %v53, 0.0
  %v330 = vadd.f32 %v328, %v329
  %v331 = vsel %vm155, %v69, 0.0
  %v332 = vadd.f32 %v330, %v331
  %v333 = vsel %vm155, %v85, 0.0
  %v334 = vadd.f32 %v332, %v333
  %v335 = vsel %vm155, %v101, 0.0
  %v336 = vadd.f32 %v334, %v335
  %v337 = vsel %vm155, %v117, 0.0
  %v338 = vadd.f32 %v336, %v337
  %v339 = vsel %vm155, %v133, 0.0
  %v340 = vadd.f32 %v338, %v339
  %v341 = vsel %vm155, %v149, 0.0
  %v342 = vadd.f32 %v340, %v341
  %v343 = vsel %vm155, %v22, 0.0
  %v344 = vsel %vm155, %v38, 0.0
  %v345 = vadd.f32 %v343, %v344
  %v346 = vsel %vm155, %v54, 0.0
  %v347 = vadd.f32 %v345, %v346
  %v348 = vsel %vm155, %v70, 0.0
  %v349 = vadd.f32 %v347, %v348
  %v350 = vsel %vm155, %v86, 0.0
  %v351 = vadd.f32 %v349, %v350
  %v352 = vsel %vm155, %v102, 0.0
  %v353 = vadd.f32 %v351, %v352
  %v354 = vsel %vm155, %v118, 0.0
  %v355 = vadd.f32 %v353, %v354
  %v356 = vsel %vm155, %v134, 0.0
  %v357 = vadd.f32 %v355, %v356
  %v358 = vsel %vm155, %v150, 0.0
  %v359 = vadd.f32 %v357, %v358
  %v360 = vsel %vm155, %v23, 0.0
  %v361 = vsel %vm155, %v39, 0.0
  %v362 = vadd.f32 %v360, %v361
  %v363 = vsel %vm155, %v55, 0.0
  %v364 = vadd.f32 %v362, %v363
  %v365 = vsel %vm155, %v71, 0.0
  %v366 = vadd.f32 %v364, %v365
  %v367 = vsel %vm155, %v87, 0.0
  %v368 = vadd.f32 %v366, %v367
  %v369 = vsel %vm155, %v103, 0.0
  %v370 = vadd.f32 %v368, %v369
  %v371 = vsel %vm155, %v119, 0.0
  %v372 = vadd.f32 %v370, %v371
  %v373 = vsel %vm155, %v135, 0.0
  %v374 = vadd.f32 %v372, %v373
  %v375 = vsel %vm155, %v151, 0.0
  %v376 = vadd.f32 %v374, %v375
  %v377 = vsel %vm155, %v24, 0.0
  %v378 = vsel %vm155, %v40, 0.0
  %v379 = vadd.f32 %v377, %v378
  %v380 = vsel %vm155, %v56, 0.0
  %v381 = vadd.f32 %v379, %v380
  %v382 = vsel %vm155, %v72, 0.0
  %v383 = vadd.f32 %v381, %v382
  %v384 = vsel %vm155, %v88, 0.0
  %v385 = vadd.f32 %v383, %v384
  %v386 = vsel %vm155, %v104, 0.0
  %v387 = vadd.f32 %v385, %v386
  %v388 = vsel %vm155, %v120, 0.0
  %v389 = vadd.f32 %v387, %v388
  %v390 = vsel %vm155, %v136, 0.0
  %v391 = vadd.f32 %v389, %v390
  %v392 = vsel %vm155, %v152, 0.0
  %v393 = vadd.f32 %v391, %v392
  %v394 = vsel %vm155, %v25, 0.0
  %v395 = vsel %vm155, %v41, 0.0
  %v396 = vadd.f32 %v394, %v395
  %v397 = vsel %vm155, %v57, 0.0
  %v398 = vadd.f32 %v396, %v397
  %v399 = vsel %vm155, %v73, 0.0
  %v400 = vadd.f32 %v398, %v399
  %v401 = vsel %vm155, %v89, 0.0
  %v402 = vadd.f32 %v400, %v401
  %v403 = vsel %vm155, %v105, 0.0
  %v404 = vadd.f32 %v402, %v403
  %v405 = vsel %vm155, %v121, 0.0
  %v406 = vadd.f32 %v404, %v405
  %v407 = vsel %vm155, %v137, 0.0
  %v408 = vadd.f32 %v406, %v407
  %v409 = vsel %vm155, %v153, 0.0
  %v410 = vadd.f32 %v408, %v409
  %v411 = vsel %vm155, %v26, 0.0
  %v412 = vsel %vm155, %v42, 0.0
  %v413 = vadd.f32 %v411, %v412
  %v414 = vsel %vm155, %v58, 0.0
  %v415 = vadd.f32 %v413, %v414
  %v416 = vsel %vm155, %v74, 0.0
  %v417 = vadd.f32 %v415, %v416
  %v418 = vsel %vm155, %v90, 0.0
  %v419 = vadd.f32 %v417, %v418
  %v420 = vsel %vm155, %v106, 0.0
  %v421 = vadd.f32 %v419, %v420
  %v422 = vsel %vm155, %v122, 0.0
  %v423 = vadd.f32 %v421, %v422
  %v424 = vsel %vm155, %v138, 0.0
  %v425 = vadd.f32 %v423, %v424
  %v426 = vsel %vm155, %v154, 0.0
  %v427 = vadd.f32 %v425, %v426
  %v428 = vld [vmem:[%s1] sm:$0xff]
  %v429 = vld [vmem:[%s1 + $0x8] sm:$0xff]
  %v430 = vld [vmem:[%s1 + $0x10] sm:$0xff]
  %v431 = vld [vmem:[%s1 + $0x18] sm:$0xff]
  %v432 = vld [vmem:[%s1 + $0x20] sm:$0xff]
  %v433 = vld [vmem:[%s1 + $0x28] sm:$0xff]
  %v434 = vld [vmem:[%s1 + $0x30] sm:$0xff]
  %v435 = vld [vmem:[%s1 + $0x38] sm:$0xff]
  %v436 = vld [vmem:[%s1 + $0x40] sm:$0xff]
  %v437 = vld [vmem:[%s1 + $0x48] sm:$0xff]
  %v438 = vld [vmem:[%s1 + $0x50] sm:$0xff]
  %v439 = vld [vmem:[%s1 + $0x58] sm:$0xff]
  %v440 = vld [vmem:[%s1 + $0x60] sm:$0xff]
  %v441 = vld [vmem:[%s1 + $0x68] sm:$0xff]
  %v442 = vld [vmem:[%s1 + $0x70] sm:$0xff]
  %v443 = vld [vmem:[%s1 + $0x78] sm:$0xff]
  %445 = vset.pattern.permute.xlu0 0
  %446 = vperm.xlu0 %445, %v428
  %v447 = vpop.permute.xlu0 %446
  %450 = vset.pattern.permute.xlu0 0
  %451 = vperm.xlu0 %450, %v429
  %v452 = vpop.permute.xlu0 %451
  %455 = vset.pattern.permute.xlu0 0
  %456 = vperm.xlu0 %455, %v430
  %v457 = vpop.permute.xlu0 %456
  %460 = vset.pattern.permute.xlu0 0
  %461 = vperm.xlu0 %460, %v431
  %v462 = vpop.permute.xlu0 %461
  %465 = vset.pattern.permute.xlu0 0
  %466 = vperm.xlu0 %465, %v432
  %v467 = vpop.permute.xlu0 %466
  %470 = vset.pattern.permute.xlu0 0
  %471 = vperm.xlu0 %470, %v433
  %v472 = vpop.permute.xlu0 %471
  %475 = vset.pattern.permute.xlu0 0
  %476 = vperm.xlu0 %475, %v434
  %v477 = vpop.permute.xlu0 %476
  %480 = vset.pattern.permute.xlu0 0
  %481 = vperm.xlu0 %480, %v435
  %v482 = vpop.permute.xlu0 %481
  %485 = vset.pattern.permute.xlu0 0
  %486 = vperm.xlu0 %485, %v436
  %v487 = vpop.permute.xlu0 %486
  %490 = vset.pattern.permute.xlu0 0
  %491 = vperm.xlu0 %490, %v437
  %v492 = vpop.permute.xlu0 %491
  %495 = vset.pattern.permute.xlu0 0
  %496 = vperm.xlu0 %495, %v438
  %v497 = vpop.permute.xlu0 %496
  %500 = vset.pattern.permute.xlu0 0
  %501 = vperm.xlu0 %500, %v439
  %v502 = vpop.permute.xlu0 %501
  %505 = vset.pattern.permute.xlu0 0
  %506 = vperm.xlu0 %505, %v440
  %v507 = vpop.permute.xlu0 %506
  %510 = vset.pattern.permute.xlu0 0
  %511 = vperm.xlu0 %510, %v441
  %v512 = vpop.permute.xlu0 %511
  %515 = vset.pattern.permute.xlu0 0
  %516 = vperm.xlu0 %515, %v442
  %v517 = vpop.permute.xlu0 %516
  %520 = vset.pattern.permute.xlu0 0
  %521 = vperm.xlu0 %520, %v443
  %v522 = vpop.permute.xlu0 %521
  %v524 = vmul.f32 %v172, %v447
  %v525 = vmul.f32 %v189, %v452
  %v526 = vmul.f32 %v206, %v457
  %v527 = vmul.f32 %v223, %v462
  %v528 = vmul.f32 %v240, %v467
  %v529 = vmul.f32 %v257, %v472
  %v530 = vmul.f32 %v274, %v477
  %v531 = vmul.f32 %v291, %v482
  %v532 = vmul.f32 %v308, %v487
  %v533 = vmul.f32 %v325, %v492
  %v534 = vmul.f32 %v342, %v497
  %v535 = vmul.f32 %v359, %v502
  %v536 = vmul.f32 %v376, %v507
  %v537 = vmul.f32 %v393, %v512
  %v538 = vmul.f32 %v410, %v517
  %v539 = vmul.f32 %v427, %v522
  %540 = vst.msk [vmem:[%s2] sm:$0xff] %vm155, %v524
  %541 = vst.msk [vmem:[%s2 + $0x8] sm:$0xff] %vm155, %v525
  %542 = vst.msk [vmem:[%s2 + $0x10] sm:$0xff] %vm155, %v526
  %543 = vst.msk [vmem:[%s2 + $0x18] sm:$0xff] %vm155, %v527
  %544 = vst.msk [vmem:[%s2 + $0x20] sm:$0xff] %vm155, %v528
  %545 = vst.msk [vmem:[%s2 + $0x28] sm:$0xff] %vm155, %v529
  %546 = vst.msk [vmem:[%s2 + $0x30] sm:$0xff] %vm155, %v530
  %547 = vst.msk [vmem:[%s2 + $0x38] sm:$0xff] %vm155, %v531
  %548 = vst.msk [vmem:[%s2 + $0x40] sm:$0xff] %vm155, %v532
  %549 = vst.msk [vmem:[%s2 + $0x48] sm:$0xff] %vm155, %v533
  %550 = vst.msk [vmem:[%s2 + $0x50] sm:$0xff] %vm155, %v534
  %551 = vst.msk [vmem:[%s2 + $0x58] sm:$0xff] %vm155, %v535
  %552 = vst.msk [vmem:[%s2 + $0x60] sm:$0xff] %vm155, %v536
  %553 = vst.msk [vmem:[%s2 + $0x68] sm:$0xff] %vm155, %v537
  %554 = vst.msk [vmem:[%s2 + $0x70] sm:$0xff] %vm155, %v538
  %555 = vst.msk [vmem:[%s2 + $0x78] sm:$0xff] %vm155, %v539
  // Predicated region
  $region10: #{local_enhancer_forward.30} parent=0 // pred_check
    _
  $region11: #{local_enhancer_forward.30} parent=0 // pred_check_branch
    %557 = sbr.rel (0) target = $region13
  $region12: #{local_enhancer_forward.30} parent=0 // pred_region
    _
  $region13: #{local_enhancer_forward.30} parent=0 // pred_fallthru
    _
  // Predicated region
  $region14: #{local_enhancer_forward.30} parent=0 // pred_check
    _
  $region15: #{local_enhancer_forward.30} parent=0 // pred_check_branch
    %559 = sbr.rel (0) target = $region17
  $region16: #{local_enhancer_forward.30} parent=0 // pred_region
    _
  $region17: #{local_enhancer_forward.30} parent=0 // pred_fallthru
    _

// kernel: tile.182
$region0: #{tile.182}
  #allocation0 [shape = 's32[1]{0}', space=sflag, size = 0x4, scoped, tag = 'scoped memory for tile.182']
  %s0 = inlined_call_operand.vmem [shape: f32[16], index: 0, kind: input, shape index: {}]
  %s1 = inlined_call_operand.vmem [shape: f32[32,16], index: 1, kind: output, shape index: {}]
  // Predicated region
  $region2: #{tile.182} parent=0 // pred_check
    _
  $region3: #{tile.182} parent=0 // pred_check_branch
    %3 = sbr.rel (0) target = $region5
  $region4: #{tile.182} parent=0 // pred_region
    _
  $region5: #{tile.182} parent=0 // pred_fallthru
    _
  %v4 = vld [vmem:[%s0] ss:$0 sm:$0xff]
  %5 = vst [vmem:[%s1] sm:$0xff] %v4
  %s6 = scalar_lea.vmem %s1, 8
  %7 = vst [vmem:[%s6] sm:$0xff] %v4
  %s8 = scalar_lea.vmem %s1, 16
  %9 = vst [vmem:[%s8] sm:$0xff] %v4
  %s10 = scalar_lea.vmem %s1, 24
  %11 = vst [vmem:[%s10] sm:$0xff] %v4

// kernel: tile.183
$region0: #{tile.183}
  %s0 = inlined_call_operand.vmem [shape: f32[32,16], index: 0, kind: input, shape index: {}]
  %s1 = inlined_call_operand.vmem [shape: f32[1,512], index: 1, kind: output, shape index: {}]
  $region1: #{tile.183} parent=0
    #allocation0 [shape = 'u8[16384]{0}', space=vmem, size = 0x4000, scoped, tag = 'scoped mem for output reshape']
    %v2 = vld [vmem:[%s0] ss:$8 sm:$0xf]
    %vm3 = vcmask 130048
    %4 = vst.msk [vmem:[#allocation0] ss:$8 sm:$0xf] %vm3, %v2
    %s5 = scalar_lea.vmem %s0, 7
    %v6 = vld [vmem:[%s5] ss:$8 sm:$0xf]
    %7 = vrot.lane.b32.xlu0 %v6, 112
    %v8 = vpop.permute.xlu0 %7
    %vm9 = vcmask 1048448
    %10 = vst.msk [vmem:[#allocation0] ss:$8 sm:$0xf] %vm9, %v8
    %s11 = scalar_lea.vmem %s0, 6
    %v12 = vld [vmem:[%s11] ss:$8 sm:$0xf]
    %13 = vrot.lane.b32.xlu0 %v12, 96
    %v14 = vpop.permute.xlu0 %13
    %vm15 = vcmask 917248
    %16 = vst.msk [vmem:[#allocation0] ss:$8 sm:$0xf] %vm15, %v14
    %s17 = scalar_lea.vmem %s0, 5
    %v18 = vld [vmem:[%s17] ss:$8 sm:$0xf]
    %19 = vrot.lane.b32.xlu0 %v18, 80
    %v20 = vpop.permute.xlu0 %19
    %vm21 = vcmask 786048
    %22 = vst.msk [vmem:[#allocation0] ss:$8 sm:$0xf] %vm21, %v20
    %s23 = scalar_lea.vmem %s0, 4
    %v24 = vld [vmem:[%s23] ss:$8 sm:$0xf]
    %25 = vrot.lane.b32.xlu0 %v24, 64
    %v26 = vpop.permute.xlu0 %25
    %vm27 = vcmask 654848
    %28 = vst.msk [vmem:[#allocation0] ss:$8 sm:$0xf] %vm27, %v26
    %s29 = scalar_lea.vmem %s0, 3
    %v30 = vld [vmem:[%s29] ss:$8 sm:$0xf]
    %31 = vrot.lane.b32.xlu0 %v30, 48
    %v32 = vpop.permute.xlu0 %31
    %vm33 = vcmask 523648
    %34 = vst.msk [vmem:[#allocation0] ss:$8 sm:$0xf] %vm33, %v32
    %s35 = scalar_lea.vmem %s0, 2
    %v36 = vld [vmem:[%s35] ss:$8 sm:$0xf]
    %37 = vrot.lane.b32.xlu0 %v36, 32
    %v38 = vpop.permute.xlu0 %37
    %vm39 = vcmask 392448
    %40 = vst.msk [vmem:[#allocation0] ss:$8 sm:$0xf] %vm39, %v38
    %s41 = scalar_lea.vmem %s0, 1
    %v42 = vld [vmem:[%s41] ss:$8 sm:$0xf]
    %43 = vrot.lane.b32.xlu0 %v42, 16
    %v44 = vpop.permute.xlu0 %43
    %vm45 = vcmask 261248
    %46 = vst.msk [vmem:[#allocation0] ss:$8 sm:$0xf] %vm45, %v44
    %s48 = sshllo.u32 0, 1
    %v50 = vld [vmem:[#allocation0] sm:%s48]
    %s51 = sshllo.u32 0, 1
    %52 = vst [vmem:[%s1] sm:%s51] %v50
    %s53 = scalar_lea.vmem [#allocation0], 8
    %v54 = vld [vmem:[%s53] sm:%s48]
    %s55 = sshllo.u32 0, 1
    %s56 = scalar_lea.vmem %s1, 1
    %57 = vst [vmem:[%s56] sm:%s55] %v54
    %s58 = scalar_lea.vmem [#allocation0], 16
    %v59 = vld [vmem:[%s58] sm:%s48]
    %s60 = sshllo.u32 0, 1
    %s61 = smul.addr 1, 2
    %s62 = scalar_lea.vmem %s1, %s61
    %63 = vst [vmem:[%s62] sm:%s60] %v59
    %s64 = scalar_lea.vmem [#allocation0], 24
    %v65 = vld [vmem:[%s64] sm:%s48]
    %s66 = sshllo.u32 0, 1
    %s67 = smul.addr 1, 3
    %s68 = scalar_lea.vmem %s1, %s67
    %69 = vst [vmem:[%s68] sm:%s66] %v65

// kernel: local_enhancer_forward.32
$region0: #{local_enhancer_forward.32}
  #allocation0 [shape = 'u32[]', space=smem, size = 0x4, offset = 0x4, fixed_abs, tag = 'smem constant byte address 0x4 - core index']
  #allocation1 [shape = 'u32[144,128]{1,0:T(1,128)}', space=vmem, size = 0x12000, scoped, tag = 'internal scratch']
  %s0 = inlined_call_operand.vmem [shape: f32[4,512], index: 0, kind: input, shape index: {}]
  %s1 = inlined_call_operand.vmem [shape: f32[1,512], index: 1, kind: input, shape index: {}]
  %s2 = inlined_call_operand.vmem [shape: f32[1,512], index: 2, kind: input, shape index: {}]
  %s3 = inlined_call_operand.vmem [shape: f32[4,512], index: 3, kind: output, shape index: {}]
  %s4 = sld [smem:[#allocation0]]
  $region22: #{local_enhancer_forward.32} parent=0
    _
  %s6 = ssub.s32 1, %s4
  %s7 = scalar_select 0, %s6, %s4
  // Predicated region
  $region2: #{local_enhancer_forward.32} parent=0 // pred_check
    _
  $region3: #{local_enhancer_forward.32} parent=0 // pred_check_branch
    %9 = sbr.rel (0) target = $region5
  $region4: #{local_enhancer_forward.32} parent=0 // pred_region
    _
  $region5: #{local_enhancer_forward.32} parent=0 // pred_fallthru
    _
  // Predicated region
  $region6: #{local_enhancer_forward.32} parent=0 // pred_check
    _
  $region7: #{local_enhancer_forward.32} parent=0 // pred_check_branch
    %11 = sbr.rel (0) target = $region9
  $region8: #{local_enhancer_forward.32} parent=0 // pred_region
    _
  $region9: #{local_enhancer_forward.32} parent=0 // pred_fallthru
    _
  // Predicated region
  $region10: #{local_enhancer_forward.32} parent=0 // pred_check
    _
  $region11: #{local_enhancer_forward.32} parent=0 // pred_check_branch
    %13 = sbr.rel (0) target = $region13
  $region12: #{local_enhancer_forward.32} parent=0 // pred_region
    _
  $region13: #{local_enhancer_forward.32} parent=0 // pred_fallthru
    _
  %v14 = vld [vmem:[%s0] sm:$0xff]
  %v15 = vld [vmem:[%s0 + $0x8] sm:$0xff]
  %v16 = vld [vmem:[%s1] sm:$0xf]
  %v18 = vlaneseq
  %v19 = vshrl.u32 %v18, 7
  %v20 = vsub.s32 0, %v19
  %v21 = vrot.slane %v16, %v20
  %v22 = vlaneseq
  %v23 = vshrl.u32 %v22, 7
  %v24 = vsub.s32 1, %v23
  %v25 = vrot.slane %v16, %v24
  %v26 = vlaneseq
  %v27 = vshrl.u32 %v26, 7
  %v28 = vsub.s32 2, %v27
  %v29 = vrot.slane %v16, %v28
  %v30 = vlaneseq
  %v31 = vshrl.u32 %v30, 7
  %v32 = vsub.s32 3, %v31
  %v33 = vrot.slane %v16, %v32
  %v34 = vcombine.low %v21, %v25
  %v35 = vcombine.low %v29, %v33
  %v38 = vmul.f32 %v14, %v34
  %v39 = vmul.f32 %v15, %v35
  %v40 = vld [vmem:[%s2] sm:$0xf]
  %v42 = vlaneseq
  %v43 = vshrl.u32 %v42, 7
  %v44 = vsub.s32 0, %v43
  %v45 = vrot.slane %v40, %v44
  %v46 = vlaneseq
  %v47 = vshrl.u32 %v46, 7
  %v48 = vsub.s32 1, %v47
  %v49 = vrot.slane %v40, %v48
  %v50 = vlaneseq
  %v51 = vshrl.u32 %v50, 7
  %v52 = vsub.s32 2, %v51
  %v53 = vrot.slane %v40, %v52
  %v54 = vlaneseq
  %v55 = vshrl.u32 %v54, 7
  %v56 = vsub.s32 3, %v55
  %v57 = vrot.slane %v40, %v56
  %v58 = vcombine.low %v45, %v49
  %v59 = vcombine.low %v53, %v57
  %v62 = vadd.f32 %v38, %v58
  %v63 = vadd.f32 %v39, %v59
  %v64 = vmax.f32 %v62, 0.0
  %v65 = vmax.f32 %v63, 0.0
  %66 = vst [vmem:[%s3] sm:$0xff] %v64
  %67 = vst [vmem:[%s3 + $0x8] sm:$0xff] %v65
  // Predicated region
  $region14: #{local_enhancer_forward.32} parent=0 // pred_check
    _
  $region15: #{local_enhancer_forward.32} parent=0 // pred_check_branch
    %69 = sbr.rel (0) target = $region17
  $region16: #{local_enhancer_forward.32} parent=0 // pred_region
    _
  $region17: #{local_enhancer_forward.32} parent=0 // pred_fallthru
    _
  // Predicated region
  $region18: #{local_enhancer_forward.32} parent=0 // pred_check
    _
  $region19: #{local_enhancer_forward.32} parent=0 // pred_check_branch
    %71 = sbr.rel (0) target = $region21
  $region20: #{local_enhancer_forward.32} parent=0 // pred_region
    _
  $region21: #{local_enhancer_forward.32} parent=0 // pred_fallthru
    _

// kernel: local_enhancer_forward.31
$region0: #{local_enhancer_forward.31}
  #allocation0 [shape = 'u32[]', space=smem, size = 0x4, offset = 0x4, fixed_abs, tag = 'smem constant byte address 0x4 - core index']
  #allocation1 [shape = 'u32[144,128]{1,0:T(1,128)}', space=vmem, size = 0x12000, scoped, tag = 'internal scratch']
  %s0 = inlined_call_operand.vmem [shape: bf16[128,147], index: 0, kind: input, shape index: {}]
  %s1 = inlined_call_operand.vmem [shape: bf16[147,16], index: 1, kind: input, shape index: {}]
  %s2 = inlined_call_operand.vmem [shape: f32[1,16], index: 2, kind: input, shape index: {}]
  %s3 = inlined_call_operand.vmem [shape: f32[128,16], index: 3, kind: output, shape index: {0}]
  %s4 = inlined_call_operand.vmem [shape: f32[1,1,16], index: 4, kind: output, shape index: {1}]
  %s5 = inlined_call_operand.vmem [shape: f32[1,1,16], index: 5, kind: output, shape index: {2}]
  %6 = xla_tuple %s3, %s4, %s5
  %s7 = sld [smem:[#allocation0]]
  $region38: #{local_enhancer_forward.31} parent=0
    _
  %s9 = ssub.s32 1, %s7
  %s10 = scalar_select 0, %s9, %s7
  // Predicated region
  $region2: #{local_enhancer_forward.31} parent=0 // pred_check
    _
  $region3: #{local_enhancer_forward.31} parent=0 // pred_check_branch
    %12 = sbr.rel (0) target = $region5
  $region4: #{local_enhancer_forward.31} parent=0 // pred_region
    _
  $region5: #{local_enhancer_forward.31} parent=0 // pred_fallthru
    _
  // Predicated region
  $region6: #{local_enhancer_forward.31} parent=0 // pred_check
    _
  $region7: #{local_enhancer_forward.31} parent=0 // pred_check_branch
    %14 = sbr.rel (0) target = $region9
  $region8: #{local_enhancer_forward.31} parent=0 // pred_region
    _
  $region9: #{local_enhancer_forward.31} parent=0 // pred_fallthru
    _
  // Predicated region
  $region10: #{local_enhancer_forward.31} parent=0 // pred_check
    _
  $region11: #{local_enhancer_forward.31} parent=0 // pred_check_branch
    %16 = sbr.rel (0) target = $region13
  $region12: #{local_enhancer_forward.31} parent=0 // pred_region
    _
  $region13: #{local_enhancer_forward.31} parent=0 // pred_fallthru
    _
  %v18 = vld [vmem:[%s0] sm:$0xff]
  %v19 = vld [vmem:[%s0 + $0x8] sm:$0xff]
  %v20 = vld [vmem:[%s0 + $0x10] sm:$0xff]
  %v21 = vld [vmem:[%s0 + $0x18] sm:$0xff]
  %v22 = vld [vmem:[%s0 + $0x20] sm:$0xff]
  %v23 = vld [vmem:[%s0 + $0x28] sm:$0xff]
  %v24 = vld [vmem:[%s0 + $0x30] sm:$0xff]
  %v25 = vld [vmem:[%s0 + $0x38] sm:$0xff]
  %v26 = vld [vmem:[%s0 + $0x40] sm:$0xff]
  %v27 = vld [vmem:[%s0 + $0x48] sm:$0xff]
  %v28 = vld [vmem:[%s0 + $0x50] sm:$0xff]
  %v29 = vld [vmem:[%s0 + $0x58] sm:$0xff]
  %v30 = vld [vmem:[%s0 + $0x60] sm:$0xff]
  %v31 = vld [vmem:[%s0 + $0x68] sm:$0xff]
  %v32 = vld [vmem:[%s0 + $0x70] sm:$0xff]
  %v33 = vld [vmem:[%s0 + $0x78] sm:$0xff]
  %v34 = vld [vmem:[%s1] sm:$0xf]
  %v35 = vld [vmem:[%s1 + $0x4] sm:$0xf]
  %v36 = vld [vmem:[%s1 + $0x8] sm:$0xf]
  %v37 = vld [vmem:[%s1 + $0xc] sm:$0xf]
  %v38 = vld [vmem:[%s1 + $0x10] sm:$0xf]
  %v39 = vld [vmem:[%s1 + $0x14] sm:$0xf]
  %v40 = vld [vmem:[%s1 + $0x18] sm:$0xf]
  %v41 = vld [vmem:[%s1 + $0x1c] sm:$0xf]
  %v42 = vld [vmem:[%s1 + $0x20] sm:$0xf]
  %v43 = vld [vmem:[%s1 + $0x24] sm:$0xf]
  %v44 = vld [vmem:[%s1 + $0x28] sm:$0xf]
  %v45 = vld [vmem:[%s1 + $0x2c] sm:$0xf]
  %v46 = vld [vmem:[%s1 + $0x30] sm:$0xf]
  %v47 = vld [vmem:[%s1 + $0x34] sm:$0xf]
  %v48 = vld [vmem:[%s1 + $0x38] sm:$0xf]
  %v49 = vld [vmem:[%s1 + $0x3c] sm:$0xf]
  %v50 = vld [vmem:[%s1 + $0x40] sm:$0xf]
  %v51 = vld [vmem:[%s1 + $0x44] sm:$0xf]
  %v52 = vld [vmem:[%s1 + $0x48] sm:$0x3]
  %v53 = vld [vmem:[%s2] sm:$0x1]
  %v55 = vlaneseq
  %v56 = vshrl.u32 %v55, 7
  %v57 = vsub.s32 0, %v56
  %v58 = vrot.slane %v53, %v57
  %v76 = vunpack.c.l.b16 %v18
  %v77 = vunpack.c.h.b16 %v18
  %v78 = vunpack.c.l.b16 %v19
  %v79 = vunpack.c.h.b16 %v19
  %v80 = vunpack.c.l.b16 %v20
  %v81 = vunpack.c.h.b16 %v20
  %v82 = vunpack.c.l.b16 %v21
  %v83 = vunpack.c.h.b16 %v21
  %v84 = vunpack.c.l.b16 %v22
  %v85 = vunpack.c.h.b16 %v22
  %v86 = vunpack.c.l.b16 %v23
  %v87 = vunpack.c.h.b16 %v23
  %v88 = vunpack.c.l.b16 %v24
  %v89 = vunpack.c.h.b16 %v24
  %v90 = vunpack.c.l.b16 %v25
  %v91 = vunpack.c.h.b16 %v25
  %v92 = vunpack.c.l.b16 %v26
  %v93 = vunpack.c.h.b16 %v26
  %v94 = vunpack.c.l.b16 %v27
  %v95 = vunpack.c.h.b16 %v27
  %v96 = vunpack.c.l.b16 %v28
  %v97 = vunpack.c.h.b16 %v28
  %v98 = vunpack.c.l.b16 %v29
  %v99 = vunpack.c.h.b16 %v29
  %v100 = vunpack.c.l.b16 %v30
  %v101 = vunpack.c.h.b16 %v30
  %v102 = vunpack.c.l.b16 %v31
  %v103 = vunpack.c.h.b16 %v31
  %v104 = vunpack.c.l.b16 %v32
  %v105 = vunpack.c.h.b16 %v32
  %v106 = vunpack.c.l.b16 %v33
  %v107 = vunpack.c.h.b16 %v33
  %v108 = vpack.c.b16 %v78, %v76
  %v109 = vpack.c.b16 %v79, %v77
  %v110 = vpack.c.b16 %v82, %v80
  %v111 = vpack.c.b16 %v83, %v81
  %v112 = vpack.c.b16 %v86, %v84
  %v113 = vpack.c.b16 %v87, %v85
  %v114 = vpack.c.b16 %v90, %v88
  %v115 = vpack.c.b16 %v91, %v89
  %v116 = vpack.c.b16 %v94, %v92
  %v117 = vpack.c.b16 %v95, %v93
  %v118 = vpack.c.b16 %v98, %v96
  %v119 = vpack.c.b16 %v99, %v97
  %v120 = vpack.c.b16 %v102, %v100
  %v121 = vpack.c.b16 %v103, %v101
  %v122 = vpack.c.b16 %v106, %v104
  %v123 = vpack.c.b16 %v107, %v105
  %v151 = vunpack.c.l.b16 %v34
  %v152 = vunpack.c.l.b16 %v35
  %v153 = vunpack.c.l.b16 %v36
  %v154 = vunpack.c.l.b16 %v37
  %v155 = vunpack.c.l.b16 %v38
  %v156 = vunpack.c.l.b16 %v39
  %v157 = vunpack.c.l.b16 %v40
  %v158 = vunpack.c.l.b16 %v41
  %v159 = vunpack.c.l.b16 %v42
  %v160 = vunpack.c.l.b16 %v43
  %v161 = vunpack.c.l.b16 %v44
  %v162 = vunpack.c.l.b16 %v45
  %v163 = vunpack.c.l.b16 %v46
  %v164 = vunpack.c.l.b16 %v47
  %v165 = vunpack.c.l.b16 %v48
  %v166 = vunpack.c.l.b16 %v49
  %v167 = vunpack.c.l.b16 %v50
  %v168 = vunpack.c.l.b16 %v51
  %v169 = vunpack.c.l.b16 %v52
  %v170 = vpack.c.b16 %v152, %v151
  %v171 = vpack.c.b16 %v154, %v153
  %v172 = vpack.c.b16 %v156, %v155
  %v173 = vpack.c.b16 %v158, %v157
  %v174 = vpack.c.b16 %v160, %v159
  %v175 = vpack.c.b16 %v162, %v161
  %v176 = vpack.c.b16 %v164, %v163
  %v177 = vpack.c.b16 %v166, %v165
  %v178 = vpack.c.b16 %v168, %v167
  %v179 = vpack.c.b16 %v169, %v169
  %vm189 = vcmask 154624
  %v191 = vsel %vm189, %v109, 0
  %v194 = vsel %vm189, %v111, 0
  %v197 = vsel %vm189, %v113, 0
  %v200 = vsel %vm189, %v115, 0
  %v203 = vsel %vm189, %v117, 0
  %v206 = vsel %vm189, %v119, 0
  %v209 = vsel %vm189, %v121, 0
  %v212 = vsel %vm189, %v123, 0
  %vm214 = vcmask 1040384
  %vm215 = vcmask 1041408
  %v216 = vsel %vm214, 4294967295, 65535
  %v217 = vsel %vm215, %v216, 0
  %v219 = vand.u32 %v179, %v217
  %221 = vmatprep.subr.bf16.mxu0 0
  %222 = vmatpush1.bf16.msra.mxu0 %v170
  %223 = vmatprep.subr.bf16.mxu0 0
  %224 = vmatpush1.bf16.msra.mxu0 %v171
  %225 = vmatprep.subr.bf16.mxu0 0
  %226 = vmatpush1.bf16.msra.mxu0 %v172
  %227 = vmatprep.subr.bf16.mxu0 0
  %228 = vmatpush1.bf16.msra.mxu0 %v173
  %229 = vmatprep.subr.bf16.mxu0 0
  %230 = vmatpush1.bf16.msra.mxu0 %v174
  %231 = vmatprep.subr.bf16.mxu0 0
  %232 = vmatpush1.bf16.msra.mxu0 %v175
  %233 = vmatprep.subr.bf16.mxu0 0
  %234 = vmatpush1.bf16.msra.mxu0 %v176
  %235 = vmatprep.subr.bf16.mxu0 0
  %236 = vmatpush1.bf16.msra.mxu0 %v177
  %237 = vmatprep.subr.bf16.mxu0 0
  %238 = vmatpush1.bf16.msra.mxu0 %v178
  %239 = vmatprep.subr.bf16.mxu0 0
  %240 = vmatpush1.bf16.msra.mxu0 %v219
  %241 = vmatprep.subr.bf16.mxu0 0
  %242 = vmatpush1.bf16.msra.mxu0 0
  %243 = vmatprep.subr.bf16.mxu0 0
  %244 = vmatpush1.bf16.msra.mxu0 0
  %245 = vmatprep.subr.bf16.mxu0 0
  %246 = vmatpush1.bf16.msra.mxu0 0
  %247 = vmatprep.subr.bf16.mxu0 0
  %248 = vmatpush1.bf16.msra.mxu0 0
  %249 = vmatprep.subr.bf16.mxu0 0
  %250 = vmatpush1.bf16.msra.mxu0 0
  %251 = vmatprep.subr.bf16.mxu0 0
  %252 = vmatpush1.bf16.msra.mxu0 0
  %253 = vmatprep.mubr.bf16.mxu0 %v191
  %254 = vmatmul.mubr.bf16.gmra.mrb[0].mxu0 %v108
  %v255 = vpop.f32.mrb[0].mxu0
  %v256 = vadd.f32 %v58, %v255
  %v257 = vpop.f32.mrb[0].mxu0
  %v258 = vpop.f32.mrb[0].mxu0
  %v259 = vadd.f32 %v58, %v258
  %v260 = vpop.f32.mrb[0].mxu0
  %261 = vmatprep.mubr.bf16.mxu0 %v194
  %262 = vmatmul.mubr.bf16.gmra.mrb[0].mxu0 %v110
  %v263 = vpop.f32.mrb[0].mxu0
  %v264 = vadd.f32 %v58, %v263
  %v265 = vpop.f32.mrb[0].mxu0
  %v266 = vpop.f32.mrb[0].mxu0
  %v267 = vadd.f32 %v58, %v266
  %v268 = vpop.f32.mrb[0].mxu0
  %269 = vmatprep.mubr.bf16.mxu0 %v197
  %270 = vmatmul.mubr.bf16.gmra.mrb[0].mxu0 %v112
  %v271 = vpop.f32.mrb[0].mxu0
  %v272 = vadd.f32 %v58, %v271
  %v273 = vpop.f32.mrb[0].mxu0
  %v274 = vpop.f32.mrb[0].mxu0
  %v275 = vadd.f32 %v58, %v274
  %v276 = vpop.f32.mrb[0].mxu0
  %277 = vmatprep.mubr.bf16.mxu0 %v200
  %278 = vmatmul.mubr.bf16.gmra.mrb[0].mxu0 %v114
  %v279 = vpop.f32.mrb[0].mxu0
  %v280 = vadd.f32 %v58, %v279
  %v281 = vpop.f32.mrb[0].mxu0
  %v282 = vpop.f32.mrb[0].mxu0
  %v283 = vadd.f32 %v58, %v282
  %v284 = vpop.f32.mrb[0].mxu0
  %285 = vmatprep.mubr.bf16.mxu0 %v203
  %286 = vmatmul.mubr.bf16.gmra.mrb[0].mxu0 %v116
  %v287 = vpop.f32.mrb[0].mxu0
  %v288 = vadd.f32 %v58, %v287
  %v289 = vpop.f32.mrb[0].mxu0
  %v290 = vpop.f32.mrb[0].mxu0
  %v291 = vadd.f32 %v58, %v290
  %v292 = vpop.f32.mrb[0].mxu0
  %293 = vmatprep.mubr.bf16.mxu0 %v206
  %294 = vmatmul.mubr.bf16.gmra.mrb[0].mxu0 %v118
  %v295 = vpop.f32.mrb[0].mxu0
  %v296 = vadd.f32 %v58, %v295
  %v297 = vpop.f32.mrb[0].mxu0
  %v298 = vpop.f32.mrb[0].mxu0
  %v299 = vadd.f32 %v58, %v298
  %v300 = vpop.f32.mrb[0].mxu0
  %301 = vmatprep.mubr.bf16.mxu0 %v209
  %302 = vmatmul.mubr.bf16.gmra.mrb[0].mxu0 %v120
  %v303 = vpop.f32.mrb[0].mxu0
  %v304 = vadd.f32 %v58, %v303
  %v305 = vpop.f32.mrb[0].mxu0
  %v306 = vpop.f32.mrb[0].mxu0
  %v307 = vadd.f32 %v58, %v306
  %v308 = vpop.f32.mrb[0].mxu0
  %309 = vmatprep.mubr.bf16.mxu0 %v212
  %310 = vmatmul.mubr.bf16.gmra.mrb[0].mxu0 %v122
  %v311 = vpop.f32.mrb[0].mxu0
  %v312 = vadd.f32 %v58, %v311
  %v313 = vpop.f32.mrb[0].mxu0
  %v314 = vpop.f32.mrb[0].mxu0
  %v315 = vadd.f32 %v58, %v314
  %v316 = vpop.f32.mrb[0].mxu0
  %317 = vdwg.mxu0
  %vm318 = vcmask 130048
  %319 = vst.msk [vmem:[%s3] sm:$0xff] %vm318, %v256
  %320 = vst.msk [vmem:[%s3 + $0x8] sm:$0xff] %vm318, %v259
  %321 = vst.msk [vmem:[%s3 + $0x10] sm:$0xff] %vm318, %v264
  %322 = vst.msk [vmem:[%s3 + $0x18] sm:$0xff] %vm318, %v267
  %323 = vst.msk [vmem:[%s3 + $0x20] sm:$0xff] %vm318, %v272
  %324 = vst.msk [vmem:[%s3 + $0x28] sm:$0xff] %vm318, %v275
  %325 = vst.msk [vmem:[%s3 + $0x30] sm:$0xff] %vm318, %v280
  %326 = vst.msk [vmem:[%s3 + $0x38] sm:$0xff] %vm318, %v283
  %327 = vst.msk [vmem:[%s3 + $0x40] sm:$0xff] %vm318, %v288
  %328 = vst.msk [vmem:[%s3 + $0x48] sm:$0xff] %vm318, %v291
  %329 = vst.msk [vmem:[%s3 + $0x50] sm:$0xff] %vm318, %v296
  %330 = vst.msk [vmem:[%s3 + $0x58] sm:$0xff] %vm318, %v299
  %331 = vst.msk [vmem:[%s3 + $0x60] sm:$0xff] %vm318, %v304
  %332 = vst.msk [vmem:[%s3 + $0x68] sm:$0xff] %vm318, %v307
  %333 = vst.msk [vmem:[%s3 + $0x70] sm:$0xff] %vm318, %v312
  %334 = vst.msk [vmem:[%s3 + $0x78] sm:$0xff] %vm318, %v315
  %s335 = smul.u32 0, 128
  %v336 = vlaneseq
  %v337 = vshrl.u32 %v336, 7
  %v338 = vadd.s32 %v337, 8
  %v339 = vadd.s32 %v337, 16
  %v340 = vadd.s32 %v337, 24
  %v341 = vadd.s32 %v337, 32
  %v342 = vadd.s32 %v337, 40
  %v343 = vadd.s32 %v337, 48
  %v344 = vadd.s32 %v337, 56
  %v345 = vadd.s32 %v337, 64
  %v346 = vadd.s32 %v337, 72
  %v347 = vadd.s32 %v337, 80
  %v348 = vadd.s32 %v337, 88
  %v349 = vadd.s32 %v337, 96
  %v350 = vadd.s32 %v337, 104
  %v351 = vadd.s32 %v337, 112
  %v352 = vadd.s32 %v337, 120
  %v353 = vstv %s335
  %v354 = vadd.s32 %v353, %v337
  %v355 = vadd.s32 %v353, %v338
  %v356 = vadd.s32 %v353, %v339
  %v357 = vadd.s32 %v353, %v340
  %v358 = vadd.s32 %v353, %v341
  %v359 = vadd.s32 %v353, %v342
  %v360 = vadd.s32 %v353, %v343
  %v361 = vadd.s32 %v353, %v344
  %v362 = vadd.s32 %v353, %v345
  %v363 = vadd.s32 %v353, %v346
  %v364 = vadd.s32 %v353, %v347
  %v365 = vadd.s32 %v353, %v348
  %v366 = vadd.s32 %v353, %v349
  %v367 = vadd.s32 %v353, %v350
  %v368 = vadd.s32 %v353, %v351
  %v369 = vadd.s32 %v353, %v352
  %vm370 = vcmp.lt.s32.totalorder %v354, 128
  %vm371 = vcmp.lt.s32.totalorder %v355, 128
  %vm372 = vcmp.lt.s32.totalorder %v356, 128
  %vm373 = vcmp.lt.s32.totalorder %v357, 128
  %vm374 = vcmp.lt.s32.totalorder %v358, 128
  %vm375 = vcmp.lt.s32.totalorder %v359, 128
  %vm376 = vcmp.lt.s32.totalorder %v360, 128
  %vm377 = vcmp.lt.s32.totalorder %v361, 128
  %vm378 = vcmp.lt.s32.totalorder %v362, 128
  %vm379 = vcmp.lt.s32.totalorder %v363, 128
  %vm380 = vcmp.lt.s32.totalorder %v364, 128
  %vm381 = vcmp.lt.s32.totalorder %v365, 128
  %vm382 = vcmp.lt.s32.totalorder %v366, 128
  %vm383 = vcmp.lt.s32.totalorder %v367, 128
  %vm384 = vcmp.lt.s32.totalorder %v368, 128
  %vm385 = vcmp.lt.s32.totalorder %v369, 128
  %v386 = vsel %vm370, 1, 0
  %v387 = vsel %vm371, 1, 0
  %v388 = vsel %vm372, 1, 0
  %v389 = vsel %vm373, 1, 0
  %v390 = vsel %vm374, 1, 0
  %v391 = vsel %vm375, 1, 0
  %v392 = vsel %vm376, 1, 0
  %v393 = vsel %vm377, 1, 0
  %v394 = vsel %vm378, 1, 0
  %v395 = vsel %vm379, 1, 0
  %v396 = vsel %vm380, 1, 0
  %v397 = vsel %vm381, 1, 0
  %v398 = vsel %vm382, 1, 0
  %v399 = vsel %vm383, 1, 0
  %v400 = vsel %vm384, 1, 0
  %v401 = vsel %vm385, 1, 0
  %v402 = vcvt.s32.f32 %v386
  %v403 = vcvt.s32.f32 %v387
  %v404 = vcvt.s32.f32 %v388
  %v405 = vcvt.s32.f32 %v389
  %v406 = vcvt.s32.f32 %v390
  %v407 = vcvt.s32.f32 %v391
  %v408 = vcvt.s32.f32 %v392
  %v409 = vcvt.s32.f32 %v393
  %v410 = vcvt.s32.f32 %v394
  %v411 = vcvt.s32.f32 %v395
  %v412 = vcvt.s32.f32 %v396
  %v413 = vcvt.s32.f32 %v397
  %v414 = vcvt.s32.f32 %v398
  %v415 = vcvt.s32.f32 %v399
  %v416 = vcvt.s32.f32 %v400
  %v417 = vcvt.s32.f32 %v401
  %v418 = vmul.f32 %v256, %v402
  %v419 = vmul.f32 %v259, %v403
  %v420 = vmul.f32 %v264, %v404
  %v421 = vmul.f32 %v267, %v405
  %v422 = vmul.f32 %v272, %v406
  %v423 = vmul.f32 %v275, %v407
  %v424 = vmul.f32 %v280, %v408
  %v425 = vmul.f32 %v283, %v409
  %v426 = vmul.f32 %v288, %v410
  %v427 = vmul.f32 %v291, %v411
  %v428 = vmul.f32 %v296, %v412
  %v429 = vmul.f32 %v299, %v413
  %v430 = vmul.f32 %v304, %v414
  %v431 = vmul.f32 %v307, %v415
  %v432 = vmul.f32 %v312, %v416
  %v433 = vmul.f32 %v315, %v417
  %v434 = vsel %vm318, %v418, 0.0
  %v435 = vsel %vm318, %v419, 0.0
  %v436 = vadd.f32 %v434, %v435
  %v437 = vsel %vm318, %v420, 0.0
  %v438 = vadd.f32 %v436, %v437
  %v439 = vsel %vm318, %v421, 0.0
  %v440 = vadd.f32 %v438, %v439
  %v441 = vsel %vm318, %v422, 0.0
  %v442 = vadd.f32 %v440, %v441
  %v443 = vsel %vm318, %v423, 0.0
  %v444 = vadd.f32 %v442, %v443
  %v445 = vsel %vm318, %v424, 0.0
  %v446 = vadd.f32 %v444, %v445
  %v447 = vsel %vm318, %v425, 0.0
  %v448 = vadd.f32 %v446, %v447
  %v449 = vsel %vm318, %v426, 0.0
  %v450 = vadd.f32 %v448, %v449
  %v451 = vsel %vm318, %v427, 0.0
  %v452 = vadd.f32 %v450, %v451
  %v453 = vsel %vm318, %v428, 0.0
  %v454 = vadd.f32 %v452, %v453
  %v455 = vsel %vm318, %v429, 0.0
  %v456 = vadd.f32 %v454, %v455
  %v457 = vsel %vm318, %v430, 0.0
  %v458 = vadd.f32 %v456, %v457
  %v459 = vsel %vm318, %v431, 0.0
  %v460 = vadd.f32 %v458, %v459
  %v461 = vsel %vm318, %v432, 0.0
  %v462 = vadd.f32 %v460, %v461
  %v463 = vsel %vm318, %v433, 0.0
  %v464 = vadd.f32 %v462, %v463
  %v465 = vrot.slane %v464, 4
  %v466 = vadd.f32 %v464, %v465
  %v467 = vrot.slane %v466, 2
  %v468 = vadd.f32 %v466, %v467
  %v469 = vrot.slane %v468, 1
  %v470 = vadd.f32 %v468, %v469
  %vm471 = vcmask 122880
  %472 = vst.msk [vmem:[%s4] sm:$0x1] %vm471, %v470
  %v473 = vmul.f32 %v418, %v256
  %v474 = vmul.f32 %v419, %v259
  %v475 = vmul.f32 %v420, %v264
  %v476 = vmul.f32 %v421, %v267
  %v477 = vmul.f32 %v422, %v272
  %v478 = vmul.f32 %v423, %v275
  %v479 = vmul.f32 %v424, %v280
  %v480 = vmul.f32 %v425, %v283
  %v481 = vmul.f32 %v426, %v288
  %v482 = vmul.f32 %v427, %v291
  %v483 = vmul.f32 %v428, %v296
  %v484 = vmul.f32 %v429, %v299
  %v485 = vmul.f32 %v430, %v304
  %v486 = vmul.f32 %v431, %v307
  %v487 = vmul.f32 %v432, %v312
  %v488 = vmul.f32 %v433, %v315
  %v489 = vsel %vm318, %v473, 0.0
  %v490 = vsel %vm318, %v474, 0.0
  %v491 = vadd.f32 %v489, %v490
  %v492 = vsel %vm318, %v475, 0.0
  %v493 = vadd.f32 %v491, %v492
  %v494 = vsel %vm318, %v476, 0.0
  %v495 = vadd.f32 %v493, %v494
  %v496 = vsel %vm318, %v477, 0.0
  %v497 = vadd.f32 %v495, %v496
  %v498 = vsel %vm318, %v478, 0.0
  %v499 = vadd.f32 %v497, %v498
  %v500 = vsel %vm318, %v479, 0.0
  %v501 = vadd.f32 %v499, %v500
  %v502 = vsel %vm318, %v480, 0.0
  %v503 = vadd.f32 %v501, %v502
  %v504 = vsel %vm318, %v481, 0.0
  %v505 = vadd.f32 %v503, %v504
  %v506 = vsel %vm318, %v482, 0.0
  %v507 = vadd.f32 %v505, %v506
  %v508 = vsel %vm318, %v483, 0.0
  %v509 = vadd.f32 %v507, %v508
  %v510 = vsel %vm318, %v484, 0.0
  %v511 = vadd.f32 %v509, %v510
  %v512 = vsel %vm318, %v485, 0.0
  %v513 = vadd.f32 %v511, %v512
  %v514 = vsel %vm318, %v486, 0.0
  %v515 = vadd.f32 %v513, %v514
  %v516 = vsel %vm318, %v487, 0.0
  %v517 = vadd.f32 %v515, %v516
  %v518 = vsel %vm318, %v488, 0.0
  %v519 = vadd.f32 %v517, %v518
  %v520 = vrot.slane %v519, 4
  %v521 = vadd.f32 %v519, %v520
  %v522 = vrot.slane %v521, 2
  %v523 = vadd.f32 %v521, %v522
  %v524 = vrot.slane %v523, 1
  %v525 = vadd.f32 %v523, %v524
  %526 = vst.msk [vmem:[%s5] sm:$0x1] %vm471, %v525
  // Predicated region
  $region14: #{local_enhancer_forward.31} parent=0 // pred_check
    _
  $region15: #{local_enhancer_forward.31} parent=0 // pred_check_branch
    %528 = sbr.rel (0) target = $region17
  $region16: #{local_enhancer_forward.31} parent=0 // pred_region
    _
  $region17: #{local_enhancer_forward.31} parent=0 // pred_fallthru
    _
  // Predicated region
  $region18: #{local_enhancer_forward.31} parent=0 // pred_check
    _
  $region19: #{local_enhancer_forward.31} parent=0 // pred_check_branch
    %530 = sbr.rel (0) target = $region21
  $region20: #{local_enhancer_forward.31} parent=0 // pred_region
    _
  $region21: #{local_enhancer_forward.31} parent=0 // pred_fallthru
    _
  // Predicated region
  $region22: #{local_enhancer_forward.31} parent=0 // pred_check
    _
  $region23: #{local_enhancer_forward.31} parent=0 // pred_check_branch
    %532 = sbr.rel (0) target = $region25
  $region24: #{local_enhancer_forward.31} parent=0 // pred_region
    _
  $region25: #{local_enhancer_forward.31} parent=0 // pred_fallthru
    _
  // Predicated region
  $region26: #{local_enhancer_forward.31} parent=0 // pred_check
    _
  $region27: #{local_enhancer_forward.31} parent=0 // pred_check_branch
    %534 = sbr.rel (0) target = $region29
  $region28: #{local_enhancer_forward.31} parent=0 // pred_region
    _
  $region29: #{local_enhancer_forward.31} parent=0 // pred_fallthru
    _
  // Predicated region
  $region30: #{local_enhancer_forward.31} parent=0 // pred_check
    _
  $region31: #{local_enhancer_forward.31} parent=0 // pred_check_branch
    %536 = sbr.rel (0) target = $region33
  $region32: #{local_enhancer_forward.31} parent=0 // pred_region
    _
  $region33: #{local_enhancer_forward.31} parent=0 // pred_fallthru
    _
  // Predicated region
  $region34: #{local_enhancer_forward.31} parent=0 // pred_check
    _
  $region35: #{local_enhancer_forward.31} parent=0 // pred_check_branch
    %538 = sbr.rel (0) target = $region37
  $region36: #{local_enhancer_forward.31} parent=0 // pred_region
    _
  $region37: #{local_enhancer_forward.31} parent=0 // pred_fallthru
    _

// kernel: tile.192
$region0: #{tile.192}
  #allocation0 [shape = 's32[1]{0}', space=sflag, size = 0x4, scoped, tag = 'scoped memory for tile.192']
  %s0 = inlined_call_operand.vmem [shape: f32[32], index: 0, kind: input, shape index: {}]
  %s1 = inlined_call_operand.vmem [shape: f32[16,32], index: 1, kind: output, shape index: {}]
  // Predicated region
  $region2: #{tile.192} parent=0 // pred_check
    _
  $region3: #{tile.192} parent=0 // pred_check_branch
    %3 = sbr.rel (0) target = $region5
  $region4: #{tile.192} parent=0 // pred_region
    _
  $region5: #{tile.192} parent=0 // pred_fallthru
    _
  %v4 = vld [vmem:[%s0] ss:$0 sm:$0xff]
  %5 = vst [vmem:[%s1] sm:$0xff] %v4
  %s6 = scalar_lea.vmem %s1, 8
  %7 = vst [vmem:[%s6] sm:$0xff] %v4

// kernel: tile.193
$region0: #{tile.193}
  %s0 = inlined_call_operand.vmem [shape: f32[16,32], index: 0, kind: input, shape index: {}]
  %s1 = inlined_call_operand.vmem [shape: f32[1,512], index: 1, kind: output, shape index: {}]
  $region1: #{tile.193} parent=0
    #allocation0 [shape = 'u8[16384]{0}', space=vmem, size = 0x4000, scoped, tag = 'scoped mem for output reshape']
    %v2 = vld [vmem:[%s0] ss:$4 sm:$0xf]
    %vm3 = vcmask 261120
    %4 = vst.msk [vmem:[#allocation0] ss:$8 sm:$0xf] %vm3, %v2
    %s5 = scalar_lea.vmem %s0, 3
    %v6 = vld [vmem:[%s5] ss:$4 sm:$0xf]
    %7 = vrot.lane.b32.xlu0 %v6, 96
    %v8 = vpop.permute.xlu0 %7
    %vm9 = vcmask 1048320
    %10 = vst.msk [vmem:[#allocation0] ss:$8 sm:$0xf] %vm9, %v8
    %s11 = scalar_lea.vmem %s0, 2
    %v12 = vld [vmem:[%s11] ss:$4 sm:$0xf]
    %13 = vrot.lane.b32.xlu0 %v12, 64
    %v14 = vpop.permute.xlu0 %13
    %vm15 = vcmask 785920
    %16 = vst.msk [vmem:[#allocation0] ss:$8 sm:$0xf] %vm15, %v14
    %s17 = scalar_lea.vmem %s0, 1
    %v18 = vld [vmem:[%s17] ss:$4 sm:$0xf]
    %19 = vrot.lane.b32.xlu0 %v18, 32
    %v20 = vpop.permute.xlu0 %19
    %vm21 = vcmask 523520
    %22 = vst.msk [vmem:[#allocation0] ss:$8 sm:$0xf] %vm21, %v20
    %s24 = sshllo.u32 0, 1
    %v26 = vld [vmem:[#allocation0] sm:%s24]
    %s27 = sshllo.u32 0, 1
    %28 = vst [vmem:[%s1] sm:%s27] %v26
    %s29 = scalar_lea.vmem [#allocation0], 8
    %v30 = vld [vmem:[%s29] sm:%s24]
    %s31 = sshllo.u32 0, 1
    %s32 = scalar_lea.vmem %s1, 1
    %33 = vst [vmem:[%s32] sm:%s31] %v30
    %s34 = scalar_lea.vmem [#allocation0], 16
    %v35 = vld [vmem:[%s34] sm:%s24]
    %s36 = sshllo.u32 0, 1
    %s37 = smul.addr 1, 2
    %s38 = scalar_lea.vmem %s1, %s37
    %39 = vst [vmem:[%s38] sm:%s36] %v35
    %s40 = scalar_lea.vmem [#allocation0], 24
    %v41 = vld [vmem:[%s40] sm:%s24]
    %s42 = sshllo.u32 0, 1
    %s43 = smul.addr 1, 3
    %s44 = scalar_lea.vmem %s1, %s43
    %45 = vst [vmem:[%s44] sm:%s42] %v41

// kernel: local_enhancer_forward.33
$region0: #{local_enhancer_forward.33}
  #allocation0 [shape = 'u32[]', space=smem, size = 0x4, offset = 0x4, fixed_abs, tag = 'smem constant byte address 0x4 - core index']
  #allocation1 [shape = 'u32[144,128]{1,0:T(1,128)}', space=vmem, size = 0x12000, scoped, tag = 'internal scratch']
  %s0 = inlined_call_operand.vmem [shape: bf16[32,144], index: 0, kind: input, shape index: {}]
  %s1 = inlined_call_operand.vmem [shape: bf16[144,32], index: 1, kind: input, shape index: {}]
  %s2 = inlined_call_operand.vmem [shape: f32[1,32], index: 2, kind: input, shape index: {}]
  %s3 = inlined_call_operand.vmem [shape: f32[32,32], index: 3, kind: output, shape index: {0}]
  %s4 = inlined_call_operand.vmem [shape: f32[1,1,32], index: 4, kind: output, shape index: {1}]
  %s5 = inlined_call_operand.vmem [shape: f32[1,1,32], index: 5, kind: output, shape index: {2}]
  %6 = xla_tuple %s3, %s4, %s5
  %s7 = sld [smem:[#allocation0]]
  $region38: #{local_enhancer_forward.33} parent=0
    _
  %s9 = ssub.s32 1, %s7
  %s10 = scalar_select 0, %s9, %s7
  // Predicated region
  $region2: #{local_enhancer_forward.33} parent=0 // pred_check
    _
  $region3: #{local_enhancer_forward.33} parent=0 // pred_check_branch
    %12 = sbr.rel (0) target = $region5
  $region4: #{local_enhancer_forward.33} parent=0 // pred_region
    _
  $region5: #{local_enhancer_forward.33} parent=0 // pred_fallthru
    _
  // Predicated region
  $region6: #{local_enhancer_forward.33} parent=0 // pred_check
    _
  $region7: #{local_enhancer_forward.33} parent=0 // pred_check_branch
    %14 = sbr.rel (0) target = $region9
  $region8: #{local_enhancer_forward.33} parent=0 // pred_region
    _
  $region9: #{local_enhancer_forward.33} parent=0 // pred_fallthru
    _
  // Predicated region
  $region10: #{local_enhancer_forward.33} parent=0 // pred_check
    _
  $region11: #{local_enhancer_forward.33} parent=0 // pred_check_branch
    %16 = sbr.rel (0) target = $region13
  $region12: #{local_enhancer_forward.33} parent=0 // pred_region
    _
  $region13: #{local_enhancer_forward.33} parent=0 // pred_fallthru
    _
  %v18 = vld [vmem:[%s0] sm:$0xff]
  %v19 = vld [vmem:[%s0 + $0x8] sm:$0xff]
  %v20 = vld [vmem:[%s0 + $0x10] sm:$0xff]
  %v21 = vld [vmem:[%s0 + $0x18] sm:$0xff]
  %v22 = vld [vmem:[%s1] sm:$0xf]
  %v23 = vld [vmem:[%s1 + $0x4] sm:$0xf]
  %v24 = vld [vmem:[%s1 + $0x8] sm:$0xf]
  %v25 = vld [vmem:[%s1 + $0xc] sm:$0xf]
  %v26 = vld [vmem:[%s1 + $0x10] sm:$0xf]
  %v27 = vld [vmem:[%s1 + $0x14] sm:$0xf]
  %v28 = vld [vmem:[%s1 + $0x18] sm:$0xf]
  %v29 = vld [vmem:[%s1 + $0x1c] sm:$0xf]
  %v30 = vld [vmem:[%s1 + $0x20] sm:$0xf]
  %v31 = vld [vmem:[%s1 + $0x24] sm:$0xf]
  %v32 = vld [vmem:[%s1 + $0x28] sm:$0xf]
  %v33 = vld [vmem:[%s1 + $0x2c] sm:$0xf]
  %v34 = vld [vmem:[%s1 + $0x30] sm:$0xf]
  %v35 = vld [vmem:[%s1 + $0x34] sm:$0xf]
  %v36 = vld [vmem:[%s1 + $0x38] sm:$0xf]
  %v37 = vld [vmem:[%s1 + $0x3c] sm:$0xf]
  %v38 = vld [vmem:[%s1 + $0x40] sm:$0xf]
  %v39 = vld [vmem:[%s1 + $0x44] sm:$0xf]
  %v40 = vld [vmem:[%s2] sm:$0x1]
  %v42 = vlaneseq
  %v43 = vshrl.u32 %v42, 7
  %v44 = vsub.s32 0, %v43
  %v45 = vrot.slane %v40, %v44
  %v51 = vunpack.c.l.b16 %v18
  %v52 = vunpack.c.h.b16 %v18
  %v53 = vunpack.c.l.b16 %v19
  %v54 = vunpack.c.h.b16 %v19
  %v55 = vunpack.c.l.b16 %v20
  %v56 = vunpack.c.h.b16 %v20
  %v57 = vunpack.c.l.b16 %v21
  %v58 = vunpack.c.h.b16 %v21
  %v59 = vpack.c.b16 %v53, %v51
  %v60 = vpack.c.b16 %v54, %v52
  %v61 = vpack.c.b16 %v57, %v55
  %v62 = vpack.c.b16 %v58, %v56
  %v83 = vunpack.c.l.b16 %v22
  %v84 = vunpack.c.l.b16 %v23
  %v85 = vunpack.c.l.b16 %v24
  %v86 = vunpack.c.l.b16 %v25
  %v87 = vunpack.c.l.b16 %v26
  %v88 = vunpack.c.l.b16 %v27
  %v89 = vunpack.c.l.b16 %v28
  %v90 = vunpack.c.l.b16 %v29
  %v91 = vunpack.c.l.b16 %v30
  %v92 = vunpack.c.l.b16 %v31
  %v93 = vunpack.c.l.b16 %v32
  %v94 = vunpack.c.l.b16 %v33
  %v95 = vunpack.c.l.b16 %v34
  %v96 = vunpack.c.l.b16 %v35
  %v97 = vunpack.c.l.b16 %v36
  %v98 = vunpack.c.l.b16 %v37
  %v99 = vunpack.c.l.b16 %v38
  %v100 = vunpack.c.l.b16 %v39
  %v101 = vpack.c.b16 %v84, %v83
  %v102 = vpack.c.b16 %v86, %v85
  %v103 = vpack.c.b16 %v88, %v87
  %v104 = vpack.c.b16 %v90, %v89
  %v105 = vpack.c.b16 %v92, %v91
  %v106 = vpack.c.b16 %v94, %v93
  %v107 = vpack.c.b16 %v96, %v95
  %v108 = vpack.c.b16 %v98, %v97
  %v109 = vpack.c.b16 %v100, %v99
  %vm119 = vcmask 130048
  %v121 = vsel %vm119, %v60, 0
  %v124 = vsel %vm119, %v62, 0
  %126 = vmatprep.subr.bf16.mxu0 0
  %127 = vmatpush1.bf16.msra.mxu0 %v101
  %128 = vmatprep.subr.bf16.mxu0 0
  %129 = vmatpush1.bf16.msra.mxu0 %v102
  %130 = vmatprep.subr.bf16.mxu0 0
  %131 = vmatpush1.bf16.msra.mxu0 %v103
  %132 = vmatprep.subr.bf16.mxu0 0
  %133 = vmatpush1.bf16.msra.mxu0 %v104
  %134 = vmatprep.subr.bf16.mxu0 0
  %135 = vmatpush1.bf16.msra.mxu0 %v105
  %136 = vmatprep.subr.bf16.mxu0 0
  %137 = vmatpush1.bf16.msra.mxu0 %v106
  %138 = vmatprep.subr.bf16.mxu0 0
  %139 = vmatpush1.bf16.msra.mxu0 %v107
  %140 = vmatprep.subr.bf16.mxu0 0
  %141 = vmatpush1.bf16.msra.mxu0 %v108
  %142 = vmatprep.subr.bf16.mxu0 0
  %143 = vmatpush1.bf16.msra.mxu0 %v109
  %144 = vmatprep.subr.bf16.mxu0 0
  %145 = vmatpush1.bf16.msra.mxu0 0
  %146 = vmatprep.subr.bf16.mxu0 0
  %147 = vmatpush1.bf16.msra.mxu0 0
  %148 = vmatprep.subr.bf16.mxu0 0
  %149 = vmatpush1.bf16.msra.mxu0 0
  %150 = vmatprep.subr.bf16.mxu0 0
  %151 = vmatpush1.bf16.msra.mxu0 0
  %152 = vmatprep.subr.bf16.mxu0 0
  %153 = vmatpush1.bf16.msra.mxu0 0
  %154 = vmatprep.subr.bf16.mxu0 0
  %155 = vmatpush1.bf16.msra.mxu0 0
  %156 = vmatprep.subr.bf16.mxu0 0
  %157 = vmatpush1.bf16.msra.mxu0 0
  %158 = vmatprep.mubr.bf16.mxu0 %v121
  %159 = vmatmul.mubr.bf16.gmra.mrb[0].mxu0 %v59
  %v160 = vpop.f32.mrb[0].mxu0
  %v161 = vadd.f32 %v45, %v160
  %v162 = vpop.f32.mrb[0].mxu0
  %v163 = vpop.f32.mrb[0].mxu0
  %v164 = vadd.f32 %v45, %v163
  %v165 = vpop.f32.mrb[0].mxu0
  %166 = vmatprep.mubr.bf16.mxu0 %v124
  %167 = vmatmul.mubr.bf16.gmra.mrb[0].mxu0 %v61
  %v168 = vpop.f32.mrb[0].mxu0
  %v169 = vadd.f32 %v45, %v168
  %v170 = vpop.f32.mrb[0].mxu0
  %v171 = vpop.f32.mrb[0].mxu0
  %v172 = vadd.f32 %v45, %v171
  %v173 = vpop.f32.mrb[0].mxu0
  %174 = vdwg.mxu0
  %vm175 = vcmask 261120
  %176 = vst.msk [vmem:[%s3] sm:$0xff] %vm175, %v161
  %177 = vst.msk [vmem:[%s3 + $0x8] sm:$0xff] %vm175, %v164
  %178 = vst.msk [vmem:[%s3 + $0x10] sm:$0xff] %vm175, %v169
  %179 = vst.msk [vmem:[%s3 + $0x18] sm:$0xff] %vm175, %v172
  %s180 = smul.u32 0, 32
  %v181 = vlaneseq
  %v182 = vshrl.u32 %v181, 7
  %v183 = vadd.s32 %v182, 8
  %v184 = vadd.s32 %v182, 16
  %v185 = vadd.s32 %v182, 24
  %v186 = vstv %s180
  %v187 = vadd.s32 %v186, %v182
  %v188 = vadd.s32 %v186, %v183
  %v189 = vadd.s32 %v186, %v184
  %v190 = vadd.s32 %v186, %v185
  %vm191 = vcmp.lt.s32.totalorder %v187, 32
  %vm192 = vcmp.lt.s32.totalorder %v188, 32
  %vm193 = vcmp.lt.s32.totalorder %v189, 32
  %vm194 = vcmp.lt.s32.totalorder %v190, 32
  %v195 = vsel %vm191, 1, 0
  %v196 = vsel %vm192, 1, 0
  %v197 = vsel %vm193, 1, 0
  %v198 = vsel %vm194, 1, 0
  %v199 = vcvt.s32.f32 %v195
  %v200 = vcvt.s32.f32 %v196
  %v201 = vcvt.s32.f32 %v197
  %v202 = vcvt.s32.f32 %v198
  %v203 = vmul.f32 %v161, %v199
  %v204 = vmul.f32 %v164, %v200
  %v205 = vmul.f32 %v169, %v201
  %v206 = vmul.f32 %v172, %v202
  %v207 = vsel %vm175, %v203, 0.0
  %v208 = vsel %vm175, %v204, 0.0
  %v209 = vadd.f32 %v207, %v208
  %v210 = vsel %vm175, %v205, 0.0
  %v211 = vadd.f32 %v209, %v210
  %v212 = vsel %vm175, %v206, 0.0
  %v213 = vadd.f32 %v211, %v212
  %v214 = vrot.slane %v213, 4
  %v215 = vadd.f32 %v213, %v214
  %v216 = vrot.slane %v215, 2
  %v217 = vadd.f32 %v215, %v216
  %v218 = vrot.slane %v217, 1
  %v219 = vadd.f32 %v217, %v218
  %vm220 = vcmask 253952
  %221 = vst.msk [vmem:[%s4] sm:$0x1] %vm220, %v219
  %v222 = vmul.f32 %v203, %v161
  %v223 = vmul.f32 %v204, %v164
  %v224 = vmul.f32 %v205, %v169
  %v225 = vmul.f32 %v206, %v172
  %v226 = vsel %vm175, %v222, 0.0
  %v227 = vsel %vm175, %v223, 0.0
  %v228 = vadd.f32 %v226, %v227
  %v229 = vsel %vm175, %v224, 0.0
  %v230 = vadd.f32 %v228, %v229
  %v231 = vsel %vm175, %v225, 0.0
  %v232 = vadd.f32 %v230, %v231
  %v233 = vrot.slane %v232, 4
  %v234 = vadd.f32 %v232, %v233
  %v235 = vrot.slane %v234, 2
  %v236 = vadd.f32 %v234, %v235
  %v237 = vrot.slane %v236, 1
  %v238 = vadd.f32 %v236, %v237
  %239 = vst.msk [vmem:[%s5] sm:$0x1] %vm220, %v238
  // Predicated region
  $region14: #{local_enhancer_forward.33} parent=0 // pred_check
    _
  $region15: #{local_enhancer_forward.33} parent=0 // pred_check_branch
    %241 = sbr.rel (0) target = $region17
  $region16: #{local_enhancer_forward.33} parent=0 // pred_region
    _
  $region17: #{local_enhancer_forward.33} parent=0 // pred_fallthru
    _
  // Predicated region
  $region18: #{local_enhancer_forward.33} parent=0 // pred_check
    _
  $region19: #{local_enhancer_forward.33} parent=0 // pred_check_branch
    %243 = sbr.rel (0) target = $region21
  $region20: #{local_enhancer_forward.33} parent=0 // pred_region
    _
  $region21: #{local_enhancer_forward.33} parent=0 // pred_fallthru
    _
  // Predicated region
  $region22: #{local_enhancer_forward.33} parent=0 // pred_check
    _
  $region23: #{local_enhancer_forward.33} parent=0 // pred_check_branch
    %245 = sbr.rel (0) target = $region25
  $region24: #{local_enhancer_forward.33} parent=0 // pred_region
    _
  $region25: #{local_enhancer_forward.33} parent=0 // pred_fallthru
    _
  // Predicated region
  $region26: #{local_enhancer_forward.33} parent=0 // pred_check
    _
  $region27: #{local_enhancer_forward.33} parent=0 // pred_check_branch
    %247 = sbr.rel (0) target = $region29
  $region28: #{local_enhancer_forward.33} parent=0 // pred_region
    _
  $region29: #{local_enhancer_forward.33} parent=0 // pred_fallthru
    _
  // Predicated region
  $region30: #{local_enhancer_forward.33} parent=0 // pred_check
    _
  $region31: #{local_enhancer_forward.33} parent=0 // pred_check_branch
    %249 = sbr.rel (0) target = $region33
  $region32: #{local_enhancer_forward.33} parent=0 // pred_region
    _
  $region33: #{local_enhancer_forward.33} parent=0 // pred_fallthru
    _
  // Predicated region
  $region34: #{local_enhancer_forward.33} parent=0 // pred_check
    _
  $region35: #{local_enhancer_forward.33} parent=0 // pred_check_branch
    %251 = sbr.rel (0) target = $region37
  $region36: #{local_enhancer_forward.33} parent=0 // pred_region
    _
  $region37: #{local_enhancer_forward.33} parent=0 // pred_fallthru
    _

// kernel: local_enhancer_forward.34
$region0: #{local_enhancer_forward.34}
  #allocation0 [shape = 'u32[]', space=smem, size = 0x4, offset = 0x4, fixed_abs, tag = 'smem constant byte address 0x4 - core index']
  #allocation1 [shape = 'u32[144,128]{1,0:T(1,128)}', space=vmem, size = 0x12000, scoped, tag = 'internal scratch']
  %s0 = inlined_call_operand.vmem [shape: f32[2,512], index: 0, kind: input, shape index: {}]
  %s1 = inlined_call_operand.vmem [shape: f32[1,512], index: 1, kind: input, shape index: {}]
  %s2 = inlined_call_operand.vmem [shape: f32[1,512], index: 2, kind: input, shape index: {}]
  %s3 = inlined_call_operand.vmem [shape: f32[2,512], index: 3, kind: output, shape index: {}]
  %s4 = sld [smem:[#allocation0]]
  $region22: #{local_enhancer_forward.34} parent=0
    _
  %s6 = ssub.s32 1, %s4
  %s7 = scalar_select 0, %s6, %s4
  // Predicated region
  $region2: #{local_enhancer_forward.34} parent=0 // pred_check
    _
  $region3: #{local_enhancer_forward.34} parent=0 // pred_check_branch
    %9 = sbr.rel (0) target = $region5
  $region4: #{local_enhancer_forward.34} parent=0 // pred_region
    _
  $region5: #{local_enhancer_forward.34} parent=0 // pred_fallthru
    _
  // Predicated region
  $region6: #{local_enhancer_forward.34} parent=0 // pred_check
    _
  $region7: #{local_enhancer_forward.34} parent=0 // pred_check_branch
    %11 = sbr.rel (0) target = $region9
  $region8: #{local_enhancer_forward.34} parent=0 // pred_region
    _
  $region9: #{local_enhancer_forward.34} parent=0 // pred_fallthru
    _
  // Predicated region
  $region10: #{local_enhancer_forward.34} parent=0 // pred_check
    _
  $region11: #{local_enhancer_forward.34} parent=0 // pred_check_branch
    %13 = sbr.rel (0) target = $region13
  $region12: #{local_enhancer_forward.34} parent=0 // pred_region
    _
  $region13: #{local_enhancer_forward.34} parent=0 // pred_fallthru
    _
  %v14 = vld [vmem:[%s0] sm:$0xff]
  %v15 = vld [vmem:[%s1] sm:$0xf]
  %v17 = vlaneseq
  %v18 = vshrl.u32 %v17, 7
  %v19 = vsub.s32 0, %v18
  %v20 = vrot.slane %v15, %v19
  %v21 = vlaneseq
  %v22 = vshrl.u32 %v21, 7
  %v23 = vsub.s32 1, %v22
  %v24 = vrot.slane %v15, %v23
  %v25 = vlaneseq
  %v26 = vshrl.u32 %v25, 7
  %v27 = vsub.s32 2, %v26
  %v28 = vrot.slane %v15, %v27
  %v29 = vlaneseq
  %v30 = vshrl.u32 %v29, 7
  %v31 = vsub.s32 3, %v30
  %v32 = vrot.slane %v15, %v31
  %v33 = vcombine.low %v20, %v24
  %v34 = vcombine.low %v28, %v32
  %v36 = vunpack.c.l.s4 1983009808
  %v37 = vunpack.c.0.s8 %v36
  %v38 = vlaneseq
  %v39 = vshrl.u32 %v38, 7
  %v40 = vsub.s32 %v37, %v39
  %v41 = vrot.slane %v33, %v40
  %v43 = vunpack.c.l.s4 1983009808
  %v44 = vunpack.c.0.s8 %v43
  %v45 = vlaneseq
  %v46 = vshrl.u32 %v45, 7
  %v47 = vsub.s32 %v44, %v46
  %v48 = vrot.slane %v34, %v47
  %v49 = vcombine.low %v41, %v48
  %v51 = vmul.f32 %v14, %v49
  %v52 = vld [vmem:[%s2] sm:$0xf]
  %v54 = vlaneseq
  %v55 = vshrl.u32 %v54, 7
  %v56 = vsub.s32 0, %v55
  %v57 = vrot.slane %v52, %v56
  %v58 = vlaneseq
  %v59 = vshrl.u32 %v58, 7
  %v60 = vsub.s32 1, %v59
  %v61 = vrot.slane %v52, %v60
  %v62 = vlaneseq
  %v63 = vshrl.u32 %v62, 7
  %v64 = vsub.s32 2, %v63
  %v65 = vrot.slane %v52, %v64
  %v66 = vlaneseq
  %v67 = vshrl.u32 %v66, 7
  %v68 = vsub.s32 3, %v67
  %v69 = vrot.slane %v52, %v68
  %v70 = vcombine.low %v57, %v61
  %v71 = vcombine.low %v65, %v69
  %v73 = vunpack.c.l.s4 1983009808
  %v74 = vunpack.c.0.s8 %v73
  %v75 = vlaneseq
  %v76 = vshrl.u32 %v75, 7
  %v77 = vsub.s32 %v74, %v76
  %v78 = vrot.slane %v70, %v77
  %v80 = vunpack.c.l.s4 1983009808
  %v81 = vunpack.c.0.s8 %v80
  %v82 = vlaneseq
  %v83 = vshrl.u32 %v82, 7
  %v84 = vsub.s32 %v81, %v83
  %v85 = vrot.slane %v71, %v84
  %v86 = vcombine.low %v78, %v85
  %v88 = vadd.f32 %v51, %v86
  %v89 = vmax.f32 %v88, 0.0
  %90 = vst [vmem:[%s3] sm:$0xff] %v89
  // Predicated region
  $region14: #{local_enhancer_forward.34} parent=0 // pred_check
    _
  $region15: #{local_enhancer_forward.34} parent=0 // pred_check_branch
    %92 = sbr.rel (0) target = $region17
  $region16: #{local_enhancer_forward.34} parent=0 // pred_region
    _
  $region17: #{local_enhancer_forward.34} parent=0 // pred_fallthru
    _
  // Predicated region
  $region18: #{local_enhancer_forward.34} parent=0 // pred_check
    _
  $region19: #{local_enhancer_forward.34} parent=0 // pred_check_branch
    %94 = sbr.rel (0) target = $region21
  $region20: #{local_enhancer_forward.34} parent=0 // pred_region
    _
  $region21: #{local_enhancer_forward.34} parent=0 // pred_fallthru
    _

// kernel: tile.202
$region0: #{tile.202}
  #allocation0 [shape = 's32[1]{0}', space=sflag, size = 0x4, scoped, tag = 'scoped memory for tile.202']
  %s0 = inlined_call_operand.vmem [shape: f32[64], index: 0, kind: input, shape index: {}]
  %s1 = inlined_call_operand.vmem [shape: f32[8,64], index: 1, kind: output, shape index: {}]
  // Predicated region
  $region2: #{tile.202} parent=0 // pred_check
    _
  $region3: #{tile.202} parent=0 // pred_check_branch
    %3 = sbr.rel (0) target = $region5
  $region4: #{tile.202} parent=0 // pred_region
    _
  $region5: #{tile.202} parent=0 // pred_fallthru
    _
  %v4 = vld [vmem:[%s0] ss:$0 sm:$0xff]
  %5 = vst [vmem:[%s1] sm:$0xff] %v4

// kernel: tile.203
$region0: #{tile.203}
  %s0 = inlined_call_operand.vmem [shape: f32[8,64], index: 0, kind: input, shape index: {}]
  %s1 = inlined_call_operand.vmem [shape: f32[1,512], index: 1, kind: output, shape index: {}]
  $region1: #{tile.203} parent=0
    #allocation0 [shape = 'u8[16384]{0}', space=vmem, size = 0x4000, scoped, tag = 'scoped mem for output reshape']
    %v2 = vld [vmem:[%s0] ss:$2 sm:$0xf]
    %vm3 = vcmask 523264
    %4 = vst.msk [vmem:[#allocation0] ss:$8 sm:$0xf] %vm3, %v2
    %s5 = scalar_lea.vmem %s0, 1
    %v6 = vld [vmem:[%s5] ss:$2 sm:$0xf]
    %7 = vrot.lane.b32.xlu0 %v6, 64
    %v8 = vpop.permute.xlu0 %7
    %vm9 = vcmask 1048064
    %10 = vst.msk [vmem:[#allocation0] ss:$8 sm:$0xf] %vm9, %v8
    %s12 = sshllo.u32 0, 1
    %v14 = vld [vmem:[#allocation0] sm:%s12]
    %s15 = sshllo.u32 0, 1
    %16 = vst [vmem:[%s1] sm:%s15] %v14
    %s17 = scalar_lea.vmem [#allocation0], 8
    %v18 = vld [vmem:[%s17] sm:%s12]
    %s19 = sshllo.u32 0, 1
    %s20 = scalar_lea.vmem %s1, 1
    %21 = vst [vmem:[%s20] sm:%s19] %v18
    %s22 = scalar_lea.vmem [#allocation0], 16
    %v23 = vld [vmem:[%s22] sm:%s12]
    %s24 = sshllo.u32 0, 1
    %s25 = smul.addr 1, 2
    %s26 = scalar_lea.vmem %s1, %s25
    %27 = vst [vmem:[%s26] sm:%s24] %v23
    %s28 = scalar_lea.vmem [#allocation0], 24
    %v29 = vld [vmem:[%s28] sm:%s12]
    %s30 = sshllo.u32 0, 1
    %s31 = smul.addr 1, 3
    %s32 = scalar_lea.vmem %s1, %s31
    %33 = vst [vmem:[%s32] sm:%s30] %v29

// kernel: local_enhancer_forward.36
$region0: #{local_enhancer_forward.36}
  #allocation0 [shape = 'u32[]', space=smem, size = 0x4, offset = 0x4, fixed_abs, tag = 'smem constant byte address 0x4 - core index']
  #allocation1 [shape = 'u32[144,128]{1,0:T(1,128)}', space=vmem, size = 0x12000, scoped, tag = 'internal scratch']
  %s0 = inlined_call_operand.vmem [shape: f32[1,512], index: 0, kind: input, shape index: {}]
  %s1 = inlined_call_operand.vmem [shape: f32[1,512], index: 1, kind: input, shape index: {}]
  %s2 = inlined_call_operand.vmem [shape: f32[1,512], index: 2, kind: input, shape index: {}]
  %s3 = inlined_call_operand.vmem [shape: f32[1,512], index: 3, kind: output, shape index: {}]
  %s4 = sld [smem:[#allocation0]]
  $region22: #{local_enhancer_forward.36} parent=0
    _
  %s6 = ssub.s32 1, %s4
  %s7 = scalar_select 0, %s6, %s4
  // Predicated region
  $region2: #{local_enhancer_forward.36} parent=0 // pred_check
    _
  $region3: #{local_enhancer_forward.36} parent=0 // pred_check_branch
    %9 = sbr.rel (0) target = $region5
  $region4: #{local_enhancer_forward.36} parent=0 // pred_region
    _
  $region5: #{local_enhancer_forward.36} parent=0 // pred_fallthru
    _
  // Predicated region
  $region6: #{local_enhancer_forward.36} parent=0 // pred_check
    _
  $region7: #{local_enhancer_forward.36} parent=0 // pred_check_branch
    %11 = sbr.rel (0) target = $region9
  $region8: #{local_enhancer_forward.36} parent=0 // pred_region
    _
  $region9: #{local_enhancer_forward.36} parent=0 // pred_fallthru
    _
  // Predicated region
  $region10: #{local_enhancer_forward.36} parent=0 // pred_check
    _
  $region11: #{local_enhancer_forward.36} parent=0 // pred_check_branch
    %13 = sbr.rel (0) target = $region13
  $region12: #{local_enhancer_forward.36} parent=0 // pred_region
    _
  $region13: #{local_enhancer_forward.36} parent=0 // pred_fallthru
    _
  %v14 = vld [vmem:[%s0] sm:$0xf]
  %v15 = vld [vmem:[%s1] sm:$0xf]
  %v16 = vmul.f32 %v14, %v15
  %v17 = vld [vmem:[%s2] sm:$0xf]
  %v18 = vadd.f32 %v16, %v17
  %v19 = vmax.f32 %v18, 0.0
  %v20 = vlaneseq
  %vm21 = vcmp.ge.s32.totalorder %v20, 0
  %vm22 = vcmp.lt.s32.totalorder %v20, 512
  %vm23 = vmand %vm21, %vm22
  %24 = vst.msk [vmem:[%s3] sm:$0xf] %vm23, %v19
  // Predicated region
  $region14: #{local_enhancer_forward.36} parent=0 // pred_check
    _
  $region15: #{local_enhancer_forward.36} parent=0 // pred_check_branch
    %26 = sbr.rel (0) target = $region17
  $region16: #{local_enhancer_forward.36} parent=0 // pred_region
    _
  $region17: #{local_enhancer_forward.36} parent=0 // pred_fallthru
    _
  // Predicated region
  $region18: #{local_enhancer_forward.36} parent=0 // pred_check
    _
  $region19: #{local_enhancer_forward.36} parent=0 // pred_check_branch
    %28 = sbr.rel (0) target = $region21
  $region20: #{local_enhancer_forward.36} parent=0 // pred_region
    _
  $region21: #{local_enhancer_forward.36} parent=0 // pred_fallthru
    _

// kernel: local_enhancer_forward.35
$region0: #{local_enhancer_forward.35}
  #allocation0 [shape = 'u32[]', space=smem, size = 0x4, offset = 0x4, fixed_abs, tag = 'smem constant byte address 0x4 - core index']
  #allocation1 [shape = 'u32[144,128]{1,0:T(1,128)}', space=vmem, size = 0x12000, scoped, tag = 'internal scratch']
  %s0 = inlined_call_operand.vmem [shape: bf16[8,288], index: 0, kind: input, shape index: {}]
  %s1 = inlined_call_operand.vmem [shape: bf16[288,64], index: 1, kind: input, shape index: {}]
  %s2 = inlined_call_operand.vmem [shape: f32[1,64], index: 2, kind: input, shape index: {}]
  %s3 = inlined_call_operand.vmem [shape: f32[8,64], index: 3, kind: output, shape index: {0}]
  %s4 = inlined_call_operand.vmem [shape: f32[1,1,64], index: 4, kind: output, shape index: {1}]
  %s5 = inlined_call_operand.vmem [shape: f32[1,1,64], index: 5, kind: output, shape index: {2}]
  %6 = xla_tuple %s3, %s4, %s5
  %s7 = sld [smem:[#allocation0]]
  $region38: #{local_enhancer_forward.35} parent=0
    _
  %s9 = ssub.s32 1, %s7
  %s10 = scalar_select 0, %s9, %s7
  // Predicated region
  $region2: #{local_enhancer_forward.35} parent=0 // pred_check
    _
  $region3: #{local_enhancer_forward.35} parent=0 // pred_check_branch
    %12 = sbr.rel (0) target = $region5
  $region4: #{local_enhancer_forward.35} parent=0 // pred_region
    _
  $region5: #{local_enhancer_forward.35} parent=0 // pred_fallthru
    _
  // Predicated region
  $region6: #{local_enhancer_forward.35} parent=0 // pred_check
    _
  $region7: #{local_enhancer_forward.35} parent=0 // pred_check_branch
    %14 = sbr.rel (0) target = $region9
  $region8: #{local_enhancer_forward.35} parent=0 // pred_region
    _
  $region9: #{local_enhancer_forward.35} parent=0 // pred_fallthru
    _
  // Predicated region
  $region10: #{local_enhancer_forward.35} parent=0 // pred_check
    _
  $region11: #{local_enhancer_forward.35} parent=0 // pred_check_branch
    %16 = sbr.rel (0) target = $region13
  $region12: #{local_enhancer_forward.35} parent=0 // pred_region
    _
  $region13: #{local_enhancer_forward.35} parent=0 // pred_fallthru
    _
  %v18 = vld [vmem:[%s0] sm:$0xff]
  %v19 = vld [vmem:[%s0 + $0x8] sm:$0xf]
  %v20 = vld [vmem:[%s1] sm:$0xf]
  %v21 = vld [vmem:[%s1 + $0x4] sm:$0xf]
  %v22 = vld [vmem:[%s1 + $0x8] sm:$0xf]
  %v23 = vld [vmem:[%s1 + $0xc] sm:$0xf]
  %v24 = vld [vmem:[%s1 + $0x10] sm:$0xf]
  %v25 = vld [vmem:[%s1 + $0x14] sm:$0xf]
  %v26 = vld [vmem:[%s1 + $0x18] sm:$0xf]
  %v27 = vld [vmem:[%s1 + $0x1c] sm:$0xf]
  %v28 = vld [vmem:[%s1 + $0x20] sm:$0xf]
  %v29 = vld [vmem:[%s1 + $0x24] sm:$0xf]
  %v30 = vld [vmem:[%s1 + $0x28] sm:$0xf]
  %v31 = vld [vmem:[%s1 + $0x2c] sm:$0xf]
  %v32 = vld [vmem:[%s1 + $0x30] sm:$0xf]
  %v33 = vld [vmem:[%s1 + $0x34] sm:$0xf]
  %v34 = vld [vmem:[%s1 + $0x38] sm:$0xf]
  %v35 = vld [vmem:[%s1 + $0x3c] sm:$0xf]
  %v36 = vld [vmem:[%s1 + $0x40] sm:$0xf]
  %v37 = vld [vmem:[%s1 + $0x44] sm:$0xf]
  %v38 = vld [vmem:[%s1 + $0x48] sm:$0xf]
  %v39 = vld [vmem:[%s1 + $0x4c] sm:$0xf]
  %v40 = vld [vmem:[%s1 + $0x50] sm:$0xf]
  %v41 = vld [vmem:[%s1 + $0x54] sm:$0xf]
  %v42 = vld [vmem:[%s1 + $0x58] sm:$0xf]
  %v43 = vld [vmem:[%s1 + $0x5c] sm:$0xf]
  %v44 = vld [vmem:[%s1 + $0x60] sm:$0xf]
  %v45 = vld [vmem:[%s1 + $0x64] sm:$0xf]
  %v46 = vld [vmem:[%s1 + $0x68] sm:$0xf]
  %v47 = vld [vmem:[%s1 + $0x6c] sm:$0xf]
  %v48 = vld [vmem:[%s1 + $0x70] sm:$0xf]
  %v49 = vld [vmem:[%s1 + $0x74] sm:$0xf]
  %v50 = vld [vmem:[%s1 + $0x78] sm:$0xf]
  %v51 = vld [vmem:[%s1 + $0x7c] sm:$0xf]
  %v52 = vld [vmem:[%s1 + $0x80] sm:$0xf]
  %v53 = vld [vmem:[%s1 + $0x84] sm:$0xf]
  %v54 = vld [vmem:[%s1 + $0x88] sm:$0xf]
  %v55 = vld [vmem:[%s1 + $0x8c] sm:$0xf]
  %v56 = vld [vmem:[%s2] sm:$0x1]
  %v58 = vlaneseq
  %v59 = vshrl.u32 %v58, 7
  %v60 = vsub.s32 0, %v59
  %v61 = vrot.slane %v56, %v60
  %v65 = vunpack.c.l.b16 %v18
  %v66 = vunpack.c.h.b16 %v18
  %v67 = vunpack.c.l.b16 %v19
  %v68 = vpack.c.b16 %v65, %v65
  %v69 = vpack.c.b16 %v66, %v66
  %v70 = vpack.c.b16 %v67, %v67
  %v109 = vunpack.c.l.b16 %v20
  %v110 = vunpack.c.l.b16 %v21
  %v111 = vunpack.c.l.b16 %v22
  %v112 = vunpack.c.l.b16 %v23
  %v113 = vunpack.c.l.b16 %v24
  %v114 = vunpack.c.l.b16 %v25
  %v115 = vunpack.c.l.b16 %v26
  %v116 = vunpack.c.l.b16 %v27
  %v117 = vunpack.c.l.b16 %v28
  %v118 = vunpack.c.l.b16 %v29
  %v119 = vunpack.c.l.b16 %v30
  %v120 = vunpack.c.l.b16 %v31
  %v121 = vunpack.c.l.b16 %v32
  %v122 = vunpack.c.l.b16 %v33
  %v123 = vunpack.c.l.b16 %v34
  %v124 = vunpack.c.l.b16 %v35
  %v125 = vunpack.c.l.b16 %v36
  %v126 = vunpack.c.l.b16 %v37
  %v127 = vunpack.c.l.b16 %v38
  %v128 = vunpack.c.l.b16 %v39
  %v129 = vunpack.c.l.b16 %v40
  %v130 = vunpack.c.l.b16 %v41
  %v131 = vunpack.c.l.b16 %v42
  %v132 = vunpack.c.l.b16 %v43
  %v133 = vunpack.c.l.b16 %v44
  %v134 = vunpack.c.l.b16 %v45
  %v135 = vunpack.c.l.b16 %v46
  %v136 = vunpack.c.l.b16 %v47
  %v137 = vunpack.c.l.b16 %v48
  %v138 = vunpack.c.l.b16 %v49
  %v139 = vunpack.c.l.b16 %v50
  %v140 = vunpack.c.l.b16 %v51
  %v141 = vunpack.c.l.b16 %v52
  %v142 = vunpack.c.l.b16 %v53
  %v143 = vunpack.c.l.b16 %v54
  %v144 = vunpack.c.l.b16 %v55
  %v145 = vpack.c.b16 %v110, %v109
  %v146 = vpack.c.b16 %v112, %v111
  %v147 = vpack.c.b16 %v114, %v113
  %v148 = vpack.c.b16 %v116, %v115
  %v149 = vpack.c.b16 %v118, %v117
  %v150 = vpack.c.b16 %v120, %v119
  %v151 = vpack.c.b16 %v122, %v121
  %v152 = vpack.c.b16 %v124, %v123
  %v153 = vpack.c.b16 %v126, %v125
  %v154 = vpack.c.b16 %v128, %v127
  %v155 = vpack.c.b16 %v130, %v129
  %v156 = vpack.c.b16 %v132, %v131
  %v157 = vpack.c.b16 %v134, %v133
  %v158 = vpack.c.b16 %v136, %v135
  %v159 = vpack.c.b16 %v138, %v137
  %v160 = vpack.c.b16 %v140, %v139
  %v161 = vpack.c.b16 %v142, %v141
  %v162 = vpack.c.b16 %v144, %v143
  %vm181 = vcmask 261120
  %v183 = vsel %vm181, %v70, 0
  %185 = vmatprep.subr.bf16.mxu0 0
  %186 = vmatpush1.bf16.msra.mxu0 %v145
  %187 = vmatprep.subr.bf16.mxu0 0
  %188 = vmatpush1.bf16.msra.mxu0 %v146
  %189 = vmatprep.subr.bf16.mxu0 0
  %190 = vmatpush1.bf16.msra.mxu0 %v147
  %191 = vmatprep.subr.bf16.mxu0 0
  %192 = vmatpush1.bf16.msra.mxu0 %v148
  %193 = vmatprep.subr.bf16.mxu0 0
  %194 = vmatpush1.bf16.msra.mxu0 %v149
  %195 = vmatprep.subr.bf16.mxu0 0
  %196 = vmatpush1.bf16.msra.mxu0 %v150
  %197 = vmatprep.subr.bf16.mxu0 0
  %198 = vmatpush1.bf16.msra.mxu0 %v151
  %199 = vmatprep.subr.bf16.mxu0 0
  %200 = vmatpush1.bf16.msra.mxu0 %v152
  %201 = vmatprep.subr.bf16.mxu0 0
  %202 = vmatpush1.bf16.msra.mxu0 %v153
  %203 = vmatprep.subr.bf16.mxu0 0
  %204 = vmatpush1.bf16.msra.mxu0 %v154
  %205 = vmatprep.subr.bf16.mxu0 0
  %206 = vmatpush1.bf16.msra.mxu0 %v155
  %207 = vmatprep.subr.bf16.mxu0 0
  %208 = vmatpush1.bf16.msra.mxu0 %v156
  %209 = vmatprep.subr.bf16.mxu0 0
  %210 = vmatpush1.bf16.msra.mxu0 %v157
  %211 = vmatprep.subr.bf16.mxu0 0
  %212 = vmatpush1.bf16.msra.mxu0 %v158
  %213 = vmatprep.subr.bf16.mxu0 0
  %214 = vmatpush1.bf16.msra.mxu0 %v159
  %215 = vmatprep.subr.bf16.mxu0 0
  %216 = vmatpush1.bf16.msra.mxu0 %v160
  %217 = vmatprep.mubr.bf16.mxu0 %v69
  %218 = vmatmul.mubr.bf16.gmra.mrb[0].mxu0 %v68
  %v219 = vpop.f32.mrb[0].mxu0
  %v220 = vadd.f32 %v61, %v219
  %v221 = vpop.f32.mrb[0].mxu0
  %v222 = vpop.f32.mrb[0].mxu0
  %v223 = vpop.f32.mrb[0].mxu0
  %224 = vdwg.mxu0
  %225 = vmatprep.subr.bf16.mxu0 0
  %226 = vmatpush1.bf16.msra.mxu0 %v161
  %227 = vmatprep.subr.bf16.mxu0 0
  %228 = vmatpush1.bf16.msra.mxu0 %v162
  %229 = vmatprep.subr.bf16.mxu0 0
  %230 = vmatpush1.bf16.msra.mxu0 0
  %231 = vmatprep.subr.bf16.mxu0 0
  %232 = vmatpush1.bf16.msra.mxu0 0
  %233 = vmatprep.subr.bf16.mxu0 0
  %234 = vmatpush1.bf16.msra.mxu0 0
  %235 = vmatprep.subr.bf16.mxu0 0
  %236 = vmatpush1.bf16.msra.mxu0 0
  %237 = vmatprep.subr.bf16.mxu0 0
  %238 = vmatpush1.bf16.msra.mxu0 0
  %239 = vmatprep.subr.bf16.mxu0 0
  %240 = vmatpush1.bf16.msra.mxu0 0
  %241 = vmatprep.subr.bf16.mxu0 0
  %242 = vmatpush1.bf16.msra.mxu0 0
  %243 = vmatprep.subr.bf16.mxu0 0
  %244 = vmatpush1.bf16.msra.mxu0 0
  %245 = vmatprep.subr.bf16.mxu0 0
  %246 = vmatpush1.bf16.msra.mxu0 0
  %247 = vmatprep.subr.bf16.mxu0 0
  %248 = vmatpush1.bf16.msra.mxu0 0
  %249 = vmatprep.subr.bf16.mxu0 0
  %250 = vmatpush1.bf16.msra.mxu0 0
  %251 = vmatprep.subr.bf16.mxu0 0
  %252 = vmatpush1.bf16.msra.mxu0 0
  %253 = vmatprep.subr.bf16.mxu0 0
  %254 = vmatpush1.bf16.msra.mxu0 0
  %255 = vmatprep.subr.bf16.mxu0 0
  %256 = vmatpush1.bf16.msra.mxu0 0
  %257 = vmatprep.mubr.bf16.mxu0 0
  %258 = vmatmul.mubr.bf16.gmra.mrb[0].mxu0 %v183
  %v259 = vpop.f32.mrb[0].mxu0
  %v260 = vadd.f32 %v220, %v259
  %v261 = vpop.f32.mrb[0].mxu0
  %v262 = vpop.f32.mrb[0].mxu0
  %v263 = vpop.f32.mrb[0].mxu0
  %264 = vdwg.mxu0
  %vm265 = vcmask 523264
  %266 = vst.msk [vmem:[%s3] sm:$0xff] %vm265, %v260
  %s267 = smul.u32 0, 8
  %v268 = vlaneseq
  %v269 = vshrl.u32 %v268, 7
  %v270 = vstv %s267
  %v271 = vadd.s32 %v270, %v269
  %vm272 = vcmp.lt.s32.totalorder %v271, 8
  %v273 = vsel %vm272, 1, 0
  %v274 = vcvt.s32.f32 %v273
  %v275 = vmul.f32 %v260, %v274
  %v276 = vsel %vm265, %v275, 0.0
  %v277 = vrot.slane %v276, 4
  %v278 = vadd.f32 %v276, %v277
  %v279 = vrot.slane %v278, 2
  %v280 = vadd.f32 %v278, %v279
  %v281 = vrot.slane %v280, 1
  %v282 = vadd.f32 %v280, %v281
  %vm283 = vcmask 516096
  %284 = vst.msk [vmem:[%s4] sm:$0x1] %vm283, %v282
  %v285 = vmul.f32 %v275, %v260
  %v286 = vsel %vm265, %v285, 0.0
  %v287 = vrot.slane %v286, 4
  %v288 = vadd.f32 %v286, %v287
  %v289 = vrot.slane %v288, 2
  %v290 = vadd.f32 %v288, %v289
  %v291 = vrot.slane %v290, 1
  %v292 = vadd.f32 %v290, %v291
  %293 = vst.msk [vmem:[%s5] sm:$0x1] %vm283, %v292
  // Predicated region
  $region14: #{local_enhancer_forward.35} parent=0 // pred_check
    _
  $region15: #{local_enhancer_forward.35} parent=0 // pred_check_branch
    %295 = sbr.rel (0) target = $region17
  $region16: #{local_enhancer_forward.35} parent=0 // pred_region
    _
  $region17: #{local_enhancer_forward.35} parent=0 // pred_fallthru
    _
  // Predicated region
  $region18: #{local_enhancer_forward.35} parent=0 // pred_check
    _
  $region19: #{local_enhancer_forward.35} parent=0 // pred_check_branch
    %297 = sbr.rel (0) target = $region21
  $region20: #{local_enhancer_forward.35} parent=0 // pred_region
    _
  $region21: #{local_enhancer_forward.35} parent=0 // pred_fallthru
    _
  // Predicated region
  $region22: #{local_enhancer_forward.35} parent=0 // pred_check
    _
  $region23: #{local_enhancer_forward.35} parent=0 // pred_check_branch
    %299 = sbr.rel (0) target = $region25
  $region24: #{local_enhancer_forward.35} parent=0 // pred_region
    _
  $region25: #{local_enhancer_forward.35} parent=0 // pred_fallthru
    _
  // Predicated region
  $region26: #{local_enhancer_forward.35} parent=0 // pred_check
    _
  $region27: #{local_enhancer_forward.35} parent=0 // pred_check_branch
    %301 = sbr.rel (0) target = $region29
  $region28: #{local_enhancer_forward.35} parent=0 // pred_region
    _
  $region29: #{local_enhancer_forward.35} parent=0 // pred_fallthru
    _
  // Predicated region
  $region30: #{local_enhancer_forward.35} parent=0 // pred_check
    _
  $region31: #{local_enhancer_forward.35} parent=0 // pred_check_branch
    %303 = sbr.rel (0) target = $region33
  $region32: #{local_enhancer_forward.35} parent=0 // pred_region
    _
  $region33: #{local_enhancer_forward.35} parent=0 // pred_fallthru
    _
  // Predicated region
  $region34: #{local_enhancer_forward.35} parent=0 // pred_check
    _
  $region35: #{local_enhancer_forward.35} parent=0 // pred_check_branch
    %305 = sbr.rel (0) target = $region37
  $region36: #{local_enhancer_forward.35} parent=0 // pred_region
    _
  $region37: #{local_enhancer_forward.35} parent=0 // pred_fallthru
    _

// kernel: local_enhancer_forward.40
$region0: #{local_enhancer_forward.40}
  #allocation0 [shape = 'u32[]', space=smem, size = 0x4, offset = 0x4, fixed_abs, tag = 'smem constant byte address 0x4 - core index']
  #allocation1 [shape = 'u32[144,128]{1,0:T(1,128)}', space=vmem, size = 0x12000, scoped, tag = 'internal scratch']
  %s0 = inlined_call_operand.vmem [shape: f32[1,512], index: 0, kind: input, shape index: {}]
  %s1 = inlined_call_operand.vmem [shape: f32[1,512], index: 1, kind: input, shape index: {}]
  %s2 = inlined_call_operand.vmem [shape: f32[1,512], index: 2, kind: input, shape index: {}]
  %s3 = inlined_call_operand.vmem [shape: f32[1,512], index: 3, kind: input, shape index: {}]
  %s4 = inlined_call_operand.vmem [shape: f32[1,512], index: 4, kind: output, shape index: {}]
  %s5 = sld [smem:[#allocation0]]
  $region26: #{local_enhancer_forward.40} parent=0
    _
  %s7 = ssub.s32 1, %s5
  %s8 = scalar_select 0, %s7, %s5
  // Predicated region
  $region2: #{local_enhancer_forward.40} parent=0 // pred_check
    _
  $region3: #{local_enhancer_forward.40} parent=0 // pred_check_branch
    %10 = sbr.rel (0) target = $region5
  $region4: #{local_enhancer_forward.40} parent=0 // pred_region
    _
  $region5: #{local_enhancer_forward.40} parent=0 // pred_fallthru
    _
  // Predicated region
  $region6: #{local_enhancer_forward.40} parent=0 // pred_check
    _
  $region7: #{local_enhancer_forward.40} parent=0 // pred_check_branch
    %12 = sbr.rel (0) target = $region9
  $region8: #{local_enhancer_forward.40} parent=0 // pred_region
    _
  $region9: #{local_enhancer_forward.40} parent=0 // pred_fallthru
    _
  // Predicated region
  $region10: #{local_enhancer_forward.40} parent=0 // pred_check
    _
  $region11: #{local_enhancer_forward.40} parent=0 // pred_check_branch
    %14 = sbr.rel (0) target = $region13
  $region12: #{local_enhancer_forward.40} parent=0 // pred_region
    _
  $region13: #{local_enhancer_forward.40} parent=0 // pred_fallthru
    _
  // Predicated region
  $region14: #{local_enhancer_forward.40} parent=0 // pred_check
    _
  $region15: #{local_enhancer_forward.40} parent=0 // pred_check_branch
    %16 = sbr.rel (0) target = $region17
  $region16: #{local_enhancer_forward.40} parent=0 // pred_region
    _
  $region17: #{local_enhancer_forward.40} parent=0 // pred_fallthru
    _
  %v17 = vld [vmem:[%s0] sm:$0xf]
  %v18 = vld [vmem:[%s1] sm:$0xf]
  %v19 = vmul.f32 %v17, %v18
  %v20 = vld [vmem:[%s2] sm:$0xf]
  %v21 = vadd.f32 %v19, %v20
  %v22 = vld [vmem:[%s3] sm:$0xf]
  %v23 = vadd.f32 %v21, %v22
  %v24 = vlaneseq
  %vm25 = vcmp.ge.s32.totalorder %v24, 0
  %vm26 = vcmp.lt.s32.totalorder %v24, 512
  %vm27 = vmand %vm25, %vm26
  %28 = vst.msk [vmem:[%s4] sm:$0xf] %vm27, %v23
  // Predicated region
  $region18: #{local_enhancer_forward.40} parent=0 // pred_check
    _
  $region19: #{local_enhancer_forward.40} parent=0 // pred_check_branch
    %30 = sbr.rel (0) target = $region21
  $region20: #{local_enhancer_forward.40} parent=0 // pred_region
    _
  $region21: #{local_enhancer_forward.40} parent=0 // pred_fallthru
    _
  // Predicated region
  $region22: #{local_enhancer_forward.40} parent=0 // pred_check
    _
  $region23: #{local_enhancer_forward.40} parent=0 // pred_check_branch
    %32 = sbr.rel (0) target = $region25
  $region24: #{local_enhancer_forward.40} parent=0 // pred_region
    _
  $region25: #{local_enhancer_forward.40} parent=0 // pred_fallthru
    _

// kernel: tile.252
$region0: #{tile.252}
  #allocation0 [shape = 's32[1]{0}', space=sflag, size = 0x4, scoped, tag = 'scoped memory for tile.252']
  %s0 = inlined_call_operand.vmem [shape: f32[32], index: 0, kind: input, shape index: {}]
  %s1 = inlined_call_operand.vmem [shape: f32[4,32], index: 1, kind: output, shape index: {}]
  // Predicated region
  $region2: #{tile.252} parent=0 // pred_check
    _
  $region3: #{tile.252} parent=0 // pred_check_branch
    %3 = sbr.rel (0) target = $region5
  $region4: #{tile.252} parent=0 // pred_region
    _
  $region5: #{tile.252} parent=0 // pred_fallthru
    _
  %v4 = vld [vmem:[%s0] ss:$0 sm:$0xff]
  %5 = vst [vmem:[%s1] sm:$0xf] %v4

// kernel: tile.253
$region0: #{tile.253}
  %s0 = inlined_call_operand.vmem [shape: f32[4,32], index: 0, kind: input, shape index: {}]
  %s1 = inlined_call_operand.vmem [shape: f32[1,128], index: 1, kind: output, shape index: {}]
  $region1: #{tile.253} parent=0
    #allocation0 [shape = 'u8[4096]{0}', space=vmem, size = 0x1000, scoped, tag = 'scoped mem for output reshape']
    #allocation1 [shape = 'u8[4096]{0}', space=vmem, size = 0x1000, scoped, tag = 'scoped mem for input reshape']
    %s3 = sshllo.u32 0, 4
    %v4 = vld [vmem:[%s0] sm:%s3]
    %5 = vst [vmem:[#allocation1] sm:%s3] %v4
    %v6 = vld [vmem:[#allocation1] sm:$0x1]
    %vm7 = vcmask 261120
    %8 = vst.msk [vmem:[#allocation0] sm:$0x1] %vm7, %v6
    %s9 = scalar_lea.vmem [#allocation1], 3
    %v10 = vld [vmem:[%s9] sm:$0x1]
    %11 = vrot.lane.b32.xlu0 %v10, 96
    %v12 = vpop.permute.xlu0 %11
    %vm13 = vcmask 1048320
    %14 = vst.msk [vmem:[#allocation0] sm:$0x1] %vm13, %v12
    %s15 = scalar_lea.vmem [#allocation1], 2
    %v16 = vld [vmem:[%s15] sm:$0x1]
    %17 = vrot.lane.b32.xlu0 %v16, 64
    %v18 = vpop.permute.xlu0 %17
    %vm19 = vcmask 785920
    %20 = vst.msk [vmem:[#allocation0] sm:$0x1] %vm19, %v18
    %s21 = scalar_lea.vmem [#allocation1], 1
    %v22 = vld [vmem:[%s21] sm:$0x1]
    %23 = vrot.lane.b32.xlu0 %v22, 32
    %v24 = vpop.permute.xlu0 %23
    %vm25 = vcmask 523520
    %26 = vst.msk [vmem:[#allocation0] sm:$0x1] %vm25, %v24
    %s28 = sshllo.u32 0, 1
    %v30 = vld [vmem:[#allocation0] sm:%s28]
    %s31 = sshllo.u32 0, 1
    %32 = vst [vmem:[%s1] sm:%s31] %v30

// kernel: local_enhancer_forward.37
$region0: #{local_enhancer_forward.37}
  #allocation0 [shape = 'u32[]', space=smem, size = 0x4, offset = 0x4, fixed_abs, tag = 'smem constant byte address 0x4 - core index']
  #allocation1 [shape = 'u32[144,128]{1,0:T(1,128)}', space=vmem, size = 0x12000, scoped, tag = 'internal scratch']
  %s0 = inlined_call_operand.vmem [shape: bf16[8,576], index: 0, kind: input, shape index: {}]
  %s1 = inlined_call_operand.vmem [shape: bf16[576,64], index: 1, kind: input, shape index: {}]
  %s2 = inlined_call_operand.vmem [shape: f32[1,64], index: 2, kind: input, shape index: {}]
  %s3 = inlined_call_operand.vmem [shape: f32[8,64], index: 3, kind: output, shape index: {0}]
  %s4 = inlined_call_operand.vmem [shape: f32[1,1,64], index: 4, kind: output, shape index: {1}]
  %s5 = inlined_call_operand.vmem [shape: f32[1,1,64], index: 5, kind: output, shape index: {2}]
  %6 = xla_tuple %s3, %s4, %s5
  %s7 = sld [smem:[#allocation0]]
  $region38: #{local_enhancer_forward.37} parent=0
    _
  %s9 = ssub.s32 1, %s7
  %s10 = scalar_select 0, %s9, %s7
  // Predicated region
  $region2: #{local_enhancer_forward.37} parent=0 // pred_check
    _
  $region3: #{local_enhancer_forward.37} parent=0 // pred_check_branch
    %12 = sbr.rel (0) target = $region5
  $region4: #{local_enhancer_forward.37} parent=0 // pred_region
    _
  $region5: #{local_enhancer_forward.37} parent=0 // pred_fallthru
    _
  // Predicated region
  $region6: #{local_enhancer_forward.37} parent=0 // pred_check
    _
  $region7: #{local_enhancer_forward.37} parent=0 // pred_check_branch
    %14 = sbr.rel (0) target = $region9
  $region8: #{local_enhancer_forward.37} parent=0 // pred_region
    _
  $region9: #{local_enhancer_forward.37} parent=0 // pred_fallthru
    _
  // Predicated region
  $region10: #{local_enhancer_forward.37} parent=0 // pred_check
    _
  $region11: #{local_enhancer_forward.37} parent=0 // pred_check_branch
    %16 = sbr.rel (0) target = $region13
  $region12: #{local_enhancer_forward.37} parent=0 // pred_region
    _
  $region13: #{local_enhancer_forward.37} parent=0 // pred_fallthru
    _
  %v18 = vld [vmem:[%s0] sm:$0xff]
  %v19 = vld [vmem:[%s0 + $0x8] sm:$0xff]
  %v20 = vld [vmem:[%s0 + $0x10] sm:$0xf]
  %v21 = vld [vmem:[%s1] sm:$0xf]
  %v22 = vld [vmem:[%s1 + $0x4] sm:$0xf]
  %v23 = vld [vmem:[%s1 + $0x8] sm:$0xf]
  %v24 = vld [vmem:[%s1 + $0xc] sm:$0xf]
  %v25 = vld [vmem:[%s1 + $0x10] sm:$0xf]
  %v26 = vld [vmem:[%s1 + $0x14] sm:$0xf]
  %v27 = vld [vmem:[%s1 + $0x18] sm:$0xf]
  %v28 = vld [vmem:[%s1 + $0x1c] sm:$0xf]
  %v29 = vld [vmem:[%s1 + $0x20] sm:$0xf]
  %v30 = vld [vmem:[%s1 + $0x24] sm:$0xf]
  %v31 = vld [vmem:[%s1 + $0x28] sm:$0xf]
  %v32 = vld [vmem:[%s1 + $0x2c] sm:$0xf]
  %v33 = vld [vmem:[%s1 + $0x30] sm:$0xf]
  %v34 = vld [vmem:[%s1 + $0x34] sm:$0xf]
  %v35 = vld [vmem:[%s1 + $0x38] sm:$0xf]
  %v36 = vld [vmem:[%s1 + $0x3c] sm:$0xf]
  %v37 = vld [vmem:[%s1 + $0x40] sm:$0xf]
  %v38 = vld [vmem:[%s1 + $0x44] sm:$0xf]
  %v39 = vld [vmem:[%s1 + $0x48] sm:$0xf]
  %v40 = vld [vmem:[%s1 + $0x4c] sm:$0xf]
  %v41 = vld [vmem:[%s1 + $0x50] sm:$0xf]
  %v42 = vld [vmem:[%s1 + $0x54] sm:$0xf]
  %v43 = vld [vmem:[%s1 + $0x58] sm:$0xf]
  %v44 = vld [vmem:[%s1 + $0x5c] sm:$0xf]
  %v45 = vld [vmem:[%s1 + $0x60] sm:$0xf]
  %v46 = vld [vmem:[%s1 + $0x64] sm:$0xf]
  %v47 = vld [vmem:[%s1 + $0x68] sm:$0xf]
  %v48 = vld [vmem:[%s1 + $0x6c] sm:$0xf]
  %v49 = vld [vmem:[%s1 + $0x70] sm:$0xf]
  %v50 = vld [vmem:[%s1 + $0x74] sm:$0xf]
  %v51 = vld [vmem:[%s1 + $0x78] sm:$0xf]
  %v52 = vld [vmem:[%s1 + $0x7c] sm:$0xf]
  %v53 = vld [vmem:[%s1 + $0x80] sm:$0xf]
  %v54 = vld [vmem:[%s1 + $0x84] sm:$0xf]
  %v55 = vld [vmem:[%s1 + $0x88] sm:$0xf]
  %v56 = vld [vmem:[%s1 + $0x8c] sm:$0xf]
  %v57 = vld [vmem:[%s1 + $0x90] sm:$0xf]
  %v58 = vld [vmem:[%s1 + $0x94] sm:$0xf]
  %v59 = vld [vmem:[%s1 + $0x98] sm:$0xf]
  %v60 = vld [vmem:[%s1 + $0x9c] sm:$0xf]
  %v61 = vld [vmem:[%s1 + $0xa0] sm:$0xf]
  %v62 = vld [vmem:[%s1 + $0xa4] sm:$0xf]
  %v63 = vld [vmem:[%s1 + $0xa8] sm:$0xf]
  %v64 = vld [vmem:[%s1 + $0xac] sm:$0xf]
  %v65 = vld [vmem:[%s1 + $0xb0] sm:$0xf]
  %v66 = vld [vmem:[%s1 + $0xb4] sm:$0xf]
  %v67 = vld [vmem:[%s1 + $0xb8] sm:$0xf]
  %v68 = vld [vmem:[%s1 + $0xbc] sm:$0xf]
  %v69 = vld [vmem:[%s1 + $0xc0] sm:$0xf]
  %v70 = vld [vmem:[%s1 + $0xc4] sm:$0xf]
  %v71 = vld [vmem:[%s1 + $0xc8] sm:$0xf]
  %v72 = vld [vmem:[%s1 + $0xcc] sm:$0xf]
  %v73 = vld [vmem:[%s1 + $0xd0] sm:$0xf]
  %v74 = vld [vmem:[%s1 + $0xd4] sm:$0xf]
  %v75 = vld [vmem:[%s1 + $0xd8] sm:$0xf]
  %v76 = vld [vmem:[%s1 + $0xdc] sm:$0xf]
  %v77 = vld [vmem:[%s1 + $0xe0] sm:$0xf]
  %v78 = vld [vmem:[%s1 + $0xe4] sm:$0xf]
  %v79 = vld [vmem:[%s1 + $0xe8] sm:$0xf]
  %v80 = vld [vmem:[%s1 + $0xec] sm:$0xf]
  %v81 = vld [vmem:[%s1 + $0xf0] sm:$0xf]
  %v82 = vld [vmem:[%s1 + $0xf4] sm:$0xf]
  %v83 = vld [vmem:[%s1 + $0xf8] sm:$0xf]
  %v84 = vld [vmem:[%s1 + $0xfc] sm:$0xf]
  %v85 = vld [vmem:[%s1 + $0x100] sm:$0xf]
  %v86 = vld [vmem:[%s1 + $0x104] sm:$0xf]
  %v87 = vld [vmem:[%s1 + $0x108] sm:$0xf]
  %v88 = vld [vmem:[%s1 + $0x10c] sm:$0xf]
  %v89 = vld [vmem:[%s1 + $0x110] sm:$0xf]
  %v90 = vld [vmem:[%s1 + $0x114] sm:$0xf]
  %v91 = vld [vmem:[%s1 + $0x118] sm:$0xf]
  %v92 = vld [vmem:[%s1 + $0x11c] sm:$0xf]
  %v93 = vld [vmem:[%s2] sm:$0x1]
  %v95 = vlaneseq
  %v96 = vshrl.u32 %v95, 7
  %v97 = vsub.s32 0, %v96
  %v98 = vrot.slane %v93, %v97
  %v103 = vunpack.c.l.b16 %v18
  %v104 = vunpack.c.h.b16 %v18
  %v105 = vunpack.c.l.b16 %v19
  %v106 = vunpack.c.h.b16 %v19
  %v107 = vunpack.c.l.b16 %v20
  %v108 = vpack.c.b16 %v103, %v103
  %v109 = vpack.c.b16 %v104, %v104
  %v110 = vpack.c.b16 %v105, %v105
  %v111 = vpack.c.b16 %v106, %v106
  %v112 = vpack.c.b16 %v107, %v107
  %v189 = vunpack.c.l.b16 %v21
  %v190 = vunpack.c.l.b16 %v22
  %v191 = vunpack.c.l.b16 %v23
  %v192 = vunpack.c.l.b16 %v24
  %v193 = vunpack.c.l.b16 %v25
  %v194 = vunpack.c.l.b16 %v26
  %v195 = vunpack.c.l.b16 %v27
  %v196 = vunpack.c.l.b16 %v28
  %v197 = vunpack.c.l.b16 %v29
  %v198 = vunpack.c.l.b16 %v30
  %v199 = vunpack.c.l.b16 %v31
  %v200 = vunpack.c.l.b16 %v32
  %v201 = vunpack.c.l.b16 %v33
  %v202 = vunpack.c.l.b16 %v34
  %v203 = vunpack.c.l.b16 %v35
  %v204 = vunpack.c.l.b16 %v36
  %v205 = vunpack.c.l.b16 %v37
  %v206 = vunpack.c.l.b16 %v38
  %v207 = vunpack.c.l.b16 %v39
  %v208 = vunpack.c.l.b16 %v40
  %v209 = vunpack.c.l.b16 %v41
  %v210 = vunpack.c.l.b16 %v42
  %v211 = vunpack.c.l.b16 %v43
  %v212 = vunpack.c.l.b16 %v44
  %v213 = vunpack.c.l.b16 %v45
  %v214 = vunpack.c.l.b16 %v46
  %v215 = vunpack.c.l.b16 %v47
  %v216 = vunpack.c.l.b16 %v48
  %v217 = vunpack.c.l.b16 %v49
  %v218 = vunpack.c.l.b16 %v50
  %v219 = vunpack.c.l.b16 %v51
  %v220 = vunpack.c.l.b16 %v52
  %v221 = vunpack.c.l.b16 %v53
  %v222 = vunpack.c.l.b16 %v54
  %v223 = vunpack.c.l.b16 %v55
  %v224 = vunpack.c.l.b16 %v56
  %v225 = vunpack.c.l.b16 %v57
  %v226 = vunpack.c.l.b16 %v58
  %v227 = vunpack.c.l.b16 %v59
  %v228 = vunpack.c.l.b16 %v60
  %v229 = vunpack.c.l.b16 %v61
  %v230 = vunpack.c.l.b16 %v62
  %v231 = vunpack.c.l.b16 %v63
  %v232 = vunpack.c.l.b16 %v64
  %v233 = vunpack.c.l.b16 %v65
  %v234 = vunpack.c.l.b16 %v66
  %v235 = vunpack.c.l.b16 %v67
  %v236 = vunpack.c.l.b16 %v68
  %v237 = vunpack.c.l.b16 %v69
  %v238 = vunpack.c.l.b16 %v70
  %v239 = vunpack.c.l.b16 %v71
  %v240 = vunpack.c.l.b16 %v72
  %v241 = vunpack.c.l.b16 %v73
  %v242 = vunpack.c.l.b16 %v74
  %v243 = vunpack.c.l.b16 %v75
  %v244 = vunpack.c.l.b16 %v76
  %v245 = vunpack.c.l.b16 %v77
  %v246 = vunpack.c.l.b16 %v78
  %v247 = vunpack.c.l.b16 %v79
  %v248 = vunpack.c.l.b16 %v80
  %v249 = vunpack.c.l.b16 %v81
  %v250 = vunpack.c.l.b16 %v82
  %v251 = vunpack.c.l.b16 %v83
  %v252 = vunpack.c.l.b16 %v84
  %v253 = vunpack.c.l.b16 %v85
  %v254 = vunpack.c.l.b16 %v86
  %v255 = vunpack.c.l.b16 %v87
  %v256 = vunpack.c.l.b16 %v88
  %v257 = vunpack.c.l.b16 %v89
  %v258 = vunpack.c.l.b16 %v90
  %v259 = vunpack.c.l.b16 %v91
  %v260 = vunpack.c.l.b16 %v92
  %v261 = vpack.c.b16 %v190, %v189
  %v262 = vpack.c.b16 %v192, %v191
  %v263 = vpack.c.b16 %v194, %v193
  %v264 = vpack.c.b16 %v196, %v195
  %v265 = vpack.c.b16 %v198, %v197
  %v266 = vpack.c.b16 %v200, %v199
  %v267 = vpack.c.b16 %v202, %v201
  %v268 = vpack.c.b16 %v204, %v203
  %v269 = vpack.c.b16 %v206, %v205
  %v270 = vpack.c.b16 %v208, %v207
  %v271 = vpack.c.b16 %v210, %v209
  %v272 = vpack.c.b16 %v212, %v211
  %v273 = vpack.c.b16 %v214, %v213
  %v274 = vpack.c.b16 %v216, %v215
  %v275 = vpack.c.b16 %v218, %v217
  %v276 = vpack.c.b16 %v220, %v219
  %v277 = vpack.c.b16 %v222, %v221
  %v278 = vpack.c.b16 %v224, %v223
  %v279 = vpack.c.b16 %v226, %v225
  %v280 = vpack.c.b16 %v228, %v227
  %v281 = vpack.c.b16 %v230, %v229
  %v282 = vpack.c.b16 %v232, %v231
  %v283 = vpack.c.b16 %v234, %v233
  %v284 = vpack.c.b16 %v236, %v235
  %v285 = vpack.c.b16 %v238, %v237
  %v286 = vpack.c.b16 %v240, %v239
  %v287 = vpack.c.b16 %v242, %v241
  %v288 = vpack.c.b16 %v244, %v243
  %v289 = vpack.c.b16 %v246, %v245
  %v290 = vpack.c.b16 %v248, %v247
  %v291 = vpack.c.b16 %v250, %v249
  %v292 = vpack.c.b16 %v252, %v251
  %v293 = vpack.c.b16 %v254, %v253
  %v294 = vpack.c.b16 %v256, %v255
  %v295 = vpack.c.b16 %v258, %v257
  %v296 = vpack.c.b16 %v260, %v259
  %vm333 = vcmask 523264
  %v335 = vsel %vm333, %v112, 0
  %337 = vmatprep.subr.bf16.mxu0 0
  %338 = vmatpush1.bf16.msra.mxu0 %v261
  %339 = vmatprep.subr.bf16.mxu0 0
  %340 = vmatpush1.bf16.msra.mxu0 %v262
  %341 = vmatprep.subr.bf16.mxu0 0
  %342 = vmatpush1.bf16.msra.mxu0 %v263
  %343 = vmatprep.subr.bf16.mxu0 0
  %344 = vmatpush1.bf16.msra.mxu0 %v264
  %345 = vmatprep.subr.bf16.mxu0 0
  %346 = vmatpush1.bf16.msra.mxu0 %v265
  %347 = vmatprep.subr.bf16.mxu0 0
  %348 = vmatpush1.bf16.msra.mxu0 %v266
  %349 = vmatprep.subr.bf16.mxu0 0
  %350 = vmatpush1.bf16.msra.mxu0 %v267
  %351 = vmatprep.subr.bf16.mxu0 0
  %352 = vmatpush1.bf16.msra.mxu0 %v268
  %353 = vmatprep.subr.bf16.mxu0 0
  %354 = vmatpush1.bf16.msra.mxu0 %v269
  %355 = vmatprep.subr.bf16.mxu0 0
  %356 = vmatpush1.bf16.msra.mxu0 %v270
  %357 = vmatprep.subr.bf16.mxu0 0
  %358 = vmatpush1.bf16.msra.mxu0 %v271
  %359 = vmatprep.subr.bf16.mxu0 0
  %360 = vmatpush1.bf16.msra.mxu0 %v272
  %361 = vmatprep.subr.bf16.mxu0 0
  %362 = vmatpush1.bf16.msra.mxu0 %v273
  %363 = vmatprep.subr.bf16.mxu0 0
  %364 = vmatpush1.bf16.msra.mxu0 %v274
  %365 = vmatprep.subr.bf16.mxu0 0
  %366 = vmatpush1.bf16.msra.mxu0 %v275
  %367 = vmatprep.subr.bf16.mxu0 0
  %368 = vmatpush1.bf16.msra.mxu0 %v276
  %369 = vmatprep.mubr.bf16.mxu0 %v109
  %370 = vmatmul.mubr.bf16.gmra.mrb[0].mxu0 %v108
  %v371 = vpop.f32.mrb[0].mxu0
  %v372 = vadd.f32 %v98, %v371
  %v373 = vpop.f32.mrb[0].mxu0
  %v374 = vpop.f32.mrb[0].mxu0
  %v375 = vpop.f32.mrb[0].mxu0
  %376 = vdwg.mxu0
  %377 = vmatprep.subr.bf16.mxu0 0
  %378 = vmatpush1.bf16.msra.mxu0 %v277
  %379 = vmatprep.subr.bf16.mxu0 0
  %380 = vmatpush1.bf16.msra.mxu0 %v278
  %381 = vmatprep.subr.bf16.mxu0 0
  %382 = vmatpush1.bf16.msra.mxu0 %v279
  %383 = vmatprep.subr.bf16.mxu0 0
  %384 = vmatpush1.bf16.msra.mxu0 %v280
  %385 = vmatprep.subr.bf16.mxu0 0
  %386 = vmatpush1.bf16.msra.mxu0 %v281
  %387 = vmatprep.subr.bf16.mxu0 0
  %388 = vmatpush1.bf16.msra.mxu0 %v282
  %389 = vmatprep.subr.bf16.mxu0 0
  %390 = vmatpush1.bf16.msra.mxu0 %v283
  %391 = vmatprep.subr.bf16.mxu0 0
  %392 = vmatpush1.bf16.msra.mxu0 %v284
  %393 = vmatprep.subr.bf16.mxu0 0
  %394 = vmatpush1.bf16.msra.mxu0 %v285
  %395 = vmatprep.subr.bf16.mxu0 0
  %396 = vmatpush1.bf16.msra.mxu0 %v286
  %397 = vmatprep.subr.bf16.mxu0 0
  %398 = vmatpush1.bf16.msra.mxu0 %v287
  %399 = vmatprep.subr.bf16.mxu0 0
  %400 = vmatpush1.bf16.msra.mxu0 %v288
  %401 = vmatprep.subr.bf16.mxu0 0
  %402 = vmatpush1.bf16.msra.mxu0 %v289
  %403 = vmatprep.subr.bf16.mxu0 0
  %404 = vmatpush1.bf16.msra.mxu0 %v290
  %405 = vmatprep.subr.bf16.mxu0 0
  %406 = vmatpush1.bf16.msra.mxu0 %v291
  %407 = vmatprep.subr.bf16.mxu0 0
  %408 = vmatpush1.bf16.msra.mxu0 %v292
  %409 = vmatprep.mubr.bf16.mxu0 %v111
  %410 = vmatmul.mubr.bf16.gmra.mrb[0].mxu0 %v110
  %v411 = vpop.f32.mrb[0].mxu0
  %v412 = vadd.f32 %v372, %v411
  %v413 = vpop.f32.mrb[0].mxu0
  %v414 = vpop.f32.mrb[0].mxu0
  %v415 = vpop.f32.mrb[0].mxu0
  %416 = vdwg.mxu0
  %417 = vmatprep.subr.bf16.mxu0 0
  %418 = vmatpush1.bf16.msra.mxu0 %v293
  %419 = vmatprep.subr.bf16.mxu0 0
  %420 = vmatpush1.bf16.msra.mxu0 %v294
  %421 = vmatprep.subr.bf16.mxu0 0
  %422 = vmatpush1.bf16.msra.mxu0 %v295
  %423 = vmatprep.subr.bf16.mxu0 0
  %424 = vmatpush1.bf16.msra.mxu0 %v296
  %425 = vmatprep.subr.bf16.mxu0 0
  %426 = vmatpush1.bf16.msra.mxu0 0
  %427 = vmatprep.subr.bf16.mxu0 0
  %428 = vmatpush1.bf16.msra.mxu0 0
  %429 = vmatprep.subr.bf16.mxu0 0
  %430 = vmatpush1.bf16.msra.mxu0 0
  %431 = vmatprep.subr.bf16.mxu0 0
  %432 = vmatpush1.bf16.msra.mxu0 0
  %433 = vmatprep.subr.bf16.mxu0 0
  %434 = vmatpush1.bf16.msra.mxu0 0
  %435 = vmatprep.subr.bf16.mxu0 0
  %436 = vmatpush1.bf16.msra.mxu0 0
  %437 = vmatprep.subr.bf16.mxu0 0
  %438 = vmatpush1.bf16.msra.mxu0 0
  %439 = vmatprep.subr.bf16.mxu0 0
  %440 = vmatpush1.bf16.msra.mxu0 0
  %441 = vmatprep.subr.bf16.mxu0 0
  %442 = vmatpush1.bf16.msra.mxu0 0
  %443 = vmatprep.subr.bf16.mxu0 0
  %444 = vmatpush1.bf16.msra.mxu0 0
  %445 = vmatprep.subr.bf16.mxu0 0
  %446 = vmatpush1.bf16.msra.mxu0 0
  %447 = vmatprep.subr.bf16.mxu0 0
  %448 = vmatpush1.bf16.msra.mxu0 0
  %449 = vmatprep.mubr.bf16.mxu0 0
  %450 = vmatmul.mubr.bf16.gmra.mrb[0].mxu0 %v335
  %v451 = vpop.f32.mrb[0].mxu0
  %v452 = vadd.f32 %v412, %v451
  %v453 = vpop.f32.mrb[0].mxu0
  %v454 = vpop.f32.mrb[0].mxu0
  %v455 = vpop.f32.mrb[0].mxu0
  %456 = vdwg.mxu0
  %457 = vst.msk [vmem:[%s3] sm:$0xff] %vm333, %v452
  %s458 = smul.u32 0, 8
  %v459 = vlaneseq
  %v460 = vshrl.u32 %v459, 7
  %v461 = vstv %s458
  %v462 = vadd.s32 %v461, %v460
  %vm463 = vcmp.lt.s32.totalorder %v462, 8
  %v464 = vsel %vm463, 1, 0
  %v465 = vcvt.s32.f32 %v464
  %v466 = vmul.f32 %v452, %v465
  %v467 = vsel %vm333, %v466, 0.0
  %v468 = vrot.slane %v467, 4
  %v469 = vadd.f32 %v467, %v468
  %v470 = vrot.slane %v469, 2
  %v471 = vadd.f32 %v469, %v470
  %v472 = vrot.slane %v471, 1
  %v473 = vadd.f32 %v471, %v472
  %vm474 = vcmask 516096
  %475 = vst.msk [vmem:[%s4] sm:$0x1] %vm474, %v473
  %v476 = vmul.f32 %v466, %v452
  %v477 = vsel %vm333, %v476, 0.0
  %v478 = vrot.slane %v477, 4
  %v479 = vadd.f32 %v477, %v478
  %v480 = vrot.slane %v479, 2
  %v481 = vadd.f32 %v479, %v480
  %v482 = vrot.slane %v481, 1
  %v483 = vadd.f32 %v481, %v482
  %484 = vst.msk [vmem:[%s5] sm:$0x1] %vm474, %v483
  // Predicated region
  $region14: #{local_enhancer_forward.37} parent=0 // pred_check
    _
  $region15: #{local_enhancer_forward.37} parent=0 // pred_check_branch
    %486 = sbr.rel (0) target = $region17
  $region16: #{local_enhancer_forward.37} parent=0 // pred_region
    _
  $region17: #{local_enhancer_forward.37} parent=0 // pred_fallthru
    _
  // Predicated region
  $region18: #{local_enhancer_forward.37} parent=0 // pred_check
    _
  $region19: #{local_enhancer_forward.37} parent=0 // pred_check_branch
    %488 = sbr.rel (0) target = $region21
  $region20: #{local_enhancer_forward.37} parent=0 // pred_region
    _
  $region21: #{local_enhancer_forward.37} parent=0 // pred_fallthru
    _
  // Predicated region
  $region22: #{local_enhancer_forward.37} parent=0 // pred_check
    _
  $region23: #{local_enhancer_forward.37} parent=0 // pred_check_branch
    %490 = sbr.rel (0) target = $region25
  $region24: #{local_enhancer_forward.37} parent=0 // pred_region
    _
  $region25: #{local_enhancer_forward.37} parent=0 // pred_fallthru
    _
  // Predicated region
  $region26: #{local_enhancer_forward.37} parent=0 // pred_check
    _
  $region27: #{local_enhancer_forward.37} parent=0 // pred_check_branch
    %492 = sbr.rel (0) target = $region29
  $region28: #{local_enhancer_forward.37} parent=0 // pred_region
    _
  $region29: #{local_enhancer_forward.37} parent=0 // pred_fallthru
    _
  // Predicated region
  $region30: #{local_enhancer_forward.37} parent=0 // pred_check
    _
  $region31: #{local_enhancer_forward.37} parent=0 // pred_check_branch
    %494 = sbr.rel (0) target = $region33
  $region32: #{local_enhancer_forward.37} parent=0 // pred_region
    _
  $region33: #{local_enhancer_forward.37} parent=0 // pred_fallthru
    _
  // Predicated region
  $region34: #{local_enhancer_forward.37} parent=0 // pred_check
    _
  $region35: #{local_enhancer_forward.37} parent=0 // pred_check_branch
    %496 = sbr.rel (0) target = $region37
  $region36: #{local_enhancer_forward.37} parent=0 // pred_region
    _
  $region37: #{local_enhancer_forward.37} parent=0 // pred_fallthru
    _

// kernel: tile.264
$region0: #{tile.264}
  %s0 = inlined_call_operand.vmem [shape: f32[4,32], index: 0, kind: input, shape index: {}]
  %s1 = inlined_call_operand.vmem [shape: f32[128], index: 1, kind: output, shape index: {}]
  $region1: #{tile.264} parent=0
    #allocation0 [shape = 'u8[4096]{0}', space=vmem, size = 0x1000, scoped, tag = 'scoped mem for output reshape']
    #allocation1 [shape = 'u8[4096]{0}', space=vmem, size = 0x1000, scoped, tag = 'scoped mem for input reshape']
    %s3 = sshllo.u32 0, 4
    %v4 = vld [vmem:[%s0] sm:%s3]
    %5 = vst [vmem:[#allocation1] sm:%s3] %v4
    %v6 = vld [vmem:[#allocation1] sm:$0x1]
    %vm7 = vcmask 261120
    %8 = vst.msk [vmem:[#allocation0] sm:$0x1] %vm7, %v6
    %s9 = scalar_lea.vmem [#allocation1], 3
    %v10 = vld [vmem:[%s9] sm:$0x1]
    %11 = vrot.lane.b32.xlu0 %v10, 96
    %v12 = vpop.permute.xlu0 %11
    %vm13 = vcmask 1048320
    %14 = vst.msk [vmem:[#allocation0] sm:$0x1] %vm13, %v12
    %s15 = scalar_lea.vmem [#allocation1], 2
    %v16 = vld [vmem:[%s15] sm:$0x1]
    %17 = vrot.lane.b32.xlu0 %v16, 64
    %v18 = vpop.permute.xlu0 %17
    %vm19 = vcmask 785920
    %20 = vst.msk [vmem:[#allocation0] sm:$0x1] %vm19, %v18
    %s21 = scalar_lea.vmem [#allocation1], 1
    %v22 = vld [vmem:[%s21] sm:$0x1]
    %23 = vrot.lane.b32.xlu0 %v22, 32
    %v24 = vpop.permute.xlu0 %23
    %vm25 = vcmask 523520
    %26 = vst.msk [vmem:[#allocation0] sm:$0x1] %vm25, %v24
    %s28 = sshllo.u32 0, 1
    %v30 = vld [vmem:[#allocation0] sm:%s28]
    %s31 = sshllo.u32 0, 1
    %32 = vst [vmem:[%s1] sm:%s31] %v30

// kernel: tile.265
$region0: #{tile.265}
  #allocation0 [shape = 's32[1]{0}', space=sflag, size = 0x4, scoped, tag = 'scoped memory for tile.265']
  %s0 = inlined_call_operand.vmem [shape: f32[128], index: 0, kind: input, shape index: {}]
  %s1 = inlined_call_operand.vmem [shape: f32[4,128], index: 1, kind: output, shape index: {}]
  // Predicated region
  $region2: #{tile.265} parent=0 // pred_check
    _
  $region3: #{tile.265} parent=0 // pred_check_branch
    %3 = sbr.rel (0) target = $region5
  $region4: #{tile.265} parent=0 // pred_region
    _
  $region5: #{tile.265} parent=0 // pred_fallthru
    _
  %v4 = vld [vmem:[%s0] ss:$0 sm:$0xff]
  %5 = vst [vmem:[%s1] sm:$0xf] %v4

// kernel: local_enhancer_forward.45
$region0: #{local_enhancer_forward.45}
  #allocation0 [shape = 'u32[]', space=smem, size = 0x4, offset = 0x4, fixed_abs, tag = 'smem constant byte address 0x4 - core index']
  #allocation1 [shape = 'u32[144,128]{1,0:T(1,128)}', space=vmem, size = 0x12000, scoped, tag = 'internal scratch']
  %s0 = inlined_call_operand.vmem [shape: bf16[8,256], index: 0, kind: input, shape index: {}]
  %s1 = inlined_call_operand.vmem [shape: bf16[256,128], index: 1, kind: input, shape index: {}]
  %s2 = inlined_call_operand.vmem [shape: f32[1,128], index: 2, kind: input, shape index: {}]
  %s3 = inlined_call_operand.vmem [shape: f32[8,128], index: 3, kind: output, shape index: {0}]
  %s4 = inlined_call_operand.vmem [shape: f32[1,1,128], index: 4, kind: output, shape index: {1}]
  %s5 = inlined_call_operand.vmem [shape: f32[1,1,128], index: 5, kind: output, shape index: {2}]
  %6 = xla_tuple %s3, %s4, %s5
  %s7 = sld [smem:[#allocation0]]
  $region38: #{local_enhancer_forward.45} parent=0
    _
  %s9 = ssub.s32 1, %s7
  %s10 = scalar_select 0, %s9, %s7
  // Predicated region
  $region2: #{local_enhancer_forward.45} parent=0 // pred_check
    _
  $region3: #{local_enhancer_forward.45} parent=0 // pred_check_branch
    %12 = sbr.rel (0) target = $region5
  $region4: #{local_enhancer_forward.45} parent=0 // pred_region
    _
  $region5: #{local_enhancer_forward.45} parent=0 // pred_fallthru
    _
  // Predicated region
  $region6: #{local_enhancer_forward.45} parent=0 // pred_check
    _
  $region7: #{local_enhancer_forward.45} parent=0 // pred_check_branch
    %14 = sbr.rel (0) target = $region9
  $region8: #{local_enhancer_forward.45} parent=0 // pred_region
    _
  $region9: #{local_enhancer_forward.45} parent=0 // pred_fallthru
    _
  // Predicated region
  $region10: #{local_enhancer_forward.45} parent=0 // pred_check
    _
  $region11: #{local_enhancer_forward.45} parent=0 // pred_check_branch
    %16 = sbr.rel (0) target = $region13
  $region12: #{local_enhancer_forward.45} parent=0 // pred_region
    _
  $region13: #{local_enhancer_forward.45} parent=0 // pred_fallthru
    _
  %v18 = vld [vmem:[%s0] sm:$0xff]
  %v19 = vld [vmem:[%s1] sm:$0xf]
  %v20 = vld [vmem:[%s1 + $0x4] sm:$0xf]
  %v21 = vld [vmem:[%s1 + $0x8] sm:$0xf]
  %v22 = vld [vmem:[%s1 + $0xc] sm:$0xf]
  %v23 = vld [vmem:[%s1 + $0x10] sm:$0xf]
  %v24 = vld [vmem:[%s1 + $0x14] sm:$0xf]
  %v25 = vld [vmem:[%s1 + $0x18] sm:$0xf]
  %v26 = vld [vmem:[%s1 + $0x1c] sm:$0xf]
  %v27 = vld [vmem:[%s1 + $0x20] sm:$0xf]
  %v28 = vld [vmem:[%s1 + $0x24] sm:$0xf]
  %v29 = vld [vmem:[%s1 + $0x28] sm:$0xf]
  %v30 = vld [vmem:[%s1 + $0x2c] sm:$0xf]
  %v31 = vld [vmem:[%s1 + $0x30] sm:$0xf]
  %v32 = vld [vmem:[%s1 + $0x34] sm:$0xf]
  %v33 = vld [vmem:[%s1 + $0x38] sm:$0xf]
  %v34 = vld [vmem:[%s1 + $0x3c] sm:$0xf]
  %v35 = vld [vmem:[%s1 + $0x40] sm:$0xf]
  %v36 = vld [vmem:[%s1 + $0x44] sm:$0xf]
  %v37 = vld [vmem:[%s1 + $0x48] sm:$0xf]
  %v38 = vld [vmem:[%s1 + $0x4c] sm:$0xf]
  %v39 = vld [vmem:[%s1 + $0x50] sm:$0xf]
  %v40 = vld [vmem:[%s1 + $0x54] sm:$0xf]
  %v41 = vld [vmem:[%s1 + $0x58] sm:$0xf]
  %v42 = vld [vmem:[%s1 + $0x5c] sm:$0xf]
  %v43 = vld [vmem:[%s1 + $0x60] sm:$0xf]
  %v44 = vld [vmem:[%s1 + $0x64] sm:$0xf]
  %v45 = vld [vmem:[%s1 + $0x68] sm:$0xf]
  %v46 = vld [vmem:[%s1 + $0x6c] sm:$0xf]
  %v47 = vld [vmem:[%s1 + $0x70] sm:$0xf]
  %v48 = vld [vmem:[%s1 + $0x74] sm:$0xf]
  %v49 = vld [vmem:[%s1 + $0x78] sm:$0xf]
  %v50 = vld [vmem:[%s1 + $0x7c] sm:$0xf]
  %v51 = vld [vmem:[%s2] sm:$0x1]
  %v53 = vlaneseq
  %v54 = vshrl.u32 %v53, 7
  %v55 = vsub.s32 0, %v54
  %v56 = vrot.slane %v51, %v55
  %v59 = vunpack.c.l.b16 %v18
  %v60 = vunpack.c.h.b16 %v18
  %v61 = vpack.c.b16 %v59, %v59
  %v62 = vpack.c.b16 %v60, %v60
  %v97 = vunpack.c.l.b16 %v19
  %v98 = vunpack.c.l.b16 %v20
  %v99 = vunpack.c.l.b16 %v21
  %v100 = vunpack.c.l.b16 %v22
  %v101 = vunpack.c.l.b16 %v23
  %v102 = vunpack.c.l.b16 %v24
  %v103 = vunpack.c.l.b16 %v25
  %v104 = vunpack.c.l.b16 %v26
  %v105 = vunpack.c.l.b16 %v27
  %v106 = vunpack.c.l.b16 %v28
  %v107 = vunpack.c.l.b16 %v29
  %v108 = vunpack.c.l.b16 %v30
  %v109 = vunpack.c.l.b16 %v31
  %v110 = vunpack.c.l.b16 %v32
  %v111 = vunpack.c.l.b16 %v33
  %v112 = vunpack.c.l.b16 %v34
  %v113 = vunpack.c.l.b16 %v35
  %v114 = vunpack.c.l.b16 %v36
  %v115 = vunpack.c.l.b16 %v37
  %v116 = vunpack.c.l.b16 %v38
  %v117 = vunpack.c.l.b16 %v39
  %v118 = vunpack.c.l.b16 %v40
  %v119 = vunpack.c.l.b16 %v41
  %v120 = vunpack.c.l.b16 %v42
  %v121 = vunpack.c.l.b16 %v43
  %v122 = vunpack.c.l.b16 %v44
  %v123 = vunpack.c.l.b16 %v45
  %v124 = vunpack.c.l.b16 %v46
  %v125 = vunpack.c.l.b16 %v47
  %v126 = vunpack.c.l.b16 %v48
  %v127 = vunpack.c.l.b16 %v49
  %v128 = vunpack.c.l.b16 %v50
  %v129 = vpack.c.b16 %v98, %v97
  %v130 = vpack.c.b16 %v100, %v99
  %v131 = vpack.c.b16 %v102, %v101
  %v132 = vpack.c.b16 %v104, %v103
  %v133 = vpack.c.b16 %v106, %v105
  %v134 = vpack.c.b16 %v108, %v107
  %v135 = vpack.c.b16 %v110, %v109
  %v136 = vpack.c.b16 %v112, %v111
  %v137 = vpack.c.b16 %v114, %v113
  %v138 = vpack.c.b16 %v116, %v115
  %v139 = vpack.c.b16 %v118, %v117
  %v140 = vpack.c.b16 %v120, %v119
  %v141 = vpack.c.b16 %v122, %v121
  %v142 = vpack.c.b16 %v124, %v123
  %v143 = vpack.c.b16 %v126, %v125
  %v144 = vpack.c.b16 %v128, %v127
  %161 = vmatprep.subr.bf16.mxu0 0
  %162 = vmatpush1.bf16.msra.mxu0 %v129
  %163 = vmatprep.subr.bf16.mxu0 0
  %164 = vmatpush1.bf16.msra.mxu0 %v130
  %165 = vmatprep.subr.bf16.mxu0 0
  %166 = vmatpush1.bf16.msra.mxu0 %v131
  %167 = vmatprep.subr.bf16.mxu0 0
  %168 = vmatpush1.bf16.msra.mxu0 %v132
  %169 = vmatprep.subr.bf16.mxu0 0
  %170 = vmatpush1.bf16.msra.mxu0 %v133
  %171 = vmatprep.subr.bf16.mxu0 0
  %172 = vmatpush1.bf16.msra.mxu0 %v134
  %173 = vmatprep.subr.bf16.mxu0 0
  %174 = vmatpush1.bf16.msra.mxu0 %v135
  %175 = vmatprep.subr.bf16.mxu0 0
  %176 = vmatpush1.bf16.msra.mxu0 %v136
  %177 = vmatprep.subr.bf16.mxu0 0
  %178 = vmatpush1.bf16.msra.mxu0 %v137
  %179 = vmatprep.subr.bf16.mxu0 0
  %180 = vmatpush1.bf16.msra.mxu0 %v138
  %181 = vmatprep.subr.bf16.mxu0 0
  %182 = vmatpush1.bf16.msra.mxu0 %v139
  %183 = vmatprep.subr.bf16.mxu0 0
  %184 = vmatpush1.bf16.msra.mxu0 %v140
  %185 = vmatprep.subr.bf16.mxu0 0
  %186 = vmatpush1.bf16.msra.mxu0 %v141
  %187 = vmatprep.subr.bf16.mxu0 0
  %188 = vmatpush1.bf16.msra.mxu0 %v142
  %189 = vmatprep.subr.bf16.mxu0 0
  %190 = vmatpush1.bf16.msra.mxu0 %v143
  %191 = vmatprep.subr.bf16.mxu0 0
  %192 = vmatpush1.bf16.msra.mxu0 %v144
  %193 = vmatprep.mubr.bf16.mxu0 %v62
  %194 = vmatmul.mubr.bf16.gmra.mrb[0].mxu0 %v61
  %v195 = vpop.f32.mrb[0].mxu0
  %v196 = vadd.f32 %v56, %v195
  %v197 = vpop.f32.mrb[0].mxu0
  %v198 = vpop.f32.mrb[0].mxu0
  %v199 = vpop.f32.mrb[0].mxu0
  %200 = vdwg.mxu0
  %201 = vst [vmem:[%s3] sm:$0xff] %v196
  %s202 = smul.u32 0, 8
  %v203 = vlaneseq
  %v204 = vshrl.u32 %v203, 7
  %v205 = vstv %s202
  %v206 = vadd.s32 %v205, %v204
  %vm207 = vcmp.lt.s32.totalorder %v206, 8
  %v208 = vsel %vm207, 1, 0
  %v209 = vcvt.s32.f32 %v208
  %v210 = vmul.f32 %v196, %v209
  %v211 = vrot.slane %v210, 4
  %v212 = vadd.f32 %v210, %v211
  %v213 = vrot.slane %v212, 2
  %v214 = vadd.f32 %v212, %v213
  %v215 = vrot.slane %v214, 1
  %v216 = vadd.f32 %v214, %v215
  %217 = vst [vmem:[%s4] sm:$0x1] %v216
  %v218 = vmul.f32 %v210, %v196
  %v219 = vrot.slane %v218, 4
  %v220 = vadd.f32 %v218, %v219
  %v221 = vrot.slane %v220, 2
  %v222 = vadd.f32 %v220, %v221
  %v223 = vrot.slane %v222, 1
  %v224 = vadd.f32 %v222, %v223
  %225 = vst [vmem:[%s5] sm:$0x1] %v224
  // Predicated region
  $region14: #{local_enhancer_forward.45} parent=0 // pred_check
    _
  $region15: #{local_enhancer_forward.45} parent=0 // pred_check_branch
    %227 = sbr.rel (0) target = $region17
  $region16: #{local_enhancer_forward.45} parent=0 // pred_region
    _
  $region17: #{local_enhancer_forward.45} parent=0 // pred_fallthru
    _
  // Predicated region
  $region18: #{local_enhancer_forward.45} parent=0 // pred_check
    _
  $region19: #{local_enhancer_forward.45} parent=0 // pred_check_branch
    %229 = sbr.rel (0) target = $region21
  $region20: #{local_enhancer_forward.45} parent=0 // pred_region
    _
  $region21: #{local_enhancer_forward.45} parent=0 // pred_fallthru
    _
  // Predicated region
  $region22: #{local_enhancer_forward.45} parent=0 // pred_check
    _
  $region23: #{local_enhancer_forward.45} parent=0 // pred_check_branch
    %231 = sbr.rel (0) target = $region25
  $region24: #{local_enhancer_forward.45} parent=0 // pred_region
    _
  $region25: #{local_enhancer_forward.45} parent=0 // pred_fallthru
    _
  // Predicated region
  $region26: #{local_enhancer_forward.45} parent=0 // pred_check
    _
  $region27: #{local_enhancer_forward.45} parent=0 // pred_check_branch
    %233 = sbr.rel (0) target = $region29
  $region28: #{local_enhancer_forward.45} parent=0 // pred_region
    _
  $region29: #{local_enhancer_forward.45} parent=0 // pred_fallthru
    _
  // Predicated region
  $region30: #{local_enhancer_forward.45} parent=0 // pred_check
    _
  $region31: #{local_enhancer_forward.45} parent=0 // pred_check_branch
    %235 = sbr.rel (0) target = $region33
  $region32: #{local_enhancer_forward.45} parent=0 // pred_region
    _
  $region33: #{local_enhancer_forward.45} parent=0 // pred_fallthru
    _
  // Predicated region
  $region34: #{local_enhancer_forward.45} parent=0 // pred_check
    _
  $region35: #{local_enhancer_forward.45} parent=0 // pred_check_branch
    %237 = sbr.rel (0) target = $region37
  $region36: #{local_enhancer_forward.45} parent=0 // pred_region
    _
  $region37: #{local_enhancer_forward.45} parent=0 // pred_fallthru
    _

// kernel: tile.275
$region0: #{tile.275}
  #allocation0 [shape = 's32[1]{0}', space=sflag, size = 0x4, scoped, tag = 'scoped memory for tile.275']
  %s0 = inlined_call_operand.vmem [shape: f32[16], index: 0, kind: input, shape index: {}]
  %s1 = inlined_call_operand.vmem [shape: f32[4,16], index: 1, kind: output, shape index: {}]
  // Predicated region
  $region2: #{tile.275} parent=0 // pred_check
    _
  $region3: #{tile.275} parent=0 // pred_check_branch
    %3 = sbr.rel (0) target = $region5
  $region4: #{tile.275} parent=0 // pred_region
    _
  $region5: #{tile.275} parent=0 // pred_fallthru
    _
  %v4 = vld [vmem:[%s0] ss:$0 sm:$0xff]
  %5 = vst [vmem:[%s1] sm:$0xf] %v4

// kernel: tile.276
$region0: #{tile.276}
  %s0 = inlined_call_operand.vmem [shape: f32[4,16], index: 0, kind: input, shape index: {}]
  %s1 = inlined_call_operand.vmem [shape: f32[1,64], index: 1, kind: output, shape index: {}]
  $region1: #{tile.276} parent=0
    #allocation0 [shape = 'u8[4096]{0}', space=vmem, size = 0x1000, scoped, tag = 'scoped mem for output reshape']
    #allocation1 [shape = 'u8[4096]{0}', space=vmem, size = 0x1000, scoped, tag = 'scoped mem for input reshape']
    %s3 = sshllo.u32 0, 4
    %v4 = vld [vmem:[%s0] sm:%s3]
    %5 = vst [vmem:[#allocation1] sm:%s3] %v4
    %v6 = vld [vmem:[#allocation1] sm:$0x1]
    %vm7 = vcmask 130048
    %8 = vst.msk [vmem:[#allocation0] sm:$0x1] %vm7, %v6
    %s9 = scalar_lea.vmem [#allocation1], 3
    %v10 = vld [vmem:[%s9] sm:$0x1]
    %11 = vrot.lane.b32.xlu0 %v10, 48
    %v12 = vpop.permute.xlu0 %11
    %vm13 = vcmask 523648
    %14 = vst.msk [vmem:[#allocation0] sm:$0x1] %vm13, %v12
    %s15 = scalar_lea.vmem [#allocation1], 2
    %v16 = vld [vmem:[%s15] sm:$0x1]
    %17 = vrot.lane.b32.xlu0 %v16, 32
    %v18 = vpop.permute.xlu0 %17
    %vm19 = vcmask 392448
    %20 = vst.msk [vmem:[#allocation0] sm:$0x1] %vm19, %v18
    %s21 = scalar_lea.vmem [#allocation1], 1
    %v22 = vld [vmem:[%s21] sm:$0x1]
    %23 = vrot.lane.b32.xlu0 %v22, 16
    %v24 = vpop.permute.xlu0 %23
    %vm25 = vcmask 261248
    %26 = vst.msk [vmem:[#allocation0] sm:$0x1] %vm25, %v24
    %s28 = sshllo.u32 0, 1
    %v30 = vld [vmem:[#allocation0] sm:%s28]
    %s31 = sshllo.u32 0, 1
    %32 = vst [vmem:[%s1] sm:%s31] %v30

// kernel: tile.287
$region0: #{tile.287}
  %s0 = inlined_call_operand.vmem [shape: f32[4,16], index: 0, kind: input, shape index: {}]
  %s1 = inlined_call_operand.vmem [shape: f32[64], index: 1, kind: output, shape index: {}]
  $region1: #{tile.287} parent=0
    #allocation0 [shape = 'u8[4096]{0}', space=vmem, size = 0x1000, scoped, tag = 'scoped mem for output reshape']
    #allocation1 [shape = 'u8[4096]{0}', space=vmem, size = 0x1000, scoped, tag = 'scoped mem for input reshape']
    %s3 = sshllo.u32 0, 4
    %v4 = vld [vmem:[%s0] sm:%s3]
    %5 = vst [vmem:[#allocation1] sm:%s3] %v4
    %v6 = vld [vmem:[#allocation1] sm:$0x1]
    %vm7 = vcmask 130048
    %8 = vst.msk [vmem:[#allocation0] sm:$0x1] %vm7, %v6
    %s9 = scalar_lea.vmem [#allocation1], 3
    %v10 = vld [vmem:[%s9] sm:$0x1]
    %11 = vrot.lane.b32.xlu0 %v10, 48
    %v12 = vpop.permute.xlu0 %11
    %vm13 = vcmask 523648
    %14 = vst.msk [vmem:[#allocation0] sm:$0x1] %vm13, %v12
    %s15 = scalar_lea.vmem [#allocation1], 2
    %v16 = vld [vmem:[%s15] sm:$0x1]
    %17 = vrot.lane.b32.xlu0 %v16, 32
    %v18 = vpop.permute.xlu0 %17
    %vm19 = vcmask 392448
    %20 = vst.msk [vmem:[#allocation0] sm:$0x1] %vm19, %v18
    %s21 = scalar_lea.vmem [#allocation1], 1
    %v22 = vld [vmem:[%s21] sm:$0x1]
    %23 = vrot.lane.b32.xlu0 %v22, 16
    %v24 = vpop.permute.xlu0 %23
    %vm25 = vcmask 261248
    %26 = vst.msk [vmem:[#allocation0] sm:$0x1] %vm25, %v24
    %s28 = sshllo.u32 0, 1
    %v30 = vld [vmem:[#allocation0] sm:%s28]
    %s31 = sshllo.u32 0, 1
    %32 = vst [vmem:[%s1] sm:%s31] %v30

// kernel: local_enhancer_forward.47
$region0: #{local_enhancer_forward.47}
  #allocation0 [shape = 'u32[]', space=smem, size = 0x4, offset = 0x4, fixed_abs, tag = 'smem constant byte address 0x4 - core index']
  #allocation1 [shape = 'u32[144,128]{1,0:T(1,128)}', space=vmem, size = 0x12000, scoped, tag = 'internal scratch']
  %s0 = inlined_call_operand.vmem [shape: bf16[32,128], index: 0, kind: input, shape index: {}]
  %s1 = inlined_call_operand.vmem [shape: bf16[128,64], index: 1, kind: input, shape index: {}]
  %s2 = inlined_call_operand.vmem [shape: f32[1,64], index: 2, kind: input, shape index: {}]
  %s3 = inlined_call_operand.vmem [shape: f32[32,64], index: 3, kind: output, shape index: {0}]
  %s4 = inlined_call_operand.vmem [shape: f32[1,1,64], index: 4, kind: output, shape index: {1}]
  %s5 = inlined_call_operand.vmem [shape: f32[1,1,64], index: 5, kind: output, shape index: {2}]
  %6 = xla_tuple %s3, %s4, %s5
  %s7 = sld [smem:[#allocation0]]
  $region38: #{local_enhancer_forward.47} parent=0
    _
  %s9 = ssub.s32 1, %s7
  %s10 = scalar_select 0, %s9, %s7
  // Predicated region
  $region2: #{local_enhancer_forward.47} parent=0 // pred_check
    _
  $region3: #{local_enhancer_forward.47} parent=0 // pred_check_branch
    %12 = sbr.rel (0) target = $region5
  $region4: #{local_enhancer_forward.47} parent=0 // pred_region
    _
  $region5: #{local_enhancer_forward.47} parent=0 // pred_fallthru
    _
  // Predicated region
  $region6: #{local_enhancer_forward.47} parent=0 // pred_check
    _
  $region7: #{local_enhancer_forward.47} parent=0 // pred_check_branch
    %14 = sbr.rel (0) target = $region9
  $region8: #{local_enhancer_forward.47} parent=0 // pred_region
    _
  $region9: #{local_enhancer_forward.47} parent=0 // pred_fallthru
    _
  // Predicated region
  $region10: #{local_enhancer_forward.47} parent=0 // pred_check
    _
  $region11: #{local_enhancer_forward.47} parent=0 // pred_check_branch
    %16 = sbr.rel (0) target = $region13
  $region12: #{local_enhancer_forward.47} parent=0 // pred_region
    _
  $region13: #{local_enhancer_forward.47} parent=0 // pred_fallthru
    _
  %v18 = vld [vmem:[%s0] sm:$0xf]
  %v19 = vld [vmem:[%s0 + $0x4] sm:$0xf]
  %v20 = vld [vmem:[%s0 + $0x8] sm:$0xf]
  %v21 = vld [vmem:[%s0 + $0xc] sm:$0xf]
  %v22 = vld [vmem:[%s1] sm:$0xf]
  %v23 = vld [vmem:[%s1 + $0x4] sm:$0xf]
  %v24 = vld [vmem:[%s1 + $0x8] sm:$0xf]
  %v25 = vld [vmem:[%s1 + $0xc] sm:$0xf]
  %v26 = vld [vmem:[%s1 + $0x10] sm:$0xf]
  %v27 = vld [vmem:[%s1 + $0x14] sm:$0xf]
  %v28 = vld [vmem:[%s1 + $0x18] sm:$0xf]
  %v29 = vld [vmem:[%s1 + $0x1c] sm:$0xf]
  %v30 = vld [vmem:[%s1 + $0x20] sm:$0xf]
  %v31 = vld [vmem:[%s1 + $0x24] sm:$0xf]
  %v32 = vld [vmem:[%s1 + $0x28] sm:$0xf]
  %v33 = vld [vmem:[%s1 + $0x2c] sm:$0xf]
  %v34 = vld [vmem:[%s1 + $0x30] sm:$0xf]
  %v35 = vld [vmem:[%s1 + $0x34] sm:$0xf]
  %v36 = vld [vmem:[%s1 + $0x38] sm:$0xf]
  %v37 = vld [vmem:[%s1 + $0x3c] sm:$0xf]
  %v38 = vld [vmem:[%s2] sm:$0x1]
  %v40 = vlaneseq
  %v41 = vshrl.u32 %v40, 7
  %v42 = vsub.s32 0, %v41
  %v43 = vrot.slane %v38, %v42
  %v49 = vunpack.c.l.b16 %v18
  %v50 = vunpack.c.l.b16 %v19
  %v51 = vunpack.c.l.b16 %v20
  %v52 = vunpack.c.l.b16 %v21
  %v53 = vpack.c.b16 %v50, %v49
  %v54 = vpack.c.b16 %v52, %v51
  %v73 = vunpack.c.l.b16 %v22
  %v74 = vunpack.c.l.b16 %v23
  %v75 = vunpack.c.l.b16 %v24
  %v76 = vunpack.c.l.b16 %v25
  %v77 = vunpack.c.l.b16 %v26
  %v78 = vunpack.c.l.b16 %v27
  %v79 = vunpack.c.l.b16 %v28
  %v80 = vunpack.c.l.b16 %v29
  %v81 = vunpack.c.l.b16 %v30
  %v82 = vunpack.c.l.b16 %v31
  %v83 = vunpack.c.l.b16 %v32
  %v84 = vunpack.c.l.b16 %v33
  %v85 = vunpack.c.l.b16 %v34
  %v86 = vunpack.c.l.b16 %v35
  %v87 = vunpack.c.l.b16 %v36
  %v88 = vunpack.c.l.b16 %v37
  %v89 = vpack.c.b16 %v74, %v73
  %v90 = vpack.c.b16 %v76, %v75
  %v91 = vpack.c.b16 %v78, %v77
  %v92 = vpack.c.b16 %v80, %v79
  %v93 = vpack.c.b16 %v82, %v81
  %v94 = vpack.c.b16 %v84, %v83
  %v95 = vpack.c.b16 %v86, %v85
  %v96 = vpack.c.b16 %v88, %v87
  %105 = vmatprep.subr.bf16.mxu0 0
  %106 = vmatpush1.bf16.msra.mxu0 %v89
  %107 = vmatprep.subr.bf16.mxu0 0
  %108 = vmatpush1.bf16.msra.mxu0 %v90
  %109 = vmatprep.subr.bf16.mxu0 0
  %110 = vmatpush1.bf16.msra.mxu0 %v91
  %111 = vmatprep.subr.bf16.mxu0 0
  %112 = vmatpush1.bf16.msra.mxu0 %v92
  %113 = vmatprep.subr.bf16.mxu0 0
  %114 = vmatpush1.bf16.msra.mxu0 %v93
  %115 = vmatprep.subr.bf16.mxu0 0
  %116 = vmatpush1.bf16.msra.mxu0 %v94
  %117 = vmatprep.subr.bf16.mxu0 0
  %118 = vmatpush1.bf16.msra.mxu0 %v95
  %119 = vmatprep.subr.bf16.mxu0 0
  %120 = vmatpush1.bf16.msra.mxu0 %v96
  %121 = vmatprep.subr.bf16.mxu0 0
  %122 = vmatpush1.bf16.msra.mxu0 0
  %123 = vmatprep.subr.bf16.mxu0 0
  %124 = vmatpush1.bf16.msra.mxu0 0
  %125 = vmatprep.subr.bf16.mxu0 0
  %126 = vmatpush1.bf16.msra.mxu0 0
  %127 = vmatprep.subr.bf16.mxu0 0
  %128 = vmatpush1.bf16.msra.mxu0 0
  %129 = vmatprep.subr.bf16.mxu0 0
  %130 = vmatpush1.bf16.msra.mxu0 0
  %131 = vmatprep.subr.bf16.mxu0 0
  %132 = vmatpush1.bf16.msra.mxu0 0
  %133 = vmatprep.subr.bf16.mxu0 0
  %134 = vmatpush1.bf16.msra.mxu0 0
  %135 = vmatprep.subr.bf16.mxu0 0
  %136 = vmatpush1.bf16.msra.mxu0 0
  %137 = vmatprep.mubr.bf16.mxu0 0
  %138 = vmatmul.mubr.bf16.gmra.mrb[0].mxu0 %v53
  %v139 = vpop.f32.mrb[0].mxu0
  %v140 = vadd.f32 %v43, %v139
  %v141 = vpop.f32.mrb[0].mxu0
  %v142 = vpop.f32.mrb[0].mxu0
  %v143 = vadd.f32 %v43, %v142
  %v144 = vpop.f32.mrb[0].mxu0
  %145 = vmatprep.mubr.bf16.mxu0 0
  %146 = vmatmul.mubr.bf16.gmra.mrb[0].mxu0 %v54
  %v147 = vpop.f32.mrb[0].mxu0
  %v148 = vadd.f32 %v43, %v147
  %v149 = vpop.f32.mrb[0].mxu0
  %v150 = vpop.f32.mrb[0].mxu0
  %v151 = vadd.f32 %v43, %v150
  %v152 = vpop.f32.mrb[0].mxu0
  %153 = vdwg.mxu0
  %vm154 = vcmask 523264
  %155 = vst.msk [vmem:[%s3] sm:$0xff] %vm154, %v140
  %156 = vst.msk [vmem:[%s3 + $0x8] sm:$0xff] %vm154, %v143
  %157 = vst.msk [vmem:[%s3 + $0x10] sm:$0xff] %vm154, %v148
  %158 = vst.msk [vmem:[%s3 + $0x18] sm:$0xff] %vm154, %v151
  %s159 = smul.u32 0, 32
  %v160 = vlaneseq
  %v161 = vshrl.u32 %v160, 7
  %v162 = vadd.s32 %v161, 8
  %v163 = vadd.s32 %v161, 16
  %v164 = vadd.s32 %v161, 24
  %v165 = vstv %s159
  %v166 = vadd.s32 %v165, %v161
  %v167 = vadd.s32 %v165, %v162
  %v168 = vadd.s32 %v165, %v163
  %v169 = vadd.s32 %v165, %v164
  %vm170 = vcmp.lt.s32.totalorder %v166, 32
  %vm171 = vcmp.lt.s32.totalorder %v167, 32
  %vm172 = vcmp.lt.s32.totalorder %v168, 32
  %vm173 = vcmp.lt.s32.totalorder %v169, 32
  %v174 = vsel %vm170, 1, 0
  %v175 = vsel %vm171, 1, 0
  %v176 = vsel %vm172, 1, 0
  %v177 = vsel %vm173, 1, 0
  %v178 = vcvt.s32.f32 %v174
  %v179 = vcvt.s32.f32 %v175
  %v180 = vcvt.s32.f32 %v176
  %v181 = vcvt.s32.f32 %v177
  %v182 = vmul.f32 %v140, %v178
  %v183 = vmul.f32 %v143, %v179
  %v184 = vmul.f32 %v148, %v180
  %v185 = vmul.f32 %v151, %v181
  %v186 = vsel %vm154, %v182, 0.0
  %v187 = vsel %vm154, %v183, 0.0
  %v188 = vadd.f32 %v186, %v187
  %v189 = vsel %vm154, %v184, 0.0
  %v190 = vadd.f32 %v188, %v189
  %v191 = vsel %vm154, %v185, 0.0
  %v192 = vadd.f32 %v190, %v191
  %v193 = vrot.slane %v192, 4
  %v194 = vadd.f32 %v192, %v193
  %v195 = vrot.slane %v194, 2
  %v196 = vadd.f32 %v194, %v195
  %v197 = vrot.slane %v196, 1
  %v198 = vadd.f32 %v196, %v197
  %vm199 = vcmask 516096
  %200 = vst.msk [vmem:[%s4] sm:$0x1] %vm199, %v198
  %v201 = vmul.f32 %v182, %v140
  %v202 = vmul.f32 %v183, %v143
  %v203 = vmul.f32 %v184, %v148
  %v204 = vmul.f32 %v185, %v151
  %v205 = vsel %vm154, %v201, 0.0
  %v206 = vsel %vm154, %v202, 0.0
  %v207 = vadd.f32 %v205, %v206
  %v208 = vsel %vm154, %v203, 0.0
  %v209 = vadd.f32 %v207, %v208
  %v210 = vsel %vm154, %v204, 0.0
  %v211 = vadd.f32 %v209, %v210
  %v212 = vrot.slane %v211, 4
  %v213 = vadd.f32 %v211, %v212
  %v214 = vrot.slane %v213, 2
  %v215 = vadd.f32 %v213, %v214
  %v216 = vrot.slane %v215, 1
  %v217 = vadd.f32 %v215, %v216
  %218 = vst.msk [vmem:[%s5] sm:$0x1] %vm199, %v217
  // Predicated region
  $region14: #{local_enhancer_forward.47} parent=0 // pred_check
    _
  $region15: #{local_enhancer_forward.47} parent=0 // pred_check_branch
    %220 = sbr.rel (0) target = $region17
  $region16: #{local_enhancer_forward.47} parent=0 // pred_region
    _
  $region17: #{local_enhancer_forward.47} parent=0 // pred_fallthru
    _
  // Predicated region
  $region18: #{local_enhancer_forward.47} parent=0 // pred_check
    _
  $region19: #{local_enhancer_forward.47} parent=0 // pred_check_branch
    %222 = sbr.rel (0) target = $region21
  $region20: #{local_enhancer_forward.47} parent=0 // pred_region
    _
  $region21: #{local_enhancer_forward.47} parent=0 // pred_fallthru
    _
  // Predicated region
  $region22: #{local_enhancer_forward.47} parent=0 // pred_check
    _
  $region23: #{local_enhancer_forward.47} parent=0 // pred_check_branch
    %224 = sbr.rel (0) target = $region25
  $region24: #{local_enhancer_forward.47} parent=0 // pred_region
    _
  $region25: #{local_enhancer_forward.47} parent=0 // pred_fallthru
    _
  // Predicated region
  $region26: #{local_enhancer_forward.47} parent=0 // pred_check
    _
  $region27: #{local_enhancer_forward.47} parent=0 // pred_check_branch
    %226 = sbr.rel (0) target = $region29
  $region28: #{local_enhancer_forward.47} parent=0 // pred_region
    _
  $region29: #{local_enhancer_forward.47} parent=0 // pred_fallthru
    _
  // Predicated region
  $region30: #{local_enhancer_forward.47} parent=0 // pred_check
    _
  $region31: #{local_enhancer_forward.47} parent=0 // pred_check_branch
    %228 = sbr.rel (0) target = $region33
  $region32: #{local_enhancer_forward.47} parent=0 // pred_region
    _
  $region33: #{local_enhancer_forward.47} parent=0 // pred_fallthru
    _
  // Predicated region
  $region34: #{local_enhancer_forward.47} parent=0 // pred_check
    _
  $region35: #{local_enhancer_forward.47} parent=0 // pred_check_branch
    %230 = sbr.rel (0) target = $region37
  $region36: #{local_enhancer_forward.47} parent=0 // pred_region
    _
  $region37: #{local_enhancer_forward.47} parent=0 // pred_fallthru
    _

// kernel: tile.298
$region0: #{tile.298}
  #allocation0 [shape = 's32[1]{0}', space=sflag, size = 0x4, scoped, tag = 'scoped memory for tile.298']
  %s0 = inlined_call_operand.vmem [shape: f32[8], index: 0, kind: input, shape index: {}]
  %s1 = inlined_call_operand.vmem [shape: f32[64,8], index: 1, kind: output, shape index: {}]
  // Predicated region
  $region2: #{tile.298} parent=0 // pred_check
    _
  $region3: #{tile.298} parent=0 // pred_check_branch
    %3 = sbr.rel (0) target = $region5
  $region4: #{tile.298} parent=0 // pred_region
    _
  $region5: #{tile.298} parent=0 // pred_fallthru
    _
  %v4 = vld [vmem:[%s0] ss:$0 sm:$0xff]
  %5 = vst [vmem:[%s1] sm:$0xff] %v4
  %s6 = scalar_lea.vmem %s1, 8
  %7 = vst [vmem:[%s6] sm:$0xff] %v4
  %s8 = scalar_lea.vmem %s1, 16
  %9 = vst [vmem:[%s8] sm:$0xff] %v4
  %s10 = scalar_lea.vmem %s1, 24
  %11 = vst [vmem:[%s10] sm:$0xff] %v4
  %s12 = scalar_lea.vmem %s1, 32
  %13 = vst [vmem:[%s12] sm:$0xff] %v4
  %s14 = scalar_lea.vmem %s1, 40
  %15 = vst [vmem:[%s14] sm:$0xff] %v4
  %s16 = scalar_lea.vmem %s1, 48
  %17 = vst [vmem:[%s16] sm:$0xff] %v4
  %s18 = scalar_lea.vmem %s1, 56
  %19 = vst [vmem:[%s18] sm:$0xff] %v4

// kernel: tile.299
$region0: #{tile.299}
  %s0 = inlined_call_operand.vmem [shape: f32[64,8], index: 0, kind: input, shape index: {}]
  %s1 = inlined_call_operand.vmem [shape: f32[1,512], index: 1, kind: output, shape index: {}]
  $region1: #{tile.299} parent=0
    #allocation0 [shape = 'u8[16384]{0}', space=vmem, size = 0x4000, scoped, tag = 'scoped mem for output reshape']
    %s2 = smov 3
    %v3 = vld [vmem:[%s0] ss:$16 sm:%s2]
    %s4 = smov 12
    %v5 = vld [vmem:[%s0] ss:$16 sm:%s4]
    %vm6 = vcmask 1043458
    %v7 = vsel %vm6, %v5, %v3
    %vm8 = vcmask 64512
    %9 = vst.msk [vmem:[#allocation0] ss:$8 sm:$0xf] %vm8, %v7
    %s10 = scalar_lea.vmem %s0, 15
    %s11 = smov 3
    %v12 = vld [vmem:[%s10] ss:$16 sm:%s11]
    %s13 = scalar_lea.vmem %s0, 15
    %s14 = smov 12
    %v15 = vld [vmem:[%s13] ss:$16 sm:%s14]
    %vm16 = vcmask 1043458
    %v17 = vsel %vm16, %v15, %v12
    %18 = vrot.lane.b32.xlu0 %v17, 120
    %v19 = vpop.permute.xlu0 %18
    %vm20 = vcmask 1048512
    %21 = vst.msk [vmem:[#allocation0] ss:$8 sm:$0xf] %vm20, %v19
    %s22 = scalar_lea.vmem %s0, 14
    %s23 = smov 3
    %v24 = vld [vmem:[%s22] ss:$16 sm:%s23]
    %s25 = scalar_lea.vmem %s0, 14
    %s26 = smov 12
    %v27 = vld [vmem:[%s25] ss:$16 sm:%s26]
    %vm28 = vcmask 1043458
    %v29 = vsel %vm28, %v27, %v24
    %30 = vrot.lane.b32.xlu0 %v29, 112
    %v31 = vpop.permute.xlu0 %30
    %vm32 = vcmask 982912
    %33 = vst.msk [vmem:[#allocation0] ss:$8 sm:$0xf] %vm32, %v31
    %s34 = scalar_lea.vmem %s0, 13
    %s35 = smov 3
    %v36 = vld [vmem:[%s34] ss:$16 sm:%s35]
    %s37 = scalar_lea.vmem %s0, 13
    %s38 = smov 12
    %v39 = vld [vmem:[%s37] ss:$16 sm:%s38]
    %vm40 = vcmask 1043458
    %v41 = vsel %vm40, %v39, %v36
    %42 = vrot.lane.b32.xlu0 %v41, 104
    %v43 = vpop.permute.xlu0 %42
    %vm44 = vcmask 917312
    %45 = vst.msk [vmem:[#allocation0] ss:$8 sm:$0xf] %vm44, %v43
    %s46 = scalar_lea.vmem %s0, 12
    %s47 = smov 3
    %v48 = vld [vmem:[%s46] ss:$16 sm:%s47]
    %s49 = scalar_lea.vmem %s0, 12
    %s50 = smov 12
    %v51 = vld [vmem:[%s49] ss:$16 sm:%s50]
    %vm52 = vcmask 1043458
    %v53 = vsel %vm52, %v51, %v48
    %54 = vrot.lane.b32.xlu0 %v53, 96
    %v55 = vpop.permute.xlu0 %54
    %vm56 = vcmask 851712
    %57 = vst.msk [vmem:[#allocation0] ss:$8 sm:$0xf] %vm56, %v55
    %s58 = scalar_lea.vmem %s0, 11
    %s59 = smov 3
    %v60 = vld [vmem:[%s58] ss:$16 sm:%s59]
    %s61 = scalar_lea.vmem %s0, 11
    %s62 = smov 12
    %v63 = vld [vmem:[%s61] ss:$16 sm:%s62]
    %vm64 = vcmask 1043458
    %v65 = vsel %vm64, %v63, %v60
    %66 = vrot.lane.b32.xlu0 %v65, 88
    %v67 = vpop.permute.xlu0 %66
    %vm68 = vcmask 786112
    %69 = vst.msk [vmem:[#allocation0] ss:$8 sm:$0xf] %vm68, %v67
    %s70 = scalar_lea.vmem %s0, 10
    %s71 = smov 3
    %v72 = vld [vmem:[%s70] ss:$16 sm:%s71]
    %s73 = scalar_lea.vmem %s0, 10
    %s74 = smov 12
    %v75 = vld [vmem:[%s73] ss:$16 sm:%s74]
    %vm76 = vcmask 1043458
    %v77 = vsel %vm76, %v75, %v72
    %78 = vrot.lane.b32.xlu0 %v77, 80
    %v79 = vpop.permute.xlu0 %78
    %vm80 = vcmask 720512
    %81 = vst.msk [vmem:[#allocation0] ss:$8 sm:$0xf] %vm80, %v79
    %s82 = scalar_lea.vmem %s0, 9
    %s83 = smov 3
    %v84 = vld [vmem:[%s82] ss:$16 sm:%s83]
    %s85 = scalar_lea.vmem %s0, 9
    %s86 = smov 12
    %v87 = vld [vmem:[%s85] ss:$16 sm:%s86]
    %vm88 = vcmask 1043458
    %v89 = vsel %vm88, %v87, %v84
    %90 = vrot.lane.b32.xlu0 %v89, 72
    %v91 = vpop.permute.xlu0 %90
    %vm92 = vcmask 654912
    %93 = vst.msk [vmem:[#allocation0] ss:$8 sm:$0xf] %vm92, %v91
    %s94 = scalar_lea.vmem %s0, 8
    %s95 = smov 3
    %v96 = vld [vmem:[%s94] ss:$16 sm:%s95]
    %s97 = scalar_lea.vmem %s0, 8
    %s98 = smov 12
    %v99 = vld [vmem:[%s97] ss:$16 sm:%s98]
    %vm100 = vcmask 1043458
    %v101 = vsel %vm100, %v99, %v96
    %102 = vrot.lane.b32.xlu0 %v101, 64
    %v103 = vpop.permute.xlu0 %102
    %vm104 = vcmask 589312
    %105 = vst.msk [vmem:[#allocation0] ss:$8 sm:$0xf] %vm104, %v103
    %s106 = scalar_lea.vmem %s0, 7
    %s107 = smov 3
    %v108 = vld [vmem:[%s106] ss:$16 sm:%s107]
    %s109 = scalar_lea.vmem %s0, 7
    %s110 = smov 12
    %v111 = vld [vmem:[%s109] ss:$16 sm:%s110]
    %vm112 = vcmask 1043458
    %v113 = vsel %vm112, %v111, %v108
    %114 = vrot.lane.b32.xlu0 %v113, 56
    %v115 = vpop.permute.xlu0 %114
    %vm116 = vcmask 523712
    %117 = vst.msk [vmem:[#allocation0] ss:$8 sm:$0xf] %vm116, %v115
    %s118 = scalar_lea.vmem %s0, 6
    %s119 = smov 3
    %v120 = vld [vmem:[%s118] ss:$16 sm:%s119]
    %s121 = scalar_lea.vmem %s0, 6
    %s122 = smov 12
    %v123 = vld [vmem:[%s121] ss:$16 sm:%s122]
    %vm124 = vcmask 1043458
    %v125 = vsel %vm124, %v123, %v120
    %126 = vrot.lane.b32.xlu0 %v125, 48
    %v127 = vpop.permute.xlu0 %126
    %vm128 = vcmask 458112
    %129 = vst.msk [vmem:[#allocation0] ss:$8 sm:$0xf] %vm128, %v127
    %s130 = scalar_lea.vmem %s0, 5
    %s131 = smov 3
    %v132 = vld [vmem:[%s130] ss:$16 sm:%s131]
    %s133 = scalar_lea.vmem %s0, 5
    %s134 = smov 12
    %v135 = vld [vmem:[%s133] ss:$16 sm:%s134]
    %vm136 = vcmask 1043458
    %v137 = vsel %vm136, %v135, %v132
    %138 = vrot.lane.b32.xlu0 %v137, 40
    %v139 = vpop.permute.xlu0 %138
    %vm140 = vcmask 392512
    %141 = vst.msk [vmem:[#allocation0] ss:$8 sm:$0xf] %vm140, %v139
    %s142 = scalar_lea.vmem %s0, 4
    %s143 = smov 3
    %v144 = vld [vmem:[%s142] ss:$16 sm:%s143]
    %s145 = scalar_lea.vmem %s0, 4
    %s146 = smov 12
    %v147 = vld [vmem:[%s145] ss:$16 sm:%s146]
    %vm148 = vcmask 1043458
    %v149 = vsel %vm148, %v147, %v144
    %150 = vrot.lane.b32.xlu0 %v149, 32
    %v151 = vpop.permute.xlu0 %150
    %vm152 = vcmask 326912
    %153 = vst.msk [vmem:[#allocation0] ss:$8 sm:$0xf] %vm152, %v151
    %s154 = scalar_lea.vmem %s0, 3
    %s155 = smov 3
    %v156 = vld [vmem:[%s154] ss:$16 sm:%s155]
    %s157 = scalar_lea.vmem %s0, 3
    %s158 = smov 12
    %v159 = vld [vmem:[%s157] ss:$16 sm:%s158]
    %vm160 = vcmask 1043458
    %v161 = vsel %vm160, %v159, %v156
    %162 = vrot.lane.b32.xlu0 %v161, 24
    %v163 = vpop.permute.xlu0 %162
    %vm164 = vcmask 261312
    %165 = vst.msk [vmem:[#allocation0] ss:$8 sm:$0xf] %vm164, %v163
    %s166 = scalar_lea.vmem %s0, 2
    %s167 = smov 3
    %v168 = vld [vmem:[%s166] ss:$16 sm:%s167]
    %s169 = scalar_lea.vmem %s0, 2
    %s170 = smov 12
    %v171 = vld [vmem:[%s169] ss:$16 sm:%s170]
    %vm172 = vcmask 1043458
    %v173 = vsel %vm172, %v171, %v168
    %174 = vrot.lane.b32.xlu0 %v173, 16
    %v175 = vpop.permute.xlu0 %174
    %vm176 = vcmask 195712
    %177 = vst.msk [vmem:[#allocation0] ss:$8 sm:$0xf] %vm176, %v175
    %s178 = scalar_lea.vmem %s0, 1
    %s179 = smov 3
    %v180 = vld [vmem:[%s178] ss:$16 sm:%s179]
    %s181 = scalar_lea.vmem %s0, 1
    %s182 = smov 12
    %v183 = vld [vmem:[%s181] ss:$16 sm:%s182]
    %vm184 = vcmask 1043458
    %v185 = vsel %vm184, %v183, %v180
    %186 = vrot.lane.b32.xlu0 %v185, 8
    %v187 = vpop.permute.xlu0 %186
    %vm188 = vcmask 130112
    %189 = vst.msk [vmem:[#allocation0] ss:$8 sm:$0xf] %vm188, %v187
    %s191 = sshllo.u32 0, 1
    %v193 = vld [vmem:[#allocation0] sm:%s191]
    %s194 = sshllo.u32 0, 1
    %195 = vst [vmem:[%s1] sm:%s194] %v193
    %s196 = scalar_lea.vmem [#allocation0], 8
    %v197 = vld [vmem:[%s196] sm:%s191]
    %s198 = sshllo.u32 0, 1
    %s199 = scalar_lea.vmem %s1, 1
    %200 = vst [vmem:[%s199] sm:%s198] %v197
    %s201 = scalar_lea.vmem [#allocation0], 16
    %v202 = vld [vmem:[%s201] sm:%s191]
    %s203 = sshllo.u32 0, 1
    %s204 = smul.addr 1, 2
    %s205 = scalar_lea.vmem %s1, %s204
    %206 = vst [vmem:[%s205] sm:%s203] %v202
    %s207 = scalar_lea.vmem [#allocation0], 24
    %v208 = vld [vmem:[%s207] sm:%s191]
    %s209 = sshllo.u32 0, 1
    %s210 = smul.addr 1, 3
    %s211 = scalar_lea.vmem %s1, %s210
    %212 = vst [vmem:[%s211] sm:%s209] %v208

// kernel: local_enhancer_forward.49
$region0: #{local_enhancer_forward.49}
  #allocation0 [shape = 'u32[]', space=smem, size = 0x4, offset = 0x4, fixed_abs, tag = 'smem constant byte address 0x4 - core index']
  #allocation1 [shape = 'u32[144,128]{1,0:T(1,128)}', space=vmem, size = 0x12000, scoped, tag = 'internal scratch']
  %s0 = inlined_call_operand.vmem [shape: bf16[512,147], index: 0, kind: input, shape index: {}]
  %s1 = inlined_call_operand.vmem [shape: bf16[147,8], index: 1, kind: input, shape index: {}]
  %s2 = inlined_call_operand.vmem [shape: f32[1,8], index: 2, kind: input, shape index: {}]
  %s3 = inlined_call_operand.vmem [shape: f32[512,8], index: 3, kind: output, shape index: {0}]
  %s4 = inlined_call_operand.vmem [shape: f32[2,1,8], index: 4, kind: output, shape index: {1}]
  %s5 = inlined_call_operand.vmem [shape: f32[2,1,8], index: 5, kind: output, shape index: {2}]
  %6 = xla_tuple %s3, %s4, %s5
  %s7 = sld [smem:[#allocation0]]
  $region61: #{local_enhancer_forward.49} parent=0
    _
  %s9 = ssub.s32 1, %s7
  %s10 = scalar_select 0, %s9, %s7
  loop: start=0, step=1, limit=4
  $region2: #{local_enhancer_forward.49} parent=0 // loop_pre_header
    _
  $region3: #{local_enhancer_forward.49} parent=0 // loop_header
    %s12 = sphi 0, %s16
    %p13 = scmp.ge.s32.totalorder %s12, 4
    %s22 = sphi 0, %s24
    %s25 = sphi 0, %s22
    %s26 = sphi 0, %s25
    %s42 = sphi 0, %s26
    %s46 = sphi 0, %s46
    %s48 = sphi 0, %s46
    %s49 = sphi 0, %s48
    %s63 = sphi 0, %s49
    %s67 = sphi 0, %s67
    %s69 = sphi 0, %s67
    %s70 = sphi 0, %s69
    %s84 = sphi 0, %s70
    %s90 = sphi 0, %s92
    %s93 = sphi 0, %s90
    %s94 = sphi 0, %s93
    %s110 = sphi 0, %s94
    %s116 = sphi 0, %s118
    %s119 = sphi 0, %s116
    %s120 = sphi 0, %s119
    %s136 = sphi 0, %s120
    %s142 = sphi 0, %s144
    %s145 = sphi 0, %s142
    %s146 = sphi 0, %s145
    %s162 = sphi 0, %s146
  $region4: #{local_enhancer_forward.49} parent=0 // loop_header_branch
    %15 = sbr.rel (%p13) target = $region8
  $region5: #{local_enhancer_forward.49} parent=0 // loop_body
    %s17 = ssub.s32 %s12, 1
    %s18 = ssub.s32 %s12, 2
    %s19 = sadd.s32 %s12, 1
    %s20 = ssub.s32 %s12, %s19
    %p21 = scmp.eq.s32.totalorder %s20, 0
    %s23 = sadd.s32 %s22, 1
    %s24 = scalar_select %p21, %s22, %s23
    %p27 = pneg %p21
    %p28 = scmp.eq.s32.totalorder %s12, 1
    %p29 = por %p27, %p28
    %p30 = scmp.ne.s32.totalorder %s22, %s25
    %p31 = scmp.eq.s32.totalorder %s12, 0
    %p32 = por %p30, %p31
    %p33 = scmp.ne.s32.totalorder %s22, %s25
    %p34 = scmp.eq.s32.totalorder %s17, 1
    %p35 = por %p33, %p34
    %p36 = scmp.ne.s32.totalorder %s25, %s26
    %p37 = scmp.eq.s32.totalorder %s17, 0
    %p38 = por %p36, %p37
    %p39 = scmp.ne.s32.totalorder %s25, %s26
    %p40 = scmp.eq.s32.totalorder %s18, 1
    %p41 = por %p39, %p40
    %p43 = scmp.ne.s32.totalorder %s26, %s42
    %p44 = scmp.eq.s32.totalorder %s18, 0
    %p45 = por %p43, %p44
    %s47 = sadd.s32 %s46, 1
    %p50 = scmp.eq.s32.totalorder %s12, 1
    %p51 = scmp.ne.s32.totalorder %s46, %s48
    %p52 = scmp.eq.s32.totalorder %s12, 0
    %p53 = por %p51, %p52
    %p54 = scmp.ne.s32.totalorder %s46, %s48
    %p55 = scmp.eq.s32.totalorder %s17, 1
    %p56 = por %p54, %p55
    %p57 = scmp.ne.s32.totalorder %s48, %s49
    %p58 = scmp.eq.s32.totalorder %s17, 0
    %p59 = por %p57, %p58
    %p60 = scmp.ne.s32.totalorder %s48, %s49
    %p61 = scmp.eq.s32.totalorder %s18, 1
    %p62 = por %p60, %p61
    %p64 = scmp.ne.s32.totalorder %s49, %s63
    %p65 = scmp.eq.s32.totalorder %s18, 0
    %p66 = por %p64, %p65
    %s68 = sadd.s32 %s67, 1
    %p71 = scmp.eq.s32.totalorder %s12, 1
    %p72 = scmp.ne.s32.totalorder %s67, %s69
    %p73 = scmp.eq.s32.totalorder %s12, 0
    %p74 = por %p72, %p73
    %p75 = scmp.ne.s32.totalorder %s67, %s69
    %p76 = scmp.eq.s32.totalorder %s17, 1
    %p77 = por %p75, %p76
    %p78 = scmp.ne.s32.totalorder %s69, %s70
    %p79 = scmp.eq.s32.totalorder %s17, 0
    %p80 = por %p78, %p79
    %p81 = scmp.ne.s32.totalorder %s69, %s70
    %p82 = scmp.eq.s32.totalorder %s18, 1
    %p83 = por %p81, %p82
    %p85 = scmp.ne.s32.totalorder %s70, %s84
    %p86 = scmp.eq.s32.totalorder %s18, 0
    %p87 = por %p85, %p86
    %s88 = ssub.s32 %s12, %s19
    %p89 = scmp.eq.s32.totalorder %s88, 0
    %s91 = sadd.s32 %s90, 1
    %s92 = scalar_select %p89, %s90, %s91
    %p95 = pneg %p89
    %p96 = scmp.eq.s32.totalorder %s12, 1
    %p97 = por %p95, %p96
    %p98 = scmp.ne.s32.totalorder %s90, %s93
    %p99 = scmp.eq.s32.totalorder %s12, 0
    %p100 = por %p98, %p99
    %p101 = scmp.ne.s32.totalorder %s90, %s93
    %p102 = scmp.eq.s32.totalorder %s17, 1
    %p103 = por %p101, %p102
    %p104 = scmp.ne.s32.totalorder %s93, %s94
    %p105 = scmp.eq.s32.totalorder %s17, 0
    %p106 = por %p104, %p105
    %p107 = scmp.ne.s32.totalorder %s93, %s94
    %p108 = scmp.eq.s32.totalorder %s18, 1
    %p109 = por %p107, %p108
    %p111 = scmp.ne.s32.totalorder %s94, %s110
    %p112 = scmp.eq.s32.totalorder %s18, 0
    %p113 = por %p111, %p112
    %s114 = ssub.s32 %s12, %s19
    %p115 = scmp.eq.s32.totalorder %s114, 0
    %s117 = sadd.s32 %s116, 1
    %s118 = scalar_select %p115, %s116, %s117
    %p121 = pneg %p115
    %p122 = scmp.eq.s32.totalorder %s12, 1
    %p123 = por %p121, %p122
    %p124 = scmp.ne.s32.totalorder %s116, %s119
    %p125 = scmp.eq.s32.totalorder %s12, 0
    %p126 = por %p124, %p125
    %p127 = scmp.ne.s32.totalorder %s116, %s119
    %p128 = scmp.eq.s32.totalorder %s17, 1
    %p129 = por %p127, %p128
    %p130 = scmp.ne.s32.totalorder %s119, %s120
    %p131 = scmp.eq.s32.totalorder %s17, 0
    %p132 = por %p130, %p131
    %p133 = scmp.ne.s32.totalorder %s119, %s120
    %p134 = scmp.eq.s32.totalorder %s18, 1
    %p135 = por %p133, %p134
    %p137 = scmp.ne.s32.totalorder %s120, %s136
    %p138 = scmp.eq.s32.totalorder %s18, 0
    %p139 = por %p137, %p138
    %s140 = ssub.s32 %s12, %s19
    %p141 = scmp.eq.s32.totalorder %s140, 0
    %s143 = sadd.s32 %s142, 1
    %s144 = scalar_select %p141, %s142, %s143
    %p147 = pneg %p141
    %p148 = scmp.eq.s32.totalorder %s12, 1
    %p149 = por %p147, %p148
    %p150 = scmp.ne.s32.totalorder %s142, %s145
    %p151 = scmp.eq.s32.totalorder %s12, 0
    %p152 = por %p150, %p151
    %p153 = scmp.ne.s32.totalorder %s142, %s145
    %p154 = scmp.eq.s32.totalorder %s17, 1
    %p155 = por %p153, %p154
    %p156 = scmp.ne.s32.totalorder %s145, %s146
    %p157 = scmp.eq.s32.totalorder %s17, 0
    %p158 = por %p156, %p157
    %p159 = scmp.ne.s32.totalorder %s145, %s146
    %p160 = scmp.eq.s32.totalorder %s18, 1
    %p161 = por %p159, %p160
    %p163 = scmp.ne.s32.totalorder %s146, %s162
    %p164 = scmp.eq.s32.totalorder %s18, 0
    %p165 = por %p163, %p164
    %p166 = scmp.le.s32.totalorder 1, %s12
    %p167 = scmp.lt.s32.totalorder %s12, 3
    %p168 = pnand %p166, %p167
    %p169 = pneg %p168
    // Predicated region
    $region9: #{local_enhancer_forward.49} parent=5 // pred_check
      _
    $region10: #{local_enhancer_forward.49} parent=5 // pred_check_branch
      %171 = sbr.rel (%p168) target = $region12
    $region11: #{local_enhancer_forward.49} parent=5 // pred_region
      %s172 = ssub.s32 %s12, 1
      // Predicated region
      $region13: #{local_enhancer_forward.49} parent=11 // pred_check
        %p173 = pneg %p59
      $region14: #{local_enhancer_forward.49} parent=11 // pred_check_branch
        %175 = sbr.rel (%p173) target = $region16
      $region15: #{local_enhancer_forward.49} parent=11 // pred_region
        _
      $region16: #{local_enhancer_forward.49} parent=11 // pred_fallthru
        _
      // Predicated region
      $region17: #{local_enhancer_forward.49} parent=11 // pred_check
        %p176 = pneg %p80
      $region18: #{local_enhancer_forward.49} parent=11 // pred_check_branch
        %178 = sbr.rel (%p176) target = $region20
      $region19: #{local_enhancer_forward.49} parent=11 // pred_region
        _
      $region20: #{local_enhancer_forward.49} parent=11 // pred_fallthru
        _
    $region12: #{local_enhancer_forward.49} parent=5 // pred_fallthru
      _
    %p179 = scmp.lt.s32.totalorder %s12, 2
    // Predicated region
    $region21: #{local_enhancer_forward.49} parent=5 // pred_check
      %p180 = pneg %p179
    $region22: #{local_enhancer_forward.49} parent=5 // pred_check_branch
      %182 = sbr.rel (%p180) target = $region24
    $region23: #{local_enhancer_forward.49} parent=5 // pred_region
      // Predicated region
      $region25: #{local_enhancer_forward.49} parent=23 // pred_check
        %p183 = pneg %p32
      $region26: #{local_enhancer_forward.49} parent=23 // pred_check_branch
        %185 = sbr.rel (%p183) target = $region28
      $region27: #{local_enhancer_forward.49} parent=23 // pred_region
        %s186 = smul.u32 32, %s12
        %p187 = scmp.lt.s32.totalorder %s186, 63
        %s188 = scalar_select %p187, %s186, 63
        %s189 = smul.addr %s188, 2
        %s190 = smul.addr %s189, 4
        %s191 = scalar_lea.vmem %s0, %s190
        %s192 = smul.u32 32, %s12
      $region28: #{local_enhancer_forward.49} parent=23 // pred_fallthru
        _
    $region24: #{local_enhancer_forward.49} parent=5 // pred_fallthru
      _
    %p193 = scmp.le.s32.totalorder 1, %s12
    %p194 = scmp.lt.s32.totalorder %s12, 3
    %p195 = pnand %p193, %p194
    %p196 = pneg %p195
    // Predicated region
    $region29: #{local_enhancer_forward.49} parent=5 // pred_check
      _
    $region30: #{local_enhancer_forward.49} parent=5 // pred_check_branch
      %198 = sbr.rel (%p195) target = $region32
    $region31: #{local_enhancer_forward.49} parent=5 // pred_region
      %s199 = ssub.s32 %s12, 1
      %s200 = smul.u32 32, %s17
      %p201 = scmp.lt.s32.totalorder %s200, 63
      %s202 = scalar_select %p201, %s200, 63
      %s203 = smul.addr %s202, 2
      %s204 = smul.addr %s203, 4
      %s205 = scalar_lea.vmem %s0, %s204
      %p206 = pneg %p38
      %p207 = pneg %p35
      %p208 = pneg %p59
      %p209 = pneg %p56
      %p210 = pneg %p80
      %p211 = pneg %p77
      %p212 = pneg %p106
      %p213 = pneg %p103
      %s214 = smul.u32 32, %s17
      %p215 = scmp.lt.s32.totalorder %s214, 63
      %s216 = scalar_select %p215, %s214, 63
      %s217 = smul.addr %s216, 8
      %s218 = scalar_lea.vmem %s3, %s217
      %p219 = pneg %p132
      %p220 = pneg %p129
      %p221 = scmp.lt.s32.totalorder %s17, 1
      %s222 = scalar_select %p221, %s17, 1
      %s223 = scalar_lea.vmem %s4, %s222
      %p224 = pneg %p158
      %p225 = pneg %p155
      %p226 = scmp.lt.s32.totalorder %s17, 1
      %s227 = scalar_select %p226, %s17, 1
      %s228 = scalar_lea.vmem %s5, %s227
      %s229 = smul.u32 32, %s17
      %p230 = scmp.lt.s32.totalorder %s229, 63
      %s231 = scalar_select %p230, %s229, 63
      %s232 = smul.addr %s231, 2
      %s233 = smul.addr %s232, 4
      %s234 = scalar_lea.vmem %s0, %s233
      %s235 = smul.u32 32, %s17
      %s236 = smul.u32 32, %s17
      %p237 = scmp.lt.s32.totalorder %s236, 63
      %s238 = scalar_select %p237, %s236, 63
      %s239 = smul.addr %s238, 8
      %s240 = scalar_lea.vmem %s3, %s239
      %s241 = smul.u32 32, %s17
      %p242 = scmp.lt.s32.totalorder %s17, 1
      %s243 = scalar_select %p242, %s17, 1
      %s244 = scalar_lea.vmem %s4, %s243
      %p245 = scmp.lt.s32.totalorder %s17, 1
      %s246 = scalar_select %p245, %s17, 1
      %s247 = scalar_lea.vmem %s5, %s246
      %v249 = vld [vmem:[%s234] sm:$0xff]
      %v250 = vld [vmem:[%s234 + $0x8] sm:$0xff]
      %v251 = vld [vmem:[%s234 + $0x10] sm:$0xff]
      %v252 = vld [vmem:[%s234 + $0x18] sm:$0xff]
      %v253 = vld [vmem:[%s234 + $0x20] sm:$0xff]
      %v254 = vld [vmem:[%s234 + $0x28] sm:$0xff]
      %v255 = vld [vmem:[%s234 + $0x30] sm:$0xff]
      %v256 = vld [vmem:[%s234 + $0x38] sm:$0xff]
      %v257 = vld [vmem:[%s234 + $0x40] sm:$0xff]
      %v258 = vld [vmem:[%s234 + $0x48] sm:$0xff]
      %v259 = vld [vmem:[%s234 + $0x50] sm:$0xff]
      %v260 = vld [vmem:[%s234 + $0x58] sm:$0xff]
      %v261 = vld [vmem:[%s234 + $0x60] sm:$0xff]
      %v262 = vld [vmem:[%s234 + $0x68] sm:$0xff]
      %v263 = vld [vmem:[%s234 + $0x70] sm:$0xff]
      %v264 = vld [vmem:[%s234 + $0x78] sm:$0xff]
      %v265 = vld [vmem:[%s234 + $0x80] sm:$0xff]
      %v266 = vld [vmem:[%s234 + $0x88] sm:$0xff]
      %v267 = vld [vmem:[%s234 + $0x90] sm:$0xff]
      %v268 = vld [vmem:[%s234 + $0x98] sm:$0xff]
      %v269 = vld [vmem:[%s234 + $0xa0] sm:$0xff]
      %v270 = vld [vmem:[%s234 + $0xa8] sm:$0xff]
      %v271 = vld [vmem:[%s234 + $0xb0] sm:$0xff]
      %v272 = vld [vmem:[%s234 + $0xb8] sm:$0xff]
      %v273 = vld [vmem:[%s234 + $0xc0] sm:$0xff]
      %v274 = vld [vmem:[%s234 + $0xc8] sm:$0xff]
      %v275 = vld [vmem:[%s234 + $0xd0] sm:$0xff]
      %v276 = vld [vmem:[%s234 + $0xd8] sm:$0xff]
      %v277 = vld [vmem:[%s234 + $0xe0] sm:$0xff]
      %v278 = vld [vmem:[%s234 + $0xe8] sm:$0xff]
      %v279 = vld [vmem:[%s234 + $0xf0] sm:$0xff]
      %v280 = vld [vmem:[%s234 + $0xf8] sm:$0xff]
      %v281 = vld [vmem:[%s1] sm:$0xf]
      %v282 = vld [vmem:[%s1 + $0x4] sm:$0xf]
      %v283 = vld [vmem:[%s1 + $0x8] sm:$0xf]
      %v284 = vld [vmem:[%s1 + $0xc] sm:$0xf]
      %v285 = vld [vmem:[%s1 + $0x10] sm:$0xf]
      %v286 = vld [vmem:[%s1 + $0x14] sm:$0xf]
      %v287 = vld [vmem:[%s1 + $0x18] sm:$0xf]
      %v288 = vld [vmem:[%s1 + $0x1c] sm:$0xf]
      %v289 = vld [vmem:[%s1 + $0x20] sm:$0xf]
      %v290 = vld [vmem:[%s1 + $0x24] sm:$0xf]
      %v291 = vld [vmem:[%s1 + $0x28] sm:$0xf]
      %v292 = vld [vmem:[%s1 + $0x2c] sm:$0xf]
      %v293 = vld [vmem:[%s1 + $0x30] sm:$0xf]
      %v294 = vld [vmem:[%s1 + $0x34] sm:$0xf]
      %v295 = vld [vmem:[%s1 + $0x38] sm:$0xf]
      %v296 = vld [vmem:[%s1 + $0x3c] sm:$0xf]
      %v297 = vld [vmem:[%s1 + $0x40] sm:$0xf]
      %v298 = vld [vmem:[%s1 + $0x44] sm:$0xf]
      %v299 = vld [vmem:[%s1 + $0x48] sm:$0x3]
      %v300 = vld [vmem:[%s2] sm:$0x1]
      %v302 = vlaneseq
      %v303 = vshrl.u32 %v302, 7
      %v304 = vsub.s32 0, %v303
      %v305 = vrot.slane %v300, %v304
      %v339 = vunpack.c.l.b16 %v249
      %v340 = vunpack.c.h.b16 %v249
      %v341 = vunpack.c.l.b16 %v250
      %v342 = vunpack.c.h.b16 %v250
      %v343 = vunpack.c.l.b16 %v251
      %v344 = vunpack.c.h.b16 %v251
      %v345 = vunpack.c.l.b16 %v252
      %v346 = vunpack.c.h.b16 %v252
      %v347 = vunpack.c.l.b16 %v253
      %v348 = vunpack.c.h.b16 %v253
      %v349 = vunpack.c.l.b16 %v254
      %v350 = vunpack.c.h.b16 %v254
      %v351 = vunpack.c.l.b16 %v255
      %v352 = vunpack.c.h.b16 %v255
      %v353 = vunpack.c.l.b16 %v256
      %v354 = vunpack.c.h.b16 %v256
      %v355 = vunpack.c.l.b16 %v257
      %v356 = vunpack.c.h.b16 %v257
      %v357 = vunpack.c.l.b16 %v258
      %v358 = vunpack.c.h.b16 %v258
      %v359 = vunpack.c.l.b16 %v259
      %v360 = vunpack.c.h.b16 %v259
      %v361 = vunpack.c.l.b16 %v260
      %v362 = vunpack.c.h.b16 %v260
      %v363 = vunpack.c.l.b16 %v261
      %v364 = vunpack.c.h.b16 %v261
      %v365 = vunpack.c.l.b16 %v262
      %v366 = vunpack.c.h.b16 %v262
      %v367 = vunpack.c.l.b16 %v263
      %v368 = vunpack.c.h.b16 %v263
      %v369 = vunpack.c.l.b16 %v264
      %v370 = vunpack.c.h.b16 %v264
      %v371 = vunpack.c.l.b16 %v265
      %v372 = vunpack.c.h.b16 %v265
      %v373 = vunpack.c.l.b16 %v266
      %v374 = vunpack.c.h.b16 %v266
      %v375 = vunpack.c.l.b16 %v267
      %v376 = vunpack.c.h.b16 %v267
      %v377 = vunpack.c.l.b16 %v268
      %v378 = vunpack.c.h.b16 %v268
      %v379 = vunpack.c.l.b16 %v269
      %v380 = vunpack.c.h.b16 %v269
      %v381 = vunpack.c.l.b16 %v270
      %v382 = vunpack.c.h.b16 %v270
      %v383 = vunpack.c.l.b16 %v271
      %v384 = vunpack.c.h.b16 %v271
      %v385 = vunpack.c.l.b16 %v272
      %v386 = vunpack.c.h.b16 %v272
      %v387 = vunpack.c.l.b16 %v273
      %v388 = vunpack.c.h.b16 %v273
      %v389 = vunpack.c.l.b16 %v274
      %v390 = vunpack.c.h.b16 %v274
      %v391 = vunpack.c.l.b16 %v275
      %v392 = vunpack.c.h.b16 %v275
      %v393 = vunpack.c.l.b16 %v276
      %v394 = vunpack.c.h.b16 %v276
      %v395 = vunpack.c.l.b16 %v277
      %v396 = vunpack.c.h.b16 %v277
      %v397 = vunpack.c.l.b16 %v278
      %v398 = vunpack.c.h.b16 %v278
      %v399 = vunpack.c.l.b16 %v279
      %v400 = vunpack.c.h.b16 %v279
      %v401 = vunpack.c.l.b16 %v280
      %v402 = vunpack.c.h.b16 %v280
      %v403 = vpack.c.b16 %v341, %v339
      %v404 = vpack.c.b16 %v342, %v340
      %v405 = vpack.c.b16 %v345, %v343
      %v406 = vpack.c.b16 %v346, %v344
      %v407 = vpack.c.b16 %v349, %v347
      %v408 = vpack.c.b16 %v350, %v348
      %v409 = vpack.c.b16 %v353, %v351
      %v410 = vpack.c.b16 %v354, %v352
      %v411 = vpack.c.b16 %v357, %v355
      %v412 = vpack.c.b16 %v358, %v356
      %v413 = vpack.c.b16 %v361, %v359
      %v414 = vpack.c.b16 %v362, %v360
      %v415 = vpack.c.b16 %v365, %v363
      %v416 = vpack.c.b16 %v366, %v364
      %v417 = vpack.c.b16 %v369, %v367
      %v418 = vpack.c.b16 %v370, %v368
      %v419 = vpack.c.b16 %v373, %v371
      %v420 = vpack.c.b16 %v374, %v372
      %v421 = vpack.c.b16 %v377, %v375
      %v422 = vpack.c.b16 %v378, %v376
      %v423 = vpack.c.b16 %v381, %v379
      %v424 = vpack.c.b16 %v382, %v380
      %v425 = vpack.c.b16 %v385, %v383
      %v426 = vpack.c.b16 %v386, %v384
      %v427 = vpack.c.b16 %v389, %v387
      %v428 = vpack.c.b16 %v390, %v388
      %v429 = vpack.c.b16 %v393, %v391
      %v430 = vpack.c.b16 %v394, %v392
      %v431 = vpack.c.b16 %v397, %v395
      %v432 = vpack.c.b16 %v398, %v396
      %v433 = vpack.c.b16 %v401, %v399
      %v434 = vpack.c.b16 %v402, %v400
      %v470 = vunpack.c.l.b16 %v281
      %v471 = vunpack.c.l.b16 %v282
      %v472 = vunpack.c.l.b16 %v283
      %v473 = vunpack.c.l.b16 %v284
      %v474 = vunpack.c.l.b16 %v285
      %v475 = vunpack.c.l.b16 %v286
      %v476 = vunpack.c.l.b16 %v287
      %v477 = vunpack.c.l.b16 %v288
      %v478 = vunpack.c.l.b16 %v289
      %v479 = vunpack.c.l.b16 %v290
      %v480 = vunpack.c.l.b16 %v291
      %v481 = vunpack.c.l.b16 %v292
      %v482 = vunpack.c.l.b16 %v293
      %v483 = vunpack.c.l.b16 %v294
      %v484 = vunpack.c.l.b16 %v295
      %v485 = vunpack.c.l.b16 %v296
      %v486 = vunpack.c.l.b16 %v297
      %v487 = vunpack.c.l.b16 %v298
      %v488 = vunpack.c.l.b16 %v299
      %v489 = vpack.c.b16 %v471, %v470
      %v490 = vpack.c.b16 %v473, %v472
      %v491 = vpack.c.b16 %v475, %v474
      %v492 = vpack.c.b16 %v477, %v476
      %v493 = vpack.c.b16 %v479, %v478
      %v494 = vpack.c.b16 %v481, %v480
      %v495 = vpack.c.b16 %v483, %v482
      %v496 = vpack.c.b16 %v485, %v484
      %v497 = vpack.c.b16 %v487, %v486
      %v498 = vpack.c.b16 %v488, %v488
      %vm508 = vcmask 154624
      %v510 = vsel %vm508, %v404, 0
      %v513 = vsel %vm508, %v406, 0
      %v516 = vsel %vm508, %v408, 0
      %v519 = vsel %vm508, %v410, 0
      %v522 = vsel %vm508, %v412, 0
      %v525 = vsel %vm508, %v414, 0
      %v528 = vsel %vm508, %v416, 0
      %v531 = vsel %vm508, %v418, 0
      %v534 = vsel %vm508, %v420, 0
      %v537 = vsel %vm508, %v422, 0
      %v540 = vsel %vm508, %v424, 0
      %v543 = vsel %vm508, %v426, 0
      %v546 = vsel %vm508, %v428, 0
      %v549 = vsel %vm508, %v430, 0
      %v552 = vsel %vm508, %v432, 0
      %v555 = vsel %vm508, %v434, 0
      %vm557 = vcmask 1040384
      %vm558 = vcmask 1041408
      %v559 = vsel %vm557, 4294967295, 65535
      %v560 = vsel %vm558, %v559, 0
      %v562 = vand.u32 %v498, %v560
      %564 = vmatprep.subr.bf16.mxu0 0
      %565 = vmatpush1.bf16.msra.mxu0 %v489
      %566 = vmatprep.subr.bf16.mxu0 0
      %567 = vmatpush1.bf16.msra.mxu0 %v490
      %568 = vmatprep.subr.bf16.mxu0 0
      %569 = vmatpush1.bf16.msra.mxu0 %v491
      %570 = vmatprep.subr.bf16.mxu0 0
      %571 = vmatpush1.bf16.msra.mxu0 %v492
      %572 = vmatprep.subr.bf16.mxu0 0
      %573 = vmatpush1.bf16.msra.mxu0 %v493
      %574 = vmatprep.subr.bf16.mxu0 0
      %575 = vmatpush1.bf16.msra.mxu0 %v494
      %576 = vmatprep.subr.bf16.mxu0 0
      %577 = vmatpush1.bf16.msra.mxu0 %v495
      %578 = vmatprep.subr.bf16.mxu0 0
      %579 = vmatpush1.bf16.msra.mxu0 %v496
      %580 = vmatprep.subr.bf16.mxu0 0
      %581 = vmatpush1.bf16.msra.mxu0 %v497
      %582 = vmatprep.subr.bf16.mxu0 0
      %583 = vmatpush1.bf16.msra.mxu0 %v562
      %584 = vmatprep.subr.bf16.mxu0 0
      %585 = vmatpush1.bf16.msra.mxu0 0
      %586 = vmatprep.subr.bf16.mxu0 0
      %587 = vmatpush1.bf16.msra.mxu0 0
      %588 = vmatprep.subr.bf16.mxu0 0
      %589 = vmatpush1.bf16.msra.mxu0 0
      %590 = vmatprep.subr.bf16.mxu0 0
      %591 = vmatpush1.bf16.msra.mxu0 0
      %592 = vmatprep.subr.bf16.mxu0 0
      %593 = vmatpush1.bf16.msra.mxu0 0
      %594 = vmatprep.subr.bf16.mxu0 0
      %595 = vmatpush1.bf16.msra.mxu0 0
      %596 = vmatprep.mubr.bf16.mxu0 %v510
      %597 = vmatmul.mubr.bf16.gmra.mrb[0].mxu0 %v403
      %v598 = vpop.f32.mrb[0].mxu0
      %v599 = vadd.f32 %v305, %v598
      %v600 = vpop.f32.mrb[0].mxu0
      %v601 = vpop.f32.mrb[0].mxu0
      %v602 = vadd.f32 %v305, %v601
      %v603 = vpop.f32.mrb[0].mxu0
      %604 = vmatprep.mubr.bf16.mxu0 %v513
      %605 = vmatmul.mubr.bf16.gmra.mrb[0].mxu0 %v405
      %v606 = vpop.f32.mrb[0].mxu0
      %v607 = vadd.f32 %v305, %v606
      %v608 = vpop.f32.mrb[0].mxu0
      %v609 = vpop.f32.mrb[0].mxu0
      %v610 = vadd.f32 %v305, %v609
      %v611 = vpop.f32.mrb[0].mxu0
      %612 = vmatprep.mubr.bf16.mxu0 %v516
      %613 = vmatmul.mubr.bf16.gmra.mrb[0].mxu0 %v407
      %v614 = vpop.f32.mrb[0].mxu0
      %v615 = vadd.f32 %v305, %v614
      %v616 = vpop.f32.mrb[0].mxu0
      %v617 = vpop.f32.mrb[0].mxu0
      %v618 = vadd.f32 %v305, %v617
      %v619 = vpop.f32.mrb[0].mxu0
      %620 = vmatprep.mubr.bf16.mxu0 %v519
      %621 = vmatmul.mubr.bf16.gmra.mrb[0].mxu0 %v409
      %v622 = vpop.f32.mrb[0].mxu0
      %v623 = vadd.f32 %v305, %v622
      %v624 = vpop.f32.mrb[0].mxu0
      %v625 = vpop.f32.mrb[0].mxu0
      %v626 = vadd.f32 %v305, %v625
      %v627 = vpop.f32.mrb[0].mxu0
      %628 = vmatprep.mubr.bf16.mxu0 %v522
      %629 = vmatmul.mubr.bf16.gmra.mrb[0].mxu0 %v411
      %v630 = vpop.f32.mrb[0].mxu0
      %v631 = vadd.f32 %v305, %v630
      %v632 = vpop.f32.mrb[0].mxu0
      %v633 = vpop.f32.mrb[0].mxu0
      %v634 = vadd.f32 %v305, %v633
      %v635 = vpop.f32.mrb[0].mxu0
      %636 = vmatprep.mubr.bf16.mxu0 %v525
      %637 = vmatmul.mubr.bf16.gmra.mrb[0].mxu0 %v413
      %v638 = vpop.f32.mrb[0].mxu0
      %v639 = vadd.f32 %v305, %v638
      %v640 = vpop.f32.mrb[0].mxu0
      %v641 = vpop.f32.mrb[0].mxu0
      %v642 = vadd.f32 %v305, %v641
      %v643 = vpop.f32.mrb[0].mxu0
      %644 = vmatprep.mubr.bf16.mxu0 %v528
      %645 = vmatmul.mubr.bf16.gmra.mrb[0].mxu0 %v415
      %v646 = vpop.f32.mrb[0].mxu0
      %v647 = vadd.f32 %v305, %v646
      %v648 = vpop.f32.mrb[0].mxu0
      %v649 = vpop.f32.mrb[0].mxu0
      %v650 = vadd.f32 %v305, %v649
      %v651 = vpop.f32.mrb[0].mxu0
      %652 = vmatprep.mubr.bf16.mxu0 %v531
      %653 = vmatmul.mubr.bf16.gmra.mrb[0].mxu0 %v417
      %v654 = vpop.f32.mrb[0].mxu0
      %v655 = vadd.f32 %v305, %v654
      %v656 = vpop.f32.mrb[0].mxu0
      %v657 = vpop.f32.mrb[0].mxu0
      %v658 = vadd.f32 %v305, %v657
      %v659 = vpop.f32.mrb[0].mxu0
      %660 = vmatprep.mubr.bf16.mxu0 %v534
      %661 = vmatmul.mubr.bf16.gmra.mrb[0].mxu0 %v419
      %v662 = vpop.f32.mrb[0].mxu0
      %v663 = vadd.f32 %v305, %v662
      %v664 = vpop.f32.mrb[0].mxu0
      %v665 = vpop.f32.mrb[0].mxu0
      %v666 = vadd.f32 %v305, %v665
      %v667 = vpop.f32.mrb[0].mxu0
      %668 = vmatprep.mubr.bf16.mxu0 %v537
      %669 = vmatmul.mubr.bf16.gmra.mrb[0].mxu0 %v421
      %v670 = vpop.f32.mrb[0].mxu0
      %v671 = vadd.f32 %v305, %v670
      %v672 = vpop.f32.mrb[0].mxu0
      %v673 = vpop.f32.mrb[0].mxu0
      %v674 = vadd.f32 %v305, %v673
      %v675 = vpop.f32.mrb[0].mxu0
      %676 = vmatprep.mubr.bf16.mxu0 %v540
      %677 = vmatmul.mubr.bf16.gmra.mrb[0].mxu0 %v423
      %v678 = vpop.f32.mrb[0].mxu0
      %v679 = vadd.f32 %v305, %v678
      %v680 = vpop.f32.mrb[0].mxu0
      %v681 = vpop.f32.mrb[0].mxu0
      %v682 = vadd.f32 %v305, %v681
      %v683 = vpop.f32.mrb[0].mxu0
      %684 = vmatprep.mubr.bf16.mxu0 %v543
      %685 = vmatmul.mubr.bf16.gmra.mrb[0].mxu0 %v425
      %v686 = vpop.f32.mrb[0].mxu0
      %v687 = vadd.f32 %v305, %v686
      %v688 = vpop.f32.mrb[0].mxu0
      %v689 = vpop.f32.mrb[0].mxu0
      %v690 = vadd.f32 %v305, %v689
      %v691 = vpop.f32.mrb[0].mxu0
      %692 = vmatprep.mubr.bf16.mxu0 %v546
      %693 = vmatmul.mubr.bf16.gmra.mrb[0].mxu0 %v427
      %v694 = vpop.f32.mrb[0].mxu0
      %v695 = vadd.f32 %v305, %v694
      %v696 = vpop.f32.mrb[0].mxu0
      %v697 = vpop.f32.mrb[0].mxu0
      %v698 = vadd.f32 %v305, %v697
      %v699 = vpop.f32.mrb[0].mxu0
      %700 = vmatprep.mubr.bf16.mxu0 %v549
      %701 = vmatmul.mubr.bf16.gmra.mrb[0].mxu0 %v429
      %v702 = vpop.f32.mrb[0].mxu0
      %v703 = vadd.f32 %v305, %v702
      %v704 = vpop.f32.mrb[0].mxu0
      %v705 = vpop.f32.mrb[0].mxu0
      %v706 = vadd.f32 %v305, %v705
      %v707 = vpop.f32.mrb[0].mxu0
      %708 = vmatprep.mubr.bf16.mxu0 %v552
      %709 = vmatmul.mubr.bf16.gmra.mrb[0].mxu0 %v431
      %v710 = vpop.f32.mrb[0].mxu0
      %v711 = vadd.f32 %v305, %v710
      %v712 = vpop.f32.mrb[0].mxu0
      %v713 = vpop.f32.mrb[0].mxu0
      %v714 = vadd.f32 %v305, %v713
      %v715 = vpop.f32.mrb[0].mxu0
      %716 = vmatprep.mubr.bf16.mxu0 %v555
      %717 = vmatmul.mubr.bf16.gmra.mrb[0].mxu0 %v433
      %v718 = vpop.f32.mrb[0].mxu0
      %v719 = vadd.f32 %v305, %v718
      %v720 = vpop.f32.mrb[0].mxu0
      %v721 = vpop.f32.mrb[0].mxu0
      %v722 = vadd.f32 %v305, %v721
      %v723 = vpop.f32.mrb[0].mxu0
      %724 = vdwg.mxu0
      %vm725 = vcmask 64512
      %726 = vst.msk [vmem:[%s240] sm:$0xff] %vm725, %v599
      %727 = vst.msk [vmem:[%s240 + $0x8] sm:$0xff] %vm725, %v602
      %728 = vst.msk [vmem:[%s240 + $0x10] sm:$0xff] %vm725, %v607
      %729 = vst.msk [vmem:[%s240 + $0x18] sm:$0xff] %vm725, %v610
      %730 = vst.msk [vmem:[%s240 + $0x20] sm:$0xff] %vm725, %v615
      %731 = vst.msk [vmem:[%s240 + $0x28] sm:$0xff] %vm725, %v618
      %732 = vst.msk [vmem:[%s240 + $0x30] sm:$0xff] %vm725, %v623
      %733 = vst.msk [vmem:[%s240 + $0x38] sm:$0xff] %vm725, %v626
      %734 = vst.msk [vmem:[%s240 + $0x40] sm:$0xff] %vm725, %v631
      %735 = vst.msk [vmem:[%s240 + $0x48] sm:$0xff] %vm725, %v634
      %736 = vst.msk [vmem:[%s240 + $0x50] sm:$0xff] %vm725, %v639
      %737 = vst.msk [vmem:[%s240 + $0x58] sm:$0xff] %vm725, %v642
      %738 = vst.msk [vmem:[%s240 + $0x60] sm:$0xff] %vm725, %v647
      %739 = vst.msk [vmem:[%s240 + $0x68] sm:$0xff] %vm725, %v650
      %740 = vst.msk [vmem:[%s240 + $0x70] sm:$0xff] %vm725, %v655
      %741 = vst.msk [vmem:[%s240 + $0x78] sm:$0xff] %vm725, %v658
      %742 = vst.msk [vmem:[%s240 + $0x80] sm:$0xff] %vm725, %v663
      %743 = vst.msk [vmem:[%s240 + $0x88] sm:$0xff] %vm725, %v666
      %744 = vst.msk [vmem:[%s240 + $0x90] sm:$0xff] %vm725, %v671
      %745 = vst.msk [vmem:[%s240 + $0x98] sm:$0xff] %vm725, %v674
      %746 = vst.msk [vmem:[%s240 + $0xa0] sm:$0xff] %vm725, %v679
      %747 = vst.msk [vmem:[%s240 + $0xa8] sm:$0xff] %vm725, %v682
      %748 = vst.msk [vmem:[%s240 + $0xb0] sm:$0xff] %vm725, %v687
      %749 = vst.msk [vmem:[%s240 + $0xb8] sm:$0xff] %vm725, %v690
      %750 = vst.msk [vmem:[%s240 + $0xc0] sm:$0xff] %vm725, %v695
      %751 = vst.msk [vmem:[%s240 + $0xc8] sm:$0xff] %vm725, %v698
      %752 = vst.msk [vmem:[%s240 + $0xd0] sm:$0xff] %vm725, %v703
      %753 = vst.msk [vmem:[%s240 + $0xd8] sm:$0xff] %vm725, %v706
      %754 = vst.msk [vmem:[%s240 + $0xe0] sm:$0xff] %vm725, %v711
      %755 = vst.msk [vmem:[%s240 + $0xe8] sm:$0xff] %vm725, %v714
      %756 = vst.msk [vmem:[%s240 + $0xf0] sm:$0xff] %vm725, %v719
      %757 = vst.msk [vmem:[%s240 + $0xf8] sm:$0xff] %vm725, %v722
      %s758 = smul.u32 %s17, 256
      %v759 = vlaneseq
      %v760 = vshrl.u32 %v759, 7
      %v761 = vadd.s32 %v760, 8
      %v762 = vadd.s32 %v760, 16
      %v763 = vadd.s32 %v760, 24
      %v764 = vadd.s32 %v760, 32
      %v765 = vadd.s32 %v760, 40
      %v766 = vadd.s32 %v760, 48
      %v767 = vadd.s32 %v760, 56
      %v768 = vadd.s32 %v760, 64
      %v769 = vadd.s32 %v760, 72
      %v770 = vadd.s32 %v760, 80
      %v771 = vadd.s32 %v760, 88
      %v772 = vadd.s32 %v760, 96
      %v773 = vadd.s32 %v760, 104
      %v774 = vadd.s32 %v760, 112
      %v775 = vadd.s32 %v760, 120
      %v776 = vadd.s32 %v760, 128
      %v777 = vadd.s32 %v760, 136
      %v778 = vadd.s32 %v760, 144
      %v779 = vadd.s32 %v760, 152
      %v780 = vadd.s32 %v760, 160
      %v781 = vadd.s32 %v760, 168
      %v782 = vadd.s32 %v760, 176
      %v783 = vadd.s32 %v760, 184
      %v784 = vadd.s32 %v760, 192
      %v785 = vadd.s32 %v760, 200
      %v786 = vadd.s32 %v760, 208
      %v787 = vadd.s32 %v760, 216
      %v788 = vadd.s32 %v760, 224
      %v789 = vadd.s32 %v760, 232
      %v790 = vadd.s32 %v760, 240
      %v791 = vadd.s32 %v760, 248
      %v792 = vstv %s758
      %v793 = vadd.s32 %v792, %v760
      %v794 = vadd.s32 %v792, %v761
      %v795 = vadd.s32 %v792, %v762
      %v796 = vadd.s32 %v792, %v763
      %v797 = vadd.s32 %v792, %v764
      %v798 = vadd.s32 %v792, %v765
      %v799 = vadd.s32 %v792, %v766
      %v800 = vadd.s32 %v792, %v767
      %v801 = vadd.s32 %v792, %v768
      %v802 = vadd.s32 %v792, %v769
      %v803 = vadd.s32 %v792, %v770
      %v804 = vadd.s32 %v792, %v771
      %v805 = vadd.s32 %v792, %v772
      %v806 = vadd.s32 %v792, %v773
      %v807 = vadd.s32 %v792, %v774
      %v808 = vadd.s32 %v792, %v775
      %v809 = vadd.s32 %v792, %v776
      %v810 = vadd.s32 %v792, %v777
      %v811 = vadd.s32 %v792, %v778
      %v812 = vadd.s32 %v792, %v779
      %v813 = vadd.s32 %v792, %v780
      %v814 = vadd.s32 %v792, %v781
      %v815 = vadd.s32 %v792, %v782
      %v816 = vadd.s32 %v792, %v783
      %v817 = vadd.s32 %v792, %v784
      %v818 = vadd.s32 %v792, %v785
      %v819 = vadd.s32 %v792, %v786
      %v820 = vadd.s32 %v792, %v787
      %v821 = vadd.s32 %v792, %v788
      %v822 = vadd.s32 %v792, %v789
      %v823 = vadd.s32 %v792, %v790
      %v824 = vadd.s32 %v792, %v791
      %vm825 = vcmp.lt.s32.totalorder %v793, 512
      %vm826 = vcmp.lt.s32.totalorder %v794, 512
      %vm827 = vcmp.lt.s32.totalorder %v795, 512
      %vm828 = vcmp.lt.s32.totalorder %v796, 512
      %vm829 = vcmp.lt.s32.totalorder %v797, 512
      %vm830 = vcmp.lt.s32.totalorder %v798, 512
      %vm831 = vcmp.lt.s32.totalorder %v799, 512
      %vm832 = vcmp.lt.s32.totalorder %v800, 512
      %vm833 = vcmp.lt.s32.totalorder %v801, 512
      %vm834 = vcmp.lt.s32.totalorder %v802, 512
      %vm835 = vcmp.lt.s32.totalorder %v803, 512
      %vm836 = vcmp.lt.s32.totalorder %v804, 512
      %vm837 = vcmp.lt.s32.totalorder %v805, 512
      %vm838 = vcmp.lt.s32.totalorder %v806, 512
      %vm839 = vcmp.lt.s32.totalorder %v807, 512
      %vm840 = vcmp.lt.s32.totalorder %v808, 512
      %vm841 = vcmp.lt.s32.totalorder %v809, 512
      %vm842 = vcmp.lt.s32.totalorder %v810, 512
      %vm843 = vcmp.lt.s32.totalorder %v811, 512
      %vm844 = vcmp.lt.s32.totalorder %v812, 512
      %vm845 = vcmp.lt.s32.totalorder %v813, 512
      %vm846 = vcmp.lt.s32.totalorder %v814, 512
      %vm847 = vcmp.lt.s32.totalorder %v815, 512
      %vm848 = vcmp.lt.s32.totalorder %v816, 512
      %vm849 = vcmp.lt.s32.totalorder %v817, 512
      %vm850 = vcmp.lt.s32.totalorder %v818, 512
      %vm851 = vcmp.lt.s32.totalorder %v819, 512
      %vm852 = vcmp.lt.s32.totalorder %v820, 512
      %vm853 = vcmp.lt.s32.totalorder %v821, 512
      %vm854 = vcmp.lt.s32.totalorder %v822, 512
      %vm855 = vcmp.lt.s32.totalorder %v823, 512
      %vm856 = vcmp.lt.s32.totalorder %v824, 512
      %v857 = vsel %vm825, 1, 0
      %v858 = vsel %vm826, 1, 0
      %v859 = vsel %vm827, 1, 0
      %v860 = vsel %vm828, 1, 0
      %v861 = vsel %vm829, 1, 0
      %v862 = vsel %vm830, 1, 0
      %v863 = vsel %vm831, 1, 0
      %v864 = vsel %vm832, 1, 0
      %v865 = vsel %vm833, 1, 0
      %v866 = vsel %vm834, 1, 0
      %v867 = vsel %vm835, 1, 0
      %v868 = vsel %vm836, 1, 0
      %v869 = vsel %vm837, 1, 0
      %v870 = vsel %vm838, 1, 0
      %v871 = vsel %vm839, 1, 0
      %v872 = vsel %vm840, 1, 0
      %v873 = vsel %vm841, 1, 0
      %v874 = vsel %vm842, 1, 0
      %v875 = vsel %vm843, 1, 0
      %v876 = vsel %vm844, 1, 0
      %v877 = vsel %vm845, 1, 0
      %v878 = vsel %vm846, 1, 0
      %v879 = vsel %vm847, 1, 0
      %v880 = vsel %vm848, 1, 0
      %v881 = vsel %vm849, 1, 0
      %v882 = vsel %vm850, 1, 0
      %v883 = vsel %vm851, 1, 0
      %v884 = vsel %vm852, 1, 0
      %v885 = vsel %vm853, 1, 0
      %v886 = vsel %vm854, 1, 0
      %v887 = vsel %vm855, 1, 0
      %v888 = vsel %vm856, 1, 0
      %v889 = vcvt.s32.f32 %v857
      %v890 = vcvt.s32.f32 %v858
      %v891 = vcvt.s32.f32 %v859
      %v892 = vcvt.s32.f32 %v860
      %v893 = vcvt.s32.f32 %v861
      %v894 = vcvt.s32.f32 %v862
      %v895 = vcvt.s32.f32 %v863
      %v896 = vcvt.s32.f32 %v864
      %v897 = vcvt.s32.f32 %v865
      %v898 = vcvt.s32.f32 %v866
      %v899 = vcvt.s32.f32 %v867
      %v900 = vcvt.s32.f32 %v868
      %v901 = vcvt.s32.f32 %v869
      %v902 = vcvt.s32.f32 %v870
      %v903 = vcvt.s32.f32 %v871
      %v904 = vcvt.s32.f32 %v872
      %v905 = vcvt.s32.f32 %v873
      %v906 = vcvt.s32.f32 %v874
      %v907 = vcvt.s32.f32 %v875
      %v908 = vcvt.s32.f32 %v876
      %v909 = vcvt.s32.f32 %v877
      %v910 = vcvt.s32.f32 %v878
      %v911 = vcvt.s32.f32 %v879
      %v912 = vcvt.s32.f32 %v880
      %v913 = vcvt.s32.f32 %v881
      %v914 = vcvt.s32.f32 %v882
      %v915 = vcvt.s32.f32 %v883
      %v916 = vcvt.s32.f32 %v884
      %v917 = vcvt.s32.f32 %v885
      %v918 = vcvt.s32.f32 %v886
      %v919 = vcvt.s32.f32 %v887
      %v920 = vcvt.s32.f32 %v888
      %v921 = vmul.f32 %v599, %v889
      %v922 = vmul.f32 %v602, %v890
      %v923 = vmul.f32 %v607, %v891
      %v924 = vmul.f32 %v610, %v892
      %v925 = vmul.f32 %v615, %v893
      %v926 = vmul.f32 %v618, %v894
      %v927 = vmul.f32 %v623, %v895
      %v928 = vmul.f32 %v626, %v896
      %v929 = vmul.f32 %v631, %v897
      %v930 = vmul.f32 %v634, %v898
      %v931 = vmul.f32 %v639, %v899
      %v932 = vmul.f32 %v642, %v900
      %v933 = vmul.f32 %v647, %v901
      %v934 = vmul.f32 %v650, %v902
      %v935 = vmul.f32 %v655, %v903
      %v936 = vmul.f32 %v658, %v904
      %v937 = vmul.f32 %v663, %v905
      %v938 = vmul.f32 %v666, %v906
      %v939 = vmul.f32 %v671, %v907
      %v940 = vmul.f32 %v674, %v908
      %v941 = vmul.f32 %v679, %v909
      %v942 = vmul.f32 %v682, %v910
      %v943 = vmul.f32 %v687, %v911
      %v944 = vmul.f32 %v690, %v912
      %v945 = vmul.f32 %v695, %v913
      %v946 = vmul.f32 %v698, %v914
      %v947 = vmul.f32 %v703, %v915
      %v948 = vmul.f32 %v706, %v916
      %v949 = vmul.f32 %v711, %v917
      %v950 = vmul.f32 %v714, %v918
      %v951 = vmul.f32 %v719, %v919
      %v952 = vmul.f32 %v722, %v920
      %v953 = vsel %vm725, %v921, 0.0
      %v954 = vsel %vm725, %v922, 0.0
      %v955 = vadd.f32 %v953, %v954
      %v956 = vsel %vm725, %v923, 0.0
      %v957 = vadd.f32 %v955, %v956
      %v958 = vsel %vm725, %v924, 0.0
      %v959 = vadd.f32 %v957, %v958
      %v960 = vsel %vm725, %v925, 0.0
      %v961 = vadd.f32 %v959, %v960
      %v962 = vsel %vm725, %v926, 0.0
      %v963 = vadd.f32 %v961, %v962
      %v964 = vsel %vm725, %v927, 0.0
      %v965 = vadd.f32 %v963, %v964
      %v966 = vsel %vm725, %v928, 0.0
      %v967 = vadd.f32 %v965, %v966
      %v968 = vsel %vm725, %v929, 0.0
      %v969 = vadd.f32 %v967, %v968
      %v970 = vsel %vm725, %v930, 0.0
      %v971 = vadd.f32 %v969, %v970
      %v972 = vsel %vm725, %v931, 0.0
      %v973 = vadd.f32 %v971, %v972
      %v974 = vsel %vm725, %v932, 0.0
      %v975 = vadd.f32 %v973, %v974
      %v976 = vsel %vm725, %v933, 0.0
      %v977 = vadd.f32 %v975, %v976
      %v978 = vsel %vm725, %v934, 0.0
      %v979 = vadd.f32 %v977, %v978
      %v980 = vsel %vm725, %v935, 0.0
      %v981 = vadd.f32 %v979, %v980
      %v982 = vsel %vm725, %v936, 0.0
      %v983 = vadd.f32 %v981, %v982
      %v984 = vsel %vm725, %v937, 0.0
      %v985 = vadd.f32 %v983, %v984
      %v986 = vsel %vm725, %v938, 0.0
      %v987 = vadd.f32 %v985, %v986
      %v988 = vsel %vm725, %v939, 0.0
      %v989 = vadd.f32 %v987, %v988
      %v990 = vsel %vm725, %v940, 0.0
      %v991 = vadd.f32 %v989, %v990
      %v992 = vsel %vm725, %v941, 0.0
      %v993 = vadd.f32 %v991, %v992
      %v994 = vsel %vm725, %v942, 0.0
      %v995 = vadd.f32 %v993, %v994
      %v996 = vsel %vm725, %v943, 0.0
      %v997 = vadd.f32 %v995, %v996
      %v998 = vsel %vm725, %v944, 0.0
      %v999 = vadd.f32 %v997, %v998
      %v1000 = vsel %vm725, %v945, 0.0
      %v1001 = vadd.f32 %v999, %v1000
      %v1002 = vsel %vm725, %v946, 0.0
      %v1003 = vadd.f32 %v1001, %v1002
      %v1004 = vsel %vm725, %v947, 0.0
      %v1005 = vadd.f32 %v1003, %v1004
      %v1006 = vsel %vm725, %v948, 0.0
      %v1007 = vadd.f32 %v1005, %v1006
      %v1008 = vsel %vm725, %v949, 0.0
      %v1009 = vadd.f32 %v1007, %v1008
      %v1010 = vsel %vm725, %v950, 0.0
      %v1011 = vadd.f32 %v1009, %v1010
      %v1012 = vsel %vm725, %v951, 0.0
      %v1013 = vadd.f32 %v1011, %v1012
      %v1014 = vsel %vm725, %v952, 0.0
      %v1015 = vadd.f32 %v1013, %v1014
      %v1016 = vrot.slane %v1015, 4
      %v1017 = vadd.f32 %v1015, %v1016
      %v1018 = vrot.slane %v1017, 2
      %v1019 = vadd.f32 %v1017, %v1018
      %v1020 = vrot.slane %v1019, 1
      %v1021 = vadd.f32 %v1019, %v1020
      %vm1022 = vcmask 57344
      %1023 = vst.msk [vmem:[%s244] sm:$0x1] %vm1022, %v1021
      %v1024 = vmul.f32 %v921, %v599
      %v1025 = vmul.f32 %v922, %v602
      %v1026 = vmul.f32 %v923, %v607
      %v1027 = vmul.f32 %v924, %v610
      %v1028 = vmul.f32 %v925, %v615
      %v1029 = vmul.f32 %v926, %v618
      %v1030 = vmul.f32 %v927, %v623
      %v1031 = vmul.f32 %v928, %v626
      %v1032 = vmul.f32 %v929, %v631
      %v1033 = vmul.f32 %v930, %v634
      %v1034 = vmul.f32 %v931, %v639
      %v1035 = vmul.f32 %v932, %v642
      %v1036 = vmul.f32 %v933, %v647
      %v1037 = vmul.f32 %v934, %v650
      %v1038 = vmul.f32 %v935, %v655
      %v1039 = vmul.f32 %v936, %v658
      %v1040 = vmul.f32 %v937, %v663
      %v1041 = vmul.f32 %v938, %v666
      %v1042 = vmul.f32 %v939, %v671
      %v1043 = vmul.f32 %v940, %v674
      %v1044 = vmul.f32 %v941, %v679
      %v1045 = vmul.f32 %v942, %v682
      %v1046 = vmul.f32 %v943, %v687
      %v1047 = vmul.f32 %v944, %v690
      %v1048 = vmul.f32 %v945, %v695
      %v1049 = vmul.f32 %v946, %v698
      %v1050 = vmul.f32 %v947, %v703
      %v1051 = vmul.f32 %v948, %v706
      %v1052 = vmul.f32 %v949, %v711
      %v1053 = vmul.f32 %v950, %v714
      %v1054 = vmul.f32 %v951, %v719
      %v1055 = vmul.f32 %v952, %v722
      %v1056 = vsel %vm725, %v1024, 0.0
      %v1057 = vsel %vm725, %v1025, 0.0
      %v1058 = vadd.f32 %v1056, %v1057
      %v1059 = vsel %vm725, %v1026, 0.0
      %v1060 = vadd.f32 %v1058, %v1059
      %v1061 = vsel %vm725, %v1027, 0.0
      %v1062 = vadd.f32 %v1060, %v1061
      %v1063 = vsel %vm725, %v1028, 0.0
      %v1064 = vadd.f32 %v1062, %v1063
      %v1065 = vsel %vm725, %v1029, 0.0
      %v1066 = vadd.f32 %v1064, %v1065
      %v1067 = vsel %vm725, %v1030, 0.0
      %v1068 = vadd.f32 %v1066, %v1067
      %v1069 = vsel %vm725, %v1031, 0.0
      %v1070 = vadd.f32 %v1068, %v1069
      %v1071 = vsel %vm725, %v1032, 0.0
      %v1072 = vadd.f32 %v1070, %v1071
      %v1073 = vsel %vm725, %v1033, 0.0
      %v1074 = vadd.f32 %v1072, %v1073
      %v1075 = vsel %vm725, %v1034, 0.0
      %v1076 = vadd.f32 %v1074, %v1075
      %v1077 = vsel %vm725, %v1035, 0.0
      %v1078 = vadd.f32 %v1076, %v1077
      %v1079 = vsel %vm725, %v1036, 0.0
      %v1080 = vadd.f32 %v1078, %v1079
      %v1081 = vsel %vm725, %v1037, 0.0
      %v1082 = vadd.f32 %v1080, %v1081
      %v1083 = vsel %vm725, %v1038, 0.0
      %v1084 = vadd.f32 %v1082, %v1083
      %v1085 = vsel %vm725, %v1039, 0.0
      %v1086 = vadd.f32 %v1084, %v1085
      %v1087 = vsel %vm725, %v1040, 0.0
      %v1088 = vadd.f32 %v1086, %v1087
      %v1089 = vsel %vm725, %v1041, 0.0
      %v1090 = vadd.f32 %v1088, %v1089
      %v1091 = vsel %vm725, %v1042, 0.0
      %v1092 = vadd.f32 %v1090, %v1091
      %v1093 = vsel %vm725, %v1043, 0.0
      %v1094 = vadd.f32 %v1092, %v1093
      %v1095 = vsel %vm725, %v1044, 0.0
      %v1096 = vadd.f32 %v1094, %v1095
      %v1097 = vsel %vm725, %v1045, 0.0
      %v1098 = vadd.f32 %v1096, %v1097
      %v1099 = vsel %vm725, %v1046, 0.0
      %v1100 = vadd.f32 %v1098, %v1099
      %v1101 = vsel %vm725, %v1047, 0.0
      %v1102 = vadd.f32 %v1100, %v1101
      %v1103 = vsel %vm725, %v1048, 0.0
      %v1104 = vadd.f32 %v1102, %v1103
      %v1105 = vsel %vm725, %v1049, 0.0
      %v1106 = vadd.f32 %v1104, %v1105
      %v1107 = vsel %vm725, %v1050, 0.0
      %v1108 = vadd.f32 %v1106, %v1107
      %v1109 = vsel %vm725, %v1051, 0.0
      %v1110 = vadd.f32 %v1108, %v1109
      %v1111 = vsel %vm725, %v1052, 0.0
      %v1112 = vadd.f32 %v1110, %v1111
      %v1113 = vsel %vm725, %v1053, 0.0
      %v1114 = vadd.f32 %v1112, %v1113
      %v1115 = vsel %vm725, %v1054, 0.0
      %v1116 = vadd.f32 %v1114, %v1115
      %v1117 = vsel %vm725, %v1055, 0.0
      %v1118 = vadd.f32 %v1116, %v1117
      %v1119 = vrot.slane %v1118, 4
      %v1120 = vadd.f32 %v1118, %v1119
      %v1121 = vrot.slane %v1120, 2
      %v1122 = vadd.f32 %v1120, %v1121
      %v1123 = vrot.slane %v1122, 1
      %v1124 = vadd.f32 %v1122, %v1123
      %1125 = vst.msk [vmem:[%s247] sm:$0x1] %vm1022, %v1124
      %s1126 = smul.u32 32, %s17
      %p1127 = scmp.lt.s32.totalorder %s1126, 63
      %s1128 = scalar_select %p1127, %s1126, 63
      %s1129 = smul.addr %s1128, 8
      %s1130 = scalar_lea.vmem %s3, %s1129
      %p1131 = scmp.lt.s32.totalorder %s17, 1
      %s1132 = scalar_select %p1131, %s17, 1
      %s1133 = scalar_lea.vmem %s4, %s1132
      %p1134 = scmp.lt.s32.totalorder %s17, 1
      %s1135 = scalar_select %p1134, %s17, 1
      %s1136 = scalar_lea.vmem %s5, %s1135
      // Predicated region
      $region33: #{local_enhancer_forward.49} parent=31 // pred_check
        %p1137 = pneg %p103
      $region34: #{local_enhancer_forward.49} parent=31 // pred_check_branch
        %1139 = sbr.rel (%p1137) target = $region36
      $region35: #{local_enhancer_forward.49} parent=31 // pred_region
        %s1140 = smul.u32 32, %s17
      $region36: #{local_enhancer_forward.49} parent=31 // pred_fallthru
        _
      // Predicated region
      $region37: #{local_enhancer_forward.49} parent=31 // pred_check
        %p1141 = pneg %p129
      $region38: #{local_enhancer_forward.49} parent=31 // pred_check_branch
        %1143 = sbr.rel (%p1141) target = $region40
      $region39: #{local_enhancer_forward.49} parent=31 // pred_region
        _
      $region40: #{local_enhancer_forward.49} parent=31 // pred_fallthru
        _
      // Predicated region
      $region41: #{local_enhancer_forward.49} parent=31 // pred_check
        %p1144 = pneg %p155
      $region42: #{local_enhancer_forward.49} parent=31 // pred_check_branch
        %1146 = sbr.rel (%p1144) target = $region44
      $region43: #{local_enhancer_forward.49} parent=31 // pred_region
        _
      $region44: #{local_enhancer_forward.49} parent=31 // pred_fallthru
        _
    $region32: #{local_enhancer_forward.49} parent=5 // pred_fallthru
      _
    %p1147 = scmp.le.s32.totalorder 2, %s12
    // Predicated region
    $region45: #{local_enhancer_forward.49} parent=5 // pred_check
      %p1148 = pneg %p1147
    $region46: #{local_enhancer_forward.49} parent=5 // pred_check_branch
      %1150 = sbr.rel (%p1148) target = $region48
    $region47: #{local_enhancer_forward.49} parent=5 // pred_region
      %s1151 = ssub.s32 %s12, 2
      // Predicated region
      $region49: #{local_enhancer_forward.49} parent=47 // pred_check
        %p1152 = pneg %p109
      $region50: #{local_enhancer_forward.49} parent=47 // pred_check_branch
        %1154 = sbr.rel (%p1152) target = $region52
      $region51: #{local_enhancer_forward.49} parent=47 // pred_region
        %s1155 = smul.u32 32, %s18
        %p1156 = scmp.lt.s32.totalorder %s1155, 63
        %s1157 = scalar_select %p1156, %s1155, 63
        %s1158 = smul.addr %s1157, 8
        %s1159 = scalar_lea.vmem %s3, %s1158
      $region52: #{local_enhancer_forward.49} parent=47 // pred_fallthru
        _
      // Predicated region
      $region53: #{local_enhancer_forward.49} parent=47 // pred_check
        %p1160 = pneg %p135
      $region54: #{local_enhancer_forward.49} parent=47 // pred_check_branch
        %1162 = sbr.rel (%p1160) target = $region56
      $region55: #{local_enhancer_forward.49} parent=47 // pred_region
        %p1163 = scmp.lt.s32.totalorder %s18, 1
        %s1164 = scalar_select %p1163, %s18, 1
        %s1165 = scalar_lea.vmem %s4, %s1164
      $region56: #{local_enhancer_forward.49} parent=47 // pred_fallthru
        _
      // Predicated region
      $region57: #{local_enhancer_forward.49} parent=47 // pred_check
        %p1166 = pneg %p161
      $region58: #{local_enhancer_forward.49} parent=47 // pred_check_branch
        %1168 = sbr.rel (%p1166) target = $region60
      $region59: #{local_enhancer_forward.49} parent=47 // pred_region
        %p1169 = scmp.lt.s32.totalorder %s18, 1
        %s1170 = scalar_select %p1169, %s18, 1
        %s1171 = scalar_lea.vmem %s5, %s1170
      $region60: #{local_enhancer_forward.49} parent=47 // pred_fallthru
        _
    $region48: #{local_enhancer_forward.49} parent=5 // pred_fallthru
      _
  $region6: #{local_enhancer_forward.49} parent=0 // loop_footer
    %s16 = sadd.s32 1, %s12
  $region7: #{local_enhancer_forward.49} parent=0 // loop_footer_branch
    %11 = sbr.rel target = $region3
  $region8: #{local_enhancer_forward.49} parent=0 // loop_exit
    _

// kernel: local_enhancer_forward.50
$region0: #{local_enhancer_forward.50}
  #allocation0 [shape = 'u32[]', space=smem, size = 0x4, offset = 0x4, fixed_abs, tag = 'smem constant byte address 0x4 - core index']
  #allocation1 [shape = 'u32[144,128]{1,0:T(1,128)}', space=vmem, size = 0x12000, scoped, tag = 'internal scratch']
  %s0 = inlined_call_operand.vmem [shape: f32[8,512], index: 0, kind: input, shape index: {}]
  %s1 = inlined_call_operand.vmem [shape: f32[1,512], index: 1, kind: input, shape index: {}]
  %s2 = inlined_call_operand.vmem [shape: f32[1,512], index: 2, kind: input, shape index: {}]
  %s3 = inlined_call_operand.vmem [shape: f32[8,512], index: 3, kind: output, shape index: {}]
  %s4 = sld [smem:[#allocation0]]
  $region22: #{local_enhancer_forward.50} parent=0
    _
  %s6 = ssub.s32 1, %s4
  %s7 = scalar_select 0, %s6, %s4
  // Predicated region
  $region2: #{local_enhancer_forward.50} parent=0 // pred_check
    _
  $region3: #{local_enhancer_forward.50} parent=0 // pred_check_branch
    %9 = sbr.rel (0) target = $region5
  $region4: #{local_enhancer_forward.50} parent=0 // pred_region
    _
  $region5: #{local_enhancer_forward.50} parent=0 // pred_fallthru
    _
  // Predicated region
  $region6: #{local_enhancer_forward.50} parent=0 // pred_check
    _
  $region7: #{local_enhancer_forward.50} parent=0 // pred_check_branch
    %11 = sbr.rel (0) target = $region9
  $region8: #{local_enhancer_forward.50} parent=0 // pred_region
    _
  $region9: #{local_enhancer_forward.50} parent=0 // pred_fallthru
    _
  // Predicated region
  $region10: #{local_enhancer_forward.50} parent=0 // pred_check
    _
  $region11: #{local_enhancer_forward.50} parent=0 // pred_check_branch
    %13 = sbr.rel (0) target = $region13
  $region12: #{local_enhancer_forward.50} parent=0 // pred_region
    _
  $region13: #{local_enhancer_forward.50} parent=0 // pred_fallthru
    _
  %v14 = vld [vmem:[%s0] sm:$0xff]
  %v15 = vld [vmem:[%s0 + $0x8] sm:$0xff]
  %v16 = vld [vmem:[%s0 + $0x10] sm:$0xff]
  %v17 = vld [vmem:[%s0 + $0x18] sm:$0xff]
  %v18 = vld [vmem:[%s1] sm:$0xf]
  %v20 = vlaneseq
  %v21 = vshrl.u32 %v20, 7
  %v22 = vsub.s32 0, %v21
  %v23 = vrot.slane %v18, %v22
  %v24 = vlaneseq
  %v25 = vshrl.u32 %v24, 7
  %v26 = vsub.s32 1, %v25
  %v27 = vrot.slane %v18, %v26
  %v28 = vlaneseq
  %v29 = vshrl.u32 %v28, 7
  %v30 = vsub.s32 2, %v29
  %v31 = vrot.slane %v18, %v30
  %v32 = vlaneseq
  %v33 = vshrl.u32 %v32, 7
  %v34 = vsub.s32 3, %v33
  %v35 = vrot.slane %v18, %v34
  %v40 = vmul.f32 %v14, %v23
  %v41 = vmul.f32 %v15, %v27
  %v42 = vmul.f32 %v16, %v31
  %v43 = vmul.f32 %v17, %v35
  %v44 = vld [vmem:[%s2] sm:$0xf]
  %v46 = vlaneseq
  %v47 = vshrl.u32 %v46, 7
  %v48 = vsub.s32 0, %v47
  %v49 = vrot.slane %v44, %v48
  %v50 = vlaneseq
  %v51 = vshrl.u32 %v50, 7
  %v52 = vsub.s32 1, %v51
  %v53 = vrot.slane %v44, %v52
  %v54 = vlaneseq
  %v55 = vshrl.u32 %v54, 7
  %v56 = vsub.s32 2, %v55
  %v57 = vrot.slane %v44, %v56
  %v58 = vlaneseq
  %v59 = vshrl.u32 %v58, 7
  %v60 = vsub.s32 3, %v59
  %v61 = vrot.slane %v44, %v60
  %v66 = vadd.f32 %v40, %v49
  %v67 = vadd.f32 %v41, %v53
  %v68 = vadd.f32 %v42, %v57
  %v69 = vadd.f32 %v43, %v61
  %v70 = vmax.f32 %v66, 0.0
  %v71 = vmax.f32 %v67, 0.0
  %v72 = vmax.f32 %v68, 0.0
  %v73 = vmax.f32 %v69, 0.0
  %74 = vst [vmem:[%s3] sm:$0xff] %v70
  %75 = vst [vmem:[%s3 + $0x8] sm:$0xff] %v71
  %76 = vst [vmem:[%s3 + $0x10] sm:$0xff] %v72
  %77 = vst [vmem:[%s3 + $0x18] sm:$0xff] %v73
  // Predicated region
  $region14: #{local_enhancer_forward.50} parent=0 // pred_check
    _
  $region15: #{local_enhancer_forward.50} parent=0 // pred_check_branch
    %79 = sbr.rel (0) target = $region17
  $region16: #{local_enhancer_forward.50} parent=0 // pred_region
    _
  $region17: #{local_enhancer_forward.50} parent=0 // pred_fallthru
    _
  // Predicated region
  $region18: #{local_enhancer_forward.50} parent=0 // pred_check
    _
  $region19: #{local_enhancer_forward.50} parent=0 // pred_check_branch
    %81 = sbr.rel (0) target = $region21
  $region20: #{local_enhancer_forward.50} parent=0 // pred_region
    _
  $region21: #{local_enhancer_forward.50} parent=0 // pred_fallthru
    _

// kernel: local_enhancer_forward.51
$region0: #{local_enhancer_forward.51}
  #allocation0 [shape = 'u32[]', space=smem, size = 0x4, offset = 0x4, fixed_abs, tag = 'smem constant byte address 0x4 - core index']
  #allocation1 [shape = 'u32[144,128]{1,0:T(1,128)}', space=vmem, size = 0x12000, scoped, tag = 'internal scratch']
  %s0 = inlined_call_operand.vmem [shape: bf16[128,72], index: 0, kind: input, shape index: {}]
  %s1 = inlined_call_operand.vmem [shape: bf16[72,16], index: 1, kind: input, shape index: {}]
  %s2 = inlined_call_operand.vmem [shape: f32[1,16], index: 2, kind: input, shape index: {}]
  %s3 = inlined_call_operand.vmem [shape: f32[128,16], index: 3, kind: output, shape index: {0}]
  %s4 = inlined_call_operand.vmem [shape: f32[1,1,16], index: 4, kind: output, shape index: {1}]
  %s5 = inlined_call_operand.vmem [shape: f32[1,1,16], index: 5, kind: output, shape index: {2}]
  %6 = xla_tuple %s3, %s4, %s5
  %s7 = sld [smem:[#allocation0]]
  $region38: #{local_enhancer_forward.51} parent=0
    _
  %s9 = ssub.s32 1, %s7
  %s10 = scalar_select 0, %s9, %s7
  // Predicated region
  $region2: #{local_enhancer_forward.51} parent=0 // pred_check
    _
  $region3: #{local_enhancer_forward.51} parent=0 // pred_check_branch
    %12 = sbr.rel (0) target = $region5
  $region4: #{local_enhancer_forward.51} parent=0 // pred_region
    _
  $region5: #{local_enhancer_forward.51} parent=0 // pred_fallthru
    _
  // Predicated region
  $region6: #{local_enhancer_forward.51} parent=0 // pred_check
    _
  $region7: #{local_enhancer_forward.51} parent=0 // pred_check_branch
    %14 = sbr.rel (0) target = $region9
  $region8: #{local_enhancer_forward.51} parent=0 // pred_region
    _
  $region9: #{local_enhancer_forward.51} parent=0 // pred_fallthru
    _
  // Predicated region
  $region10: #{local_enhancer_forward.51} parent=0 // pred_check
    _
  $region11: #{local_enhancer_forward.51} parent=0 // pred_check_branch
    %16 = sbr.rel (0) target = $region13
  $region12: #{local_enhancer_forward.51} parent=0 // pred_region
    _
  $region13: #{local_enhancer_forward.51} parent=0 // pred_fallthru
    _
  %v18 = vld [vmem:[%s0] sm:$0xf]
  %v19 = vld [vmem:[%s0 + $0x4] sm:$0xf]
  %v20 = vld [vmem:[%s0 + $0x8] sm:$0xf]
  %v21 = vld [vmem:[%s0 + $0xc] sm:$0xf]
  %v22 = vld [vmem:[%s0 + $0x10] sm:$0xf]
  %v23 = vld [vmem:[%s0 + $0x14] sm:$0xf]
  %v24 = vld [vmem:[%s0 + $0x18] sm:$0xf]
  %v25 = vld [vmem:[%s0 + $0x1c] sm:$0xf]
  %v26 = vld [vmem:[%s0 + $0x20] sm:$0xf]
  %v27 = vld [vmem:[%s0 + $0x24] sm:$0xf]
  %v28 = vld [vmem:[%s0 + $0x28] sm:$0xf]
  %v29 = vld [vmem:[%s0 + $0x2c] sm:$0xf]
  %v30 = vld [vmem:[%s0 + $0x30] sm:$0xf]
  %v31 = vld [vmem:[%s0 + $0x34] sm:$0xf]
  %v32 = vld [vmem:[%s0 + $0x38] sm:$0xf]
  %v33 = vld [vmem:[%s0 + $0x3c] sm:$0xf]
  %v34 = vld [vmem:[%s1] sm:$0xf]
  %v35 = vld [vmem:[%s1 + $0x4] sm:$0xf]
  %v36 = vld [vmem:[%s1 + $0x8] sm:$0xf]
  %v37 = vld [vmem:[%s1 + $0xc] sm:$0xf]
  %v38 = vld [vmem:[%s1 + $0x10] sm:$0xf]
  %v39 = vld [vmem:[%s1 + $0x14] sm:$0xf]
  %v40 = vld [vmem:[%s1 + $0x18] sm:$0xf]
  %v41 = vld [vmem:[%s1 + $0x1c] sm:$0xf]
  %v42 = vld [vmem:[%s1 + $0x20] sm:$0xf]
  %v43 = vld [vmem:[%s2] sm:$0x1]
  %v45 = vlaneseq
  %v46 = vshrl.u32 %v45, 7
  %v47 = vsub.s32 0, %v46
  %v48 = vrot.slane %v43, %v47
  %v66 = vunpack.c.l.b16 %v18
  %v67 = vunpack.c.l.b16 %v19
  %v68 = vunpack.c.l.b16 %v20
  %v69 = vunpack.c.l.b16 %v21
  %v70 = vunpack.c.l.b16 %v22
  %v71 = vunpack.c.l.b16 %v23
  %v72 = vunpack.c.l.b16 %v24
  %v73 = vunpack.c.l.b16 %v25
  %v74 = vunpack.c.l.b16 %v26
  %v75 = vunpack.c.l.b16 %v27
  %v76 = vunpack.c.l.b16 %v28
  %v77 = vunpack.c.l.b16 %v29
  %v78 = vunpack.c.l.b16 %v30
  %v79 = vunpack.c.l.b16 %v31
  %v80 = vunpack.c.l.b16 %v32
  %v81 = vunpack.c.l.b16 %v33
  %v82 = vpack.c.b16 %v67, %v66
  %v83 = vpack.c.b16 %v69, %v68
  %v84 = vpack.c.b16 %v71, %v70
  %v85 = vpack.c.b16 %v73, %v72
  %v86 = vpack.c.b16 %v75, %v74
  %v87 = vpack.c.b16 %v77, %v76
  %v88 = vpack.c.b16 %v79, %v78
  %v89 = vpack.c.b16 %v81, %v80
  %v99 = vunpack.c.l.b16 %v34
  %v100 = vunpack.c.l.b16 %v35
  %v101 = vunpack.c.l.b16 %v36
  %v102 = vunpack.c.l.b16 %v37
  %v103 = vunpack.c.l.b16 %v38
  %v104 = vunpack.c.l.b16 %v39
  %v105 = vunpack.c.l.b16 %v40
  %v106 = vunpack.c.l.b16 %v41
  %v107 = vunpack.c.l.b16 %v42
  %v108 = vpack.c.b16 %v100, %v99
  %v109 = vpack.c.b16 %v102, %v101
  %v110 = vpack.c.b16 %v104, %v103
  %v111 = vpack.c.b16 %v106, %v105
  %v112 = vpack.c.b16 %v107, %v107
  %vm117 = vcmask 588800
  %v119 = vsel %vm117, %v82, 0
  %v122 = vsel %vm117, %v83, 0
  %v125 = vsel %vm117, %v84, 0
  %v128 = vsel %vm117, %v85, 0
  %v131 = vsel %vm117, %v86, 0
  %v134 = vsel %vm117, %v87, 0
  %v137 = vsel %vm117, %v88, 0
  %v140 = vsel %vm117, %v89, 0
  %vm142 = vcmask 1043456
  %v144 = vsel %vm142, %v112, 0
  %146 = vmatprep.subr.bf16.mxu0 0
  %147 = vmatpush1.bf16.msra.mxu0 %v108
  %148 = vmatprep.subr.bf16.mxu0 0
  %149 = vmatpush1.bf16.msra.mxu0 %v109
  %150 = vmatprep.subr.bf16.mxu0 0
  %151 = vmatpush1.bf16.msra.mxu0 %v110
  %152 = vmatprep.subr.bf16.mxu0 0
  %153 = vmatpush1.bf16.msra.mxu0 %v111
  %154 = vmatprep.subr.bf16.mxu0 0
  %155 = vmatpush1.bf16.msra.mxu0 %v144
  %156 = vmatprep.subr.bf16.mxu0 0
  %157 = vmatpush1.bf16.msra.mxu0 0
  %158 = vmatprep.subr.bf16.mxu0 0
  %159 = vmatpush1.bf16.msra.mxu0 0
  %160 = vmatprep.subr.bf16.mxu0 0
  %161 = vmatpush1.bf16.msra.mxu0 0
  %162 = vmatprep.subr.bf16.mxu0 0
  %163 = vmatpush1.bf16.msra.mxu0 0
  %164 = vmatprep.subr.bf16.mxu0 0
  %165 = vmatpush1.bf16.msra.mxu0 0
  %166 = vmatprep.subr.bf16.mxu0 0
  %167 = vmatpush1.bf16.msra.mxu0 0
  %168 = vmatprep.subr.bf16.mxu0 0
  %169 = vmatpush1.bf16.msra.mxu0 0
  %170 = vmatprep.subr.bf16.mxu0 0
  %171 = vmatpush1.bf16.msra.mxu0 0
  %172 = vmatprep.subr.bf16.mxu0 0
  %173 = vmatpush1.bf16.msra.mxu0 0
  %174 = vmatprep.subr.bf16.mxu0 0
  %175 = vmatpush1.bf16.msra.mxu0 0
  %176 = vmatprep.subr.bf16.mxu0 0
  %177 = vmatpush1.bf16.msra.mxu0 0
  %178 = vmatprep.mubr.bf16.mxu0 0
  %179 = vmatmul.mubr.bf16.gmra.mrb[0].mxu0 %v119
  %v180 = vpop.f32.mrb[0].mxu0
  %v181 = vadd.f32 %v48, %v180
  %v182 = vpop.f32.mrb[0].mxu0
  %v183 = vpop.f32.mrb[0].mxu0
  %v184 = vadd.f32 %v48, %v183
  %v185 = vpop.f32.mrb[0].mxu0
  %186 = vmatprep.mubr.bf16.mxu0 0
  %187 = vmatmul.mubr.bf16.gmra.mrb[0].mxu0 %v122
  %v188 = vpop.f32.mrb[0].mxu0
  %v189 = vadd.f32 %v48, %v188
  %v190 = vpop.f32.mrb[0].mxu0
  %v191 = vpop.f32.mrb[0].mxu0
  %v192 = vadd.f32 %v48, %v191
  %v193 = vpop.f32.mrb[0].mxu0
  %194 = vmatprep.mubr.bf16.mxu0 0
  %195 = vmatmul.mubr.bf16.gmra.mrb[0].mxu0 %v125
  %v196 = vpop.f32.mrb[0].mxu0
  %v197 = vadd.f32 %v48, %v196
  %v198 = vpop.f32.mrb[0].mxu0
  %v199 = vpop.f32.mrb[0].mxu0
  %v200 = vadd.f32 %v48, %v199
  %v201 = vpop.f32.mrb[0].mxu0
  %202 = vmatprep.mubr.bf16.mxu0 0
  %203 = vmatmul.mubr.bf16.gmra.mrb[0].mxu0 %v128
  %v204 = vpop.f32.mrb[0].mxu0
  %v205 = vadd.f32 %v48, %v204
  %v206 = vpop.f32.mrb[0].mxu0
  %v207 = vpop.f32.mrb[0].mxu0
  %v208 = vadd.f32 %v48, %v207
  %v209 = vpop.f32.mrb[0].mxu0
  %210 = vmatprep.mubr.bf16.mxu0 0
  %211 = vmatmul.mubr.bf16.gmra.mrb[0].mxu0 %v131
  %v212 = vpop.f32.mrb[0].mxu0
  %v213 = vadd.f32 %v48, %v212
  %v214 = vpop.f32.mrb[0].mxu0
  %v215 = vpop.f32.mrb[0].mxu0
  %v216 = vadd.f32 %v48, %v215
  %v217 = vpop.f32.mrb[0].mxu0
  %218 = vmatprep.mubr.bf16.mxu0 0
  %219 = vmatmul.mubr.bf16.gmra.mrb[0].mxu0 %v134
  %v220 = vpop.f32.mrb[0].mxu0
  %v221 = vadd.f32 %v48, %v220
  %v222 = vpop.f32.mrb[0].mxu0
  %v223 = vpop.f32.mrb[0].mxu0
  %v224 = vadd.f32 %v48, %v223
  %v225 = vpop.f32.mrb[0].mxu0
  %226 = vmatprep.mubr.bf16.mxu0 0
  %227 = vmatmul.mubr.bf16.gmra.mrb[0].mxu0 %v137
  %v228 = vpop.f32.mrb[0].mxu0
  %v229 = vadd.f32 %v48, %v228
  %v230 = vpop.f32.mrb[0].mxu0
  %v231 = vpop.f32.mrb[0].mxu0
  %v232 = vadd.f32 %v48, %v231
  %v233 = vpop.f32.mrb[0].mxu0
  %234 = vmatprep.mubr.bf16.mxu0 0
  %235 = vmatmul.mubr.bf16.gmra.mrb[0].mxu0 %v140
  %v236 = vpop.f32.mrb[0].mxu0
  %v237 = vadd.f32 %v48, %v236
  %v238 = vpop.f32.mrb[0].mxu0
  %v239 = vpop.f32.mrb[0].mxu0
  %v240 = vadd.f32 %v48, %v239
  %v241 = vpop.f32.mrb[0].mxu0
  %242 = vdwg.mxu0
  %vm243 = vcmask 130048
  %244 = vst.msk [vmem:[%s3] sm:$0xff] %vm243, %v181
  %245 = vst.msk [vmem:[%s3 + $0x8] sm:$0xff] %vm243, %v184
  %246 = vst.msk [vmem:[%s3 + $0x10] sm:$0xff] %vm243, %v189
  %247 = vst.msk [vmem:[%s3 + $0x18] sm:$0xff] %vm243, %v192
  %248 = vst.msk [vmem:[%s3 + $0x20] sm:$0xff] %vm243, %v197
  %249 = vst.msk [vmem:[%s3 + $0x28] sm:$0xff] %vm243, %v200
  %250 = vst.msk [vmem:[%s3 + $0x30] sm:$0xff] %vm243, %v205
  %251 = vst.msk [vmem:[%s3 + $0x38] sm:$0xff] %vm243, %v208
  %252 = vst.msk [vmem:[%s3 + $0x40] sm:$0xff] %vm243, %v213
  %253 = vst.msk [vmem:[%s3 + $0x48] sm:$0xff] %vm243, %v216
  %254 = vst.msk [vmem:[%s3 + $0x50] sm:$0xff] %vm243, %v221
  %255 = vst.msk [vmem:[%s3 + $0x58] sm:$0xff] %vm243, %v224
  %256 = vst.msk [vmem:[%s3 + $0x60] sm:$0xff] %vm243, %v229
  %257 = vst.msk [vmem:[%s3 + $0x68] sm:$0xff] %vm243, %v232
  %258 = vst.msk [vmem:[%s3 + $0x70] sm:$0xff] %vm243, %v237
  %259 = vst.msk [vmem:[%s3 + $0x78] sm:$0xff] %vm243, %v240
  %s260 = smul.u32 0, 128
  %v261 = vlaneseq
  %v262 = vshrl.u32 %v261, 7
  %v263 = vadd.s32 %v262, 8
  %v264 = vadd.s32 %v262, 16
  %v265 = vadd.s32 %v262, 24
  %v266 = vadd.s32 %v262, 32
  %v267 = vadd.s32 %v262, 40
  %v268 = vadd.s32 %v262, 48
  %v269 = vadd.s32 %v262, 56
  %v270 = vadd.s32 %v262, 64
  %v271 = vadd.s32 %v262, 72
  %v272 = vadd.s32 %v262, 80
  %v273 = vadd.s32 %v262, 88
  %v274 = vadd.s32 %v262, 96
  %v275 = vadd.s32 %v262, 104
  %v276 = vadd.s32 %v262, 112
  %v277 = vadd.s32 %v262, 120
  %v278 = vstv %s260
  %v279 = vadd.s32 %v278, %v262
  %v280 = vadd.s32 %v278, %v263
  %v281 = vadd.s32 %v278, %v264
  %v282 = vadd.s32 %v278, %v265
  %v283 = vadd.s32 %v278, %v266
  %v284 = vadd.s32 %v278, %v267
  %v285 = vadd.s32 %v278, %v268
  %v286 = vadd.s32 %v278, %v269
  %v287 = vadd.s32 %v278, %v270
  %v288 = vadd.s32 %v278, %v271
  %v289 = vadd.s32 %v278, %v272
  %v290 = vadd.s32 %v278, %v273
  %v291 = vadd.s32 %v278, %v274
  %v292 = vadd.s32 %v278, %v275
  %v293 = vadd.s32 %v278, %v276
  %v294 = vadd.s32 %v278, %v277
  %vm295 = vcmp.lt.s32.totalorder %v279, 128
  %vm296 = vcmp.lt.s32.totalorder %v280, 128
  %vm297 = vcmp.lt.s32.totalorder %v281, 128
  %vm298 = vcmp.lt.s32.totalorder %v282, 128
  %vm299 = vcmp.lt.s32.totalorder %v283, 128
  %vm300 = vcmp.lt.s32.totalorder %v284, 128
  %vm301 = vcmp.lt.s32.totalorder %v285, 128
  %vm302 = vcmp.lt.s32.totalorder %v286, 128
  %vm303 = vcmp.lt.s32.totalorder %v287, 128
  %vm304 = vcmp.lt.s32.totalorder %v288, 128
  %vm305 = vcmp.lt.s32.totalorder %v289, 128
  %vm306 = vcmp.lt.s32.totalorder %v290, 128
  %vm307 = vcmp.lt.s32.totalorder %v291, 128
  %vm308 = vcmp.lt.s32.totalorder %v292, 128
  %vm309 = vcmp.lt.s32.totalorder %v293, 128
  %vm310 = vcmp.lt.s32.totalorder %v294, 128
  %v311 = vsel %vm295, 1, 0
  %v312 = vsel %vm296, 1, 0
  %v313 = vsel %vm297, 1, 0
  %v314 = vsel %vm298, 1, 0
  %v315 = vsel %vm299, 1, 0
  %v316 = vsel %vm300, 1, 0
  %v317 = vsel %vm301, 1, 0
  %v318 = vsel %vm302, 1, 0
  %v319 = vsel %vm303, 1, 0
  %v320 = vsel %vm304, 1, 0
  %v321 = vsel %vm305, 1, 0
  %v322 = vsel %vm306, 1, 0
  %v323 = vsel %vm307, 1, 0
  %v324 = vsel %vm308, 1, 0
  %v325 = vsel %vm309, 1, 0
  %v326 = vsel %vm310, 1, 0
  %v327 = vcvt.s32.f32 %v311
  %v328 = vcvt.s32.f32 %v312
  %v329 = vcvt.s32.f32 %v313
  %v330 = vcvt.s32.f32 %v314
  %v331 = vcvt.s32.f32 %v315
  %v332 = vcvt.s32.f32 %v316
  %v333 = vcvt.s32.f32 %v317
  %v334 = vcvt.s32.f32 %v318
  %v335 = vcvt.s32.f32 %v319
  %v336 = vcvt.s32.f32 %v320
  %v337 = vcvt.s32.f32 %v321
  %v338 = vcvt.s32.f32 %v322
  %v339 = vcvt.s32.f32 %v323
  %v340 = vcvt.s32.f32 %v324
  %v341 = vcvt.s32.f32 %v325
  %v342 = vcvt.s32.f32 %v326
  %v343 = vmul.f32 %v181, %v327
  %v344 = vmul.f32 %v184, %v328
  %v345 = vmul.f32 %v189, %v329
  %v346 = vmul.f32 %v192, %v330
  %v347 = vmul.f32 %v197, %v331
  %v348 = vmul.f32 %v200, %v332
  %v349 = vmul.f32 %v205, %v333
  %v350 = vmul.f32 %v208, %v334
  %v351 = vmul.f32 %v213, %v335
  %v352 = vmul.f32 %v216, %v336
  %v353 = vmul.f32 %v221, %v337
  %v354 = vmul.f32 %v224, %v338
  %v355 = vmul.f32 %v229, %v339
  %v356 = vmul.f32 %v232, %v340
  %v357 = vmul.f32 %v237, %v341
  %v358 = vmul.f32 %v240, %v342
  %v359 = vsel %vm243, %v343, 0.0
  %v360 = vsel %vm243, %v344, 0.0
  %v361 = vadd.f32 %v359, %v360
  %v362 = vsel %vm243, %v345, 0.0
  %v363 = vadd.f32 %v361, %v362
  %v364 = vsel %vm243, %v346, 0.0
  %v365 = vadd.f32 %v363, %v364
  %v366 = vsel %vm243, %v347, 0.0
  %v367 = vadd.f32 %v365, %v366
  %v368 = vsel %vm243, %v348, 0.0
  %v369 = vadd.f32 %v367, %v368
  %v370 = vsel %vm243, %v349, 0.0
  %v371 = vadd.f32 %v369, %v370
  %v372 = vsel %vm243, %v350, 0.0
  %v373 = vadd.f32 %v371, %v372
  %v374 = vsel %vm243, %v351, 0.0
  %v375 = vadd.f32 %v373, %v374
  %v376 = vsel %vm243, %v352, 0.0
  %v377 = vadd.f32 %v375, %v376
  %v378 = vsel %vm243, %v353, 0.0
  %v379 = vadd.f32 %v377, %v378
  %v380 = vsel %vm243, %v354, 0.0
  %v381 = vadd.f32 %v379, %v380
  %v382 = vsel %vm243, %v355, 0.0
  %v383 = vadd.f32 %v381, %v382
  %v384 = vsel %vm243, %v356, 0.0
  %v385 = vadd.f32 %v383, %v384
  %v386 = vsel %vm243, %v357, 0.0
  %v387 = vadd.f32 %v385, %v386
  %v388 = vsel %vm243, %v358, 0.0
  %v389 = vadd.f32 %v387, %v388
  %v390 = vrot.slane %v389, 4
  %v391 = vadd.f32 %v389, %v390
  %v392 = vrot.slane %v391, 2
  %v393 = vadd.f32 %v391, %v392
  %v394 = vrot.slane %v393, 1
  %v395 = vadd.f32 %v393, %v394
  %vm396 = vcmask 122880
  %397 = vst.msk [vmem:[%s4] sm:$0x1] %vm396, %v395
  %v398 = vmul.f32 %v343, %v181
  %v399 = vmul.f32 %v344, %v184
  %v400 = vmul.f32 %v345, %v189
  %v401 = vmul.f32 %v346, %v192
  %v402 = vmul.f32 %v347, %v197
  %v403 = vmul.f32 %v348, %v200
  %v404 = vmul.f32 %v349, %v205
  %v405 = vmul.f32 %v350, %v208
  %v406 = vmul.f32 %v351, %v213
  %v407 = vmul.f32 %v352, %v216
  %v408 = vmul.f32 %v353, %v221
  %v409 = vmul.f32 %v354, %v224
  %v410 = vmul.f32 %v355, %v229
  %v411 = vmul.f32 %v356, %v232
  %v412 = vmul.f32 %v357, %v237
  %v413 = vmul.f32 %v358, %v240
  %v414 = vsel %vm243, %v398, 0.0
  %v415 = vsel %vm243, %v399, 0.0
  %v416 = vadd.f32 %v414, %v415
  %v417 = vsel %vm243, %v400, 0.0
  %v418 = vadd.f32 %v416, %v417
  %v419 = vsel %vm243, %v401, 0.0
  %v420 = vadd.f32 %v418, %v419
  %v421 = vsel %vm243, %v402, 0.0
  %v422 = vadd.f32 %v420, %v421
  %v423 = vsel %vm243, %v403, 0.0
  %v424 = vadd.f32 %v422, %v423
  %v425 = vsel %vm243, %v404, 0.0
  %v426 = vadd.f32 %v424, %v425
  %v427 = vsel %vm243, %v405, 0.0
  %v428 = vadd.f32 %v426, %v427
  %v429 = vsel %vm243, %v406, 0.0
  %v430 = vadd.f32 %v428, %v429
  %v431 = vsel %vm243, %v407, 0.0
  %v432 = vadd.f32 %v430, %v431
  %v433 = vsel %vm243, %v408, 0.0
  %v434 = vadd.f32 %v432, %v433
  %v435 = vsel %vm243, %v409, 0.0
  %v436 = vadd.f32 %v434, %v435
  %v437 = vsel %vm243, %v410, 0.0
  %v438 = vadd.f32 %v436, %v437
  %v439 = vsel %vm243, %v411, 0.0
  %v440 = vadd.f32 %v438, %v439
  %v441 = vsel %vm243, %v412, 0.0
  %v442 = vadd.f32 %v440, %v441
  %v443 = vsel %vm243, %v413, 0.0
  %v444 = vadd.f32 %v442, %v443
  %v445 = vrot.slane %v444, 4
  %v446 = vadd.f32 %v444, %v445
  %v447 = vrot.slane %v446, 2
  %v448 = vadd.f32 %v446, %v447
  %v449 = vrot.slane %v448, 1
  %v450 = vadd.f32 %v448, %v449
  %451 = vst.msk [vmem:[%s5] sm:$0x1] %vm396, %v450
  // Predicated region
  $region14: #{local_enhancer_forward.51} parent=0 // pred_check
    _
  $region15: #{local_enhancer_forward.51} parent=0 // pred_check_branch
    %453 = sbr.rel (0) target = $region17
  $region16: #{local_enhancer_forward.51} parent=0 // pred_region
    _
  $region17: #{local_enhancer_forward.51} parent=0 // pred_fallthru
    _
  // Predicated region
  $region18: #{local_enhancer_forward.51} parent=0 // pred_check
    _
  $region19: #{local_enhancer_forward.51} parent=0 // pred_check_branch
    %455 = sbr.rel (0) target = $region21
  $region20: #{local_enhancer_forward.51} parent=0 // pred_region
    _
  $region21: #{local_enhancer_forward.51} parent=0 // pred_fallthru
    _
  // Predicated region
  $region22: #{local_enhancer_forward.51} parent=0 // pred_check
    _
  $region23: #{local_enhancer_forward.51} parent=0 // pred_check_branch
    %457 = sbr.rel (0) target = $region25
  $region24: #{local_enhancer_forward.51} parent=0 // pred_region
    _
  $region25: #{local_enhancer_forward.51} parent=0 // pred_fallthru
    _
  // Predicated region
  $region26: #{local_enhancer_forward.51} parent=0 // pred_check
    _
  $region27: #{local_enhancer_forward.51} parent=0 // pred_check_branch
    %459 = sbr.rel (0) target = $region29
  $region28: #{local_enhancer_forward.51} parent=0 // pred_region
    _
  $region29: #{local_enhancer_forward.51} parent=0 // pred_fallthru
    _
  // Predicated region
  $region30: #{local_enhancer_forward.51} parent=0 // pred_check
    _
  $region31: #{local_enhancer_forward.51} parent=0 // pred_check_branch
    %461 = sbr.rel (0) target = $region33
  $region32: #{local_enhancer_forward.51} parent=0 // pred_region
    _
  $region33: #{local_enhancer_forward.51} parent=0 // pred_fallthru
    _
  // Predicated region
  $region34: #{local_enhancer_forward.51} parent=0 // pred_check
    _
  $region35: #{local_enhancer_forward.51} parent=0 // pred_check_branch
    %463 = sbr.rel (0) target = $region37
  $region36: #{local_enhancer_forward.51} parent=0 // pred_region
    _
  $region37: #{local_enhancer_forward.51} parent=0 // pred_fallthru
    _

// kernel: local_enhancer_forward.52
$region0: #{local_enhancer_forward.52}
  #allocation0 [shape = 'u32[]', space=smem, size = 0x4, offset = 0x4, fixed_abs, tag = 'smem constant byte address 0x4 - core index']
  #allocation1 [shape = 'u32[144,128]{1,0:T(1,128)}', space=vmem, size = 0x12000, scoped, tag = 'internal scratch']
  %s0 = inlined_call_operand.vmem [shape: f32[4,512], index: 0, kind: input, shape index: {}]
  %s1 = inlined_call_operand.vmem [shape: f32[1,512], index: 1, kind: input, shape index: {}]
  %s2 = inlined_call_operand.vmem [shape: f32[1,512], index: 2, kind: input, shape index: {}]
  %s3 = inlined_call_operand.vmem [shape: f32[4,512], index: 3, kind: input, shape index: {}]
  %s4 = inlined_call_operand.vmem [shape: f32[4,512], index: 4, kind: output, shape index: {}]
  %s5 = sld [smem:[#allocation0]]
  $region26: #{local_enhancer_forward.52} parent=0
    _
  %s7 = ssub.s32 1, %s5
  %s8 = scalar_select 0, %s7, %s5
  // Predicated region
  $region2: #{local_enhancer_forward.52} parent=0 // pred_check
    _
  $region3: #{local_enhancer_forward.52} parent=0 // pred_check_branch
    %10 = sbr.rel (0) target = $region5
  $region4: #{local_enhancer_forward.52} parent=0 // pred_region
    _
  $region5: #{local_enhancer_forward.52} parent=0 // pred_fallthru
    _
  // Predicated region
  $region6: #{local_enhancer_forward.52} parent=0 // pred_check
    _
  $region7: #{local_enhancer_forward.52} parent=0 // pred_check_branch
    %12 = sbr.rel (0) target = $region9
  $region8: #{local_enhancer_forward.52} parent=0 // pred_region
    _
  $region9: #{local_enhancer_forward.52} parent=0 // pred_fallthru
    _
  // Predicated region
  $region10: #{local_enhancer_forward.52} parent=0 // pred_check
    _
  $region11: #{local_enhancer_forward.52} parent=0 // pred_check_branch
    %14 = sbr.rel (0) target = $region13
  $region12: #{local_enhancer_forward.52} parent=0 // pred_region
    _
  $region13: #{local_enhancer_forward.52} parent=0 // pred_fallthru
    _
  // Predicated region
  $region14: #{local_enhancer_forward.52} parent=0 // pred_check
    _
  $region15: #{local_enhancer_forward.52} parent=0 // pred_check_branch
    %16 = sbr.rel (0) target = $region17
  $region16: #{local_enhancer_forward.52} parent=0 // pred_region
    _
  $region17: #{local_enhancer_forward.52} parent=0 // pred_fallthru
    _
  %v17 = vld [vmem:[%s0] sm:$0xff]
  %v18 = vld [vmem:[%s0 + $0x8] sm:$0xff]
  %v19 = vld [vmem:[%s1] sm:$0xf]
  %v21 = vlaneseq
  %v22 = vshrl.u32 %v21, 7
  %v23 = vsub.s32 0, %v22
  %v24 = vrot.slane %v19, %v23
  %v25 = vlaneseq
  %v26 = vshrl.u32 %v25, 7
  %v27 = vsub.s32 1, %v26
  %v28 = vrot.slane %v19, %v27
  %v29 = vlaneseq
  %v30 = vshrl.u32 %v29, 7
  %v31 = vsub.s32 2, %v30
  %v32 = vrot.slane %v19, %v31
  %v33 = vlaneseq
  %v34 = vshrl.u32 %v33, 7
  %v35 = vsub.s32 3, %v34
  %v36 = vrot.slane %v19, %v35
  %v37 = vcombine.low %v24, %v28
  %v38 = vcombine.low %v32, %v36
  %v41 = vmul.f32 %v17, %v37
  %v42 = vmul.f32 %v18, %v38
  %v43 = vld [vmem:[%s2] sm:$0xf]
  %v45 = vlaneseq
  %v46 = vshrl.u32 %v45, 7
  %v47 = vsub.s32 0, %v46
  %v48 = vrot.slane %v43, %v47
  %v49 = vlaneseq
  %v50 = vshrl.u32 %v49, 7
  %v51 = vsub.s32 1, %v50
  %v52 = vrot.slane %v43, %v51
  %v53 = vlaneseq
  %v54 = vshrl.u32 %v53, 7
  %v55 = vsub.s32 2, %v54
  %v56 = vrot.slane %v43, %v55
  %v57 = vlaneseq
  %v58 = vshrl.u32 %v57, 7
  %v59 = vsub.s32 3, %v58
  %v60 = vrot.slane %v43, %v59
  %v61 = vcombine.low %v48, %v52
  %v62 = vcombine.low %v56, %v60
  %v65 = vadd.f32 %v41, %v61
  %v66 = vadd.f32 %v42, %v62
  %v67 = vmax.f32 %v65, 0.0
  %v68 = vmax.f32 %v66, 0.0
  %v69 = vld [vmem:[%s3] sm:$0xff]
  %v70 = vld [vmem:[%s3 + $0x8] sm:$0xff]
  %v71 = vadd.f32 %v67, %v69
  %v72 = vadd.f32 %v68, %v70
  %73 = vst [vmem:[%s4] sm:$0xff] %v71
  %74 = vst [vmem:[%s4 + $0x8] sm:$0xff] %v72
  // Predicated region
  $region18: #{local_enhancer_forward.52} parent=0 // pred_check
    _
  $region19: #{local_enhancer_forward.52} parent=0 // pred_check_branch
    %76 = sbr.rel (0) target = $region21
  $region20: #{local_enhancer_forward.52} parent=0 // pred_region
    _
  $region21: #{local_enhancer_forward.52} parent=0 // pred_fallthru
    _
  // Predicated region
  $region22: #{local_enhancer_forward.52} parent=0 // pred_check
    _
  $region23: #{local_enhancer_forward.52} parent=0 // pred_check_branch
    %78 = sbr.rel (0) target = $region25
  $region24: #{local_enhancer_forward.52} parent=0 // pred_region
    _
  $region25: #{local_enhancer_forward.52} parent=0 // pred_fallthru
    _

// kernel: local_enhancer_forward.53
$region0: #{local_enhancer_forward.53}
  #allocation0 [shape = 'u32[]', space=smem, size = 0x4, offset = 0x4, fixed_abs, tag = 'smem constant byte address 0x4 - core index']
  #allocation1 [shape = 'u32[144,128]{1,0:T(1,128)}', space=vmem, size = 0x12000, scoped, tag = 'internal scratch']
  %s0 = inlined_call_operand.vmem [shape: bf16[128,144], index: 0, kind: input, shape index: {}]
  %s1 = inlined_call_operand.vmem [shape: bf16[144,16], index: 1, kind: input, shape index: {}]
  %s2 = inlined_call_operand.vmem [shape: f32[1,16], index: 2, kind: input, shape index: {}]
  %s3 = inlined_call_operand.vmem [shape: f32[128,16], index: 3, kind: output, shape index: {0}]
  %s4 = inlined_call_operand.vmem [shape: f32[1,1,16], index: 4, kind: output, shape index: {1}]
  %s5 = inlined_call_operand.vmem [shape: f32[1,1,16], index: 5, kind: output, shape index: {2}]
  %6 = xla_tuple %s3, %s4, %s5
  %s7 = sld [smem:[#allocation0]]
  $region38: #{local_enhancer_forward.53} parent=0
    _
  %s9 = ssub.s32 1, %s7
  %s10 = scalar_select 0, %s9, %s7
  // Predicated region
  $region2: #{local_enhancer_forward.53} parent=0 // pred_check
    _
  $region3: #{local_enhancer_forward.53} parent=0 // pred_check_branch
    %12 = sbr.rel (0) target = $region5
  $region4: #{local_enhancer_forward.53} parent=0 // pred_region
    _
  $region5: #{local_enhancer_forward.53} parent=0 // pred_fallthru
    _
  // Predicated region
  $region6: #{local_enhancer_forward.53} parent=0 // pred_check
    _
  $region7: #{local_enhancer_forward.53} parent=0 // pred_check_branch
    %14 = sbr.rel (0) target = $region9
  $region8: #{local_enhancer_forward.53} parent=0 // pred_region
    _
  $region9: #{local_enhancer_forward.53} parent=0 // pred_fallthru
    _
  // Predicated region
  $region10: #{local_enhancer_forward.53} parent=0 // pred_check
    _
  $region11: #{local_enhancer_forward.53} parent=0 // pred_check_branch
    %16 = sbr.rel (0) target = $region13
  $region12: #{local_enhancer_forward.53} parent=0 // pred_region
    _
  $region13: #{local_enhancer_forward.53} parent=0 // pred_fallthru
    _
  %v18 = vld [vmem:[%s0] sm:$0xff]
  %v19 = vld [vmem:[%s0 + $0x8] sm:$0xff]
  %v20 = vld [vmem:[%s0 + $0x10] sm:$0xff]
  %v21 = vld [vmem:[%s0 + $0x18] sm:$0xff]
  %v22 = vld [vmem:[%s0 + $0x20] sm:$0xff]
  %v23 = vld [vmem:[%s0 + $0x28] sm:$0xff]
  %v24 = vld [vmem:[%s0 + $0x30] sm:$0xff]
  %v25 = vld [vmem:[%s0 + $0x38] sm:$0xff]
  %v26 = vld [vmem:[%s0 + $0x40] sm:$0xff]
  %v27 = vld [vmem:[%s0 + $0x48] sm:$0xff]
  %v28 = vld [vmem:[%s0 + $0x50] sm:$0xff]
  %v29 = vld [vmem:[%s0 + $0x58] sm:$0xff]
  %v30 = vld [vmem:[%s0 + $0x60] sm:$0xff]
  %v31 = vld [vmem:[%s0 + $0x68] sm:$0xff]
  %v32 = vld [vmem:[%s0 + $0x70] sm:$0xff]
  %v33 = vld [vmem:[%s0 + $0x78] sm:$0xff]
  %v34 = vld [vmem:[%s1] sm:$0xf]
  %v35 = vld [vmem:[%s1 + $0x4] sm:$0xf]
  %v36 = vld [vmem:[%s1 + $0x8] sm:$0xf]
  %v37 = vld [vmem:[%s1 + $0xc] sm:$0xf]
  %v38 = vld [vmem:[%s1 + $0x10] sm:$0xf]
  %v39 = vld [vmem:[%s1 + $0x14] sm:$0xf]
  %v40 = vld [vmem:[%s1 + $0x18] sm:$0xf]
  %v41 = vld [vmem:[%s1 + $0x1c] sm:$0xf]
  %v42 = vld [vmem:[%s1 + $0x20] sm:$0xf]
  %v43 = vld [vmem:[%s1 + $0x24] sm:$0xf]
  %v44 = vld [vmem:[%s1 + $0x28] sm:$0xf]
  %v45 = vld [vmem:[%s1 + $0x2c] sm:$0xf]
  %v46 = vld [vmem:[%s1 + $0x30] sm:$0xf]
  %v47 = vld [vmem:[%s1 + $0x34] sm:$0xf]
  %v48 = vld [vmem:[%s1 + $0x38] sm:$0xf]
  %v49 = vld [vmem:[%s1 + $0x3c] sm:$0xf]
  %v50 = vld [vmem:[%s1 + $0x40] sm:$0xf]
  %v51 = vld [vmem:[%s1 + $0x44] sm:$0xf]
  %v52 = vld [vmem:[%s2] sm:$0x1]
  %v54 = vlaneseq
  %v55 = vshrl.u32 %v54, 7
  %v56 = vsub.s32 0, %v55
  %v57 = vrot.slane %v52, %v56
  %v75 = vunpack.c.l.b16 %v18
  %v76 = vunpack.c.h.b16 %v18
  %v77 = vunpack.c.l.b16 %v19
  %v78 = vunpack.c.h.b16 %v19
  %v79 = vunpack.c.l.b16 %v20
  %v80 = vunpack.c.h.b16 %v20
  %v81 = vunpack.c.l.b16 %v21
  %v82 = vunpack.c.h.b16 %v21
  %v83 = vunpack.c.l.b16 %v22
  %v84 = vunpack.c.h.b16 %v22
  %v85 = vunpack.c.l.b16 %v23
  %v86 = vunpack.c.h.b16 %v23
  %v87 = vunpack.c.l.b16 %v24
  %v88 = vunpack.c.h.b16 %v24
  %v89 = vunpack.c.l.b16 %v25
  %v90 = vunpack.c.h.b16 %v25
  %v91 = vunpack.c.l.b16 %v26
  %v92 = vunpack.c.h.b16 %v26
  %v93 = vunpack.c.l.b16 %v27
  %v94 = vunpack.c.h.b16 %v27
  %v95 = vunpack.c.l.b16 %v28
  %v96 = vunpack.c.h.b16 %v28
  %v97 = vunpack.c.l.b16 %v29
  %v98 = vunpack.c.h.b16 %v29
  %v99 = vunpack.c.l.b16 %v30
  %v100 = vunpack.c.h.b16 %v30
  %v101 = vunpack.c.l.b16 %v31
  %v102 = vunpack.c.h.b16 %v31
  %v103 = vunpack.c.l.b16 %v32
  %v104 = vunpack.c.h.b16 %v32
  %v105 = vunpack.c.l.b16 %v33
  %v106 = vunpack.c.h.b16 %v33
  %v107 = vpack.c.b16 %v77, %v75
  %v108 = vpack.c.b16 %v78, %v76
  %v109 = vpack.c.b16 %v81, %v79
  %v110 = vpack.c.b16 %v82, %v80
  %v111 = vpack.c.b16 %v85, %v83
  %v112 = vpack.c.b16 %v86, %v84
  %v113 = vpack.c.b16 %v89, %v87
  %v114 = vpack.c.b16 %v90, %v88
  %v115 = vpack.c.b16 %v93, %v91
  %v116 = vpack.c.b16 %v94, %v92
  %v117 = vpack.c.b16 %v97, %v95
  %v118 = vpack.c.b16 %v98, %v96
  %v119 = vpack.c.b16 %v101, %v99
  %v120 = vpack.c.b16 %v102, %v100
  %v121 = vpack.c.b16 %v105, %v103
  %v122 = vpack.c.b16 %v106, %v104
  %v149 = vunpack.c.l.b16 %v34
  %v150 = vunpack.c.l.b16 %v35
  %v151 = vunpack.c.l.b16 %v36
  %v152 = vunpack.c.l.b16 %v37
  %v153 = vunpack.c.l.b16 %v38
  %v154 = vunpack.c.l.b16 %v39
  %v155 = vunpack.c.l.b16 %v40
  %v156 = vunpack.c.l.b16 %v41
  %v157 = vunpack.c.l.b16 %v42
  %v158 = vunpack.c.l.b16 %v43
  %v159 = vunpack.c.l.b16 %v44
  %v160 = vunpack.c.l.b16 %v45
  %v161 = vunpack.c.l.b16 %v46
  %v162 = vunpack.c.l.b16 %v47
  %v163 = vunpack.c.l.b16 %v48
  %v164 = vunpack.c.l.b16 %v49
  %v165 = vunpack.c.l.b16 %v50
  %v166 = vunpack.c.l.b16 %v51
  %v167 = vpack.c.b16 %v150, %v149
  %v168 = vpack.c.b16 %v152, %v151
  %v169 = vpack.c.b16 %v154, %v153
  %v170 = vpack.c.b16 %v156, %v155
  %v171 = vpack.c.b16 %v158, %v157
  %v172 = vpack.c.b16 %v160, %v159
  %v173 = vpack.c.b16 %v162, %v161
  %v174 = vpack.c.b16 %v164, %v163
  %v175 = vpack.c.b16 %v166, %v165
  %vm185 = vcmask 130048
  %v187 = vsel %vm185, %v108, 0
  %v190 = vsel %vm185, %v110, 0
  %v193 = vsel %vm185, %v112, 0
  %v196 = vsel %vm185, %v114, 0
  %v199 = vsel %vm185, %v116, 0
  %v202 = vsel %vm185, %v118, 0
  %v205 = vsel %vm185, %v120, 0
  %v208 = vsel %vm185, %v122, 0
  %210 = vmatprep.subr.bf16.mxu0 0
  %211 = vmatpush1.bf16.msra.mxu0 %v167
  %212 = vmatprep.subr.bf16.mxu0 0
  %213 = vmatpush1.bf16.msra.mxu0 %v168
  %214 = vmatprep.subr.bf16.mxu0 0
  %215 = vmatpush1.bf16.msra.mxu0 %v169
  %216 = vmatprep.subr.bf16.mxu0 0
  %217 = vmatpush1.bf16.msra.mxu0 %v170
  %218 = vmatprep.subr.bf16.mxu0 0
  %219 = vmatpush1.bf16.msra.mxu0 %v171
  %220 = vmatprep.subr.bf16.mxu0 0
  %221 = vmatpush1.bf16.msra.mxu0 %v172
  %222 = vmatprep.subr.bf16.mxu0 0
  %223 = vmatpush1.bf16.msra.mxu0 %v173
  %224 = vmatprep.subr.bf16.mxu0 0
  %225 = vmatpush1.bf16.msra.mxu0 %v174
  %226 = vmatprep.subr.bf16.mxu0 0
  %227 = vmatpush1.bf16.msra.mxu0 %v175
  %228 = vmatprep.subr.bf16.mxu0 0
  %229 = vmatpush1.bf16.msra.mxu0 0
  %230 = vmatprep.subr.bf16.mxu0 0
  %231 = vmatpush1.bf16.msra.mxu0 0
  %232 = vmatprep.subr.bf16.mxu0 0
  %233 = vmatpush1.bf16.msra.mxu0 0
  %234 = vmatprep.subr.bf16.mxu0 0
  %235 = vmatpush1.bf16.msra.mxu0 0
  %236 = vmatprep.subr.bf16.mxu0 0
  %237 = vmatpush1.bf16.msra.mxu0 0
  %238 = vmatprep.subr.bf16.mxu0 0
  %239 = vmatpush1.bf16.msra.mxu0 0
  %240 = vmatprep.subr.bf16.mxu0 0
  %241 = vmatpush1.bf16.msra.mxu0 0
  %242 = vmatprep.mubr.bf16.mxu0 %v187
  %243 = vmatmul.mubr.bf16.gmra.mrb[0].mxu0 %v107
  %v244 = vpop.f32.mrb[0].mxu0
  %v245 = vadd.f32 %v57, %v244
  %v246 = vpop.f32.mrb[0].mxu0
  %v247 = vpop.f32.mrb[0].mxu0
  %v248 = vadd.f32 %v57, %v247
  %v249 = vpop.f32.mrb[0].mxu0
  %250 = vmatprep.mubr.bf16.mxu0 %v190
  %251 = vmatmul.mubr.bf16.gmra.mrb[0].mxu0 %v109
  %v252 = vpop.f32.mrb[0].mxu0
  %v253 = vadd.f32 %v57, %v252
  %v254 = vpop.f32.mrb[0].mxu0
  %v255 = vpop.f32.mrb[0].mxu0
  %v256 = vadd.f32 %v57, %v255
  %v257 = vpop.f32.mrb[0].mxu0
  %258 = vmatprep.mubr.bf16.mxu0 %v193
  %259 = vmatmul.mubr.bf16.gmra.mrb[0].mxu0 %v111
  %v260 = vpop.f32.mrb[0].mxu0
  %v261 = vadd.f32 %v57, %v260
  %v262 = vpop.f32.mrb[0].mxu0
  %v263 = vpop.f32.mrb[0].mxu0
  %v264 = vadd.f32 %v57, %v263
  %v265 = vpop.f32.mrb[0].mxu0
  %266 = vmatprep.mubr.bf16.mxu0 %v196
  %267 = vmatmul.mubr.bf16.gmra.mrb[0].mxu0 %v113
  %v268 = vpop.f32.mrb[0].mxu0
  %v269 = vadd.f32 %v57, %v268
  %v270 = vpop.f32.mrb[0].mxu0
  %v271 = vpop.f32.mrb[0].mxu0
  %v272 = vadd.f32 %v57, %v271
  %v273 = vpop.f32.mrb[0].mxu0
  %274 = vmatprep.mubr.bf16.mxu0 %v199
  %275 = vmatmul.mubr.bf16.gmra.mrb[0].mxu0 %v115
  %v276 = vpop.f32.mrb[0].mxu0
  %v277 = vadd.f32 %v57, %v276
  %v278 = vpop.f32.mrb[0].mxu0
  %v279 = vpop.f32.mrb[0].mxu0
  %v280 = vadd.f32 %v57, %v279
  %v281 = vpop.f32.mrb[0].mxu0
  %282 = vmatprep.mubr.bf16.mxu0 %v202
  %283 = vmatmul.mubr.bf16.gmra.mrb[0].mxu0 %v117
  %v284 = vpop.f32.mrb[0].mxu0
  %v285 = vadd.f32 %v57, %v284
  %v286 = vpop.f32.mrb[0].mxu0
  %v287 = vpop.f32.mrb[0].mxu0
  %v288 = vadd.f32 %v57, %v287
  %v289 = vpop.f32.mrb[0].mxu0
  %290 = vmatprep.mubr.bf16.mxu0 %v205
  %291 = vmatmul.mubr.bf16.gmra.mrb[0].mxu0 %v119
  %v292 = vpop.f32.mrb[0].mxu0
  %v293 = vadd.f32 %v57, %v292
  %v294 = vpop.f32.mrb[0].mxu0
  %v295 = vpop.f32.mrb[0].mxu0
  %v296 = vadd.f32 %v57, %v295
  %v297 = vpop.f32.mrb[0].mxu0
  %298 = vmatprep.mubr.bf16.mxu0 %v208
  %299 = vmatmul.mubr.bf16.gmra.mrb[0].mxu0 %v121
  %v300 = vpop.f32.mrb[0].mxu0
  %v301 = vadd.f32 %v57, %v300
  %v302 = vpop.f32.mrb[0].mxu0
  %v303 = vpop.f32.mrb[0].mxu0
  %v304 = vadd.f32 %v57, %v303
  %v305 = vpop.f32.mrb[0].mxu0
  %306 = vdwg.mxu0
  %307 = vst.msk [vmem:[%s3] sm:$0xff] %vm185, %v245
  %308 = vst.msk [vmem:[%s3 + $0x8] sm:$0xff] %vm185, %v248
  %309 = vst.msk [vmem:[%s3 + $0x10] sm:$0xff] %vm185, %v253
  %310 = vst.msk [vmem:[%s3 + $0x18] sm:$0xff] %vm185, %v256
  %311 = vst.msk [vmem:[%s3 + $0x20] sm:$0xff] %vm185, %v261
  %312 = vst.msk [vmem:[%s3 + $0x28] sm:$0xff] %vm185, %v264
  %313 = vst.msk [vmem:[%s3 + $0x30] sm:$0xff] %vm185, %v269
  %314 = vst.msk [vmem:[%s3 + $0x38] sm:$0xff] %vm185, %v272
  %315 = vst.msk [vmem:[%s3 + $0x40] sm:$0xff] %vm185, %v277
  %316 = vst.msk [vmem:[%s3 + $0x48] sm:$0xff] %vm185, %v280
  %317 = vst.msk [vmem:[%s3 + $0x50] sm:$0xff] %vm185, %v285
  %318 = vst.msk [vmem:[%s3 + $0x58] sm:$0xff] %vm185, %v288
  %319 = vst.msk [vmem:[%s3 + $0x60] sm:$0xff] %vm185, %v293
  %320 = vst.msk [vmem:[%s3 + $0x68] sm:$0xff] %vm185, %v296
  %321 = vst.msk [vmem:[%s3 + $0x70] sm:$0xff] %vm185, %v301
  %322 = vst.msk [vmem:[%s3 + $0x78] sm:$0xff] %vm185, %v304
  %s323 = smul.u32 0, 128
  %v324 = vlaneseq
  %v325 = vshrl.u32 %v324, 7
  %v326 = vadd.s32 %v325, 8
  %v327 = vadd.s32 %v325, 16
  %v328 = vadd.s32 %v325, 24
  %v329 = vadd.s32 %v325, 32
  %v330 = vadd.s32 %v325, 40
  %v331 = vadd.s32 %v325, 48
  %v332 = vadd.s32 %v325, 56
  %v333 = vadd.s32 %v325, 64
  %v334 = vadd.s32 %v325, 72
  %v335 = vadd.s32 %v325, 80
  %v336 = vadd.s32 %v325, 88
  %v337 = vadd.s32 %v325, 96
  %v338 = vadd.s32 %v325, 104
  %v339 = vadd.s32 %v325, 112
  %v340 = vadd.s32 %v325, 120
  %v341 = vstv %s323
  %v342 = vadd.s32 %v341, %v325
  %v343 = vadd.s32 %v341, %v326
  %v344 = vadd.s32 %v341, %v327
  %v345 = vadd.s32 %v341, %v328
  %v346 = vadd.s32 %v341, %v329
  %v347 = vadd.s32 %v341, %v330
  %v348 = vadd.s32 %v341, %v331
  %v349 = vadd.s32 %v341, %v332
  %v350 = vadd.s32 %v341, %v333
  %v351 = vadd.s32 %v341, %v334
  %v352 = vadd.s32 %v341, %v335
  %v353 = vadd.s32 %v341, %v336
  %v354 = vadd.s32 %v341, %v337
  %v355 = vadd.s32 %v341, %v338
  %v356 = vadd.s32 %v341, %v339
  %v357 = vadd.s32 %v341, %v340
  %vm358 = vcmp.lt.s32.totalorder %v342, 128
  %vm359 = vcmp.lt.s32.totalorder %v343, 128
  %vm360 = vcmp.lt.s32.totalorder %v344, 128
  %vm361 = vcmp.lt.s32.totalorder %v345, 128
  %vm362 = vcmp.lt.s32.totalorder %v346, 128
  %vm363 = vcmp.lt.s32.totalorder %v347, 128
  %vm364 = vcmp.lt.s32.totalorder %v348, 128
  %vm365 = vcmp.lt.s32.totalorder %v349, 128
  %vm366 = vcmp.lt.s32.totalorder %v350, 128
  %vm367 = vcmp.lt.s32.totalorder %v351, 128
  %vm368 = vcmp.lt.s32.totalorder %v352, 128
  %vm369 = vcmp.lt.s32.totalorder %v353, 128
  %vm370 = vcmp.lt.s32.totalorder %v354, 128
  %vm371 = vcmp.lt.s32.totalorder %v355, 128
  %vm372 = vcmp.lt.s32.totalorder %v356, 128
  %vm373 = vcmp.lt.s32.totalorder %v357, 128
  %v374 = vsel %vm358, 1, 0
  %v375 = vsel %vm359, 1, 0
  %v376 = vsel %vm360, 1, 0
  %v377 = vsel %vm361, 1, 0
  %v378 = vsel %vm362, 1, 0
  %v379 = vsel %vm363, 1, 0
  %v380 = vsel %vm364, 1, 0
  %v381 = vsel %vm365, 1, 0
  %v382 = vsel %vm366, 1, 0
  %v383 = vsel %vm367, 1, 0
  %v384 = vsel %vm368, 1, 0
  %v385 = vsel %vm369, 1, 0
  %v386 = vsel %vm370, 1, 0
  %v387 = vsel %vm371, 1, 0
  %v388 = vsel %vm372, 1, 0
  %v389 = vsel %vm373, 1, 0
  %v390 = vcvt.s32.f32 %v374
  %v391 = vcvt.s32.f32 %v375
  %v392 = vcvt.s32.f32 %v376
  %v393 = vcvt.s32.f32 %v377
  %v394 = vcvt.s32.f32 %v378
  %v395 = vcvt.s32.f32 %v379
  %v396 = vcvt.s32.f32 %v380
  %v397 = vcvt.s32.f32 %v381
  %v398 = vcvt.s32.f32 %v382
  %v399 = vcvt.s32.f32 %v383
  %v400 = vcvt.s32.f32 %v384
  %v401 = vcvt.s32.f32 %v385
  %v402 = vcvt.s32.f32 %v386
  %v403 = vcvt.s32.f32 %v387
  %v404 = vcvt.s32.f32 %v388
  %v405 = vcvt.s32.f32 %v389
  %v406 = vmul.f32 %v245, %v390
  %v407 = vmul.f32 %v248, %v391
  %v408 = vmul.f32 %v253, %v392
  %v409 = vmul.f32 %v256, %v393
  %v410 = vmul.f32 %v261, %v394
  %v411 = vmul.f32 %v264, %v395
  %v412 = vmul.f32 %v269, %v396
  %v413 = vmul.f32 %v272, %v397
  %v414 = vmul.f32 %v277, %v398
  %v415 = vmul.f32 %v280, %v399
  %v416 = vmul.f32 %v285, %v400
  %v417 = vmul.f32 %v288, %v401
  %v418 = vmul.f32 %v293, %v402
  %v419 = vmul.f32 %v296, %v403
  %v420 = vmul.f32 %v301, %v404
  %v421 = vmul.f32 %v304, %v405
  %v422 = vsel %vm185, %v406, 0.0
  %v423 = vsel %vm185, %v407, 0.0
  %v424 = vadd.f32 %v422, %v423
  %v425 = vsel %vm185, %v408, 0.0
  %v426 = vadd.f32 %v424, %v425
  %v427 = vsel %vm185, %v409, 0.0
  %v428 = vadd.f32 %v426, %v427
  %v429 = vsel %vm185, %v410, 0.0
  %v430 = vadd.f32 %v428, %v429
  %v431 = vsel %vm185, %v411, 0.0
  %v432 = vadd.f32 %v430, %v431
  %v433 = vsel %vm185, %v412, 0.0
  %v434 = vadd.f32 %v432, %v433
  %v435 = vsel %vm185, %v413, 0.0
  %v436 = vadd.f32 %v434, %v435
  %v437 = vsel %vm185, %v414, 0.0
  %v438 = vadd.f32 %v436, %v437
  %v439 = vsel %vm185, %v415, 0.0
  %v440 = vadd.f32 %v438, %v439
  %v441 = vsel %vm185, %v416, 0.0
  %v442 = vadd.f32 %v440, %v441
  %v443 = vsel %vm185, %v417, 0.0
  %v444 = vadd.f32 %v442, %v443
  %v445 = vsel %vm185, %v418, 0.0
  %v446 = vadd.f32 %v444, %v445
  %v447 = vsel %vm185, %v419, 0.0
  %v448 = vadd.f32 %v446, %v447
  %v449 = vsel %vm185, %v420, 0.0
  %v450 = vadd.f32 %v448, %v449
  %v451 = vsel %vm185, %v421, 0.0
  %v452 = vadd.f32 %v450, %v451
  %v453 = vrot.slane %v452, 4
  %v454 = vadd.f32 %v452, %v453
  %v455 = vrot.slane %v454, 2
  %v456 = vadd.f32 %v454, %v455
  %v457 = vrot.slane %v456, 1
  %v458 = vadd.f32 %v456, %v457
  %vm459 = vcmask 122880
  %460 = vst.msk [vmem:[%s4] sm:$0x1] %vm459, %v458
  %v461 = vmul.f32 %v406, %v245
  %v462 = vmul.f32 %v407, %v248
  %v463 = vmul.f32 %v408, %v253
  %v464 = vmul.f32 %v409, %v256
  %v465 = vmul.f32 %v410, %v261
  %v466 = vmul.f32 %v411, %v264
  %v467 = vmul.f32 %v412, %v269
  %v468 = vmul.f32 %v413, %v272
  %v469 = vmul.f32 %v414, %v277
  %v470 = vmul.f32 %v415, %v280
  %v471 = vmul.f32 %v416, %v285
  %v472 = vmul.f32 %v417, %v288
  %v473 = vmul.f32 %v418, %v293
  %v474 = vmul.f32 %v419, %v296
  %v475 = vmul.f32 %v420, %v301
  %v476 = vmul.f32 %v421, %v304
  %v477 = vsel %vm185, %v461, 0.0
  %v478 = vsel %vm185, %v462, 0.0
  %v479 = vadd.f32 %v477, %v478
  %v480 = vsel %vm185, %v463, 0.0
  %v481 = vadd.f32 %v479, %v480
  %v482 = vsel %vm185, %v464, 0.0
  %v483 = vadd.f32 %v481, %v482
  %v484 = vsel %vm185, %v465, 0.0
  %v485 = vadd.f32 %v483, %v484
  %v486 = vsel %vm185, %v466, 0.0
  %v487 = vadd.f32 %v485, %v486
  %v488 = vsel %vm185, %v467, 0.0
  %v489 = vadd.f32 %v487, %v488
  %v490 = vsel %vm185, %v468, 0.0
  %v491 = vadd.f32 %v489, %v490
  %v492 = vsel %vm185, %v469, 0.0
  %v493 = vadd.f32 %v491, %v492
  %v494 = vsel %vm185, %v470, 0.0
  %v495 = vadd.f32 %v493, %v494
  %v496 = vsel %vm185, %v471, 0.0
  %v497 = vadd.f32 %v495, %v496
  %v498 = vsel %vm185, %v472, 0.0
  %v499 = vadd.f32 %v497, %v498
  %v500 = vsel %vm185, %v473, 0.0
  %v501 = vadd.f32 %v499, %v500
  %v502 = vsel %vm185, %v474, 0.0
  %v503 = vadd.f32 %v501, %v502
  %v504 = vsel %vm185, %v475, 0.0
  %v505 = vadd.f32 %v503, %v504
  %v506 = vsel %vm185, %v476, 0.0
  %v507 = vadd.f32 %v505, %v506
  %v508 = vrot.slane %v507, 4
  %v509 = vadd.f32 %v507, %v508
  %v510 = vrot.slane %v509, 2
  %v511 = vadd.f32 %v509, %v510
  %v512 = vrot.slane %v511, 1
  %v513 = vadd.f32 %v511, %v512
  %514 = vst.msk [vmem:[%s5] sm:$0x1] %vm459, %v513
  // Predicated region
  $region14: #{local_enhancer_forward.53} parent=0 // pred_check
    _
  $region15: #{local_enhancer_forward.53} parent=0 // pred_check_branch
    %516 = sbr.rel (0) target = $region17
  $region16: #{local_enhancer_forward.53} parent=0 // pred_region
    _
  $region17: #{local_enhancer_forward.53} parent=0 // pred_fallthru
    _
  // Predicated region
  $region18: #{local_enhancer_forward.53} parent=0 // pred_check
    _
  $region19: #{local_enhancer_forward.53} parent=0 // pred_check_branch
    %518 = sbr.rel (0) target = $region21
  $region20: #{local_enhancer_forward.53} parent=0 // pred_region
    _
  $region21: #{local_enhancer_forward.53} parent=0 // pred_fallthru
    _
  // Predicated region
  $region22: #{local_enhancer_forward.53} parent=0 // pred_check
    _
  $region23: #{local_enhancer_forward.53} parent=0 // pred_check_branch
    %520 = sbr.rel (0) target = $region25
  $region24: #{local_enhancer_forward.53} parent=0 // pred_region
    _
  $region25: #{local_enhancer_forward.53} parent=0 // pred_fallthru
    _
  // Predicated region
  $region26: #{local_enhancer_forward.53} parent=0 // pred_check
    _
  $region27: #{local_enhancer_forward.53} parent=0 // pred_check_branch
    %522 = sbr.rel (0) target = $region29
  $region28: #{local_enhancer_forward.53} parent=0 // pred_region
    _
  $region29: #{local_enhancer_forward.53} parent=0 // pred_fallthru
    _
  // Predicated region
  $region30: #{local_enhancer_forward.53} parent=0 // pred_check
    _
  $region31: #{local_enhancer_forward.53} parent=0 // pred_check_branch
    %524 = sbr.rel (0) target = $region33
  $region32: #{local_enhancer_forward.53} parent=0 // pred_region
    _
  $region33: #{local_enhancer_forward.53} parent=0 // pred_fallthru
    _
  // Predicated region
  $region34: #{local_enhancer_forward.53} parent=0 // pred_check
    _
  $region35: #{local_enhancer_forward.53} parent=0 // pred_check_branch
    %526 = sbr.rel (0) target = $region37
  $region36: #{local_enhancer_forward.53} parent=0 // pred_region
    _
  $region37: #{local_enhancer_forward.53} parent=0 // pred_fallthru
    _

// kernel: local_enhancer_forward.56
$region0: #{local_enhancer_forward.56}
  #allocation0 [shape = 'u32[]', space=smem, size = 0x4, offset = 0x4, fixed_abs, tag = 'smem constant byte address 0x4 - core index']
  #allocation1 [shape = 'u32[144,128]{1,0:T(1,128)}', space=vmem, size = 0x12000, scoped, tag = 'internal scratch']
  %s0 = inlined_call_operand.vmem [shape: f32[4,512], index: 0, kind: input, shape index: {}]
  %s1 = inlined_call_operand.vmem [shape: f32[1,512], index: 1, kind: input, shape index: {}]
  %s2 = inlined_call_operand.vmem [shape: f32[1,512], index: 2, kind: input, shape index: {}]
  %s3 = inlined_call_operand.vmem [shape: f32[4,512], index: 3, kind: input, shape index: {}]
  %s4 = inlined_call_operand.vmem [shape: f32[4,512], index: 4, kind: output, shape index: {}]
  %s5 = sld [smem:[#allocation0]]
  $region26: #{local_enhancer_forward.56} parent=0
    _
  %s7 = ssub.s32 1, %s5
  %s8 = scalar_select 0, %s7, %s5
  // Predicated region
  $region2: #{local_enhancer_forward.56} parent=0 // pred_check
    _
  $region3: #{local_enhancer_forward.56} parent=0 // pred_check_branch
    %10 = sbr.rel (0) target = $region5
  $region4: #{local_enhancer_forward.56} parent=0 // pred_region
    _
  $region5: #{local_enhancer_forward.56} parent=0 // pred_fallthru
    _
  // Predicated region
  $region6: #{local_enhancer_forward.56} parent=0 // pred_check
    _
  $region7: #{local_enhancer_forward.56} parent=0 // pred_check_branch
    %12 = sbr.rel (0) target = $region9
  $region8: #{local_enhancer_forward.56} parent=0 // pred_region
    _
  $region9: #{local_enhancer_forward.56} parent=0 // pred_fallthru
    _
  // Predicated region
  $region10: #{local_enhancer_forward.56} parent=0 // pred_check
    _
  $region11: #{local_enhancer_forward.56} parent=0 // pred_check_branch
    %14 = sbr.rel (0) target = $region13
  $region12: #{local_enhancer_forward.56} parent=0 // pred_region
    _
  $region13: #{local_enhancer_forward.56} parent=0 // pred_fallthru
    _
  // Predicated region
  $region14: #{local_enhancer_forward.56} parent=0 // pred_check
    _
  $region15: #{local_enhancer_forward.56} parent=0 // pred_check_branch
    %16 = sbr.rel (0) target = $region17
  $region16: #{local_enhancer_forward.56} parent=0 // pred_region
    _
  $region17: #{local_enhancer_forward.56} parent=0 // pred_fallthru
    _
  %v17 = vld [vmem:[%s0] sm:$0xff]
  %v18 = vld [vmem:[%s0 + $0x8] sm:$0xff]
  %v19 = vld [vmem:[%s1] sm:$0xf]
  %v21 = vlaneseq
  %v22 = vshrl.u32 %v21, 7
  %v23 = vsub.s32 0, %v22
  %v24 = vrot.slane %v19, %v23
  %v25 = vlaneseq
  %v26 = vshrl.u32 %v25, 7
  %v27 = vsub.s32 1, %v26
  %v28 = vrot.slane %v19, %v27
  %v29 = vlaneseq
  %v30 = vshrl.u32 %v29, 7
  %v31 = vsub.s32 2, %v30
  %v32 = vrot.slane %v19, %v31
  %v33 = vlaneseq
  %v34 = vshrl.u32 %v33, 7
  %v35 = vsub.s32 3, %v34
  %v36 = vrot.slane %v19, %v35
  %v37 = vcombine.low %v24, %v28
  %v38 = vcombine.low %v32, %v36
  %v41 = vmul.f32 %v17, %v37
  %v42 = vmul.f32 %v18, %v38
  %v43 = vld [vmem:[%s2] sm:$0xf]
  %v45 = vlaneseq
  %v46 = vshrl.u32 %v45, 7
  %v47 = vsub.s32 0, %v46
  %v48 = vrot.slane %v43, %v47
  %v49 = vlaneseq
  %v50 = vshrl.u32 %v49, 7
  %v51 = vsub.s32 1, %v50
  %v52 = vrot.slane %v43, %v51
  %v53 = vlaneseq
  %v54 = vshrl.u32 %v53, 7
  %v55 = vsub.s32 2, %v54
  %v56 = vrot.slane %v43, %v55
  %v57 = vlaneseq
  %v58 = vshrl.u32 %v57, 7
  %v59 = vsub.s32 3, %v58
  %v60 = vrot.slane %v43, %v59
  %v61 = vcombine.low %v48, %v52
  %v62 = vcombine.low %v56, %v60
  %v65 = vadd.f32 %v41, %v61
  %v66 = vadd.f32 %v42, %v62
  %v67 = vld [vmem:[%s3] sm:$0xff]
  %v68 = vld [vmem:[%s3 + $0x8] sm:$0xff]
  %v69 = vadd.f32 %v65, %v67
  %v70 = vadd.f32 %v66, %v68
  %71 = vst [vmem:[%s4] sm:$0xff] %v69
  %72 = vst [vmem:[%s4 + $0x8] sm:$0xff] %v70
  // Predicated region
  $region18: #{local_enhancer_forward.56} parent=0 // pred_check
    _
  $region19: #{local_enhancer_forward.56} parent=0 // pred_check_branch
    %74 = sbr.rel (0) target = $region21
  $region20: #{local_enhancer_forward.56} parent=0 // pred_region
    _
  $region21: #{local_enhancer_forward.56} parent=0 // pred_fallthru
    _
  // Predicated region
  $region22: #{local_enhancer_forward.56} parent=0 // pred_check
    _
  $region23: #{local_enhancer_forward.56} parent=0 // pred_check_branch
    %76 = sbr.rel (0) target = $region25
  $region24: #{local_enhancer_forward.56} parent=0 // pred_region
    _
  $region25: #{local_enhancer_forward.56} parent=0 // pred_fallthru
    _

// kernel: tile.338
$region0: #{tile.338}
  #allocation0 [shape = 's32[1]{0}', space=sflag, size = 0x4, scoped, tag = 'scoped memory for tile.338']
  %s0 = inlined_call_operand.vmem [shape: f32[8], index: 0, kind: input, shape index: {}]
  %s1 = inlined_call_operand.vmem [shape: f32[4,8], index: 1, kind: output, shape index: {}]
  // Predicated region
  $region2: #{tile.338} parent=0 // pred_check
    _
  $region3: #{tile.338} parent=0 // pred_check_branch
    %3 = sbr.rel (0) target = $region5
  $region4: #{tile.338} parent=0 // pred_region
    _
  $region5: #{tile.338} parent=0 // pred_fallthru
    _
  %v4 = vld [vmem:[%s0] ss:$0 sm:$0xff]
  %5 = vst [vmem:[%s1] sm:$0xf] %v4

// kernel: tile.339
$region0: #{tile.339}
  %s0 = inlined_call_operand.vmem [shape: f32[4,8], index: 0, kind: input, shape index: {}]
  %s1 = inlined_call_operand.vmem [shape: f32[1,32], index: 1, kind: output, shape index: {}]
  $region1: #{tile.339} parent=0
    #allocation0 [shape = 'u8[4096]{0}', space=vmem, size = 0x1000, scoped, tag = 'scoped mem for output reshape']
    #allocation1 [shape = 'u8[4096]{0}', space=vmem, size = 0x1000, scoped, tag = 'scoped mem for input reshape']
    %s3 = sshllo.u32 0, 4
    %v4 = vld [vmem:[%s0] sm:%s3]
    %5 = vst [vmem:[#allocation1] sm:%s3] %v4
    %v6 = vld [vmem:[#allocation1] sm:$0x1]
    %vm7 = vcmask 64512
    %8 = vst.msk [vmem:[#allocation0] sm:$0x1] %vm7, %v6
    %s9 = scalar_lea.vmem [#allocation1], 3
    %v10 = vld [vmem:[%s9] sm:$0x1]
    %11 = vrot.lane.b32.xlu0 %v10, 24
    %v12 = vpop.permute.xlu0 %11
    %vm13 = vcmask 261312
    %14 = vst.msk [vmem:[#allocation0] sm:$0x1] %vm13, %v12
    %s15 = scalar_lea.vmem [#allocation1], 2
    %v16 = vld [vmem:[%s15] sm:$0x1]
    %17 = vrot.lane.b32.xlu0 %v16, 16
    %v18 = vpop.permute.xlu0 %17
    %vm19 = vcmask 195712
    %20 = vst.msk [vmem:[#allocation0] sm:$0x1] %vm19, %v18
    %s21 = scalar_lea.vmem [#allocation1], 1
    %v22 = vld [vmem:[%s21] sm:$0x1]
    %23 = vrot.lane.b32.xlu0 %v22, 8
    %v24 = vpop.permute.xlu0 %23
    %vm25 = vcmask 130112
    %26 = vst.msk [vmem:[#allocation0] sm:$0x1] %vm25, %v24
    %s28 = sshllo.u32 0, 1
    %v30 = vld [vmem:[#allocation0] sm:%s28]
    %s31 = sshllo.u32 0, 1
    %32 = vst [vmem:[%s1] sm:%s31] %v30

// kernel: tile.350
$region0: #{tile.350}
  %s0 = inlined_call_operand.vmem [shape: f32[4,8], index: 0, kind: input, shape index: {}]
  %s1 = inlined_call_operand.vmem [shape: f32[32], index: 1, kind: output, shape index: {}]
  $region1: #{tile.350} parent=0
    #allocation0 [shape = 'u8[4096]{0}', space=vmem, size = 0x1000, scoped, tag = 'scoped mem for output reshape']
    #allocation1 [shape = 'u8[4096]{0}', space=vmem, size = 0x1000, scoped, tag = 'scoped mem for input reshape']
    %s3 = sshllo.u32 0, 4
    %v4 = vld [vmem:[%s0] sm:%s3]
    %5 = vst [vmem:[#allocation1] sm:%s3] %v4
    %v6 = vld [vmem:[#allocation1] sm:$0x1]
    %vm7 = vcmask 64512
    %8 = vst.msk [vmem:[#allocation0] sm:$0x1] %vm7, %v6
    %s9 = scalar_lea.vmem [#allocation1], 3
    %v10 = vld [vmem:[%s9] sm:$0x1]
    %11 = vrot.lane.b32.xlu0 %v10, 24
    %v12 = vpop.permute.xlu0 %11
    %vm13 = vcmask 261312
    %14 = vst.msk [vmem:[#allocation0] sm:$0x1] %vm13, %v12
    %s15 = scalar_lea.vmem [#allocation1], 2
    %v16 = vld [vmem:[%s15] sm:$0x1]
    %17 = vrot.lane.b32.xlu0 %v16, 16
    %v18 = vpop.permute.xlu0 %17
    %vm19 = vcmask 195712
    %20 = vst.msk [vmem:[#allocation0] sm:$0x1] %vm19, %v18
    %s21 = scalar_lea.vmem [#allocation1], 1
    %v22 = vld [vmem:[%s21] sm:$0x1]
    %23 = vrot.lane.b32.xlu0 %v22, 8
    %v24 = vpop.permute.xlu0 %23
    %vm25 = vcmask 130112
    %26 = vst.msk [vmem:[#allocation0] sm:$0x1] %vm25, %v24
    %s28 = sshllo.u32 0, 1
    %v30 = vld [vmem:[#allocation0] sm:%s28]
    %s31 = sshllo.u32 0, 1
    %32 = vst [vmem:[%s1] sm:%s31] %v30

// kernel: local_enhancer_forward.57
$region0: #{local_enhancer_forward.57}
  #allocation0 [shape = 'u32[]', space=smem, size = 0x4, offset = 0x4, fixed_abs, tag = 'smem constant byte address 0x4 - core index']
  #allocation1 [shape = 'u32[144,128]{1,0:T(1,128)}', space=vmem, size = 0x12000, scoped, tag = 'internal scratch']
  %s0 = inlined_call_operand.vmem [shape: bf16[128,64], index: 0, kind: input, shape index: {}]
  %s1 = inlined_call_operand.vmem [shape: bf16[64,32], index: 1, kind: input, shape index: {}]
  %s2 = inlined_call_operand.vmem [shape: f32[1,32], index: 2, kind: input, shape index: {}]
  %s3 = inlined_call_operand.vmem [shape: f32[128,32], index: 3, kind: output, shape index: {0}]
  %s4 = inlined_call_operand.vmem [shape: f32[1,1,32], index: 4, kind: output, shape index: {1}]
  %s5 = inlined_call_operand.vmem [shape: f32[1,1,32], index: 5, kind: output, shape index: {2}]
  %6 = xla_tuple %s3, %s4, %s5
  %s7 = sld [smem:[#allocation0]]
  $region38: #{local_enhancer_forward.57} parent=0
    _
  %s9 = ssub.s32 1, %s7
  %s10 = scalar_select 0, %s9, %s7
  // Predicated region
  $region2: #{local_enhancer_forward.57} parent=0 // pred_check
    _
  $region3: #{local_enhancer_forward.57} parent=0 // pred_check_branch
    %12 = sbr.rel (0) target = $region5
  $region4: #{local_enhancer_forward.57} parent=0 // pred_region
    _
  $region5: #{local_enhancer_forward.57} parent=0 // pred_fallthru
    _
  // Predicated region
  $region6: #{local_enhancer_forward.57} parent=0 // pred_check
    _
  $region7: #{local_enhancer_forward.57} parent=0 // pred_check_branch
    %14 = sbr.rel (0) target = $region9
  $region8: #{local_enhancer_forward.57} parent=0 // pred_region
    _
  $region9: #{local_enhancer_forward.57} parent=0 // pred_fallthru
    _
  // Predicated region
  $region10: #{local_enhancer_forward.57} parent=0 // pred_check
    _
  $region11: #{local_enhancer_forward.57} parent=0 // pred_check_branch
    %16 = sbr.rel (0) target = $region13
  $region12: #{local_enhancer_forward.57} parent=0 // pred_region
    _
  $region13: #{local_enhancer_forward.57} parent=0 // pred_fallthru
    _
  %v18 = vld [vmem:[%s0] sm:$0xf]
  %v19 = vld [vmem:[%s0 + $0x4] sm:$0xf]
  %v20 = vld [vmem:[%s0 + $0x8] sm:$0xf]
  %v21 = vld [vmem:[%s0 + $0xc] sm:$0xf]
  %v22 = vld [vmem:[%s0 + $0x10] sm:$0xf]
  %v23 = vld [vmem:[%s0 + $0x14] sm:$0xf]
  %v24 = vld [vmem:[%s0 + $0x18] sm:$0xf]
  %v25 = vld [vmem:[%s0 + $0x1c] sm:$0xf]
  %v26 = vld [vmem:[%s0 + $0x20] sm:$0xf]
  %v27 = vld [vmem:[%s0 + $0x24] sm:$0xf]
  %v28 = vld [vmem:[%s0 + $0x28] sm:$0xf]
  %v29 = vld [vmem:[%s0 + $0x2c] sm:$0xf]
  %v30 = vld [vmem:[%s0 + $0x30] sm:$0xf]
  %v31 = vld [vmem:[%s0 + $0x34] sm:$0xf]
  %v32 = vld [vmem:[%s0 + $0x38] sm:$0xf]
  %v33 = vld [vmem:[%s0 + $0x3c] sm:$0xf]
  %v34 = vld [vmem:[%s1] sm:$0xf]
  %v35 = vld [vmem:[%s1 + $0x4] sm:$0xf]
  %v36 = vld [vmem:[%s1 + $0x8] sm:$0xf]
  %v37 = vld [vmem:[%s1 + $0xc] sm:$0xf]
  %v38 = vld [vmem:[%s1 + $0x10] sm:$0xf]
  %v39 = vld [vmem:[%s1 + $0x14] sm:$0xf]
  %v40 = vld [vmem:[%s1 + $0x18] sm:$0xf]
  %v41 = vld [vmem:[%s1 + $0x1c] sm:$0xf]
  %v42 = vld [vmem:[%s2] sm:$0x1]
  %v44 = vlaneseq
  %v45 = vshrl.u32 %v44, 7
  %v46 = vsub.s32 0, %v45
  %v47 = vrot.slane %v42, %v46
  %v65 = vunpack.c.l.b16 %v18
  %v66 = vunpack.c.l.b16 %v19
  %v67 = vunpack.c.l.b16 %v20
  %v68 = vunpack.c.l.b16 %v21
  %v69 = vunpack.c.l.b16 %v22
  %v70 = vunpack.c.l.b16 %v23
  %v71 = vunpack.c.l.b16 %v24
  %v72 = vunpack.c.l.b16 %v25
  %v73 = vunpack.c.l.b16 %v26
  %v74 = vunpack.c.l.b16 %v27
  %v75 = vunpack.c.l.b16 %v28
  %v76 = vunpack.c.l.b16 %v29
  %v77 = vunpack.c.l.b16 %v30
  %v78 = vunpack.c.l.b16 %v31
  %v79 = vunpack.c.l.b16 %v32
  %v80 = vunpack.c.l.b16 %v33
  %v81 = vpack.c.b16 %v66, %v65
  %v82 = vpack.c.b16 %v68, %v67
  %v83 = vpack.c.b16 %v70, %v69
  %v84 = vpack.c.b16 %v72, %v71
  %v85 = vpack.c.b16 %v74, %v73
  %v86 = vpack.c.b16 %v76, %v75
  %v87 = vpack.c.b16 %v78, %v77
  %v88 = vpack.c.b16 %v80, %v79
  %v97 = vunpack.c.l.b16 %v34
  %v98 = vunpack.c.l.b16 %v35
  %v99 = vunpack.c.l.b16 %v36
  %v100 = vunpack.c.l.b16 %v37
  %v101 = vunpack.c.l.b16 %v38
  %v102 = vunpack.c.l.b16 %v39
  %v103 = vunpack.c.l.b16 %v40
  %v104 = vunpack.c.l.b16 %v41
  %v105 = vpack.c.b16 %v98, %v97
  %v106 = vpack.c.b16 %v100, %v99
  %v107 = vpack.c.b16 %v102, %v101
  %v108 = vpack.c.b16 %v104, %v103
  %vm113 = vcmask 523264
  %v115 = vsel %vm113, %v81, 0
  %v118 = vsel %vm113, %v82, 0
  %v121 = vsel %vm113, %v83, 0
  %v124 = vsel %vm113, %v84, 0
  %v127 = vsel %vm113, %v85, 0
  %v130 = vsel %vm113, %v86, 0
  %v133 = vsel %vm113, %v87, 0
  %v136 = vsel %vm113, %v88, 0
  %138 = vmatprep.subr.bf16.mxu0 0
  %139 = vmatpush1.bf16.msra.mxu0 %v105
  %140 = vmatprep.subr.bf16.mxu0 0
  %141 = vmatpush1.bf16.msra.mxu0 %v106
  %142 = vmatprep.subr.bf16.mxu0 0
  %143 = vmatpush1.bf16.msra.mxu0 %v107
  %144 = vmatprep.subr.bf16.mxu0 0
  %145 = vmatpush1.bf16.msra.mxu0 %v108
  %146 = vmatprep.subr.bf16.mxu0 0
  %147 = vmatpush1.bf16.msra.mxu0 0
  %148 = vmatprep.subr.bf16.mxu0 0
  %149 = vmatpush1.bf16.msra.mxu0 0
  %150 = vmatprep.subr.bf16.mxu0 0
  %151 = vmatpush1.bf16.msra.mxu0 0
  %152 = vmatprep.subr.bf16.mxu0 0
  %153 = vmatpush1.bf16.msra.mxu0 0
  %154 = vmatprep.subr.bf16.mxu0 0
  %155 = vmatpush1.bf16.msra.mxu0 0
  %156 = vmatprep.subr.bf16.mxu0 0
  %157 = vmatpush1.bf16.msra.mxu0 0
  %158 = vmatprep.subr.bf16.mxu0 0
  %159 = vmatpush1.bf16.msra.mxu0 0
  %160 = vmatprep.subr.bf16.mxu0 0
  %161 = vmatpush1.bf16.msra.mxu0 0
  %162 = vmatprep.subr.bf16.mxu0 0
  %163 = vmatpush1.bf16.msra.mxu0 0
  %164 = vmatprep.subr.bf16.mxu0 0
  %165 = vmatpush1.bf16.msra.mxu0 0
  %166 = vmatprep.subr.bf16.mxu0 0
  %167 = vmatpush1.bf16.msra.mxu0 0
  %168 = vmatprep.subr.bf16.mxu0 0
  %169 = vmatpush1.bf16.msra.mxu0 0
  %170 = vmatprep.mubr.bf16.mxu0 0
  %171 = vmatmul.mubr.bf16.gmra.mrb[0].mxu0 %v115
  %v172 = vpop.f32.mrb[0].mxu0
  %v173 = vadd.f32 %v47, %v172
  %v174 = vpop.f32.mrb[0].mxu0
  %v175 = vpop.f32.mrb[0].mxu0
  %v176 = vadd.f32 %v47, %v175
  %v177 = vpop.f32.mrb[0].mxu0
  %178 = vmatprep.mubr.bf16.mxu0 0
  %179 = vmatmul.mubr.bf16.gmra.mrb[0].mxu0 %v118
  %v180 = vpop.f32.mrb[0].mxu0
  %v181 = vadd.f32 %v47, %v180
  %v182 = vpop.f32.mrb[0].mxu0
  %v183 = vpop.f32.mrb[0].mxu0
  %v184 = vadd.f32 %v47, %v183
  %v185 = vpop.f32.mrb[0].mxu0
  %186 = vmatprep.mubr.bf16.mxu0 0
  %187 = vmatmul.mubr.bf16.gmra.mrb[0].mxu0 %v121
  %v188 = vpop.f32.mrb[0].mxu0
  %v189 = vadd.f32 %v47, %v188
  %v190 = vpop.f32.mrb[0].mxu0
  %v191 = vpop.f32.mrb[0].mxu0
  %v192 = vadd.f32 %v47, %v191
  %v193 = vpop.f32.mrb[0].mxu0
  %194 = vmatprep.mubr.bf16.mxu0 0
  %195 = vmatmul.mubr.bf16.gmra.mrb[0].mxu0 %v124
  %v196 = vpop.f32.mrb[0].mxu0
  %v197 = vadd.f32 %v47, %v196
  %v198 = vpop.f32.mrb[0].mxu0
  %v199 = vpop.f32.mrb[0].mxu0
  %v200 = vadd.f32 %v47, %v199
  %v201 = vpop.f32.mrb[0].mxu0
  %202 = vmatprep.mubr.bf16.mxu0 0
  %203 = vmatmul.mubr.bf16.gmra.mrb[0].mxu0 %v127
  %v204 = vpop.f32.mrb[0].mxu0
  %v205 = vadd.f32 %v47, %v204
  %v206 = vpop.f32.mrb[0].mxu0
  %v207 = vpop.f32.mrb[0].mxu0
  %v208 = vadd.f32 %v47, %v207
  %v209 = vpop.f32.mrb[0].mxu0
  %210 = vmatprep.mubr.bf16.mxu0 0
  %211 = vmatmul.mubr.bf16.gmra.mrb[0].mxu0 %v130
  %v212 = vpop.f32.mrb[0].mxu0
  %v213 = vadd.f32 %v47, %v212
  %v214 = vpop.f32.mrb[0].mxu0
  %v215 = vpop.f32.mrb[0].mxu0
  %v216 = vadd.f32 %v47, %v215
  %v217 = vpop.f32.mrb[0].mxu0
  %218 = vmatprep.mubr.bf16.mxu0 0
  %219 = vmatmul.mubr.bf16.gmra.mrb[0].mxu0 %v133
  %v220 = vpop.f32.mrb[0].mxu0
  %v221 = vadd.f32 %v47, %v220
  %v222 = vpop.f32.mrb[0].mxu0
  %v223 = vpop.f32.mrb[0].mxu0
  %v224 = vadd.f32 %v47, %v223
  %v225 = vpop.f32.mrb[0].mxu0
  %226 = vmatprep.mubr.bf16.mxu0 0
  %227 = vmatmul.mubr.bf16.gmra.mrb[0].mxu0 %v136
  %v228 = vpop.f32.mrb[0].mxu0
  %v229 = vadd.f32 %v47, %v228
  %v230 = vpop.f32.mrb[0].mxu0
  %v231 = vpop.f32.mrb[0].mxu0
  %v232 = vadd.f32 %v47, %v231
  %v233 = vpop.f32.mrb[0].mxu0
  %234 = vdwg.mxu0
  %vm235 = vcmask 261120
  %236 = vst.msk [vmem:[%s3] sm:$0xff] %vm235, %v173
  %237 = vst.msk [vmem:[%s3 + $0x8] sm:$0xff] %vm235, %v176
  %238 = vst.msk [vmem:[%s3 + $0x10] sm:$0xff] %vm235, %v181
  %239 = vst.msk [vmem:[%s3 + $0x18] sm:$0xff] %vm235, %v184
  %240 = vst.msk [vmem:[%s3 + $0x20] sm:$0xff] %vm235, %v189
  %241 = vst.msk [vmem:[%s3 + $0x28] sm:$0xff] %vm235, %v192
  %242 = vst.msk [vmem:[%s3 + $0x30] sm:$0xff] %vm235, %v197
  %243 = vst.msk [vmem:[%s3 + $0x38] sm:$0xff] %vm235, %v200
  %244 = vst.msk [vmem:[%s3 + $0x40] sm:$0xff] %vm235, %v205
  %245 = vst.msk [vmem:[%s3 + $0x48] sm:$0xff] %vm235, %v208
  %246 = vst.msk [vmem:[%s3 + $0x50] sm:$0xff] %vm235, %v213
  %247 = vst.msk [vmem:[%s3 + $0x58] sm:$0xff] %vm235, %v216
  %248 = vst.msk [vmem:[%s3 + $0x60] sm:$0xff] %vm235, %v221
  %249 = vst.msk [vmem:[%s3 + $0x68] sm:$0xff] %vm235, %v224
  %250 = vst.msk [vmem:[%s3 + $0x70] sm:$0xff] %vm235, %v229
  %251 = vst.msk [vmem:[%s3 + $0x78] sm:$0xff] %vm235, %v232
  %s252 = smul.u32 0, 128
  %v253 = vlaneseq
  %v254 = vshrl.u32 %v253, 7
  %v255 = vadd.s32 %v254, 8
  %v256 = vadd.s32 %v254, 16
  %v257 = vadd.s32 %v254, 24
  %v258 = vadd.s32 %v254, 32
  %v259 = vadd.s32 %v254, 40
  %v260 = vadd.s32 %v254, 48
  %v261 = vadd.s32 %v254, 56
  %v262 = vadd.s32 %v254, 64
  %v263 = vadd.s32 %v254, 72
  %v264 = vadd.s32 %v254, 80
  %v265 = vadd.s32 %v254, 88
  %v266 = vadd.s32 %v254, 96
  %v267 = vadd.s32 %v254, 104
  %v268 = vadd.s32 %v254, 112
  %v269 = vadd.s32 %v254, 120
  %v270 = vstv %s252
  %v271 = vadd.s32 %v270, %v254
  %v272 = vadd.s32 %v270, %v255
  %v273 = vadd.s32 %v270, %v256
  %v274 = vadd.s32 %v270, %v257
  %v275 = vadd.s32 %v270, %v258
  %v276 = vadd.s32 %v270, %v259
  %v277 = vadd.s32 %v270, %v260
  %v278 = vadd.s32 %v270, %v261
  %v279 = vadd.s32 %v270, %v262
  %v280 = vadd.s32 %v270, %v263
  %v281 = vadd.s32 %v270, %v264
  %v282 = vadd.s32 %v270, %v265
  %v283 = vadd.s32 %v270, %v266
  %v284 = vadd.s32 %v270, %v267
  %v285 = vadd.s32 %v270, %v268
  %v286 = vadd.s32 %v270, %v269
  %vm287 = vcmp.lt.s32.totalorder %v271, 128
  %vm288 = vcmp.lt.s32.totalorder %v272, 128
  %vm289 = vcmp.lt.s32.totalorder %v273, 128
  %vm290 = vcmp.lt.s32.totalorder %v274, 128
  %vm291 = vcmp.lt.s32.totalorder %v275, 128
  %vm292 = vcmp.lt.s32.totalorder %v276, 128
  %vm293 = vcmp.lt.s32.totalorder %v277, 128
  %vm294 = vcmp.lt.s32.totalorder %v278, 128
  %vm295 = vcmp.lt.s32.totalorder %v279, 128
  %vm296 = vcmp.lt.s32.totalorder %v280, 128
  %vm297 = vcmp.lt.s32.totalorder %v281, 128
  %vm298 = vcmp.lt.s32.totalorder %v282, 128
  %vm299 = vcmp.lt.s32.totalorder %v283, 128
  %vm300 = vcmp.lt.s32.totalorder %v284, 128
  %vm301 = vcmp.lt.s32.totalorder %v285, 128
  %vm302 = vcmp.lt.s32.totalorder %v286, 128
  %v303 = vsel %vm287, 1, 0
  %v304 = vsel %vm288, 1, 0
  %v305 = vsel %vm289, 1, 0
  %v306 = vsel %vm290, 1, 0
  %v307 = vsel %vm291, 1, 0
  %v308 = vsel %vm292, 1, 0
  %v309 = vsel %vm293, 1, 0
  %v310 = vsel %vm294, 1, 0
  %v311 = vsel %vm295, 1, 0
  %v312 = vsel %vm296, 1, 0
  %v313 = vsel %vm297, 1, 0
  %v314 = vsel %vm298, 1, 0
  %v315 = vsel %vm299, 1, 0
  %v316 = vsel %vm300, 1, 0
  %v317 = vsel %vm301, 1, 0
  %v318 = vsel %vm302, 1, 0
  %v319 = vcvt.s32.f32 %v303
  %v320 = vcvt.s32.f32 %v304
  %v321 = vcvt.s32.f32 %v305
  %v322 = vcvt.s32.f32 %v306
  %v323 = vcvt.s32.f32 %v307
  %v324 = vcvt.s32.f32 %v308
  %v325 = vcvt.s32.f32 %v309
  %v326 = vcvt.s32.f32 %v310
  %v327 = vcvt.s32.f32 %v311
  %v328 = vcvt.s32.f32 %v312
  %v329 = vcvt.s32.f32 %v313
  %v330 = vcvt.s32.f32 %v314
  %v331 = vcvt.s32.f32 %v315
  %v332 = vcvt.s32.f32 %v316
  %v333 = vcvt.s32.f32 %v317
  %v334 = vcvt.s32.f32 %v318
  %v335 = vmul.f32 %v173, %v319
  %v336 = vmul.f32 %v176, %v320
  %v337 = vmul.f32 %v181, %v321
  %v338 = vmul.f32 %v184, %v322
  %v339 = vmul.f32 %v189, %v323
  %v340 = vmul.f32 %v192, %v324
  %v341 = vmul.f32 %v197, %v325
  %v342 = vmul.f32 %v200, %v326
  %v343 = vmul.f32 %v205, %v327
  %v344 = vmul.f32 %v208, %v328
  %v345 = vmul.f32 %v213, %v329
  %v346 = vmul.f32 %v216, %v330
  %v347 = vmul.f32 %v221, %v331
  %v348 = vmul.f32 %v224, %v332
  %v349 = vmul.f32 %v229, %v333
  %v350 = vmul.f32 %v232, %v334
  %v351 = vsel %vm235, %v335, 0.0
  %v352 = vsel %vm235, %v336, 0.0
  %v353 = vadd.f32 %v351, %v352
  %v354 = vsel %vm235, %v337, 0.0
  %v355 = vadd.f32 %v353, %v354
  %v356 = vsel %vm235, %v338, 0.0
  %v357 = vadd.f32 %v355, %v356
  %v358 = vsel %vm235, %v339, 0.0
  %v359 = vadd.f32 %v357, %v358
  %v360 = vsel %vm235, %v340, 0.0
  %v361 = vadd.f32 %v359, %v360
  %v362 = vsel %vm235, %v341, 0.0
  %v363 = vadd.f32 %v361, %v362
  %v364 = vsel %vm235, %v342, 0.0
  %v365 = vadd.f32 %v363, %v364
  %v366 = vsel %vm235, %v343, 0.0
  %v367 = vadd.f32 %v365, %v366
  %v368 = vsel %vm235, %v344, 0.0
  %v369 = vadd.f32 %v367, %v368
  %v370 = vsel %vm235, %v345, 0.0
  %v371 = vadd.f32 %v369, %v370
  %v372 = vsel %vm235, %v346, 0.0
  %v373 = vadd.f32 %v371, %v372
  %v374 = vsel %vm235, %v347, 0.0
  %v375 = vadd.f32 %v373, %v374
  %v376 = vsel %vm235, %v348, 0.0
  %v377 = vadd.f32 %v375, %v376
  %v378 = vsel %vm235, %v349, 0.0
  %v379 = vadd.f32 %v377, %v378
  %v380 = vsel %vm235, %v350, 0.0
  %v381 = vadd.f32 %v379, %v380
  %v382 = vrot.slane %v381, 4
  %v383 = vadd.f32 %v381, %v382
  %v384 = vrot.slane %v383, 2
  %v385 = vadd.f32 %v383, %v384
  %v386 = vrot.slane %v385, 1
  %v387 = vadd.f32 %v385, %v386
  %vm388 = vcmask 253952
  %389 = vst.msk [vmem:[%s4] sm:$0x1] %vm388, %v387
  %v390 = vmul.f32 %v335, %v173
  %v391 = vmul.f32 %v336, %v176
  %v392 = vmul.f32 %v337, %v181
  %v393 = vmul.f32 %v338, %v184
  %v394 = vmul.f32 %v339, %v189
  %v395 = vmul.f32 %v340, %v192
  %v396 = vmul.f32 %v341, %v197
  %v397 = vmul.f32 %v342, %v200
  %v398 = vmul.f32 %v343, %v205
  %v399 = vmul.f32 %v344, %v208
  %v400 = vmul.f32 %v345, %v213
  %v401 = vmul.f32 %v346, %v216
  %v402 = vmul.f32 %v347, %v221
  %v403 = vmul.f32 %v348, %v224
  %v404 = vmul.f32 %v349, %v229
  %v405 = vmul.f32 %v350, %v232
  %v406 = vsel %vm235, %v390, 0.0
  %v407 = vsel %vm235, %v391, 0.0
  %v408 = vadd.f32 %v406, %v407
  %v409 = vsel %vm235, %v392, 0.0
  %v410 = vadd.f32 %v408, %v409
  %v411 = vsel %vm235, %v393, 0.0
  %v412 = vadd.f32 %v410, %v411
  %v413 = vsel %vm235, %v394, 0.0
  %v414 = vadd.f32 %v412, %v413
  %v415 = vsel %vm235, %v395, 0.0
  %v416 = vadd.f32 %v414, %v415
  %v417 = vsel %vm235, %v396, 0.0
  %v418 = vadd.f32 %v416, %v417
  %v419 = vsel %vm235, %v397, 0.0
  %v420 = vadd.f32 %v418, %v419
  %v421 = vsel %vm235, %v398, 0.0
  %v422 = vadd.f32 %v420, %v421
  %v423 = vsel %vm235, %v399, 0.0
  %v424 = vadd.f32 %v422, %v423
  %v425 = vsel %vm235, %v400, 0.0
  %v426 = vadd.f32 %v424, %v425
  %v427 = vsel %vm235, %v401, 0.0
  %v428 = vadd.f32 %v426, %v427
  %v429 = vsel %vm235, %v402, 0.0
  %v430 = vadd.f32 %v428, %v429
  %v431 = vsel %vm235, %v403, 0.0
  %v432 = vadd.f32 %v430, %v431
  %v433 = vsel %vm235, %v404, 0.0
  %v434 = vadd.f32 %v432, %v433
  %v435 = vsel %vm235, %v405, 0.0
  %v436 = vadd.f32 %v434, %v435
  %v437 = vrot.slane %v436, 4
  %v438 = vadd.f32 %v436, %v437
  %v439 = vrot.slane %v438, 2
  %v440 = vadd.f32 %v438, %v439
  %v441 = vrot.slane %v440, 1
  %v442 = vadd.f32 %v440, %v441
  %443 = vst.msk [vmem:[%s5] sm:$0x1] %vm388, %v442
  // Predicated region
  $region14: #{local_enhancer_forward.57} parent=0 // pred_check
    _
  $region15: #{local_enhancer_forward.57} parent=0 // pred_check_branch
    %445 = sbr.rel (0) target = $region17
  $region16: #{local_enhancer_forward.57} parent=0 // pred_region
    _
  $region17: #{local_enhancer_forward.57} parent=0 // pred_fallthru
    _
  // Predicated region
  $region18: #{local_enhancer_forward.57} parent=0 // pred_check
    _
  $region19: #{local_enhancer_forward.57} parent=0 // pred_check_branch
    %447 = sbr.rel (0) target = $region21
  $region20: #{local_enhancer_forward.57} parent=0 // pred_region
    _
  $region21: #{local_enhancer_forward.57} parent=0 // pred_fallthru
    _
  // Predicated region
  $region22: #{local_enhancer_forward.57} parent=0 // pred_check
    _
  $region23: #{local_enhancer_forward.57} parent=0 // pred_check_branch
    %449 = sbr.rel (0) target = $region25
  $region24: #{local_enhancer_forward.57} parent=0 // pred_region
    _
  $region25: #{local_enhancer_forward.57} parent=0 // pred_fallthru
    _
  // Predicated region
  $region26: #{local_enhancer_forward.57} parent=0 // pred_check
    _
  $region27: #{local_enhancer_forward.57} parent=0 // pred_check_branch
    %451 = sbr.rel (0) target = $region29
  $region28: #{local_enhancer_forward.57} parent=0 // pred_region
    _
  $region29: #{local_enhancer_forward.57} parent=0 // pred_fallthru
    _
  // Predicated region
  $region30: #{local_enhancer_forward.57} parent=0 // pred_check
    _
  $region31: #{local_enhancer_forward.57} parent=0 // pred_check_branch
    %453 = sbr.rel (0) target = $region33
  $region32: #{local_enhancer_forward.57} parent=0 // pred_region
    _
  $region33: #{local_enhancer_forward.57} parent=0 // pred_fallthru
    _
  // Predicated region
  $region34: #{local_enhancer_forward.57} parent=0 // pred_check
    _
  $region35: #{local_enhancer_forward.57} parent=0 // pred_check_branch
    %455 = sbr.rel (0) target = $region37
  $region36: #{local_enhancer_forward.57} parent=0 // pred_region
    _
  $region37: #{local_enhancer_forward.57} parent=0 // pred_fallthru
    _

// kernel: local_enhancer_forward.59
$region0: #{local_enhancer_forward.59}
  #allocation0 [shape = 'u32[]', space=smem, size = 0x4, offset = 0x4, fixed_abs, tag = 'smem constant byte address 0x4 - core index']
  #allocation1 [shape = 'u32[144,128]{1,0:T(1,128)}', space=vmem, size = 0x12000, scoped, tag = 'internal scratch']
  %s0 = inlined_call_operand.vmem [shape: bf16[512,392], index: 0, kind: input, shape index: {}]
  %s1 = inlined_call_operand.vmem [shape: bf16[392,3], index: 1, kind: input, shape index: {}]
  %s2 = inlined_call_operand.vmem [shape: f32[1,3], index: 2, kind: input, shape index: {}]
  %s3 = inlined_call_operand.vmem [shape: f32[512,3], index: 3, kind: output, shape index: {0}]
  %s4 = inlined_call_operand.hbm [shape: f32[2,1,3], index: 4, kind: output, shape index: {1}]
  %s5 = inlined_call_operand.hbm [shape: f32[2,1,3], index: 5, kind: output, shape index: {2}]
  %6 = xla_tuple %s3, %s4, %s5
  %s7 = sld [smem:[#allocation0]]
  $region61: #{local_enhancer_forward.59} parent=0
    _
  %s9 = ssub.s32 1, %s7
  %s10 = scalar_select 0, %s9, %s7
  $region1: #{local_enhancer_forward.59} parent=0
    #allocation2 [shape = 'u8[1024]{0}', space=vmem, size = 0x400, scoped, tag = 'output window, operand 1']
    #allocation3 [shape = 's32[2]{0}', space=sflag, size = 0x8, scoped, tag = 'scoped memory for local_enhancer_forward.59']
    #allocation4 [shape = 'u8[1024]{0}', space=vmem, size = 0x400, scoped, tag = 'output window, operand 2']
    #allocation5 [shape = 's32[2]{0}', space=sflag, size = 0x8, scoped, tag = 'scoped memory for local_enhancer_forward.59']
    %11 = vsyncpa [#allocation3], 0
    %s12 = scalar_lea.sflag [#allocation3], 1
    %13 = vsyncpa %s12, 0
    %14 = vsyncpa [#allocation5], 0
    %s15 = scalar_lea.sflag [#allocation5], 1
    %16 = vsyncpa %s15, 0
    loop: start=0, step=1, limit=4
    $region2: #{local_enhancer_forward.59} parent=1 // loop_pre_header
      _
    $region3: #{local_enhancer_forward.59} parent=1 // loop_header
      %s18 = sphi 0, %s22
      %p19 = scmp.ge.s32.totalorder %s18, 4
      %s28 = sphi 0, %s30
      %s31 = sphi 0, %s28
      %s32 = sphi 0, %s31
      %s48 = sphi 0, %s32
      %s52 = sphi 0, %s52
      %s54 = sphi 0, %s52
      %s55 = sphi 0, %s54
      %s69 = sphi 0, %s55
      %s73 = sphi 0, %s73
      %s75 = sphi 0, %s73
      %s76 = sphi 0, %s75
      %s90 = sphi 0, %s76
      %s96 = sphi 0, %s98
      %s99 = sphi 0, %s96
      %s100 = sphi 0, %s99
      %s116 = sphi 0, %s100
      %s122 = sphi 0, %s124
      %s125 = sphi 0, %s122
      %s126 = sphi 0, %s125
      %s142 = sphi 0, %s126
      %s148 = sphi 0, %s150
      %s151 = sphi 0, %s148
      %s152 = sphi 0, %s151
      %s168 = sphi 0, %s152
    $region4: #{local_enhancer_forward.59} parent=1 // loop_header_branch
      %21 = sbr.rel (%p19) target = $region8
    $region5: #{local_enhancer_forward.59} parent=1 // loop_body
      %s23 = ssub.s32 %s18, 1
      %s24 = ssub.s32 %s18, 2
      %s25 = sadd.s32 %s18, 1
      %s26 = ssub.s32 %s18, %s25
      %p27 = scmp.eq.s32.totalorder %s26, 0
      %s29 = sadd.s32 %s28, 1
      %s30 = scalar_select %p27, %s28, %s29
      %p33 = pneg %p27
      %p34 = scmp.eq.s32.totalorder %s18, 1
      %p35 = por %p33, %p34
      %p36 = scmp.ne.s32.totalorder %s28, %s31
      %p37 = scmp.eq.s32.totalorder %s18, 0
      %p38 = por %p36, %p37
      %p39 = scmp.ne.s32.totalorder %s28, %s31
      %p40 = scmp.eq.s32.totalorder %s23, 1
      %p41 = por %p39, %p40
      %p42 = scmp.ne.s32.totalorder %s31, %s32
      %p43 = scmp.eq.s32.totalorder %s23, 0
      %p44 = por %p42, %p43
      %p45 = scmp.ne.s32.totalorder %s31, %s32
      %p46 = scmp.eq.s32.totalorder %s24, 1
      %p47 = por %p45, %p46
      %p49 = scmp.ne.s32.totalorder %s32, %s48
      %p50 = scmp.eq.s32.totalorder %s24, 0
      %p51 = por %p49, %p50
      %s53 = sadd.s32 %s52, 1
      %p56 = scmp.eq.s32.totalorder %s18, 1
      %p57 = scmp.ne.s32.totalorder %s52, %s54
      %p58 = scmp.eq.s32.totalorder %s18, 0
      %p59 = por %p57, %p58
      %p60 = scmp.ne.s32.totalorder %s52, %s54
      %p61 = scmp.eq.s32.totalorder %s23, 1
      %p62 = por %p60, %p61
      %p63 = scmp.ne.s32.totalorder %s54, %s55
      %p64 = scmp.eq.s32.totalorder %s23, 0
      %p65 = por %p63, %p64
      %p66 = scmp.ne.s32.totalorder %s54, %s55
      %p67 = scmp.eq.s32.totalorder %s24, 1
      %p68 = por %p66, %p67
      %p70 = scmp.ne.s32.totalorder %s55, %s69
      %p71 = scmp.eq.s32.totalorder %s24, 0
      %p72 = por %p70, %p71
      %s74 = sadd.s32 %s73, 1
      %p77 = scmp.eq.s32.totalorder %s18, 1
      %p78 = scmp.ne.s32.totalorder %s73, %s75
      %p79 = scmp.eq.s32.totalorder %s18, 0
      %p80 = por %p78, %p79
      %p81 = scmp.ne.s32.totalorder %s73, %s75
      %p82 = scmp.eq.s32.totalorder %s23, 1
      %p83 = por %p81, %p82
      %p84 = scmp.ne.s32.totalorder %s75, %s76
      %p85 = scmp.eq.s32.totalorder %s23, 0
      %p86 = por %p84, %p85
      %p87 = scmp.ne.s32.totalorder %s75, %s76
      %p88 = scmp.eq.s32.totalorder %s24, 1
      %p89 = por %p87, %p88
      %p91 = scmp.ne.s32.totalorder %s76, %s90
      %p92 = scmp.eq.s32.totalorder %s24, 0
      %p93 = por %p91, %p92
      %s94 = ssub.s32 %s18, %s25
      %p95 = scmp.eq.s32.totalorder %s94, 0
      %s97 = sadd.s32 %s96, 1
      %s98 = scalar_select %p95, %s96, %s97
      %p101 = pneg %p95
      %p102 = scmp.eq.s32.totalorder %s18, 1
      %p103 = por %p101, %p102
      %p104 = scmp.ne.s32.totalorder %s96, %s99
      %p105 = scmp.eq.s32.totalorder %s18, 0
      %p106 = por %p104, %p105
      %p107 = scmp.ne.s32.totalorder %s96, %s99
      %p108 = scmp.eq.s32.totalorder %s23, 1
      %p109 = por %p107, %p108
      %p110 = scmp.ne.s32.totalorder %s99, %s100
      %p111 = scmp.eq.s32.totalorder %s23, 0
      %p112 = por %p110, %p111
      %p113 = scmp.ne.s32.totalorder %s99, %s100
      %p114 = scmp.eq.s32.totalorder %s24, 1
      %p115 = por %p113, %p114
      %p117 = scmp.ne.s32.totalorder %s100, %s116
      %p118 = scmp.eq.s32.totalorder %s24, 0
      %p119 = por %p117, %p118
      %s120 = ssub.s32 %s18, %s25
      %p121 = scmp.eq.s32.totalorder %s120, 0
      %s123 = sadd.s32 %s122, 1
      %s124 = scalar_select %p121, %s122, %s123
      %p127 = pneg %p121
      %p128 = scmp.eq.s32.totalorder %s18, 1
      %p129 = por %p127, %p128
      %p130 = scmp.ne.s32.totalorder %s122, %s125
      %p131 = scmp.eq.s32.totalorder %s18, 0
      %p132 = por %p130, %p131
      %p133 = scmp.ne.s32.totalorder %s122, %s125
      %p134 = scmp.eq.s32.totalorder %s23, 1
      %p135 = por %p133, %p134
      %p136 = scmp.ne.s32.totalorder %s125, %s126
      %p137 = scmp.eq.s32.totalorder %s23, 0
      %p138 = por %p136, %p137
      %p139 = scmp.ne.s32.totalorder %s125, %s126
      %p140 = scmp.eq.s32.totalorder %s24, 1
      %p141 = por %p139, %p140
      %p143 = scmp.ne.s32.totalorder %s126, %s142
      %p144 = scmp.eq.s32.totalorder %s24, 0
      %p145 = por %p143, %p144
      %s146 = ssub.s32 %s18, %s25
      %p147 = scmp.eq.s32.totalorder %s146, 0
      %s149 = sadd.s32 %s148, 1
      %s150 = scalar_select %p147, %s148, %s149
      %p153 = pneg %p147
      %p154 = scmp.eq.s32.totalorder %s18, 1
      %p155 = por %p153, %p154
      %p156 = scmp.ne.s32.totalorder %s148, %s151
      %p157 = scmp.eq.s32.totalorder %s18, 0
      %p158 = por %p156, %p157
      %p159 = scmp.ne.s32.totalorder %s148, %s151
      %p160 = scmp.eq.s32.totalorder %s23, 1
      %p161 = por %p159, %p160
      %p162 = scmp.ne.s32.totalorder %s151, %s152
      %p163 = scmp.eq.s32.totalorder %s23, 0
      %p164 = por %p162, %p163
      %p165 = scmp.ne.s32.totalorder %s151, %s152
      %p166 = scmp.eq.s32.totalorder %s24, 1
      %p167 = por %p165, %p166
      %p169 = scmp.ne.s32.totalorder %s152, %s168
      %p170 = scmp.eq.s32.totalorder %s24, 0
      %p171 = por %p169, %p170
      %p172 = scmp.le.s32.totalorder 1, %s18
      %p173 = scmp.lt.s32.totalorder %s18, 3
      %p174 = pnand %p172, %p173
      %p175 = pneg %p174
      // Predicated region
      $region9: #{local_enhancer_forward.59} parent=5 // pred_check
        _
      $region10: #{local_enhancer_forward.59} parent=5 // pred_check_branch
        %177 = sbr.rel (%p174) target = $region12
      $region11: #{local_enhancer_forward.59} parent=5 // pred_region
        %s178 = ssub.s32 %s18, 1
        // Predicated region
        $region13: #{local_enhancer_forward.59} parent=11 // pred_check
          %p179 = pneg %p65
        $region14: #{local_enhancer_forward.59} parent=11 // pred_check_branch
          %181 = sbr.rel (%p179) target = $region16
        $region15: #{local_enhancer_forward.59} parent=11 // pred_region
          _
        $region16: #{local_enhancer_forward.59} parent=11 // pred_fallthru
          _
        // Predicated region
        $region17: #{local_enhancer_forward.59} parent=11 // pred_check
          %p182 = pneg %p86
        $region18: #{local_enhancer_forward.59} parent=11 // pred_check_branch
          %184 = sbr.rel (%p182) target = $region20
        $region19: #{local_enhancer_forward.59} parent=11 // pred_region
          _
        $region20: #{local_enhancer_forward.59} parent=11 // pred_fallthru
          _
      $region12: #{local_enhancer_forward.59} parent=5 // pred_fallthru
        _
      %p185 = scmp.lt.s32.totalorder %s18, 2
      // Predicated region
      $region21: #{local_enhancer_forward.59} parent=5 // pred_check
        %p186 = pneg %p185
      $region22: #{local_enhancer_forward.59} parent=5 // pred_check_branch
        %188 = sbr.rel (%p186) target = $region24
      $region23: #{local_enhancer_forward.59} parent=5 // pred_region
        // Predicated region
        $region25: #{local_enhancer_forward.59} parent=23 // pred_check
          %p189 = pneg %p38
        $region26: #{local_enhancer_forward.59} parent=23 // pred_check_branch
          %191 = sbr.rel (%p189) target = $region28
        $region27: #{local_enhancer_forward.59} parent=23 // pred_region
          %s192 = smul.u32 32, %s18
          %p193 = scmp.lt.s32.totalorder %s192, 63
          %s194 = scalar_select %p193, %s192, 63
          %s195 = smul.addr %s194, 4
          %s196 = smul.addr %s195, 4
          %s197 = scalar_lea.vmem %s0, %s196
          %s198 = smul.u32 32, %s18
        $region28: #{local_enhancer_forward.59} parent=23 // pred_fallthru
          _
      $region24: #{local_enhancer_forward.59} parent=5 // pred_fallthru
        _
      %p199 = scmp.le.s32.totalorder 1, %s18
      %p200 = scmp.lt.s32.totalorder %s18, 3
      %p201 = pnand %p199, %p200
      %p202 = pneg %p201
      // Predicated region
      $region29: #{local_enhancer_forward.59} parent=5 // pred_check
        _
      $region30: #{local_enhancer_forward.59} parent=5 // pred_check_branch
        %204 = sbr.rel (%p201) target = $region32
      $region31: #{local_enhancer_forward.59} parent=5 // pred_region
        %s205 = ssub.s32 %s18, 1
        %s206 = smul.u32 32, %s23
        %p207 = scmp.lt.s32.totalorder %s206, 63
        %s208 = scalar_select %p207, %s206, 63
        %s209 = smul.addr %s208, 4
        %s210 = smul.addr %s209, 4
        %s211 = scalar_lea.vmem %s0, %s210
        %p212 = pneg %p44
        %p213 = pneg %p41
        %p214 = pneg %p65
        %p215 = pneg %p62
        %p216 = pneg %p86
        %p217 = pneg %p83
        %p218 = pneg %p112
        %p219 = pneg %p109
        %s220 = smul.u32 32, %s23
        %p221 = scmp.lt.s32.totalorder %s220, 63
        %s222 = scalar_select %p221, %s220, 63
        %s223 = smul.addr %s222, 8
        %s224 = scalar_lea.vmem %s3, %s223
        %p225 = pneg %p138
        %p226 = pneg %p135
        %s227 = sand.u32 %s125, 1
        %s228 = scalar_lea.sflag [#allocation3], %s227
        %s229 = sand.u32 %s125, 1
        %s230 = scalar_lea.vmem [#allocation2], %s229
        %p231 = pneg %p164
        %p232 = pneg %p161
        %s233 = sand.u32 %s151, 1
        %s234 = scalar_lea.sflag [#allocation5], %s233
        %s235 = sand.u32 %s151, 1
        %s236 = scalar_lea.vmem [#allocation4], %s235
        %s237 = smul.u32 32, %s23
        %p238 = scmp.lt.s32.totalorder %s237, 63
        %s239 = scalar_select %p238, %s237, 63
        %s240 = smul.addr %s239, 4
        %s241 = smul.addr %s240, 4
        %s242 = scalar_lea.vmem %s0, %s241
        %s243 = smul.u32 32, %s23
        %s244 = smul.u32 32, %s23
        %p245 = scmp.lt.s32.totalorder %s244, 63
        %s246 = scalar_select %p245, %s244, 63
        %s247 = smul.addr %s246, 8
        %s248 = scalar_lea.vmem %s3, %s247
        %s249 = smul.u32 32, %s23
        %v251 = vld [vmem:[%s242] sm:$0xff]
        %v252 = vld [vmem:[%s242 + $0x8] sm:$0xff]
        %v253 = vld [vmem:[%s242 + $0x10] sm:$0xff]
        %v254 = vld [vmem:[%s242 + $0x18] sm:$0xff]
        %v255 = vld [vmem:[%s242 + $0x20] sm:$0xff]
        %v256 = vld [vmem:[%s242 + $0x28] sm:$0xff]
        %v257 = vld [vmem:[%s242 + $0x30] sm:$0xff]
        %v258 = vld [vmem:[%s242 + $0x38] sm:$0xff]
        %v259 = vld [vmem:[%s242 + $0x40] sm:$0xff]
        %v260 = vld [vmem:[%s242 + $0x48] sm:$0xff]
        %v261 = vld [vmem:[%s242 + $0x50] sm:$0xff]
        %v262 = vld [vmem:[%s242 + $0x58] sm:$0xff]
        %v263 = vld [vmem:[%s242 + $0x60] sm:$0xff]
        %v264 = vld [vmem:[%s242 + $0x68] sm:$0xff]
        %v265 = vld [vmem:[%s242 + $0x70] sm:$0xff]
        %v266 = vld [vmem:[%s242 + $0x78] sm:$0xff]
        %v267 = vld [vmem:[%s242 + $0x80] sm:$0xff]
        %v268 = vld [vmem:[%s242 + $0x88] sm:$0xff]
        %v269 = vld [vmem:[%s242 + $0x90] sm:$0xff]
        %v270 = vld [vmem:[%s242 + $0x98] sm:$0xff]
        %v271 = vld [vmem:[%s242 + $0xa0] sm:$0xff]
        %v272 = vld [vmem:[%s242 + $0xa8] sm:$0xff]
        %v273 = vld [vmem:[%s242 + $0xb0] sm:$0xff]
        %v274 = vld [vmem:[%s242 + $0xb8] sm:$0xff]
        %v275 = vld [vmem:[%s242 + $0xc0] sm:$0xff]
        %v276 = vld [vmem:[%s242 + $0xc8] sm:$0xff]
        %v277 = vld [vmem:[%s242 + $0xd0] sm:$0xff]
        %v278 = vld [vmem:[%s242 + $0xd8] sm:$0xff]
        %v279 = vld [vmem:[%s242 + $0xe0] sm:$0xff]
        %v280 = vld [vmem:[%s242 + $0xe8] sm:$0xff]
        %v281 = vld [vmem:[%s242 + $0xf0] sm:$0xff]
        %v282 = vld [vmem:[%s242 + $0xf8] sm:$0xff]
        %v283 = vld [vmem:[%s242 + $0x100] sm:$0xff]
        %v284 = vld [vmem:[%s242 + $0x108] sm:$0xff]
        %v285 = vld [vmem:[%s242 + $0x110] sm:$0xff]
        %v286 = vld [vmem:[%s242 + $0x118] sm:$0xff]
        %v287 = vld [vmem:[%s242 + $0x120] sm:$0xff]
        %v288 = vld [vmem:[%s242 + $0x128] sm:$0xff]
        %v289 = vld [vmem:[%s242 + $0x130] sm:$0xff]
        %v290 = vld [vmem:[%s242 + $0x138] sm:$0xff]
        %v291 = vld [vmem:[%s242 + $0x140] sm:$0xff]
        %v292 = vld [vmem:[%s242 + $0x148] sm:$0xff]
        %v293 = vld [vmem:[%s242 + $0x150] sm:$0xff]
        %v294 = vld [vmem:[%s242 + $0x158] sm:$0xff]
        %v295 = vld [vmem:[%s242 + $0x160] sm:$0xff]
        %v296 = vld [vmem:[%s242 + $0x168] sm:$0xff]
        %v297 = vld [vmem:[%s242 + $0x170] sm:$0xff]
        %v298 = vld [vmem:[%s242 + $0x178] sm:$0xff]
        %v299 = vld [vmem:[%s242 + $0x180] sm:$0xff]
        %v300 = vld [vmem:[%s242 + $0x188] sm:$0xff]
        %v301 = vld [vmem:[%s242 + $0x190] sm:$0xff]
        %v302 = vld [vmem:[%s242 + $0x198] sm:$0xff]
        %v303 = vld [vmem:[%s242 + $0x1a0] sm:$0xff]
        %v304 = vld [vmem:[%s242 + $0x1a8] sm:$0xff]
        %v305 = vld [vmem:[%s242 + $0x1b0] sm:$0xff]
        %v306 = vld [vmem:[%s242 + $0x1b8] sm:$0xff]
        %v307 = vld [vmem:[%s242 + $0x1c0] sm:$0xff]
        %v308 = vld [vmem:[%s242 + $0x1c8] sm:$0xff]
        %v309 = vld [vmem:[%s242 + $0x1d0] sm:$0xff]
        %v310 = vld [vmem:[%s242 + $0x1d8] sm:$0xff]
        %v311 = vld [vmem:[%s242 + $0x1e0] sm:$0xff]
        %v312 = vld [vmem:[%s242 + $0x1e8] sm:$0xff]
        %v313 = vld [vmem:[%s242 + $0x1f0] sm:$0xff]
        %v314 = vld [vmem:[%s242 + $0x1f8] sm:$0xff]
        %v315 = vld [vmem:[%s1] sm:$0xf]
        %v316 = vld [vmem:[%s1 + $0x4] sm:$0xf]
        %v317 = vld [vmem:[%s1 + $0x8] sm:$0xf]
        %v318 = vld [vmem:[%s1 + $0xc] sm:$0xf]
        %v319 = vld [vmem:[%s1 + $0x10] sm:$0xf]
        %v320 = vld [vmem:[%s1 + $0x14] sm:$0xf]
        %v321 = vld [vmem:[%s1 + $0x18] sm:$0xf]
        %v322 = vld [vmem:[%s1 + $0x1c] sm:$0xf]
        %v323 = vld [vmem:[%s1 + $0x20] sm:$0xf]
        %v324 = vld [vmem:[%s1 + $0x24] sm:$0xf]
        %v325 = vld [vmem:[%s1 + $0x28] sm:$0xf]
        %v326 = vld [vmem:[%s1 + $0x2c] sm:$0xf]
        %v327 = vld [vmem:[%s1 + $0x30] sm:$0xf]
        %v328 = vld [vmem:[%s1 + $0x34] sm:$0xf]
        %v329 = vld [vmem:[%s1 + $0x38] sm:$0xf]
        %v330 = vld [vmem:[%s1 + $0x3c] sm:$0xf]
        %v331 = vld [vmem:[%s1 + $0x40] sm:$0xf]
        %v332 = vld [vmem:[%s1 + $0x44] sm:$0xf]
        %v333 = vld [vmem:[%s1 + $0x48] sm:$0xf]
        %v334 = vld [vmem:[%s1 + $0x4c] sm:$0xf]
        %v335 = vld [vmem:[%s1 + $0x50] sm:$0xf]
        %v336 = vld [vmem:[%s1 + $0x54] sm:$0xf]
        %v337 = vld [vmem:[%s1 + $0x58] sm:$0xf]
        %v338 = vld [vmem:[%s1 + $0x5c] sm:$0xf]
        %v339 = vld [vmem:[%s1 + $0x60] sm:$0xf]
        %v340 = vld [vmem:[%s1 + $0x64] sm:$0xf]
        %v341 = vld [vmem:[%s1 + $0x68] sm:$0xf]
        %v342 = vld [vmem:[%s1 + $0x6c] sm:$0xf]
        %v343 = vld [vmem:[%s1 + $0x70] sm:$0xf]
        %v344 = vld [vmem:[%s1 + $0x74] sm:$0xf]
        %v345 = vld [vmem:[%s1 + $0x78] sm:$0xf]
        %v346 = vld [vmem:[%s1 + $0x7c] sm:$0xf]
        %v347 = vld [vmem:[%s1 + $0x80] sm:$0xf]
        %v348 = vld [vmem:[%s1 + $0x84] sm:$0xf]
        %v349 = vld [vmem:[%s1 + $0x88] sm:$0xf]
        %v350 = vld [vmem:[%s1 + $0x8c] sm:$0xf]
        %v351 = vld [vmem:[%s1 + $0x90] sm:$0xf]
        %v352 = vld [vmem:[%s1 + $0x94] sm:$0xf]
        %v353 = vld [vmem:[%s1 + $0x98] sm:$0xf]
        %v354 = vld [vmem:[%s1 + $0x9c] sm:$0xf]
        %v355 = vld [vmem:[%s1 + $0xa0] sm:$0xf]
        %v356 = vld [vmem:[%s1 + $0xa4] sm:$0xf]
        %v357 = vld [vmem:[%s1 + $0xa8] sm:$0xf]
        %v358 = vld [vmem:[%s1 + $0xac] sm:$0xf]
        %v359 = vld [vmem:[%s1 + $0xb0] sm:$0xf]
        %v360 = vld [vmem:[%s1 + $0xb4] sm:$0xf]
        %v361 = vld [vmem:[%s1 + $0xb8] sm:$0xf]
        %v362 = vld [vmem:[%s1 + $0xbc] sm:$0xf]
        %v363 = vld [vmem:[%s1 + $0xc0] sm:$0xf]
        %v364 = vld [vmem:[%s2] sm:$0x1]
        %v366 = vlaneseq
        %v367 = vshrl.u32 %v366, 7
        %v368 = vsub.s32 0, %v367
        %v369 = vrot.slane %v364, %v368
        %v435 = vunpack.c.l.b16 %v251
        %v436 = vunpack.c.h.b16 %v251
        %v437 = vunpack.c.l.b16 %v252
        %v438 = vunpack.c.h.b16 %v252
        %v439 = vunpack.c.l.b16 %v253
        %v440 = vunpack.c.h.b16 %v253
        %v441 = vunpack.c.l.b16 %v254
        %v442 = vunpack.c.h.b16 %v254
        %v443 = vunpack.c.l.b16 %v255
        %v444 = vunpack.c.h.b16 %v255
        %v445 = vunpack.c.l.b16 %v256
        %v446 = vunpack.c.h.b16 %v256
        %v447 = vunpack.c.l.b16 %v257
        %v448 = vunpack.c.h.b16 %v257
        %v449 = vunpack.c.l.b16 %v258
        %v450 = vunpack.c.h.b16 %v258
        %v451 = vunpack.c.l.b16 %v259
        %v452 = vunpack.c.h.b16 %v259
        %v453 = vunpack.c.l.b16 %v260
        %v454 = vunpack.c.h.b16 %v260
        %v455 = vunpack.c.l.b16 %v261
        %v456 = vunpack.c.h.b16 %v261
        %v457 = vunpack.c.l.b16 %v262
        %v458 = vunpack.c.h.b16 %v262
        %v459 = vunpack.c.l.b16 %v263
        %v460 = vunpack.c.h.b16 %v263
        %v461 = vunpack.c.l.b16 %v264
        %v462 = vunpack.c.h.b16 %v264
        %v463 = vunpack.c.l.b16 %v265
        %v464 = vunpack.c.h.b16 %v265
        %v465 = vunpack.c.l.b16 %v266
        %v466 = vunpack.c.h.b16 %v266
        %v467 = vunpack.c.l.b16 %v267
        %v468 = vunpack.c.h.b16 %v267
        %v469 = vunpack.c.l.b16 %v268
        %v470 = vunpack.c.h.b16 %v268
        %v471 = vunpack.c.l.b16 %v269
        %v472 = vunpack.c.h.b16 %v269
        %v473 = vunpack.c.l.b16 %v270
        %v474 = vunpack.c.h.b16 %v270
        %v475 = vunpack.c.l.b16 %v271
        %v476 = vunpack.c.h.b16 %v271
        %v477 = vunpack.c.l.b16 %v272
        %v478 = vunpack.c.h.b16 %v272
        %v479 = vunpack.c.l.b16 %v273
        %v480 = vunpack.c.h.b16 %v273
        %v481 = vunpack.c.l.b16 %v274
        %v482 = vunpack.c.h.b16 %v274
        %v483 = vunpack.c.l.b16 %v275
        %v484 = vunpack.c.h.b16 %v275
        %v485 = vunpack.c.l.b16 %v276
        %v486 = vunpack.c.h.b16 %v276
        %v487 = vunpack.c.l.b16 %v277
        %v488 = vunpack.c.h.b16 %v277
        %v489 = vunpack.c.l.b16 %v278
        %v490 = vunpack.c.h.b16 %v278
        %v491 = vunpack.c.l.b16 %v279
        %v492 = vunpack.c.h.b16 %v279
        %v493 = vunpack.c.l.b16 %v280
        %v494 = vunpack.c.h.b16 %v280
        %v495 = vunpack.c.l.b16 %v281
        %v496 = vunpack.c.h.b16 %v281
        %v497 = vunpack.c.l.b16 %v282
        %v498 = vunpack.c.h.b16 %v282
        %v499 = vunpack.c.l.b16 %v283
        %v500 = vunpack.c.h.b16 %v283
        %v501 = vunpack.c.l.b16 %v284
        %v502 = vunpack.c.h.b16 %v284
        %v503 = vunpack.c.l.b16 %v285
        %v504 = vunpack.c.h.b16 %v285
        %v505 = vunpack.c.l.b16 %v286
        %v506 = vunpack.c.h.b16 %v286
        %v507 = vunpack.c.l.b16 %v287
        %v508 = vunpack.c.h.b16 %v287
        %v509 = vunpack.c.l.b16 %v288
        %v510 = vunpack.c.h.b16 %v288
        %v511 = vunpack.c.l.b16 %v289
        %v512 = vunpack.c.h.b16 %v289
        %v513 = vunpack.c.l.b16 %v290
        %v514 = vunpack.c.h.b16 %v290
        %v515 = vunpack.c.l.b16 %v291
        %v516 = vunpack.c.h.b16 %v291
        %v517 = vunpack.c.l.b16 %v292
        %v518 = vunpack.c.h.b16 %v292
        %v519 = vunpack.c.l.b16 %v293
        %v520 = vunpack.c.h.b16 %v293
        %v521 = vunpack.c.l.b16 %v294
        %v522 = vunpack.c.h.b16 %v294
        %v523 = vunpack.c.l.b16 %v295
        %v524 = vunpack.c.h.b16 %v295
        %v525 = vunpack.c.l.b16 %v296
        %v526 = vunpack.c.h.b16 %v296
        %v527 = vunpack.c.l.b16 %v297
        %v528 = vunpack.c.h.b16 %v297
        %v529 = vunpack.c.l.b16 %v298
        %v530 = vunpack.c.h.b16 %v298
        %v531 = vunpack.c.l.b16 %v299
        %v532 = vunpack.c.h.b16 %v299
        %v533 = vunpack.c.l.b16 %v300
        %v534 = vunpack.c.h.b16 %v300
        %v535 = vunpack.c.l.b16 %v301
        %v536 = vunpack.c.h.b16 %v301
        %v537 = vunpack.c.l.b16 %v302
        %v538 = vunpack.c.h.b16 %v302
        %v539 = vunpack.c.l.b16 %v303
        %v540 = vunpack.c.h.b16 %v303
        %v541 = vunpack.c.l.b16 %v304
        %v542 = vunpack.c.h.b16 %v304
        %v543 = vunpack.c.l.b16 %v305
        %v544 = vunpack.c.h.b16 %v305
        %v545 = vunpack.c.l.b16 %v306
        %v546 = vunpack.c.h.b16 %v306
        %v547 = vunpack.c.l.b16 %v307
        %v548 = vunpack.c.h.b16 %v307
        %v549 = vunpack.c.l.b16 %v308
        %v550 = vunpack.c.h.b16 %v308
        %v551 = vunpack.c.l.b16 %v309
        %v552 = vunpack.c.h.b16 %v309
        %v553 = vunpack.c.l.b16 %v310
        %v554 = vunpack.c.h.b16 %v310
        %v555 = vunpack.c.l.b16 %v311
        %v556 = vunpack.c.h.b16 %v311
        %v557 = vunpack.c.l.b16 %v312
        %v558 = vunpack.c.h.b16 %v312
        %v559 = vunpack.c.l.b16 %v313
        %v560 = vunpack.c.h.b16 %v313
        %v561 = vunpack.c.l.b16 %v314
        %v562 = vunpack.c.h.b16 %v314
        %v563 = vpack.c.b16 %v439, %v435
        %v564 = vpack.c.b16 %v440, %v436
        %v565 = vpack.c.b16 %v441, %v437
        %v566 = vpack.c.b16 %v442, %v438
        %v567 = vpack.c.b16 %v447, %v443
        %v568 = vpack.c.b16 %v448, %v444
        %v569 = vpack.c.b16 %v449, %v445
        %v570 = vpack.c.b16 %v450, %v446
        %v571 = vpack.c.b16 %v455, %v451
        %v572 = vpack.c.b16 %v456, %v452
        %v573 = vpack.c.b16 %v457, %v453
        %v574 = vpack.c.b16 %v458, %v454
        %v575 = vpack.c.b16 %v463, %v459
        %v576 = vpack.c.b16 %v464, %v460
        %v577 = vpack.c.b16 %v465, %v461
        %v578 = vpack.c.b16 %v466, %v462
        %v579 = vpack.c.b16 %v471, %v467
        %v580 = vpack.c.b16 %v472, %v468
        %v581 = vpack.c.b16 %v473, %v469
        %v582 = vpack.c.b16 %v474, %v470
        %v583 = vpack.c.b16 %v479, %v475
        %v584 = vpack.c.b16 %v480, %v476
        %v585 = vpack.c.b16 %v481, %v477
        %v586 = vpack.c.b16 %v482, %v478
        %v587 = vpack.c.b16 %v487, %v483
        %v588 = vpack.c.b16 %v488, %v484
        %v589 = vpack.c.b16 %v489, %v485
        %v590 = vpack.c.b16 %v490, %v486
        %v591 = vpack.c.b16 %v495, %v491
        %v592 = vpack.c.b16 %v496, %v492
        %v593 = vpack.c.b16 %v497, %v493
        %v594 = vpack.c.b16 %v498, %v494
        %v595 = vpack.c.b16 %v503, %v499
        %v596 = vpack.c.b16 %v504, %v500
        %v597 = vpack.c.b16 %v505, %v501
        %v598 = vpack.c.b16 %v506, %v502
        %v599 = vpack.c.b16 %v511, %v507
        %v600 = vpack.c.b16 %v512, %v508
        %v601 = vpack.c.b16 %v513, %v509
        %v602 = vpack.c.b16 %v514, %v510
        %v603 = vpack.c.b16 %v519, %v515
        %v604 = vpack.c.b16 %v520, %v516
        %v605 = vpack.c.b16 %v521, %v517
        %v606 = vpack.c.b16 %v522, %v518
        %v607 = vpack.c.b16 %v527, %v523
        %v608 = vpack.c.b16 %v528, %v524
        %v609 = vpack.c.b16 %v529, %v525
        %v610 = vpack.c.b16 %v530, %v526
        %v611 = vpack.c.b16 %v535, %v531
        %v612 = vpack.c.b16 %v536, %v532
        %v613 = vpack.c.b16 %v537, %v533
        %v614 = vpack.c.b16 %v538, %v534
        %v615 = vpack.c.b16 %v543, %v539
        %v616 = vpack.c.b16 %v544, %v540
        %v617 = vpack.c.b16 %v545, %v541
        %v618 = vpack.c.b16 %v546, %v542
        %v619 = vpack.c.b16 %v551, %v547
        %v620 = vpack.c.b16 %v552, %v548
        %v621 = vpack.c.b16 %v553, %v549
        %v622 = vpack.c.b16 %v554, %v550
        %v623 = vpack.c.b16 %v559, %v555
        %v624 = vpack.c.b16 %v560, %v556
        %v625 = vpack.c.b16 %v561, %v557
        %v626 = vpack.c.b16 %v562, %v558
        %v724 = vunpack.c.l.b16 %v315
        %v725 = vunpack.c.l.b16 %v316
        %v726 = vunpack.c.l.b16 %v317
        %v727 = vunpack.c.l.b16 %v318
        %v728 = vunpack.c.l.b16 %v319
        %v729 = vunpack.c.l.b16 %v320
        %v730 = vunpack.c.l.b16 %v321
        %v731 = vunpack.c.l.b16 %v322
        %v732 = vunpack.c.l.b16 %v323
        %v733 = vunpack.c.l.b16 %v324
        %v734 = vunpack.c.l.b16 %v325
        %v735 = vunpack.c.l.b16 %v326
        %v736 = vunpack.c.l.b16 %v327
        %v737 = vunpack.c.l.b16 %v328
        %v738 = vunpack.c.l.b16 %v329
        %v739 = vunpack.c.l.b16 %v330
        %v740 = vunpack.c.l.b16 %v331
        %v741 = vunpack.c.l.b16 %v332
        %v742 = vunpack.c.l.b16 %v333
        %v743 = vunpack.c.l.b16 %v334
        %v744 = vunpack.c.l.b16 %v335
        %v745 = vunpack.c.l.b16 %v336
        %v746 = vunpack.c.l.b16 %v337
        %v747 = vunpack.c.l.b16 %v338
        %v748 = vunpack.c.l.b16 %v339
        %v749 = vunpack.c.l.b16 %v340
        %v750 = vunpack.c.l.b16 %v341
        %v751 = vunpack.c.l.b16 %v342
        %v752 = vunpack.c.l.b16 %v343
        %v753 = vunpack.c.l.b16 %v344
        %v754 = vunpack.c.l.b16 %v345
        %v755 = vunpack.c.l.b16 %v346
        %v756 = vunpack.c.l.b16 %v347
        %v757 = vunpack.c.l.b16 %v348
        %v758 = vunpack.c.l.b16 %v349
        %v759 = vunpack.c.l.b16 %v350
        %v760 = vunpack.c.l.b16 %v351
        %v761 = vunpack.c.l.b16 %v352
        %v762 = vunpack.c.l.b16 %v353
        %v763 = vunpack.c.l.b16 %v354
        %v764 = vunpack.c.l.b16 %v355
        %v765 = vunpack.c.l.b16 %v356
        %v766 = vunpack.c.l.b16 %v357
        %v767 = vunpack.c.l.b16 %v358
        %v768 = vunpack.c.l.b16 %v359
        %v769 = vunpack.c.l.b16 %v360
        %v770 = vunpack.c.l.b16 %v361
        %v771 = vunpack.c.l.b16 %v362
        %v772 = vunpack.c.l.b16 %v363
        %v773 = vpack.c.b16 %v725, %v724
        %v774 = vpack.c.b16 %v727, %v726
        %v775 = vpack.c.b16 %v729, %v728
        %v776 = vpack.c.b16 %v731, %v730
        %v777 = vpack.c.b16 %v733, %v732
        %v778 = vpack.c.b16 %v735, %v734
        %v779 = vpack.c.b16 %v737, %v736
        %v780 = vpack.c.b16 %v739, %v738
        %v781 = vpack.c.b16 %v741, %v740
        %v782 = vpack.c.b16 %v743, %v742
        %v783 = vpack.c.b16 %v745, %v744
        %v784 = vpack.c.b16 %v747, %v746
        %v785 = vpack.c.b16 %v749, %v748
        %v786 = vpack.c.b16 %v751, %v750
        %v787 = vpack.c.b16 %v753, %v752
        %v788 = vpack.c.b16 %v755, %v754
        %v789 = vpack.c.b16 %v757, %v756
        %v790 = vpack.c.b16 %v759, %v758
        %v791 = vpack.c.b16 %v761, %v760
        %v792 = vpack.c.b16 %v763, %v762
        %v793 = vpack.c.b16 %v765, %v764
        %v794 = vpack.c.b16 %v767, %v766
        %v795 = vpack.c.b16 %v769, %v768
        %v796 = vpack.c.b16 %v771, %v770
        %v797 = vpack.c.b16 %v772, %v772
        %vm822 = vcmask 64512
        %v824 = vsel %vm822, %v566, 0
        %v827 = vsel %vm822, %v570, 0
        %v830 = vsel %vm822, %v574, 0
        %v833 = vsel %vm822, %v578, 0
        %v836 = vsel %vm822, %v582, 0
        %v839 = vsel %vm822, %v586, 0
        %v842 = vsel %vm822, %v590, 0
        %v845 = vsel %vm822, %v594, 0
        %v848 = vsel %vm822, %v598, 0
        %v851 = vsel %vm822, %v602, 0
        %v854 = vsel %vm822, %v606, 0
        %v857 = vsel %vm822, %v610, 0
        %v860 = vsel %vm822, %v614, 0
        %v863 = vsel %vm822, %v618, 0
        %v866 = vsel %vm822, %v622, 0
        %v869 = vsel %vm822, %v626, 0
        %vm871 = vcmask 1043456
        %v873 = vsel %vm871, %v797, 0
        %875 = vmatprep.subr.bf16.mxu0 0
        %876 = vmatpush1.bf16.msra.mxu0 %v773
        %877 = vmatprep.subr.bf16.mxu0 0
        %878 = vmatpush1.bf16.msra.mxu0 %v774
        %879 = vmatprep.subr.bf16.mxu0 0
        %880 = vmatpush1.bf16.msra.mxu0 %v775
        %881 = vmatprep.subr.bf16.mxu0 0
        %882 = vmatpush1.bf16.msra.mxu0 %v776
        %883 = vmatprep.subr.bf16.mxu0 0
        %884 = vmatpush1.bf16.msra.mxu0 %v777
        %885 = vmatprep.subr.bf16.mxu0 0
        %886 = vmatpush1.bf16.msra.mxu0 %v778
        %887 = vmatprep.subr.bf16.mxu0 0
        %888 = vmatpush1.bf16.msra.mxu0 %v779
        %889 = vmatprep.subr.bf16.mxu0 0
        %890 = vmatpush1.bf16.msra.mxu0 %v780
        %891 = vmatprep.subr.bf16.mxu0 0
        %892 = vmatpush1.bf16.msra.mxu0 %v781
        %893 = vmatprep.subr.bf16.mxu0 0
        %894 = vmatpush1.bf16.msra.mxu0 %v782
        %895 = vmatprep.subr.bf16.mxu0 0
        %896 = vmatpush1.bf16.msra.mxu0 %v783
        %897 = vmatprep.subr.bf16.mxu0 0
        %898 = vmatpush1.bf16.msra.mxu0 %v784
        %899 = vmatprep.subr.bf16.mxu0 0
        %900 = vmatpush1.bf16.msra.mxu0 %v785
        %901 = vmatprep.subr.bf16.mxu0 0
        %902 = vmatpush1.bf16.msra.mxu0 %v786
        %903 = vmatprep.subr.bf16.mxu0 0
        %904 = vmatpush1.bf16.msra.mxu0 %v787
        %905 = vmatprep.subr.bf16.mxu0 0
        %906 = vmatpush1.bf16.msra.mxu0 %v788
        %907 = vmatprep.mubr.bf16.mxu0 %v564
        %908 = vmatmul.mubr.bf16.gmra.mrb[0].mxu0 %v563
        %v909 = vpop.f32.mrb[0].mxu0
        %v910 = vadd.f32 %v369, %v909
        %v911 = vpop.f32.mrb[0].mxu0
        %v912 = vpop.f32.mrb[0].mxu0
        %v913 = vadd.f32 %v369, %v912
        %v914 = vpop.f32.mrb[0].mxu0
        %915 = vmatprep.mubr.bf16.mxu0 %v568
        %916 = vmatmul.mubr.bf16.gmra.mrb[0].mxu0 %v567
        %v917 = vpop.f32.mrb[0].mxu0
        %v918 = vadd.f32 %v369, %v917
        %v919 = vpop.f32.mrb[0].mxu0
        %v920 = vpop.f32.mrb[0].mxu0
        %v921 = vadd.f32 %v369, %v920
        %v922 = vpop.f32.mrb[0].mxu0
        %923 = vmatprep.mubr.bf16.mxu0 %v572
        %924 = vmatmul.mubr.bf16.gmra.mrb[0].mxu0 %v571
        %v925 = vpop.f32.mrb[0].mxu0
        %v926 = vadd.f32 %v369, %v925
        %v927 = vpop.f32.mrb[0].mxu0
        %v928 = vpop.f32.mrb[0].mxu0
        %v929 = vadd.f32 %v369, %v928
        %v930 = vpop.f32.mrb[0].mxu0
        %931 = vmatprep.mubr.bf16.mxu0 %v576
        %932 = vmatmul.mubr.bf16.gmra.mrb[0].mxu0 %v575
        %v933 = vpop.f32.mrb[0].mxu0
        %v934 = vadd.f32 %v369, %v933
        %v935 = vpop.f32.mrb[0].mxu0
        %v936 = vpop.f32.mrb[0].mxu0
        %v937 = vadd.f32 %v369, %v936
        %v938 = vpop.f32.mrb[0].mxu0
        %939 = vmatprep.mubr.bf16.mxu0 %v580
        %940 = vmatmul.mubr.bf16.gmra.mrb[0].mxu0 %v579
        %v941 = vpop.f32.mrb[0].mxu0
        %v942 = vadd.f32 %v369, %v941
        %v943 = vpop.f32.mrb[0].mxu0
        %v944 = vpop.f32.mrb[0].mxu0
        %v945 = vadd.f32 %v369, %v944
        %v946 = vpop.f32.mrb[0].mxu0
        %947 = vmatprep.mubr.bf16.mxu0 %v584
        %948 = vmatmul.mubr.bf16.gmra.mrb[0].mxu0 %v583
        %v949 = vpop.f32.mrb[0].mxu0
        %v950 = vadd.f32 %v369, %v949
        %v951 = vpop.f32.mrb[0].mxu0
        %v952 = vpop.f32.mrb[0].mxu0
        %v953 = vadd.f32 %v369, %v952
        %v954 = vpop.f32.mrb[0].mxu0
        %955 = vmatprep.mubr.bf16.mxu0 %v588
        %956 = vmatmul.mubr.bf16.gmra.mrb[0].mxu0 %v587
        %v957 = vpop.f32.mrb[0].mxu0
        %v958 = vadd.f32 %v369, %v957
        %v959 = vpop.f32.mrb[0].mxu0
        %v960 = vpop.f32.mrb[0].mxu0
        %v961 = vadd.f32 %v369, %v960
        %v962 = vpop.f32.mrb[0].mxu0
        %963 = vmatprep.mubr.bf16.mxu0 %v592
        %964 = vmatmul.mubr.bf16.gmra.mrb[0].mxu0 %v591
        %v965 = vpop.f32.mrb[0].mxu0
        %v966 = vadd.f32 %v369, %v965
        %v967 = vpop.f32.mrb[0].mxu0
        %v968 = vpop.f32.mrb[0].mxu0
        %v969 = vadd.f32 %v369, %v968
        %v970 = vpop.f32.mrb[0].mxu0
        %971 = vmatprep.mubr.bf16.mxu0 %v596
        %972 = vmatmul.mubr.bf16.gmra.mrb[0].mxu0 %v595
        %v973 = vpop.f32.mrb[0].mxu0
        %v974 = vadd.f32 %v369, %v973
        %v975 = vpop.f32.mrb[0].mxu0
        %v976 = vpop.f32.mrb[0].mxu0
        %v977 = vadd.f32 %v369, %v976
        %v978 = vpop.f32.mrb[0].mxu0
        %979 = vmatprep.mubr.bf16.mxu0 %v600
        %980 = vmatmul.mubr.bf16.gmra.mrb[0].mxu0 %v599
        %v981 = vpop.f32.mrb[0].mxu0
        %v982 = vadd.f32 %v369, %v981
        %v983 = vpop.f32.mrb[0].mxu0
        %v984 = vpop.f32.mrb[0].mxu0
        %v985 = vadd.f32 %v369, %v984
        %v986 = vpop.f32.mrb[0].mxu0
        %987 = vmatprep.mubr.bf16.mxu0 %v604
        %988 = vmatmul.mubr.bf16.gmra.mrb[0].mxu0 %v603
        %v989 = vpop.f32.mrb[0].mxu0
        %v990 = vadd.f32 %v369, %v989
        %v991 = vpop.f32.mrb[0].mxu0
        %v992 = vpop.f32.mrb[0].mxu0
        %v993 = vadd.f32 %v369, %v992
        %v994 = vpop.f32.mrb[0].mxu0
        %995 = vmatprep.mubr.bf16.mxu0 %v608
        %996 = vmatmul.mubr.bf16.gmra.mrb[0].mxu0 %v607
        %v997 = vpop.f32.mrb[0].mxu0
        %v998 = vadd.f32 %v369, %v997
        %v999 = vpop.f32.mrb[0].mxu0
        %v1000 = vpop.f32.mrb[0].mxu0
        %v1001 = vadd.f32 %v369, %v1000
        %v1002 = vpop.f32.mrb[0].mxu0
        %1003 = vmatprep.mubr.bf16.mxu0 %v612
        %1004 = vmatmul.mubr.bf16.gmra.mrb[0].mxu0 %v611
        %v1005 = vpop.f32.mrb[0].mxu0
        %v1006 = vadd.f32 %v369, %v1005
        %v1007 = vpop.f32.mrb[0].mxu0
        %v1008 = vpop.f32.mrb[0].mxu0
        %v1009 = vadd.f32 %v369, %v1008
        %v1010 = vpop.f32.mrb[0].mxu0
        %1011 = vmatprep.mubr.bf16.mxu0 %v616
        %1012 = vmatmul.mubr.bf16.gmra.mrb[0].mxu0 %v615
        %v1013 = vpop.f32.mrb[0].mxu0
        %v1014 = vadd.f32 %v369, %v1013
        %v1015 = vpop.f32.mrb[0].mxu0
        %v1016 = vpop.f32.mrb[0].mxu0
        %v1017 = vadd.f32 %v369, %v1016
        %v1018 = vpop.f32.mrb[0].mxu0
        %1019 = vmatprep.mubr.bf16.mxu0 %v620
        %1020 = vmatmul.mubr.bf16.gmra.mrb[0].mxu0 %v619
        %v1021 = vpop.f32.mrb[0].mxu0
        %v1022 = vadd.f32 %v369, %v1021
        %v1023 = vpop.f32.mrb[0].mxu0
        %v1024 = vpop.f32.mrb[0].mxu0
        %v1025 = vadd.f32 %v369, %v1024
        %v1026 = vpop.f32.mrb[0].mxu0
        %1027 = vmatprep.mubr.bf16.mxu0 %v624
        %1028 = vmatmul.mubr.bf16.gmra.mrb[0].mxu0 %v623
        %v1029 = vpop.f32.mrb[0].mxu0
        %v1030 = vadd.f32 %v369, %v1029
        %v1031 = vpop.f32.mrb[0].mxu0
        %v1032 = vpop.f32.mrb[0].mxu0
        %v1033 = vadd.f32 %v369, %v1032
        %v1034 = vpop.f32.mrb[0].mxu0
        %1035 = vdwg.mxu0
        %1036 = vmatprep.subr.bf16.mxu0 0
        %1037 = vmatpush1.bf16.msra.mxu0 %v789
        %1038 = vmatprep.subr.bf16.mxu0 0
        %1039 = vmatpush1.bf16.msra.mxu0 %v790
        %1040 = vmatprep.subr.bf16.mxu0 0
        %1041 = vmatpush1.bf16.msra.mxu0 %v791
        %1042 = vmatprep.subr.bf16.mxu0 0
        %1043 = vmatpush1.bf16.msra.mxu0 %v792
        %1044 = vmatprep.subr.bf16.mxu0 0
        %1045 = vmatpush1.bf16.msra.mxu0 %v793
        %1046 = vmatprep.subr.bf16.mxu0 0
        %1047 = vmatpush1.bf16.msra.mxu0 %v794
        %1048 = vmatprep.subr.bf16.mxu0 0
        %1049 = vmatpush1.bf16.msra.mxu0 %v795
        %1050 = vmatprep.subr.bf16.mxu0 0
        %1051 = vmatpush1.bf16.msra.mxu0 %v796
        %1052 = vmatprep.subr.bf16.mxu0 0
        %1053 = vmatpush1.bf16.msra.mxu0 %v873
        %1054 = vmatprep.subr.bf16.mxu0 0
        %1055 = vmatpush1.bf16.msra.mxu0 0
        %1056 = vmatprep.subr.bf16.mxu0 0
        %1057 = vmatpush1.bf16.msra.mxu0 0
        %1058 = vmatprep.subr.bf16.mxu0 0
        %1059 = vmatpush1.bf16.msra.mxu0 0
        %1060 = vmatprep.subr.bf16.mxu0 0
        %1061 = vmatpush1.bf16.msra.mxu0 0
        %1062 = vmatprep.subr.bf16.mxu0 0
        %1063 = vmatpush1.bf16.msra.mxu0 0
        %1064 = vmatprep.subr.bf16.mxu0 0
        %1065 = vmatpush1.bf16.msra.mxu0 0
        %1066 = vmatprep.subr.bf16.mxu0 0
        %1067 = vmatpush1.bf16.msra.mxu0 0
        %1068 = vmatprep.mubr.bf16.mxu0 %v824
        %1069 = vmatmul.mubr.bf16.gmra.mrb[0].mxu0 %v565
        %v1070 = vpop.f32.mrb[0].mxu0
        %v1071 = vadd.f32 %v910, %v1070
        %v1072 = vpop.f32.mrb[0].mxu0
        %v1073 = vpop.f32.mrb[0].mxu0
        %v1074 = vadd.f32 %v913, %v1073
        %v1075 = vpop.f32.mrb[0].mxu0
        %1076 = vmatprep.mubr.bf16.mxu0 %v827
        %1077 = vmatmul.mubr.bf16.gmra.mrb[0].mxu0 %v569
        %v1078 = vpop.f32.mrb[0].mxu0
        %v1079 = vadd.f32 %v918, %v1078
        %v1080 = vpop.f32.mrb[0].mxu0
        %v1081 = vpop.f32.mrb[0].mxu0
        %v1082 = vadd.f32 %v921, %v1081
        %v1083 = vpop.f32.mrb[0].mxu0
        %1084 = vmatprep.mubr.bf16.mxu0 %v830
        %1085 = vmatmul.mubr.bf16.gmra.mrb[0].mxu0 %v573
        %v1086 = vpop.f32.mrb[0].mxu0
        %v1087 = vadd.f32 %v926, %v1086
        %v1088 = vpop.f32.mrb[0].mxu0
        %v1089 = vpop.f32.mrb[0].mxu0
        %v1090 = vadd.f32 %v929, %v1089
        %v1091 = vpop.f32.mrb[0].mxu0
        %1092 = vmatprep.mubr.bf16.mxu0 %v833
        %1093 = vmatmul.mubr.bf16.gmra.mrb[0].mxu0 %v577
        %v1094 = vpop.f32.mrb[0].mxu0
        %v1095 = vadd.f32 %v934, %v1094
        %v1096 = vpop.f32.mrb[0].mxu0
        %v1097 = vpop.f32.mrb[0].mxu0
        %v1098 = vadd.f32 %v937, %v1097
        %v1099 = vpop.f32.mrb[0].mxu0
        %1100 = vmatprep.mubr.bf16.mxu0 %v836
        %1101 = vmatmul.mubr.bf16.gmra.mrb[0].mxu0 %v581
        %v1102 = vpop.f32.mrb[0].mxu0
        %v1103 = vadd.f32 %v942, %v1102
        %v1104 = vpop.f32.mrb[0].mxu0
        %v1105 = vpop.f32.mrb[0].mxu0
        %v1106 = vadd.f32 %v945, %v1105
        %v1107 = vpop.f32.mrb[0].mxu0
        %1108 = vmatprep.mubr.bf16.mxu0 %v839
        %1109 = vmatmul.mubr.bf16.gmra.mrb[0].mxu0 %v585
        %v1110 = vpop.f32.mrb[0].mxu0
        %v1111 = vadd.f32 %v950, %v1110
        %v1112 = vpop.f32.mrb[0].mxu0
        %v1113 = vpop.f32.mrb[0].mxu0
        %v1114 = vadd.f32 %v953, %v1113
        %v1115 = vpop.f32.mrb[0].mxu0
        %1116 = vmatprep.mubr.bf16.mxu0 %v842
        %1117 = vmatmul.mubr.bf16.gmra.mrb[0].mxu0 %v589
        %v1118 = vpop.f32.mrb[0].mxu0
        %v1119 = vadd.f32 %v958, %v1118
        %v1120 = vpop.f32.mrb[0].mxu0
        %v1121 = vpop.f32.mrb[0].mxu0
        %v1122 = vadd.f32 %v961, %v1121
        %v1123 = vpop.f32.mrb[0].mxu0
        %1124 = vmatprep.mubr.bf16.mxu0 %v845
        %1125 = vmatmul.mubr.bf16.gmra.mrb[0].mxu0 %v593
        %v1126 = vpop.f32.mrb[0].mxu0
        %v1127 = vadd.f32 %v966, %v1126
        %v1128 = vpop.f32.mrb[0].mxu0
        %v1129 = vpop.f32.mrb[0].mxu0
        %v1130 = vadd.f32 %v969, %v1129
        %v1131 = vpop.f32.mrb[0].mxu0
        %1132 = vmatprep.mubr.bf16.mxu0 %v848
        %1133 = vmatmul.mubr.bf16.gmra.mrb[0].mxu0 %v597
        %v1134 = vpop.f32.mrb[0].mxu0
        %v1135 = vadd.f32 %v974, %v1134
        %v1136 = vpop.f32.mrb[0].mxu0
        %v1137 = vpop.f32.mrb[0].mxu0
        %v1138 = vadd.f32 %v977, %v1137
        %v1139 = vpop.f32.mrb[0].mxu0
        %1140 = vmatprep.mubr.bf16.mxu0 %v851
        %1141 = vmatmul.mubr.bf16.gmra.mrb[0].mxu0 %v601
        %v1142 = vpop.f32.mrb[0].mxu0
        %v1143 = vadd.f32 %v982, %v1142
        %v1144 = vpop.f32.mrb[0].mxu0
        %v1145 = vpop.f32.mrb[0].mxu0
        %v1146 = vadd.f32 %v985, %v1145
        %v1147 = vpop.f32.mrb[0].mxu0
        %1148 = vmatprep.mubr.bf16.mxu0 %v854
        %1149 = vmatmul.mubr.bf16.gmra.mrb[0].mxu0 %v605
        %v1150 = vpop.f32.mrb[0].mxu0
        %v1151 = vadd.f32 %v990, %v1150
        %v1152 = vpop.f32.mrb[0].mxu0
        %v1153 = vpop.f32.mrb[0].mxu0
        %v1154 = vadd.f32 %v993, %v1153
        %v1155 = vpop.f32.mrb[0].mxu0
        %1156 = vmatprep.mubr.bf16.mxu0 %v857
        %1157 = vmatmul.mubr.bf16.gmra.mrb[0].mxu0 %v609
        %v1158 = vpop.f32.mrb[0].mxu0
        %v1159 = vadd.f32 %v998, %v1158
        %v1160 = vpop.f32.mrb[0].mxu0
        %v1161 = vpop.f32.mrb[0].mxu0
        %v1162 = vadd.f32 %v1001, %v1161
        %v1163 = vpop.f32.mrb[0].mxu0
        %1164 = vmatprep.mubr.bf16.mxu0 %v860
        %1165 = vmatmul.mubr.bf16.gmra.mrb[0].mxu0 %v613
        %v1166 = vpop.f32.mrb[0].mxu0
        %v1167 = vadd.f32 %v1006, %v1166
        %v1168 = vpop.f32.mrb[0].mxu0
        %v1169 = vpop.f32.mrb[0].mxu0
        %v1170 = vadd.f32 %v1009, %v1169
        %v1171 = vpop.f32.mrb[0].mxu0
        %1172 = vmatprep.mubr.bf16.mxu0 %v863
        %1173 = vmatmul.mubr.bf16.gmra.mrb[0].mxu0 %v617
        %v1174 = vpop.f32.mrb[0].mxu0
        %v1175 = vadd.f32 %v1014, %v1174
        %v1176 = vpop.f32.mrb[0].mxu0
        %v1177 = vpop.f32.mrb[0].mxu0
        %v1178 = vadd.f32 %v1017, %v1177
        %v1179 = vpop.f32.mrb[0].mxu0
        %1180 = vmatprep.mubr.bf16.mxu0 %v866
        %1181 = vmatmul.mubr.bf16.gmra.mrb[0].mxu0 %v621
        %v1182 = vpop.f32.mrb[0].mxu0
        %v1183 = vadd.f32 %v1022, %v1182
        %v1184 = vpop.f32.mrb[0].mxu0
        %v1185 = vpop.f32.mrb[0].mxu0
        %v1186 = vadd.f32 %v1025, %v1185
        %v1187 = vpop.f32.mrb[0].mxu0
        %1188 = vmatprep.mubr.bf16.mxu0 %v869
        %1189 = vmatmul.mubr.bf16.gmra.mrb[0].mxu0 %v625
        %v1190 = vpop.f32.mrb[0].mxu0
        %v1191 = vadd.f32 %v1030, %v1190
        %v1192 = vpop.f32.mrb[0].mxu0
        %v1193 = vpop.f32.mrb[0].mxu0
        %v1194 = vadd.f32 %v1033, %v1193
        %v1195 = vpop.f32.mrb[0].mxu0
        %1196 = vdwg.mxu0
        %v1197 = vtanh.pop %v1071
        %v1198 = vtanh.pop %v1074
        %v1199 = vtanh.pop %v1079
        %v1200 = vtanh.pop %v1082
        %v1201 = vtanh.pop %v1087
        %v1202 = vtanh.pop %v1090
        %v1203 = vtanh.pop %v1095
        %v1204 = vtanh.pop %v1098
        %v1205 = vtanh.pop %v1103
        %v1206 = vtanh.pop %v1106
        %v1207 = vtanh.pop %v1111
        %v1208 = vtanh.pop %v1114
        %v1209 = vtanh.pop %v1119
        %v1210 = vtanh.pop %v1122
        %v1211 = vtanh.pop %v1127
        %v1212 = vtanh.pop %v1130
        %v1213 = vtanh.pop %v1135
        %v1214 = vtanh.pop %v1138
        %v1215 = vtanh.pop %v1143
        %v1216 = vtanh.pop %v1146
        %v1217 = vtanh.pop %v1151
        %v1218 = vtanh.pop %v1154
        %v1219 = vtanh.pop %v1159
        %v1220 = vtanh.pop %v1162
        %v1221 = vtanh.pop %v1167
        %v1222 = vtanh.pop %v1170
        %v1223 = vtanh.pop %v1175
        %v1224 = vtanh.pop %v1178
        %v1225 = vtanh.pop %v1183
        %v1226 = vtanh.pop %v1186
        %v1227 = vtanh.pop %v1191
        %v1228 = vtanh.pop %v1194
        %vm1229 = vcmask 23552
        %1230 = vst.msk [vmem:[%s248] sm:$0xff] %vm1229, %v1197
        %1231 = vst.msk [vmem:[%s248 + $0x8] sm:$0xff] %vm1229, %v1198
        %1232 = vst.msk [vmem:[%s248 + $0x10] sm:$0xff] %vm1229, %v1199
        %1233 = vst.msk [vmem:[%s248 + $0x18] sm:$0xff] %vm1229, %v1200
        %1234 = vst.msk [vmem:[%s248 + $0x20] sm:$0xff] %vm1229, %v1201
        %1235 = vst.msk [vmem:[%s248 + $0x28] sm:$0xff] %vm1229, %v1202
        %1236 = vst.msk [vmem:[%s248 + $0x30] sm:$0xff] %vm1229, %v1203
        %1237 = vst.msk [vmem:[%s248 + $0x38] sm:$0xff] %vm1229, %v1204
        %1238 = vst.msk [vmem:[%s248 + $0x40] sm:$0xff] %vm1229, %v1205
        %1239 = vst.msk [vmem:[%s248 + $0x48] sm:$0xff] %vm1229, %v1206
        %1240 = vst.msk [vmem:[%s248 + $0x50] sm:$0xff] %vm1229, %v1207
        %1241 = vst.msk [vmem:[%s248 + $0x58] sm:$0xff] %vm1229, %v1208
        %1242 = vst.msk [vmem:[%s248 + $0x60] sm:$0xff] %vm1229, %v1209
        %1243 = vst.msk [vmem:[%s248 + $0x68] sm:$0xff] %vm1229, %v1210
        %1244 = vst.msk [vmem:[%s248 + $0x70] sm:$0xff] %vm1229, %v1211
        %1245 = vst.msk [vmem:[%s248 + $0x78] sm:$0xff] %vm1229, %v1212
        %1246 = vst.msk [vmem:[%s248 + $0x80] sm:$0xff] %vm1229, %v1213
        %1247 = vst.msk [vmem:[%s248 + $0x88] sm:$0xff] %vm1229, %v1214
        %1248 = vst.msk [vmem:[%s248 + $0x90] sm:$0xff] %vm1229, %v1215
        %1249 = vst.msk [vmem:[%s248 + $0x98] sm:$0xff] %vm1229, %v1216
        %1250 = vst.msk [vmem:[%s248 + $0xa0] sm:$0xff] %vm1229, %v1217
        %1251 = vst.msk [vmem:[%s248 + $0xa8] sm:$0xff] %vm1229, %v1218
        %1252 = vst.msk [vmem:[%s248 + $0xb0] sm:$0xff] %vm1229, %v1219
        %1253 = vst.msk [vmem:[%s248 + $0xb8] sm:$0xff] %vm1229, %v1220
        %1254 = vst.msk [vmem:[%s248 + $0xc0] sm:$0xff] %vm1229, %v1221
        %1255 = vst.msk [vmem:[%s248 + $0xc8] sm:$0xff] %vm1229, %v1222
        %1256 = vst.msk [vmem:[%s248 + $0xd0] sm:$0xff] %vm1229, %v1223
        %1257 = vst.msk [vmem:[%s248 + $0xd8] sm:$0xff] %vm1229, %v1224
        %1258 = vst.msk [vmem:[%s248 + $0xe0] sm:$0xff] %vm1229, %v1225
        %1259 = vst.msk [vmem:[%s248 + $0xe8] sm:$0xff] %vm1229, %v1226
        %1260 = vst.msk [vmem:[%s248 + $0xf0] sm:$0xff] %vm1229, %v1227
        %1261 = vst.msk [vmem:[%s248 + $0xf8] sm:$0xff] %vm1229, %v1228
        %s1262 = smul.u32 %s23, 256
        %v1263 = vlaneseq
        %v1264 = vshrl.u32 %v1263, 7
        %v1265 = vadd.s32 %v1264, 8
        %v1266 = vadd.s32 %v1264, 16
        %v1267 = vadd.s32 %v1264, 24
        %v1268 = vadd.s32 %v1264, 32
        %v1269 = vadd.s32 %v1264, 40
        %v1270 = vadd.s32 %v1264, 48
        %v1271 = vadd.s32 %v1264, 56
        %v1272 = vadd.s32 %v1264, 64
        %v1273 = vadd.s32 %v1264, 72
        %v1274 = vadd.s32 %v1264, 80
        %v1275 = vadd.s32 %v1264, 88
        %v1276 = vadd.s32 %v1264, 96
        %v1277 = vadd.s32 %v1264, 104
        %v1278 = vadd.s32 %v1264, 112
        %v1279 = vadd.s32 %v1264, 120
        %v1280 = vadd.s32 %v1264, 128
        %v1281 = vadd.s32 %v1264, 136
        %v1282 = vadd.s32 %v1264, 144
        %v1283 = vadd.s32 %v1264, 152
        %v1284 = vadd.s32 %v1264, 160
        %v1285 = vadd.s32 %v1264, 168
        %v1286 = vadd.s32 %v1264, 176
        %v1287 = vadd.s32 %v1264, 184
        %v1288 = vadd.s32 %v1264, 192
        %v1289 = vadd.s32 %v1264, 200
        %v1290 = vadd.s32 %v1264, 208
        %v1291 = vadd.s32 %v1264, 216
        %v1292 = vadd.s32 %v1264, 224
        %v1293 = vadd.s32 %v1264, 232
        %v1294 = vadd.s32 %v1264, 240
        %v1295 = vadd.s32 %v1264, 248
        %v1296 = vstv %s1262
        %v1297 = vadd.s32 %v1296, %v1264
        %v1298 = vadd.s32 %v1296, %v1265
        %v1299 = vadd.s32 %v1296, %v1266
        %v1300 = vadd.s32 %v1296, %v1267
        %v1301 = vadd.s32 %v1296, %v1268
        %v1302 = vadd.s32 %v1296, %v1269
        %v1303 = vadd.s32 %v1296, %v1270
        %v1304 = vadd.s32 %v1296, %v1271
        %v1305 = vadd.s32 %v1296, %v1272
        %v1306 = vadd.s32 %v1296, %v1273
        %v1307 = vadd.s32 %v1296, %v1274
        %v1308 = vadd.s32 %v1296, %v1275
        %v1309 = vadd.s32 %v1296, %v1276
        %v1310 = vadd.s32 %v1296, %v1277
        %v1311 = vadd.s32 %v1296, %v1278
        %v1312 = vadd.s32 %v1296, %v1279
        %v1313 = vadd.s32 %v1296, %v1280
        %v1314 = vadd.s32 %v1296, %v1281
        %v1315 = vadd.s32 %v1296, %v1282
        %v1316 = vadd.s32 %v1296, %v1283
        %v1317 = vadd.s32 %v1296, %v1284
        %v1318 = vadd.s32 %v1296, %v1285
        %v1319 = vadd.s32 %v1296, %v1286
        %v1320 = vadd.s32 %v1296, %v1287
        %v1321 = vadd.s32 %v1296, %v1288
        %v1322 = vadd.s32 %v1296, %v1289
        %v1323 = vadd.s32 %v1296, %v1290
        %v1324 = vadd.s32 %v1296, %v1291
        %v1325 = vadd.s32 %v1296, %v1292
        %v1326 = vadd.s32 %v1296, %v1293
        %v1327 = vadd.s32 %v1296, %v1294
        %v1328 = vadd.s32 %v1296, %v1295
        %vm1329 = vcmp.lt.s32.totalorder %v1297, 512
        %vm1330 = vcmp.lt.s32.totalorder %v1298, 512
        %vm1331 = vcmp.lt.s32.totalorder %v1299, 512
        %vm1332 = vcmp.lt.s32.totalorder %v1300, 512
        %vm1333 = vcmp.lt.s32.totalorder %v1301, 512
        %vm1334 = vcmp.lt.s32.totalorder %v1302, 512
        %vm1335 = vcmp.lt.s32.totalorder %v1303, 512
        %vm1336 = vcmp.lt.s32.totalorder %v1304, 512
        %vm1337 = vcmp.lt.s32.totalorder %v1305, 512
        %vm1338 = vcmp.lt.s32.totalorder %v1306, 512
        %vm1339 = vcmp.lt.s32.totalorder %v1307, 512
        %vm1340 = vcmp.lt.s32.totalorder %v1308, 512
        %vm1341 = vcmp.lt.s32.totalorder %v1309, 512
        %vm1342 = vcmp.lt.s32.totalorder %v1310, 512
        %vm1343 = vcmp.lt.s32.totalorder %v1311, 512
        %vm1344 = vcmp.lt.s32.totalorder %v1312, 512
        %vm1345 = vcmp.lt.s32.totalorder %v1313, 512
        %vm1346 = vcmp.lt.s32.totalorder %v1314, 512
        %vm1347 = vcmp.lt.s32.totalorder %v1315, 512
        %vm1348 = vcmp.lt.s32.totalorder %v1316, 512
        %vm1349 = vcmp.lt.s32.totalorder %v1317, 512
        %vm1350 = vcmp.lt.s32.totalorder %v1318, 512
        %vm1351 = vcmp.lt.s32.totalorder %v1319, 512
        %vm1352 = vcmp.lt.s32.totalorder %v1320, 512
        %vm1353 = vcmp.lt.s32.totalorder %v1321, 512
        %vm1354 = vcmp.lt.s32.totalorder %v1322, 512
        %vm1355 = vcmp.lt.s32.totalorder %v1323, 512
        %vm1356 = vcmp.lt.s32.totalorder %v1324, 512
        %vm1357 = vcmp.lt.s32.totalorder %v1325, 512
        %vm1358 = vcmp.lt.s32.totalorder %v1326, 512
        %vm1359 = vcmp.lt.s32.totalorder %v1327, 512
        %vm1360 = vcmp.lt.s32.totalorder %v1328, 512
        %v1361 = vsel %vm1329, 1, 0
        %v1362 = vsel %vm1330, 1, 0
        %v1363 = vsel %vm1331, 1, 0
        %v1364 = vsel %vm1332, 1, 0
        %v1365 = vsel %vm1333, 1, 0
        %v1366 = vsel %vm1334, 1, 0
        %v1367 = vsel %vm1335, 1, 0
        %v1368 = vsel %vm1336, 1, 0
        %v1369 = vsel %vm1337, 1, 0
        %v1370 = vsel %vm1338, 1, 0
        %v1371 = vsel %vm1339, 1, 0
        %v1372 = vsel %vm1340, 1, 0
        %v1373 = vsel %vm1341, 1, 0
        %v1374 = vsel %vm1342, 1, 0
        %v1375 = vsel %vm1343, 1, 0
        %v1376 = vsel %vm1344, 1, 0
        %v1377 = vsel %vm1345, 1, 0
        %v1378 = vsel %vm1346, 1, 0
        %v1379 = vsel %vm1347, 1, 0
        %v1380 = vsel %vm1348, 1, 0
        %v1381 = vsel %vm1349, 1, 0
        %v1382 = vsel %vm1350, 1, 0
        %v1383 = vsel %vm1351, 1, 0
        %v1384 = vsel %vm1352, 1, 0
        %v1385 = vsel %vm1353, 1, 0
        %v1386 = vsel %vm1354, 1, 0
        %v1387 = vsel %vm1355, 1, 0
        %v1388 = vsel %vm1356, 1, 0
        %v1389 = vsel %vm1357, 1, 0
        %v1390 = vsel %vm1358, 1, 0
        %v1391 = vsel %vm1359, 1, 0
        %v1392 = vsel %vm1360, 1, 0
        %v1393 = vcvt.s32.f32 %v1361
        %v1394 = vcvt.s32.f32 %v1362
        %v1395 = vcvt.s32.f32 %v1363
        %v1396 = vcvt.s32.f32 %v1364
        %v1397 = vcvt.s32.f32 %v1365
        %v1398 = vcvt.s32.f32 %v1366
        %v1399 = vcvt.s32.f32 %v1367
        %v1400 = vcvt.s32.f32 %v1368
        %v1401 = vcvt.s32.f32 %v1369
        %v1402 = vcvt.s32.f32 %v1370
        %v1403 = vcvt.s32.f32 %v1371
        %v1404 = vcvt.s32.f32 %v1372
        %v1405 = vcvt.s32.f32 %v1373
        %v1406 = vcvt.s32.f32 %v1374
        %v1407 = vcvt.s32.f32 %v1375
        %v1408 = vcvt.s32.f32 %v1376
        %v1409 = vcvt.s32.f32 %v1377
        %v1410 = vcvt.s32.f32 %v1378
        %v1411 = vcvt.s32.f32 %v1379
        %v1412 = vcvt.s32.f32 %v1380
        %v1413 = vcvt.s32.f32 %v1381
        %v1414 = vcvt.s32.f32 %v1382
        %v1415 = vcvt.s32.f32 %v1383
        %v1416 = vcvt.s32.f32 %v1384
        %v1417 = vcvt.s32.f32 %v1385
        %v1418 = vcvt.s32.f32 %v1386
        %v1419 = vcvt.s32.f32 %v1387
        %v1420 = vcvt.s32.f32 %v1388
        %v1421 = vcvt.s32.f32 %v1389
        %v1422 = vcvt.s32.f32 %v1390
        %v1423 = vcvt.s32.f32 %v1391
        %v1424 = vcvt.s32.f32 %v1392
        %v1425 = vmul.f32 %v1197, %v1393
        %v1426 = vmul.f32 %v1198, %v1394
        %v1427 = vmul.f32 %v1199, %v1395
        %v1428 = vmul.f32 %v1200, %v1396
        %v1429 = vmul.f32 %v1201, %v1397
        %v1430 = vmul.f32 %v1202, %v1398
        %v1431 = vmul.f32 %v1203, %v1399
        %v1432 = vmul.f32 %v1204, %v1400
        %v1433 = vmul.f32 %v1205, %v1401
        %v1434 = vmul.f32 %v1206, %v1402
        %v1435 = vmul.f32 %v1207, %v1403
        %v1436 = vmul.f32 %v1208, %v1404
        %v1437 = vmul.f32 %v1209, %v1405
        %v1438 = vmul.f32 %v1210, %v1406
        %v1439 = vmul.f32 %v1211, %v1407
        %v1440 = vmul.f32 %v1212, %v1408
        %v1441 = vmul.f32 %v1213, %v1409
        %v1442 = vmul.f32 %v1214, %v1410
        %v1443 = vmul.f32 %v1215, %v1411
        %v1444 = vmul.f32 %v1216, %v1412
        %v1445 = vmul.f32 %v1217, %v1413
        %v1446 = vmul.f32 %v1218, %v1414
        %v1447 = vmul.f32 %v1219, %v1415
        %v1448 = vmul.f32 %v1220, %v1416
        %v1449 = vmul.f32 %v1221, %v1417
        %v1450 = vmul.f32 %v1222, %v1418
        %v1451 = vmul.f32 %v1223, %v1419
        %v1452 = vmul.f32 %v1224, %v1420
        %v1453 = vmul.f32 %v1225, %v1421
        %v1454 = vmul.f32 %v1226, %v1422
        %v1455 = vmul.f32 %v1227, %v1423
        %v1456 = vmul.f32 %v1228, %v1424
        %v1457 = vsel %vm1229, %v1425, 0.0
        %v1458 = vsel %vm1229, %v1426, 0.0
        %v1459 = vadd.f32 %v1457, %v1458
        %v1460 = vsel %vm1229, %v1427, 0.0
        %v1461 = vadd.f32 %v1459, %v1460
        %v1462 = vsel %vm1229, %v1428, 0.0
        %v1463 = vadd.f32 %v1461, %v1462
        %v1464 = vsel %vm1229, %v1429, 0.0
        %v1465 = vadd.f32 %v1463, %v1464
        %v1466 = vsel %vm1229, %v1430, 0.0
        %v1467 = vadd.f32 %v1465, %v1466
        %v1468 = vsel %vm1229, %v1431, 0.0
        %v1469 = vadd.f32 %v1467, %v1468
        %v1470 = vsel %vm1229, %v1432, 0.0
        %v1471 = vadd.f32 %v1469, %v1470
        %v1472 = vsel %vm1229, %v1433, 0.0
        %v1473 = vadd.f32 %v1471, %v1472
        %v1474 = vsel %vm1229, %v1434, 0.0
        %v1475 = vadd.f32 %v1473, %v1474
        %v1476 = vsel %vm1229, %v1435, 0.0
        %v1477 = vadd.f32 %v1475, %v1476
        %v1478 = vsel %vm1229, %v1436, 0.0
        %v1479 = vadd.f32 %v1477, %v1478
        %v1480 = vsel %vm1229, %v1437, 0.0
        %v1481 = vadd.f32 %v1479, %v1480
        %v1482 = vsel %vm1229, %v1438, 0.0
        %v1483 = vadd.f32 %v1481, %v1482
        %v1484 = vsel %vm1229, %v1439, 0.0
        %v1485 = vadd.f32 %v1483, %v1484
        %v1486 = vsel %vm1229, %v1440, 0.0
        %v1487 = vadd.f32 %v1485, %v1486
        %v1488 = vsel %vm1229, %v1441, 0.0
        %v1489 = vadd.f32 %v1487, %v1488
        %v1490 = vsel %vm1229, %v1442, 0.0
        %v1491 = vadd.f32 %v1489, %v1490
        %v1492 = vsel %vm1229, %v1443, 0.0
        %v1493 = vadd.f32 %v1491, %v1492
        %v1494 = vsel %vm1229, %v1444, 0.0
        %v1495 = vadd.f32 %v1493, %v1494
        %v1496 = vsel %vm1229, %v1445, 0.0
        %v1497 = vadd.f32 %v1495, %v1496
        %v1498 = vsel %vm1229, %v1446, 0.0
        %v1499 = vadd.f32 %v1497, %v1498
        %v1500 = vsel %vm1229, %v1447, 0.0
        %v1501 = vadd.f32 %v1499, %v1500
        %v1502 = vsel %vm1229, %v1448, 0.0
        %v1503 = vadd.f32 %v1501, %v1502
        %v1504 = vsel %vm1229, %v1449, 0.0
        %v1505 = vadd.f32 %v1503, %v1504
        %v1506 = vsel %vm1229, %v1450, 0.0
        %v1507 = vadd.f32 %v1505, %v1506
        %v1508 = vsel %vm1229, %v1451, 0.0
        %v1509 = vadd.f32 %v1507, %v1508
        %v1510 = vsel %vm1229, %v1452, 0.0
        %v1511 = vadd.f32 %v1509, %v1510
        %v1512 = vsel %vm1229, %v1453, 0.0
        %v1513 = vadd.f32 %v1511, %v1512
        %v1514 = vsel %vm1229, %v1454, 0.0
        %v1515 = vadd.f32 %v1513, %v1514
        %v1516 = vsel %vm1229, %v1455, 0.0
        %v1517 = vadd.f32 %v1515, %v1516
        %v1518 = vsel %vm1229, %v1456, 0.0
        %v1519 = vadd.f32 %v1517, %v1518
        %v1520 = vrot.slane %v1519, 4
        %v1521 = vadd.f32 %v1519, %v1520
        %v1522 = vrot.slane %v1521, 2
        %v1523 = vadd.f32 %v1521, %v1522
        %v1524 = vrot.slane %v1523, 1
        %v1525 = vadd.f32 %v1523, %v1524
        %vm1526 = vcmask 16384
        %1527 = vst.msk [vmem:[%s230] sm:$0x1] %vm1526, %v1525
        %v1528 = vmul.f32 %v1425, %v1197
        %v1529 = vmul.f32 %v1426, %v1198
        %v1530 = vmul.f32 %v1427, %v1199
        %v1531 = vmul.f32 %v1428, %v1200
        %v1532 = vmul.f32 %v1429, %v1201
        %v1533 = vmul.f32 %v1430, %v1202
        %v1534 = vmul.f32 %v1431, %v1203
        %v1535 = vmul.f32 %v1432, %v1204
        %v1536 = vmul.f32 %v1433, %v1205
        %v1537 = vmul.f32 %v1434, %v1206
        %v1538 = vmul.f32 %v1435, %v1207
        %v1539 = vmul.f32 %v1436, %v1208
        %v1540 = vmul.f32 %v1437, %v1209
        %v1541 = vmul.f32 %v1438, %v1210
        %v1542 = vmul.f32 %v1439, %v1211
        %v1543 = vmul.f32 %v1440, %v1212
        %v1544 = vmul.f32 %v1441, %v1213
        %v1545 = vmul.f32 %v1442, %v1214
        %v1546 = vmul.f32 %v1443, %v1215
        %v1547 = vmul.f32 %v1444, %v1216
        %v1548 = vmul.f32 %v1445, %v1217
        %v1549 = vmul.f32 %v1446, %v1218
        %v1550 = vmul.f32 %v1447, %v1219
        %v1551 = vmul.f32 %v1448, %v1220
        %v1552 = vmul.f32 %v1449, %v1221
        %v1553 = vmul.f32 %v1450, %v1222
        %v1554 = vmul.f32 %v1451, %v1223
        %v1555 = vmul.f32 %v1452, %v1224
        %v1556 = vmul.f32 %v1453, %v1225
        %v1557 = vmul.f32 %v1454, %v1226
        %v1558 = vmul.f32 %v1455, %v1227
        %v1559 = vmul.f32 %v1456, %v1228
        %v1560 = vsel %vm1229, %v1528, 0.0
        %v1561 = vsel %vm1229, %v1529, 0.0
        %v1562 = vadd.f32 %v1560, %v1561
        %v1563 = vsel %vm1229, %v1530, 0.0
        %v1564 = vadd.f32 %v1562, %v1563
        %v1565 = vsel %vm1229, %v1531, 0.0
        %v1566 = vadd.f32 %v1564, %v1565
        %v1567 = vsel %vm1229, %v1532, 0.0
        %v1568 = vadd.f32 %v1566, %v1567
        %v1569 = vsel %vm1229, %v1533, 0.0
        %v1570 = vadd.f32 %v1568, %v1569
        %v1571 = vsel %vm1229, %v1534, 0.0
        %v1572 = vadd.f32 %v1570, %v1571
        %v1573 = vsel %vm1229, %v1535, 0.0
        %v1574 = vadd.f32 %v1572, %v1573
        %v1575 = vsel %vm1229, %v1536, 0.0
        %v1576 = vadd.f32 %v1574, %v1575
        %v1577 = vsel %vm1229, %v1537, 0.0
        %v1578 = vadd.f32 %v1576, %v1577
        %v1579 = vsel %vm1229, %v1538, 0.0
        %v1580 = vadd.f32 %v1578, %v1579
        %v1581 = vsel %vm1229, %v1539, 0.0
        %v1582 = vadd.f32 %v1580, %v1581
        %v1583 = vsel %vm1229, %v1540, 0.0
        %v1584 = vadd.f32 %v1582, %v1583
        %v1585 = vsel %vm1229, %v1541, 0.0
        %v1586 = vadd.f32 %v1584, %v1585
        %v1587 = vsel %vm1229, %v1542, 0.0
        %v1588 = vadd.f32 %v1586, %v1587
        %v1589 = vsel %vm1229, %v1543, 0.0
        %v1590 = vadd.f32 %v1588, %v1589
        %v1591 = vsel %vm1229, %v1544, 0.0
        %v1592 = vadd.f32 %v1590, %v1591
        %v1593 = vsel %vm1229, %v1545, 0.0
        %v1594 = vadd.f32 %v1592, %v1593
        %v1595 = vsel %vm1229, %v1546, 0.0
        %v1596 = vadd.f32 %v1594, %v1595
        %v1597 = vsel %vm1229, %v1547, 0.0
        %v1598 = vadd.f32 %v1596, %v1597
        %v1599 = vsel %vm1229, %v1548, 0.0
        %v1600 = vadd.f32 %v1598, %v1599
        %v1601 = vsel %vm1229, %v1549, 0.0
        %v1602 = vadd.f32 %v1600, %v1601
        %v1603 = vsel %vm1229, %v1550, 0.0
        %v1604 = vadd.f32 %v1602, %v1603
        %v1605 = vsel %vm1229, %v1551, 0.0
        %v1606 = vadd.f32 %v1604, %v1605
        %v1607 = vsel %vm1229, %v1552, 0.0
        %v1608 = vadd.f32 %v1606, %v1607
        %v1609 = vsel %vm1229, %v1553, 0.0
        %v1610 = vadd.f32 %v1608, %v1609
        %v1611 = vsel %vm1229, %v1554, 0.0
        %v1612 = vadd.f32 %v1610, %v1611
        %v1613 = vsel %vm1229, %v1555, 0.0
        %v1614 = vadd.f32 %v1612, %v1613
        %v1615 = vsel %vm1229, %v1556, 0.0
        %v1616 = vadd.f32 %v1614, %v1615
        %v1617 = vsel %vm1229, %v1557, 0.0
        %v1618 = vadd.f32 %v1616, %v1617
        %v1619 = vsel %vm1229, %v1558, 0.0
        %v1620 = vadd.f32 %v1618, %v1619
        %v1621 = vsel %vm1229, %v1559, 0.0
        %v1622 = vadd.f32 %v1620, %v1621
        %v1623 = vrot.slane %v1622, 4
        %v1624 = vadd.f32 %v1622, %v1623
        %v1625 = vrot.slane %v1624, 2
        %v1626 = vadd.f32 %v1624, %v1625
        %v1627 = vrot.slane %v1626, 1
        %v1628 = vadd.f32 %v1626, %v1627
        %1629 = vst.msk [vmem:[%s236] sm:$0x1] %vm1526, %v1628
        %s1630 = smul.u32 32, %s23
        %p1631 = scmp.lt.s32.totalorder %s1630, 63
        %s1632 = scalar_select %p1631, %s1630, 63
        %s1633 = smul.addr %s1632, 8
        %s1634 = scalar_lea.vmem %s3, %s1633
        %s1635 = sand.u32 %s125, 1
        %s1636 = scalar_lea.sflag [#allocation3], %s1635
        %s1637 = sand.u32 %s125, 1
        %s1638 = scalar_lea.vmem [#allocation2], %s1637
        %s1639 = sand.u32 %s151, 1
        %s1640 = scalar_lea.sflag [#allocation5], %s1639
        %s1641 = sand.u32 %s151, 1
        %s1642 = scalar_lea.vmem [#allocation4], %s1641
        // Predicated region
        $region33: #{local_enhancer_forward.59} parent=31 // pred_check
          %p1643 = pneg %p109
        $region34: #{local_enhancer_forward.59} parent=31 // pred_check_branch
          %1645 = sbr.rel (%p1643) target = $region36
        $region35: #{local_enhancer_forward.59} parent=31 // pred_region
          %s1646 = smul.u32 32, %s23
        $region36: #{local_enhancer_forward.59} parent=31 // pred_fallthru
          _
        // Predicated region
        $region37: #{local_enhancer_forward.59} parent=31 // pred_check
          %p1647 = pneg %p135
        $region38: #{local_enhancer_forward.59} parent=31 // pred_check_branch
          %1649 = sbr.rel (%p1647) target = $region40
        $region39: #{local_enhancer_forward.59} parent=31 // pred_region
          %s1651 = ssub.s32 16, 16
          %1652 = vsyncadd %s1636, %s1651
          %s1653 = smul.addr %s23, 16
          %s1654 = scalar_lea.hbm %s4, %s1653
          %s1656 = sshll.u32 %s1638, 4
          %s1657 = int_to_ptr.vmem [resolvable:$true] %s1656
          %1659 = dma.vmem_to_hbm [thread:$0]  %s1657, 16, %s1654, %s1636
        $region40: #{local_enhancer_forward.59} parent=31 // pred_fallthru
          _
        // Predicated region
        $region41: #{local_enhancer_forward.59} parent=31 // pred_check
          %p1660 = pneg %p161
        $region42: #{local_enhancer_forward.59} parent=31 // pred_check_branch
          %1662 = sbr.rel (%p1660) target = $region44
        $region43: #{local_enhancer_forward.59} parent=31 // pred_region
          %s1664 = ssub.s32 16, 16
          %1665 = vsyncadd %s1640, %s1664
          %s1666 = smul.addr %s23, 16
          %s1667 = scalar_lea.hbm %s5, %s1666
          %s1669 = sshll.u32 %s1642, 4
          %s1670 = int_to_ptr.vmem [resolvable:$true] %s1669
          %1672 = dma.vmem_to_hbm [thread:$0]  %s1670, 16, %s1667, %s1640
        $region44: #{local_enhancer_forward.59} parent=31 // pred_fallthru
          _
      $region32: #{local_enhancer_forward.59} parent=5 // pred_fallthru
        _
      %p1673 = scmp.le.s32.totalorder 2, %s18
      // Predicated region
      $region45: #{local_enhancer_forward.59} parent=5 // pred_check
        %p1674 = pneg %p1673
      $region46: #{local_enhancer_forward.59} parent=5 // pred_check_branch
        %1676 = sbr.rel (%p1674) target = $region48
      $region47: #{local_enhancer_forward.59} parent=5 // pred_region
        %s1677 = ssub.s32 %s18, 2
        // Predicated region
        $region49: #{local_enhancer_forward.59} parent=47 // pred_check
          %p1678 = pneg %p115
        $region50: #{local_enhancer_forward.59} parent=47 // pred_check_branch
          %1680 = sbr.rel (%p1678) target = $region52
        $region51: #{local_enhancer_forward.59} parent=47 // pred_region
          %s1681 = smul.u32 32, %s24
          %p1682 = scmp.lt.s32.totalorder %s1681, 63
          %s1683 = scalar_select %p1682, %s1681, 63
          %s1684 = smul.addr %s1683, 8
          %s1685 = scalar_lea.vmem %s3, %s1684
        $region52: #{local_enhancer_forward.59} parent=47 // pred_fallthru
          _
        // Predicated region
        $region53: #{local_enhancer_forward.59} parent=47 // pred_check
          %p1686 = pneg %p141
        $region54: #{local_enhancer_forward.59} parent=47 // pred_check_branch
          %1688 = sbr.rel (%p1686) target = $region56
        $region55: #{local_enhancer_forward.59} parent=47 // pred_region
          %s1689 = sand.u32 %s126, 1
          %s1690 = scalar_lea.sflag [#allocation3], %s1689
          %s1691 = sand.u32 %s126, 1
          %s1692 = scalar_lea.vmem [#allocation2], %s1691
          %1693 = dma.done %s1690, 16
        $region56: #{local_enhancer_forward.59} parent=47 // pred_fallthru
          _
        // Predicated region
        $region57: #{local_enhancer_forward.59} parent=47 // pred_check
          %p1694 = pneg %p167
        $region58: #{local_enhancer_forward.59} parent=47 // pred_check_branch
          %1696 = sbr.rel (%p1694) target = $region60
        $region59: #{local_enhancer_forward.59} parent=47 // pred_region
          %s1697 = sand.u32 %s152, 1
          %s1698 = scalar_lea.sflag [#allocation5], %s1697
          %s1699 = sand.u32 %s152, 1
          %s1700 = scalar_lea.vmem [#allocation4], %s1699
          %1701 = dma.done %s1698, 16
        $region60: #{local_enhancer_forward.59} parent=47 // pred_fallthru
          _
      $region48: #{local_enhancer_forward.59} parent=5 // pred_fallthru
        _
    $region6: #{local_enhancer_forward.59} parent=1 // loop_footer
      %s22 = sadd.s32 1, %s18
    $region7: #{local_enhancer_forward.59} parent=1 // loop_footer_branch
      %17 = sbr.rel target = $region3
    $region8: #{local_enhancer_forward.59} parent=1 // loop_exit
      _
    %1702 = vsyncpa [#allocation3], 1
    %s1703 = scalar_lea.sflag [#allocation3], 1
    %1704 = vsyncpa %s1703, 1
    %1705 = vsyncpa [#allocation5], 1
    %s1706 = scalar_lea.sflag [#allocation5], 1
    %1707 = vsyncpa %s1706, 1

</llo_original>
